<compile_context>
chip_gen: v7x
topology: tpu7x:2x2x1
jax: 0.10.0
libtpu: 0.0.40
codegen_flags: <defaults>
</compile_context>

<pallas_src>
import math

import jax
import jax.numpy as jnp
from jax.experimental import pallas as pl
from jax.experimental.pallas import tpu as pltpu


# ---------------------------------------------------------------------------
# In-kernel helpers
# ---------------------------------------------------------------------------

def _lstm_gates(gates, c, H):
    """gates: (B, 4H) pre-activations in PyTorch (i, f, g, o) order."""
    i = jax.nn.sigmoid(gates[:, 0 * H:1 * H])
    f = jax.nn.sigmoid(gates[:, 1 * H:2 * H])
    g = jnp.tanh(gates[:, 2 * H:3 * H])
    o = jax.nn.sigmoid(gates[:, 3 * H:4 * H])
    c_new = f * c + i * g
    return o * jnp.tanh(c_new), c_new


# ---------------------------------------------------------------------------
# Fused kernel: sLSTM scores -> x*scores -> eLSTM -> reparam -> dLSTM -> recons
# ---------------------------------------------------------------------------

def _summarizer_kernel(
    # ---- inputs
    x_ref, eps_ref,
    s_w_ih0f_ref, s_w_hh0f_ref, s_b0f_ref,
    s_w_ih0r_ref, s_w_hh0r_ref, s_b0r_ref,
    s_w_ih1f_ref, s_w_hh1f_ref, s_b1f_ref,
    s_w_ih1r_ref, s_w_hh1r_ref, s_b1r_ref,
    s_w_out_ref, s_b_out_ref,
    e_w_ih0_ref, e_w_hh0_ref, e_b0_ref,
    e_w_ih1_ref, e_w_hh1_ref, e_b1_ref,
    e_w_mu_ref, e_b_mu_ref, e_w_lv_ref, e_b_lv_ref,
    d_w0_ref, d_b0_ref, d_w1_ref, d_b1_ref,
    d_w_rec_ref, d_b_rec_ref,
    # ---- outputs
    x_hat_ref, h_mu_ref, h_lv_ref, scores_ref,
    # ---- scratch
    xpf_sc, xpr_sc, xpe_sc, h0cat_sc, he_sc,
):
    T, B, D = x_ref.shape
    sH = s_w_hh0f_ref.shape[0]
    eH = e_w_hh0_ref.shape[0]
    TB = T * B
    f32 = jnp.float32

    x2 = x_ref[...].reshape(TB, D)

    # ====================== sLSTM (bidirectional, 2 layers) =================
    # Layer 0: hoisted input projections, then fused fwd+rev recurrence.
    xpf_sc[...] = (jnp.dot(x2, s_w_ih0f_ref[...], preferred_element_type=f32)
                   + s_b0f_ref[...]).reshape(T, B, 4 * sH)
    xpr_sc[...] = (jnp.dot(x2, s_w_ih0r_ref[...], preferred_element_type=f32)
                   + s_b0r_ref[...]).reshape(T, B, 4 * sH)

    w_hh0f = s_w_hh0f_ref[...]          # hoist loop-invariant weight loads
    w_hh0r = s_w_hh0r_ref[...]
    zs = jnp.zeros((B, sH), f32)

    def l0_step(j, carry):
        hf, cf, hr, cr = carry
        tf = j
        tr = T - 1 - j
        gf = xpf_sc[tf] + jnp.dot(hf, w_hh0f, preferred_element_type=f32)
        gr = xpr_sc[tr] + jnp.dot(hr, w_hh0r, preferred_element_type=f32)
        hf, cf = _lstm_gates(gf, cf, sH)
        hr, cr = _lstm_gates(gr, cr, sH)
        # fwd hidden -> lanes [:sH], rev hidden -> lanes [sH:] of the shared
        # (T, B, 2*sH) scratch (128-lane aligned, dense stores, no concat).
        h0cat_sc[tf, :, pl.ds(0, sH)] = hf
        h0cat_sc[tr, :, pl.ds(sH, sH)] = hr
        return hf, cf, hr, cr

    jax.lax.fori_loop(0, T, l0_step, (zs, zs, zs, zs))

    # Layer 1: input is [h_fwd | h_rev], already laid out in h0cat_sc.
    h0cat = h0cat_sc[...].reshape(TB, 2 * sH)
    xpf_sc[...] = (jnp.dot(h0cat, s_w_ih1f_ref[...], preferred_element_type=f32)
                   + s_b1f_ref[...]).reshape(T, B, 4 * sH)
    xpr_sc[...] = (jnp.dot(h0cat, s_w_ih1r_ref[...], preferred_element_type=f32)
                   + s_b1r_ref[...]).reshape(T, B, 4 * sH)

    w_hh1f = s_w_hh1f_ref[...]
    w_hh1r = s_w_hh1r_ref[...]
    w_out_f = s_w_out_ref[:, pl.ds(0, sH)]       # (1, sH)
    w_out_r = s_w_out_ref[:, pl.ds(sH, sH)]      # (1, sH)

    # Score head (2H -> 1) folded into the recurrence: accumulate per-step
    # logits (VPU multiply + lane reduce) straight into the scores output.
    scores_ref[...] = jnp.zeros_like(scores_ref)

    def l1_step(j, carry):
        hf, cf, hr, cr = carry
        tf = j
        tr = T - 1 - j
        gf = xpf_sc[tf] + jnp.dot(hf, w_hh1f, preferred_element_type=f32)
        gr = xpr_sc[tr] + jnp.dot(hr, w_hh1r, preferred_element_type=f32)
        hf, cf = _lstm_gates(gf, cf, sH)
        hr, cr = _lstm_gates(gr, cr, sH)
        scores_ref[tf] += jnp.sum(hf * w_out_f, axis=-1, keepdims=True)
        scores_ref[tr] += jnp.sum(hr * w_out_r, axis=-1, keepdims=True)
        return hf, cf, hr, cr

    jax.lax.fori_loop(0, T, l1_step, (zs, zs, zs, zs))

    scores_ref[...] = jax.nn.sigmoid(scores_ref[...]
                                     + s_b_out_ref[...].reshape(1, 1, 1))

    # ====================== eLSTM (encoder, 2 layers) =======================
    # Frame weighting (x * scores) fused with the layer-0 input projection.
    xw = (x_ref[...] * scores_ref[...]).reshape(TB, D)
    xpe_sc[...] = (jnp.dot(xw, e_w_ih0_ref[...], preferred_element_type=f32)
                   + e_b0_ref[...]).reshape(T, B, 4 * eH)

    e_w_hh0 = e_w_hh0_ref[...]
    ze = jnp.zeros((B, eH), f32)

    def e0_step(j, carry):
        h, c = carry
        g = xpe_sc[j] + jnp.dot(h, e_w_hh0, preferred_element_type=f32)
        h, c = _lstm_gates(g, c, eH)
        he_sc[j] = h
        return h, c

    h0T, c0T = jax.lax.fori_loop(0, T, e0_step, (ze, ze))

    xpe_sc[...] = (jnp.dot(he_sc[...].reshape(TB, eH), e_w_ih1_ref[...],
                           preferred_element_type=f32)
                   + e_b1_ref[...]).reshape(T, B, 4 * eH)

    e_w_hh1 = e_w_hh1_ref[...]

    def e1_step(j, carry):
        h, c = carry
        g = xpe_sc[j] + jnp.dot(h, e_w_hh1, preferred_element_type=f32)
        return _lstm_gates(g, c, eH)

    h1T, c1T = jax.lax.fori_loop(0, T, e1_step, (ze, ze))

    # mu / logvar heads on the last hidden state of both layers.
    h_last = jnp.concatenate([h0T, h1T], axis=0)                    # (2B, eH)
    h_mu = (jnp.dot(h_last, e_w_mu_ref[...], preferred_element_type=f32)
            + e_b_mu_ref[...]).reshape(2, B, eH)
    h_lv = (jnp.dot(h_last, e_w_lv_ref[...], preferred_element_type=f32)
            + e_b_lv_ref[...]).reshape(2, B, eH)
    h_mu_ref[...] = h_mu
    h_lv_ref[...] = h_lv

    # ====================== reparameterize + dLSTM decode ===================
    h_init = h_mu + eps_ref[...] * jnp.exp(0.5 * h_lv)              # (2, B, eH)

    d_w0 = d_w0_ref[...]
    d_b0 = d_b0_ref[...]
    d_w1 = d_w1_ref[...]
    d_b1 = d_b1_ref[...]

    def d_step(j, carry):
        xprev, h1, c1, h2, c2 = carry
        g1 = jnp.dot(jnp.concatenate([xprev, h1], axis=-1), d_w0,
                     preferred_element_type=f32) + d_b0
        h1, c1 = _lstm_gates(g1, c1, eH)
        g2 = jnp.dot(jnp.concatenate([h1, h2], axis=-1), d_w1,
                     preferred_element_type=f32) + d_b1
        h2, c2 = _lstm_gates(g2, c2, eH)
        # he_sc is reused (its eLSTM layer-0 contents are already consumed);
        # store at the flipped index so torch.flip(dim=0) is free.
        he_sc[T - 1 - j] = h2
        return h2, h1, c1, h2, c2

    jax.lax.fori_loop(0, T, d_step, (ze, h_init[0], c0T, h_init[1], c1T))

    # Reconstruction head over all timesteps at once (already flipped order).
    x_hat = (jnp.dot(he_sc[...].reshape(TB, eH), d_w_rec_ref[...],
                     preferred_element_type=f32) + d_b_rec_ref[...])
    x_hat_ref[...] = x_hat.reshape(T, B, D)


# ---------------------------------------------------------------------------
# Wrapper
# ---------------------------------------------------------------------------

_WEIGHT_KEYS = (
    "s_w_ih_l0f", "s_w_hh_l0f", "s_b_l0f",
    "s_w_ih_l0r", "s_w_hh_l0r", "s_b_l0r",
    "s_w_ih_l1f", "s_w_hh_l1f", "s_b_l1f",
    "s_w_ih_l1r", "s_w_hh_l1r", "s_b_l1r",
    "s_w_out", "s_b_out",
    "e_w_ih_l0", "e_w_hh_l0", "e_b_l0",
    "e_w_ih_l1", "e_w_hh_l1", "e_b_l1",
    "e_w_mu", "e_b_mu", "e_w_logvar", "e_b_logvar",
    "d_w_l0", "d_b_l0", "d_w_l1", "d_b_l1",
    "d_w_rec", "d_b_rec",
)


def summarizer_forward(x, params, eps):
    """Summarizer.forward(x, uniform=False).

    x:   (T, B, D) float32
    eps: (2, B, edH) float32, the N(0,1) draw used in reparameterize()
    Returns: x_hat (T,B,D), (h_mu, h_logvar) each (2,B,edH), scores (T,B,1)
    """
    T, B, D = x.shape
    sH = params["s_w_hh_l0f"].shape[0]
    eH = params["e_w_hh_l0"].shape[0]
    f32 = jnp.float32

    args = (x, eps) + tuple(params[k] for k in _WEIGHT_KEYS)

    scratch_shapes = [
        pltpu.VMEM((T, B, 4 * sH), f32),   # xpf: sLSTM fwd input projections
        pltpu.VMEM((T, B, 4 * sH), f32),   # xpr: sLSTM rev input projections
        pltpu.VMEM((T, B, 4 * eH), f32),   # xpe: eLSTM input projections
        pltpu.VMEM((T, B, 2 * sH), f32),   # h0cat: sLSTM layer-0 [fwd|rev]
        pltpu.VMEM((T, B, eH), f32),       # he: eLSTM l0 out / decoder out
    ]

    # VMEM budget: inputs/outputs (x2 buffering margin) + scratch + slack,
    # never below the v6e/v7x default (32 MiB), never above v7x physical.
    in_elems = sum(int(math.prod(a.shape)) for a in args)
    out_elems = T * B * D + 2 * (2 * B * eH) + T * B
    scratch_elems = T * B * (4 * sH + 4 * sH + 4 * eH + 2 * sH + eH)
    vmem_limit = int(min(
        max(4 * (2 * (in_elems + out_elems) + scratch_elems) + (8 << 20),
            32 << 20),
        64 << 20))

    x_hat, h_mu, h_logvar, scores = pl.pallas_call(
        _summarizer_kernel,
        out_shape=(
            jax.ShapeDtypeStruct((T, B, D), f32),      # x_hat
            jax.ShapeDtypeStruct((2, B, eH), f32),     # h_mu
            jax.ShapeDtypeStruct((2, B, eH), f32),     # h_logvar
            jax.ShapeDtypeStruct((T, B, 1), f32),      # scores
        ),
        scratch_shapes=scratch_shapes,
        compiler_params=pltpu.CompilerParams(vmem_limit_bytes=vmem_limit),
    )(*args)

    return x_hat, (h_mu, h_logvar), scores


# ---------------------------------------------------------------------------
# Parameters (PyTorch-equivalent shapes, pre-transposed / pre-fused layout)
# ---------------------------------------------------------------------------

def init_params(key, input_size, s_hidden, ed_hidden):
    keys = iter(jax.random.split(key, 64))

    def u(shape, bound):
        return jax.random.uniform(next(keys), shape, jnp.float32, -bound, bound)

    def lstm_cell(in_size, H):
        k = 1.0 / (H ** 0.5)
        return (u((in_size, 4 * H), k),                 # W_ih^T
                u((H, 4 * H), k),                       # W_hh^T
                u((1, 4 * H), k) + u((1, 4 * H), k))    # b_ih + b_hh

    def fused_lstm_cell(in_size, H):
        # pre-fused [W_ih ; W_hh]^T -> (in_size + H, 4H)
        k = 1.0 / (H ** 0.5)
        return (u((in_size + H, 4 * H), k),
                u((1, 4 * H), k) + u((1, 4 * H), k))

    def linear(in_size, out_size):
        k = 1.0 / (in_size ** 0.5)
        return u((in_size, out_size), k), u((1, out_size), k)

    p = {}
    # sLSTM: 2-layer bidirectional
    p["s_w_ih_l0f"], p["s_w_hh_l0f"], p["s_b_l0f"] = lstm_cell(input_size, s_hidden)
    p["s_w_ih_l0r"], p["s_w_hh_l0r"], p["s_b_l0r"] = lstm_cell(input_size, s_hidden)
    p["s_w_ih_l1f"], p["s_w_hh_l1f"], p["s_b_l1f"] = lstm_cell(2 * s_hidden, s_hidden)
    p["s_w_ih_l1r"], p["s_w_hh_l1r"], p["s_b_l1r"] = lstm_cell(2 * s_hidden, s_hidden)
    k_out = 1.0 / ((2 * s_hidden) ** 0.5)
    p["s_w_out"] = u((1, 2 * s_hidden), k_out)          # row vector (VPU head)
    p["s_b_out"] = u((1, 1), k_out)
    # eLSTM: 2-layer unidirectional + mu/logvar heads
    p["e_w_ih_l0"], p["e_w_hh_l0"], p["e_b_l0"] = lstm_cell(input_size, ed_hidden)
    p["e_w_ih_l1"], p["e_w_hh_l1"], p["e_b_l1"] = lstm_cell(ed_hidden, ed_hidden)
    p["e_w_mu"], p["e_b_mu"] = linear(ed_hidden, ed_hidden)
    p["e_w_logvar"], p["e_b_logvar"] = linear(ed_hidden, ed_hidden)
    # dLSTM: 2-layer unidirectional (input size = hidden), pre-fused weights
    p["d_w_l0"], p["d_b_l0"] = fused_lstm_cell(ed_hidden, ed_hidden)
    p["d_w_l1"], p["d_b_l1"] = fused_lstm_cell(ed_hidden, ed_hidden)
    p["d_w_rec"], p["d_b_rec"] = linear(ed_hidden, input_size)
    return p


# ---------------------------------------------------------------------------
# Pure-JAX reference (same math, Python loops) for correctness checking
# ---------------------------------------------------------------------------

def _ref_lstm_layer(xs, w_ih, w_hh, b, reverse=False):
    T, B, _ = xs.shape
    H = w_hh.shape[0]
    h = jnp.zeros((B, H), jnp.float32)
    c = jnp.zeros((B, H), jnp.float32)
    outs = [None] * T
    order = range(T - 1, -1, -1) if reverse else range(T)
    for t in order:
        g = xs[t] @ w_ih + h @ w_hh + b
        i = jax.nn.sigmoid(g[:, 0 * H:1 * H])
        f = jax.nn.sigmoid(g[:, 1 * H:2 * H])
        gg = jnp.tanh(g[:, 2 * H:3 * H])
        o = jax.nn.sigmoid(g[:, 3 * H:4 * H])
        c = f * c + i * gg
        h = o * jnp.tanh(c)
        outs[t] = h
    return jnp.stack(outs, axis=0), (h, c)


def reference_forward(x, params, eps):
    T, B, D = x.shape
    sH = params["s_w_hh_l0f"].shape[0]
    eH = params["e_w_hh_l0"].shape[0]

    # sLSTM
    o0f, _ = _ref_lstm_layer(x, params["s_w_ih_l0f"], params["s_w_hh_l0f"], params["s_b_l0f"])
    o0r, _ = _ref_lstm_layer(x, params["s_w_ih_l0r"], params["s_w_hh_l0r"], params["s_b_l0r"], reverse=True)
    o0 = jnp.concatenate([o0f, o0r], axis=-1)
    o1f, _ = _ref_lstm_layer(o0, params["s_w_ih_l1f"], params["s_w_hh_l1f"], params["s_b_l1f"])
    o1r, _ = _ref_lstm_layer(o0, params["s_w_ih_l1r"], params["s_w_hh_l1r"], params["s_b_l1r"], reverse=True)
    o1 = jnp.concatenate([o1f, o1r], axis=-1)
    logits = (jnp.sum(o1 * params["s_w_out"].reshape(1, 1, 2 * sH), axis=-1, keepdims=True)
              + params["s_b_out"].reshape(1, 1, 1))
    scores = jax.nn.sigmoid(logits)

    # eLSTM
    xw = x * scores
    e0, (h0T, c0T) = _ref_lstm_layer(xw, params["e_w_ih_l0"], params["e_w_hh_l0"], params["e_b_l0"])
    _, (h1T, c1T) = _ref_lstm_layer(e0, params["e_w_ih_l1"], params["e_w_hh_l1"], params["e_b_l1"])
    h_last = jnp.stack([h0T, h1T], axis=0)
    c_last = jnp.stack([c0T, c1T], axis=0)
    h_mu = h_last @ params["e_w_mu"] + params["e_b_mu"]
    h_logvar = h_last @ params["e_w_logvar"] + params["e_b_logvar"]

    # reparameterize + dLSTM (fused [x|h] weights)
    h = h_mu + eps * jnp.exp(0.5 * h_logvar)

    def cell(inp, hh, cc, w, b):
        H = hh.shape[1]
        g = jnp.concatenate([inp, hh], axis=-1) @ w + b
        i = jax.nn.sigmoid(g[:, 0 * H:1 * H])
        f = jax.nn.sigmoid(g[:, 1 * H:2 * H])
        gg = jnp.tanh(g[:, 2 * H:3 * H])
        o = jax.nn.sigmoid(g[:, 3 * H:4 * H])
        cc = f * cc + i * gg
        return o * jnp.tanh(cc), cc

    x_dec = jnp.zeros((B, eH), jnp.float32)
    h1, c1 = h[0], c_last[0]
    h2, c2 = h[1], c_last[1]
    outs = []
    for _ in range(T):
        h1, c1 = cell(x_dec, h1, c1, params["d_w_l0"], params["d_b_l0"])
        h2, c2 = cell(h1, h2, c2, params["d_w_l1"], params["d_b_l1"])
        x_dec = h2
        outs.append(x_dec @ params["d_w_rec"] + params["d_b_rec"])
    x_hat = jnp.stack(outs, axis=0)[::-1]

    return x_hat, (h_mu, h_logvar), scores


if __name__ == "__main__":
    # Small, lane/sublane-aligned shapes (batch=8 sublanes, hidden=128 lanes).
    seq_len, batch = 8, 8
    input_size, s_hidden, ed_hidden = 256, 128, 128

    key = jax.random.PRNGKey(0)
    kx, kp, ke = jax.random.split(key, 3)
    x = jax.random.normal(kx, (seq_len, batch, input_size), jnp.float32)
    params = init_params(kp, input_size, s_hidden, ed_hidden)
    eps = jax.random.normal(ke, (2, batch, ed_hidden), jnp.float32)

    fwd = jax.jit(summarizer_forward)
    x_hat, (h_mu, h_logvar), scores = fwd(x, params, eps)
    jax.block_until_ready((x_hat, h_mu, h_logvar, scores))

    r_x_hat, (r_mu, r_lv), r_scores = reference_forward(x, params, eps)

    assert x_hat.shape == (seq_len, batch, input_size)
    assert h_mu.shape == (2, batch, ed_hidden)
    assert h_logvar.shape == (2, batch, ed_hidden)
    assert scores.shape == (seq_len, batch, 1)
    # Default (bf16-operand) MXU precision in the kernel -> loosened tolerance.
    assert jnp.allclose(scores, r_scores, atol=2e-2, rtol=2e-2)
    assert jnp.allclose(h_mu, r_mu, atol=2e-2, rtol=2e-2)
    assert jnp.allclose(h_logvar, r_lv, atol=2e-2, rtol=2e-2)
    assert jnp.allclose(x_hat, r_x_hat, atol=2e-2, rtol=2e-2)

    print("KERNEL_OK")
</pallas_src>

<mosaic_0001>
module attributes {stable_mosaic.version = 11 : i64} {
  func.func @_summarizer_kernel(%arg0: memref<8x8x256xf32, #tpu.memory_space<vmem>>, %arg1: memref<2x8x128xf32, #tpu.memory_space<vmem>>, %arg2: memref<256x512xf32, #tpu.memory_space<vmem>>, %arg3: memref<128x512xf32, #tpu.memory_space<vmem>>, %arg4: memref<1x512xf32, #tpu.memory_space<vmem>>, %arg5: memref<256x512xf32, #tpu.memory_space<vmem>>, %arg6: memref<128x512xf32, #tpu.memory_space<vmem>>, %arg7: memref<1x512xf32, #tpu.memory_space<vmem>>, %arg8: memref<256x512xf32, #tpu.memory_space<vmem>>, %arg9: memref<128x512xf32, #tpu.memory_space<vmem>>, %arg10: memref<1x512xf32, #tpu.memory_space<vmem>>, %arg11: memref<256x512xf32, #tpu.memory_space<vmem>>, %arg12: memref<128x512xf32, #tpu.memory_space<vmem>>, %arg13: memref<1x512xf32, #tpu.memory_space<vmem>>, %arg14: memref<1x256xf32, #tpu.memory_space<vmem>>, %arg15: memref<1x1xf32, #tpu.memory_space<vmem>>, %arg16: memref<256x512xf32, #tpu.memory_space<vmem>>, %arg17: memref<128x512xf32, #tpu.memory_space<vmem>>, %arg18: memref<1x512xf32, #tpu.memory_space<vmem>>, %arg19: memref<128x512xf32, #tpu.memory_space<vmem>>, %arg20: memref<128x512xf32, #tpu.memory_space<vmem>>, %arg21: memref<1x512xf32, #tpu.memory_space<vmem>>, %arg22: memref<128x128xf32, #tpu.memory_space<vmem>>, %arg23: memref<1x128xf32, #tpu.memory_space<vmem>>, %arg24: memref<128x128xf32, #tpu.memory_space<vmem>>, %arg25: memref<1x128xf32, #tpu.memory_space<vmem>>, %arg26: memref<256x512xf32, #tpu.memory_space<vmem>>, %arg27: memref<1x512xf32, #tpu.memory_space<vmem>>, %arg28: memref<256x512xf32, #tpu.memory_space<vmem>>, %arg29: memref<1x512xf32, #tpu.memory_space<vmem>>, %arg30: memref<128x256xf32, #tpu.memory_space<vmem>>, %arg31: memref<1x256xf32, #tpu.memory_space<vmem>>, %arg32: memref<8x8x256xf32, #tpu.memory_space<vmem>>, %arg33: memref<2x8x128xf32, #tpu.memory_space<vmem>>, %arg34: memref<2x8x128xf32, #tpu.memory_space<vmem>>, %arg35: memref<8x8x1xf32, #tpu.memory_space<vmem>>, %arg36: memref<8x8x512xf32, #tpu.memory_space<vmem>>, %arg37: memref<8x8x512xf32, #tpu.memory_space<vmem>>, %arg38: memref<8x8x512xf32, #tpu.memory_space<vmem>>, %arg39: memref<8x8x256xf32, #tpu.memory_space<vmem>>, %arg40: memref<8x8x128xf32, #tpu.memory_space<vmem>>) attributes {dimension_semantics = [], scalar_prefetch = 0 : i64, scratch_operands = 5 : i64, tpu.core_type = #tpu.core_type<tc>} {
    %c0 = arith.constant 0 : index
    %c0_0 = arith.constant 0 : index
    %c0_1 = arith.constant 0 : index
    %0 = vector.load %arg0[%c0, %c0_0, %c0_1] : memref<8x8x256xf32, #tpu.memory_space<vmem>>, vector<8x8x256xf32>
    %1 = vector.shape_cast %0 : vector<8x8x256xf32> to vector<64x256xf32>
    %c0_2 = arith.constant 0 : index
    %c0_3 = arith.constant 0 : index
    %2 = vector.load %arg2[%c0_2, %c0_3] : memref<256x512xf32, #tpu.memory_space<vmem>>, vector<256x512xf32>
    %cst = arith.constant dense<0.000000e+00> : vector<64x512xf32>
    %3 = tpu.matmul %1, %2, %cst {dimension_numbers = #tpu.dot_dimension_numbers<[1], [0], [0], [1], [0, 0, 1, 1], [], []>} : vector<64x256xf32>, vector<256x512xf32>, vector<64x512xf32> -> vector<64x512xf32>
    %c0_4 = arith.constant 0 : index
    %c0_5 = arith.constant 0 : index
    %4 = vector.load %arg4[%c0_4, %c0_5] : memref<1x512xf32, #tpu.memory_space<vmem>>, vector<1x512xf32>
    %5 = vector.broadcast %4 : vector<1x512xf32> to vector<64x512xf32>
    %6 = arith.addf %3, %5 : vector<64x512xf32>
    %7 = vector.shape_cast %6 : vector<64x512xf32> to vector<8x8x512xf32>
    %c0_6 = arith.constant 0 : index
    %c0_7 = arith.constant 0 : index
    %c0_8 = arith.constant 0 : index
    %8 = vector.load %arg36[%c0_6, %c0_7, %c0_8] : memref<8x8x512xf32, #tpu.memory_space<vmem>>, vector<8x8x512xf32>
    tpu.vector_store %arg36[%c0_6, %c0_7, %c0_8], %7 {strides = array<i32>} : memref<8x8x512xf32, #tpu.memory_space<vmem>>, vector<8x8x512xf32>,
    %c0_9 = arith.constant 0 : index
    %c0_10 = arith.constant 0 : index
    %9 = vector.load %arg5[%c0_9, %c0_10] : memref<256x512xf32, #tpu.memory_space<vmem>>, vector<256x512xf32>
    %cst_11 = arith.constant dense<0.000000e+00> : vector<64x512xf32>
    %10 = tpu.matmul %1, %9, %cst_11 {dimension_numbers = #tpu.dot_dimension_numbers<[1], [0], [0], [1], [0, 0, 1, 1], [], []>} : vector<64x256xf32>, vector<256x512xf32>, vector<64x512xf32> -> vector<64x512xf32>
    %c0_12 = arith.constant 0 : index
    %c0_13 = arith.constant 0 : index
    %11 = vector.load %arg7[%c0_12, %c0_13] : memref<1x512xf32, #tpu.memory_space<vmem>>, vector<1x512xf32>
    %12 = vector.broadcast %11 : vector<1x512xf32> to vector<64x512xf32>
    %13 = arith.addf %10, %12 : vector<64x512xf32>
    %14 = vector.shape_cast %13 : vector<64x512xf32> to vector<8x8x512xf32>
    %c0_14 = arith.constant 0 : index
    %c0_15 = arith.constant 0 : index
    %c0_16 = arith.constant 0 : index
    %15 = vector.load %arg37[%c0_14, %c0_15, %c0_16] : memref<8x8x512xf32, #tpu.memory_space<vmem>>, vector<8x8x512xf32>
    tpu.vector_store %arg37[%c0_14, %c0_15, %c0_16], %14 {strides = array<i32>} : memref<8x8x512xf32, #tpu.memory_space<vmem>>, vector<8x8x512xf32>,
    %c0_17 = arith.constant 0 : index
    %c0_18 = arith.constant 0 : index
    %16 = vector.load %arg3[%c0_17, %c0_18] : memref<128x512xf32, #tpu.memory_space<vmem>>, vector<128x512xf32>
    %c0_19 = arith.constant 0 : index
    %c0_20 = arith.constant 0 : index
    %17 = vector.load %arg6[%c0_19, %c0_20] : memref<128x512xf32, #tpu.memory_space<vmem>>, vector<128x512xf32>
    %cst_21 = arith.constant 0.000000e+00 : f32
    %18 = vector.broadcast %cst_21 : f32 to vector<8x128xf32>
    %c0_i32 = arith.constant 0 : i32
    %c8_i32 = arith.constant 8 : i32
    %19 = arith.addi %c0_i32, %c8_i32 : i32
    %c1_i32 = arith.constant 1 : i32
    %20:4 = scf.for %arg41 = %c0_i32 to %19 step %c1_i32 iter_args(%arg42 = %18, %arg43 = %18, %arg44 = %18, %arg45 = %18) -> (vector<8x128xf32>, vector<8x128xf32>, vector<8x128xf32>, vector<8x128xf32>)  : i32 {
      %c7_i32 = arith.constant 7 : i32
      %124 = arith.subi %c7_i32, %arg41 : i32
      %125 = arith.index_cast %arg41 : i32 to index
      %c0_147 = arith.constant 0 : index
      %c0_148 = arith.constant 0 : index
      %126 = vector.load %arg36[%125, %c0_147, %c0_148] : memref<8x8x512xf32, #tpu.memory_space<vmem>>, vector<1x8x512xf32>
      %127 = vector.shape_cast %126 : vector<1x8x512xf32> to vector<8x512xf32>
      %cst_149 = arith.constant dense<0.000000e+00> : vector<8x512xf32>
      %128 = tpu.matmul %arg42, %16, %cst_149 {dimension_numbers = #tpu.dot_dimension_numbers<[1], [0], [0], [1], [0, 0, 1, 1], [], []>} : vector<8x128xf32>, vector<128x512xf32>, vector<8x512xf32> -> vector<8x512xf32>
      %129 = arith.addf %127, %128 : vector<8x512xf32>
      %130 = arith.index_cast %124 : i32 to index
      %c0_150 = arith.constant 0 : index
      %c0_151 = arith.constant 0 : index
      %131 = vector.load %arg37[%130, %c0_150, %c0_151] : memref<8x8x512xf32, #tpu.memory_space<vmem>>, vector<1x8x512xf32>
      %132 = vector.shape_cast %131 : vector<1x8x512xf32> to vector<8x512xf32>
      %cst_152 = arith.constant dense<0.000000e+00> : vector<8x512xf32>
      %133 = tpu.matmul %arg44, %17, %cst_152 {dimension_numbers = #tpu.dot_dimension_numbers<[1], [0], [0], [1], [0, 0, 1, 1], [], []>} : vector<8x128xf32>, vector<128x512xf32>, vector<8x512xf32> -> vector<8x512xf32>
      %134 = arith.addf %132, %133 : vector<8x512xf32>
      %135 = vector.extract_strided_slice %129 {offsets = [0, 0], sizes = [8, 128], strides = [1, 1]} : vector<8x512xf32> to vector<8x128xf32>
      %136 = arith.negf %135 : vector<8x128xf32>
      %137 = math.exp %136 : vector<8x128xf32>
      %cst_153 = arith.constant 1.000000e+00 : f32
      %138 = vector.broadcast %cst_153 : f32 to vector<8x128xf32>
      %139 = arith.addf %138, %137 : vector<8x128xf32>
      %140 = arith.divf %138, %139 : vector<8x128xf32>
      %141 = vector.extract_strided_slice %129 {offsets = [0, 128], sizes = [8, 128], strides = [1, 1]} : vector<8x512xf32> to vector<8x128xf32>
      %142 = arith.negf %141 : vector<8x128xf32>
      %143 = math.exp %142 : vector<8x128xf32>
      %cst_154 = arith.constant 1.000000e+00 : f32
      %144 = vector.broadcast %cst_154 : f32 to vector<8x128xf32>
      %145 = arith.addf %144, %143 : vector<8x128xf32>
      %146 = arith.divf %144, %145 : vector<8x128xf32>
      %147 = vector.extract_strided_slice %129 {offsets = [0, 256], sizes = [8, 128], strides = [1, 1]} : vector<8x512xf32> to vector<8x128xf32>
      %148 = math.tanh %147 : vector<8x128xf32>
      %149 = vector.extract_strided_slice %129 {offsets = [0, 384], sizes = [8, 128], strides = [1, 1]} : vector<8x512xf32> to vector<8x128xf32>
      %150 = arith.negf %149 : vector<8x128xf32>
      %151 = math.exp %150 : vector<8x128xf32>
      %cst_155 = arith.constant 1.000000e+00 : f32
      %152 = vector.broadcast %cst_155 : f32 to vector<8x128xf32>
      %153 = arith.addf %152, %151 : vector<8x128xf32>
      %154 = arith.divf %152, %153 : vector<8x128xf32>
      %155 = arith.mulf %146, %arg43 : vector<8x128xf32>
      %156 = arith.mulf %140, %148 : vector<8x128xf32>
      %157 = arith.addf %155, %156 : vector<8x128xf32>
      %158 = math.tanh %157 : vector<8x128xf32>
      %159 = arith.mulf %154, %158 : vector<8x128xf32>
      %160 = vector.extract_strided_slice %134 {offsets = [0, 0], sizes = [8, 128], strides = [1, 1]} : vector<8x512xf32> to vector<8x128xf32>
      %161 = arith.negf %160 : vector<8x128xf32>
      %162 = math.exp %161 : vector<8x128xf32>
      %cst_156 = arith.constant 1.000000e+00 : f32
      %163 = vector.broadcast %cst_156 : f32 to vector<8x128xf32>
      %164 = arith.addf %163, %162 : vector<8x128xf32>
      %165 = arith.divf %163, %164 : vector<8x128xf32>
      %166 = vector.extract_strided_slice %134 {offsets = [0, 128], sizes = [8, 128], strides = [1, 1]} : vector<8x512xf32> to vector<8x128xf32>
      %167 = arith.negf %166 : vector<8x128xf32>
      %168 = math.exp %167 : vector<8x128xf32>
      %cst_157 = arith.constant 1.000000e+00 : f32
      %169 = vector.broadcast %cst_157 : f32 to vector<8x128xf32>
      %170 = arith.addf %169, %168 : vector<8x128xf32>
      %171 = arith.divf %169, %170 : vector<8x128xf32>
      %172 = vector.extract_strided_slice %134 {offsets = [0, 256], sizes = [8, 128], strides = [1, 1]} : vector<8x512xf32> to vector<8x128xf32>
      %173 = math.tanh %172 : vector<8x128xf32>
      %174 = vector.extract_strided_slice %134 {offsets = [0, 384], sizes = [8, 128], strides = [1, 1]} : vector<8x512xf32> to vector<8x128xf32>
      %175 = arith.negf %174 : vector<8x128xf32>
      %176 = math.exp %175 : vector<8x128xf32>
      %cst_158 = arith.constant 1.000000e+00 : f32
      %177 = vector.broadcast %cst_158 : f32 to vector<8x128xf32>
      %178 = arith.addf %177, %176 : vector<8x128xf32>
      %179 = arith.divf %177, %178 : vector<8x128xf32>
      %180 = arith.mulf %171, %arg45 : vector<8x128xf32>
      %181 = arith.mulf %165, %173 : vector<8x128xf32>
      %182 = arith.addf %180, %181 : vector<8x128xf32>
      %183 = math.tanh %182 : vector<8x128xf32>
      %184 = arith.mulf %179, %183 : vector<8x128xf32>
      %185 = arith.index_cast %arg41 : i32 to index
      %c0_159 = arith.constant 0 : index
      %c0_160 = arith.constant 0 : index
      %186 = vector.load %arg39[%185, %c0_159, %c0_160] : memref<8x8x256xf32, #tpu.memory_space<vmem>>, vector<1x8x128xf32>
      %187 = vector.shape_cast %186 : vector<1x8x128xf32> to vector<8x128xf32>
      %188 = vector.shape_cast %159 : vector<8x128xf32> to vector<1x8x128xf32>
      tpu.vector_store %arg39[%185, %c0_159, %c0_160], %188 {strides = array<i32>} : memref<8x8x256xf32, #tpu.memory_space<vmem>>, vector<1x8x128xf32>,
      %189 = arith.index_cast %124 : i32 to index
      %c0_161 = arith.constant 0 : index
      %c128_162 = arith.constant 128 : index
      %190 = vector.load %arg39[%189, %c0_161, %c128_162] : memref<8x8x256xf32, #tpu.memory_space<vmem>>, vector<1x8x128xf32>
      %191 = vector.shape_cast %190 : vector<1x8x128xf32> to vector<8x128xf32>
      %192 = vector.shape_cast %184 : vector<8x128xf32> to vector<1x8x128xf32>
      tpu.vector_store %arg39[%189, %c0_161, %c128_162], %192 {strides = array<i32>} : memref<8x8x256xf32, #tpu.memory_space<vmem>>, vector<1x8x128xf32>,
      scf.yield %159, %157, %184, %182 : vector<8x128xf32>, vector<8x128xf32>, vector<8x128xf32>, vector<8x128xf32>
    }
    %c8_i32_22 = arith.constant 8 : i32
    %c0_23 = arith.constant 0 : index
    %c0_24 = arith.constant 0 : index
    %c0_25 = arith.constant 0 : index
    %21 = vector.load %arg39[%c0_23, %c0_24, %c0_25] : memref<8x8x256xf32, #tpu.memory_space<vmem>>, vector<8x8x256xf32>
    %22 = vector.shape_cast %21 : vector<8x8x256xf32> to vector<64x256xf32>
    %c0_26 = arith.constant 0 : index
    %c0_27 = arith.constant 0 : index
    %23 = vector.load %arg8[%c0_26, %c0_27] : memref<256x512xf32, #tpu.memory_space<vmem>>, vector<256x512xf32>
    %cst_28 = arith.constant dense<0.000000e+00> : vector<64x512xf32>
    %24 = tpu.matmul %22, %23, %cst_28 {dimension_numbers = #tpu.dot_dimension_numbers<[1], [0], [0], [1], [0, 0, 1, 1], [], []>} : vector<64x256xf32>, vector<256x512xf32>, vector<64x512xf32> -> vector<64x512xf32>
    %c0_29 = arith.constant 0 : index
    %c0_30 = arith.constant 0 : index
    %25 = vector.load %arg10[%c0_29, %c0_30] : memref<1x512xf32, #tpu.memory_space<vmem>>, vector<1x512xf32>
    %26 = vector.broadcast %25 : vector<1x512xf32> to vector<64x512xf32>
    %27 = arith.addf %24, %26 : vector<64x512xf32>
    %28 = vector.shape_cast %27 : vector<64x512xf32> to vector<8x8x512xf32>
    %c0_31 = arith.constant 0 : index
    %c0_32 = arith.constant 0 : index
    %c0_33 = arith.constant 0 : index
    %29 = vector.load %arg36[%c0_31, %c0_32, %c0_33] : memref<8x8x512xf32, #tpu.memory_space<vmem>>, vector<8x8x512xf32>
    tpu.vector_store %arg36[%c0_31, %c0_32, %c0_33], %28 {strides = array<i32>} : memref<8x8x512xf32, #tpu.memory_space<vmem>>, vector<8x8x512xf32>,
    %c0_34 = arith.constant 0 : index
    %c0_35 = arith.constant 0 : index
    %30 = vector.load %arg11[%c0_34, %c0_35] : memref<256x512xf32, #tpu.memory_space<vmem>>, vector<256x512xf32>
    %cst_36 = arith.constant dense<0.000000e+00> : vector<64x512xf32>
    %31 = tpu.matmul %22, %30, %cst_36 {dimension_numbers = #tpu.dot_dimension_numbers<[1], [0], [0], [1], [0, 0, 1, 1], [], []>} : vector<64x256xf32>, vector<256x512xf32>, vector<64x512xf32> -> vector<64x512xf32>
    %c0_37 = arith.constant 0 : index
    %c0_38 = arith.constant 0 : index
    %32 = vector.load %arg13[%c0_37, %c0_38] : memref<1x512xf32, #tpu.memory_space<vmem>>, vector<1x512xf32>
    %33 = vector.broadcast %32 : vector<1x512xf32> to vector<64x512xf32>
    %34 = arith.addf %31, %33 : vector<64x512xf32>
    %35 = vector.shape_cast %34 : vector<64x512xf32> to vector<8x8x512xf32>
    %c0_39 = arith.constant 0 : index
    %c0_40 = arith.constant 0 : index
    %c0_41 = arith.constant 0 : index
    %36 = vector.load %arg37[%c0_39, %c0_40, %c0_41] : memref<8x8x512xf32, #tpu.memory_space<vmem>>, vector<8x8x512xf32>
    tpu.vector_store %arg37[%c0_39, %c0_40, %c0_41], %35 {strides = array<i32>} : memref<8x8x512xf32, #tpu.memory_space<vmem>>, vector<8x8x512xf32>,
    %c0_42 = arith.constant 0 : index
    %c0_43 = arith.constant 0 : index
    %37 = vector.load %arg9[%c0_42, %c0_43] : memref<128x512xf32, #tpu.memory_space<vmem>>, vector<128x512xf32>
    %c0_44 = arith.constant 0 : index
    %c0_45 = arith.constant 0 : index
    %38 = vector.load %arg12[%c0_44, %c0_45] : memref<128x512xf32, #tpu.memory_space<vmem>>, vector<128x512xf32>
    %c0_46 = arith.constant 0 : index
    %c0_47 = arith.constant 0 : index
    %39 = vector.load %arg14[%c0_46, %c0_47] : memref<1x256xf32, #tpu.memory_space<vmem>>, vector<1x128xf32>
    %c0_48 = arith.constant 0 : index
    %c128 = arith.constant 128 : index
    %40 = vector.load %arg14[%c0_48, %c128] : memref<1x256xf32, #tpu.memory_space<vmem>>, vector<1x128xf32>
    %cst_49 = arith.constant 0.000000e+00 : f32
    %41 = vector.broadcast %cst_49 : f32 to vector<8x8x1xf32>
    %c0_50 = arith.constant 0 : index
    %c0_51 = arith.constant 0 : index
    %c0_52 = arith.constant 0 : index
    %42 = vector.load %arg35[%c0_50, %c0_51, %c0_52] : memref<8x8x1xf32, #tpu.memory_space<vmem>>, vector<8x8x1xf32>
    tpu.vector_store %arg35[%c0_50, %c0_51, %c0_52], %41 {strides = array<i32>} : memref<8x8x1xf32, #tpu.memory_space<vmem>>, vector<8x8x1xf32>,
    %c0_i32_53 = arith.constant 0 : i32
    %c8_i32_54 = arith.constant 8 : i32
    %43 = arith.addi %c0_i32_53, %c8_i32_54 : i32
    %c1_i32_55 = arith.constant 1 : i32
    %44:4 = scf.for %arg41 = %c0_i32_53 to %43 step %c1_i32_55 iter_args(%arg42 = %18, %arg43 = %18, %arg44 = %18, %arg45 = %18) -> (vector<8x128xf32>, vector<8x128xf32>, vector<8x128xf32>, vector<8x128xf32>)  : i32 {
      %c7_i32 = arith.constant 7 : i32
      %124 = arith.subi %c7_i32, %arg41 : i32
      %125 = arith.index_cast %arg41 : i32 to index
      %c0_147 = arith.constant 0 : index
      %c0_148 = arith.constant 0 : index
      %126 = vector.load %arg36[%125, %c0_147, %c0_148] : memref<8x8x512xf32, #tpu.memory_space<vmem>>, vector<1x8x512xf32>
      %127 = vector.shape_cast %126 : vector<1x8x512xf32> to vector<8x512xf32>
      %cst_149 = arith.constant dense<0.000000e+00> : vector<8x512xf32>
      %128 = tpu.matmul %arg42, %37, %cst_149 {dimension_numbers = #tpu.dot_dimension_numbers<[1], [0], [0], [1], [0, 0, 1, 1], [], []>} : vector<8x128xf32>, vector<128x512xf32>, vector<8x512xf32> -> vector<8x512xf32>
      %129 = arith.addf %127, %128 : vector<8x512xf32>
      %130 = arith.index_cast %124 : i32 to index
      %c0_150 = arith.constant 0 : index
      %c0_151 = arith.constant 0 : index
      %131 = vector.load %arg37[%130, %c0_150, %c0_151] : memref<8x8x512xf32, #tpu.memory_space<vmem>>, vector<1x8x512xf32>
      %132 = vector.shape_cast %131 : vector<1x8x512xf32> to vector<8x512xf32>
      %cst_152 = arith.constant dense<0.000000e+00> : vector<8x512xf32>
      %133 = tpu.matmul %arg44, %38, %cst_152 {dimension_numbers = #tpu.dot_dimension_numbers<[1], [0], [0], [1], [0, 0, 1, 1], [], []>} : vector<8x128xf32>, vector<128x512xf32>, vector<8x512xf32> -> vector<8x512xf32>
      %134 = arith.addf %132, %133 : vector<8x512xf32>
      %135 = vector.extract_strided_slice %129 {offsets = [0, 0], sizes = [8, 128], strides = [1, 1]} : vector<8x512xf32> to vector<8x128xf32>
      %136 = arith.negf %135 : vector<8x128xf32>
      %137 = math.exp %136 : vector<8x128xf32>
      %cst_153 = arith.constant 1.000000e+00 : f32
      %138 = vector.broadcast %cst_153 : f32 to vector<8x128xf32>
      %139 = arith.addf %138, %137 : vector<8x128xf32>
      %140 = arith.divf %138, %139 : vector<8x128xf32>
      %141 = vector.extract_strided_slice %129 {offsets = [0, 128], sizes = [8, 128], strides = [1, 1]} : vector<8x512xf32> to vector<8x128xf32>
      %142 = arith.negf %141 : vector<8x128xf32>
      %143 = math.exp %142 : vector<8x128xf32>
      %cst_154 = arith.constant 1.000000e+00 : f32
      %144 = vector.broadcast %cst_154 : f32 to vector<8x128xf32>
      %145 = arith.addf %144, %143 : vector<8x128xf32>
      %146 = arith.divf %144, %145 : vector<8x128xf32>
      %147 = vector.extract_strided_slice %129 {offsets = [0, 256], sizes = [8, 128], strides = [1, 1]} : vector<8x512xf32> to vector<8x128xf32>
      %148 = math.tanh %147 : vector<8x128xf32>
      %149 = vector.extract_strided_slice %129 {offsets = [0, 384], sizes = [8, 128], strides = [1, 1]} : vector<8x512xf32> to vector<8x128xf32>
      %150 = arith.negf %149 : vector<8x128xf32>
      %151 = math.exp %150 : vector<8x128xf32>
      %cst_155 = arith.constant 1.000000e+00 : f32
      %152 = vector.broadcast %cst_155 : f32 to vector<8x128xf32>
      %153 = arith.addf %152, %151 : vector<8x128xf32>
      %154 = arith.divf %152, %153 : vector<8x128xf32>
      %155 = arith.mulf %146, %arg43 : vector<8x128xf32>
      %156 = arith.mulf %140, %148 : vector<8x128xf32>
      %157 = arith.addf %155, %156 : vector<8x128xf32>
      %158 = math.tanh %157 : vector<8x128xf32>
      %159 = arith.mulf %154, %158 : vector<8x128xf32>
      %160 = vector.extract_strided_slice %134 {offsets = [0, 0], sizes = [8, 128], strides = [1, 1]} : vector<8x512xf32> to vector<8x128xf32>
      %161 = arith.negf %160 : vector<8x128xf32>
      %162 = math.exp %161 : vector<8x128xf32>
      %cst_156 = arith.constant 1.000000e+00 : f32
      %163 = vector.broadcast %cst_156 : f32 to vector<8x128xf32>
      %164 = arith.addf %163, %162 : vector<8x128xf32>
      %165 = arith.divf %163, %164 : vector<8x128xf32>
      %166 = vector.extract_strided_slice %134 {offsets = [0, 128], sizes = [8, 128], strides = [1, 1]} : vector<8x512xf32> to vector<8x128xf32>
      %167 = arith.negf %166 : vector<8x128xf32>
      %168 = math.exp %167 : vector<8x128xf32>
      %cst_157 = arith.constant 1.000000e+00 : f32
      %169 = vector.broadcast %cst_157 : f32 to vector<8x128xf32>
      %170 = arith.addf %169, %168 : vector<8x128xf32>
      %171 = arith.divf %169, %170 : vector<8x128xf32>
      %172 = vector.extract_strided_slice %134 {offsets = [0, 256], sizes = [8, 128], strides = [1, 1]} : vector<8x512xf32> to vector<8x128xf32>
      %173 = math.tanh %172 : vector<8x128xf32>
      %174 = vector.extract_strided_slice %134 {offsets = [0, 384], sizes = [8, 128], strides = [1, 1]} : vector<8x512xf32> to vector<8x128xf32>
      %175 = arith.negf %174 : vector<8x128xf32>
      %176 = math.exp %175 : vector<8x128xf32>
      %cst_158 = arith.constant 1.000000e+00 : f32
      %177 = vector.broadcast %cst_158 : f32 to vector<8x128xf32>
      %178 = arith.addf %177, %176 : vector<8x128xf32>
      %179 = arith.divf %177, %178 : vector<8x128xf32>
      %180 = arith.mulf %171, %arg45 : vector<8x128xf32>
      %181 = arith.mulf %165, %173 : vector<8x128xf32>
      %182 = arith.addf %180, %181 : vector<8x128xf32>
      %183 = math.tanh %182 : vector<8x128xf32>
      %184 = arith.mulf %179, %183 : vector<8x128xf32>
      %185 = arith.index_cast %arg41 : i32 to index
      %c0_159 = arith.constant 0 : index
      %c0_160 = arith.constant 0 : index
      %186 = vector.load %arg35[%185, %c0_159, %c0_160] : memref<8x8x1xf32, #tpu.memory_space<vmem>>, vector<1x8x1xf32>
      %187 = vector.shape_cast %186 : vector<1x8x1xf32> to vector<8x1xf32>
      %188 = vector.broadcast %39 : vector<1x128xf32> to vector<8x128xf32>
      %189 = arith.mulf %159, %188 : vector<8x128xf32>
      %cst_161 = arith.constant dense<0.000000e+00> : vector<8xf32>
      %190 = vector.multi_reduction <add>, %189, %cst_161 [1] : vector<8x128xf32> to vector<8xf32>
      %191 = vector.shape_cast %190 : vector<8xf32> to vector<8x1xf32>
      %192 = arith.addf %187, %191 : vector<8x1xf32>
      %193 = arith.index_cast %arg41 : i32 to index
      %c0_162 = arith.constant 0 : index
      %c0_163 = arith.constant 0 : index
      %194 = vector.load %arg35[%193, %c0_162, %c0_163] : memref<8x8x1xf32, #tpu.memory_space<vmem>>, vector<1x8x1xf32>
      %195 = vector.shape_cast %194 : vector<1x8x1xf32> to vector<8x1xf32>
      %196 = vector.shape_cast %192 : vector<8x1xf32> to vector<1x8x1xf32>
      tpu.vector_store %arg35[%193, %c0_162, %c0_163], %196 {strides = array<i32>} : memref<8x8x1xf32, #tpu.memory_space<vmem>>, vector<1x8x1xf32>,
      %197 = arith.index_cast %124 : i32 to index
      %c0_164 = arith.constant 0 : index
      %c0_165 = arith.constant 0 : index
      %198 = vector.load %arg35[%197, %c0_164, %c0_165] : memref<8x8x1xf32, #tpu.memory_space<vmem>>, vector<1x8x1xf32>
      %199 = vector.shape_cast %198 : vector<1x8x1xf32> to vector<8x1xf32>
      %200 = vector.broadcast %40 : vector<1x128xf32> to vector<8x128xf32>
      %201 = arith.mulf %184, %200 : vector<8x128xf32>
      %cst_166 = arith.constant dense<0.000000e+00> : vector<8xf32>
      %202 = vector.multi_reduction <add>, %201, %cst_166 [1] : vector<8x128xf32> to vector<8xf32>
      %203 = vector.shape_cast %202 : vector<8xf32> to vector<8x1xf32>
      %204 = arith.addf %199, %203 : vector<8x1xf32>
      %205 = arith.index_cast %124 : i32 to index
      %c0_167 = arith.constant 0 : index
      %c0_168 = arith.constant 0 : index
      %206 = vector.load %arg35[%205, %c0_167, %c0_168] : memref<8x8x1xf32, #tpu.memory_space<vmem>>, vector<1x8x1xf32>
      %207 = vector.shape_cast %206 : vector<1x8x1xf32> to vector<8x1xf32>
      %208 = vector.shape_cast %204 : vector<8x1xf32> to vector<1x8x1xf32>
      tpu.vector_store %arg35[%205, %c0_167, %c0_168], %208 {strides = array<i32>} : memref<8x8x1xf32, #tpu.memory_space<vmem>>, vector<1x8x1xf32>,
      scf.yield %159, %157, %184, %182 : vector<8x128xf32>, vector<8x128xf32>, vector<8x128xf32>, vector<8x128xf32>
    }
    %c8_i32_56 = arith.constant 8 : i32
    %c0_57 = arith.constant 0 : index
    %c0_58 = arith.constant 0 : index
    %c0_59 = arith.constant 0 : index
    %45 = vector.load %arg35[%c0_57, %c0_58, %c0_59] : memref<8x8x1xf32, #tpu.memory_space<vmem>>, vector<8x8x1xf32>
    %c0_60 = arith.constant 0 : index
    %c0_61 = arith.constant 0 : index
    %46 = vector.load %arg15[%c0_60, %c0_61] : memref<1x1xf32, #tpu.memory_space<vmem>>, vector<1x1xf32>
    %47 = vector.shape_cast %46 : vector<1x1xf32> to vector<1x1x1xf32>
    %48 = vector.broadcast %47 : vector<1x1x1xf32> to vector<8x8x1xf32>
    %49 = arith.addf %45, %48 : vector<8x8x1xf32>
    %50 = arith.negf %49 : vector<8x8x1xf32>
    %51 = math.exp %50 : vector<8x8x1xf32>
    %cst_62 = arith.constant 1.000000e+00 : f32
    %52 = vector.broadcast %cst_62 : f32 to vector<8x8x1xf32>
    %53 = arith.addf %52, %51 : vector<8x8x1xf32>
    %54 = arith.divf %52, %53 : vector<8x8x1xf32>
    %c0_63 = arith.constant 0 : index
    %c0_64 = arith.constant 0 : index
    %c0_65 = arith.constant 0 : index
    %55 = vector.load %arg35[%c0_63, %c0_64, %c0_65] : memref<8x8x1xf32, #tpu.memory_space<vmem>>, vector<8x8x1xf32>
    tpu.vector_store %arg35[%c0_63, %c0_64, %c0_65], %54 {strides = array<i32>} : memref<8x8x1xf32, #tpu.memory_space<vmem>>, vector<8x8x1xf32>,
    %c0_66 = arith.constant 0 : index
    %c0_67 = arith.constant 0 : index
    %c0_68 = arith.constant 0 : index
    %56 = vector.load %arg0[%c0_66, %c0_67, %c0_68] : memref<8x8x256xf32, #tpu.memory_space<vmem>>, vector<8x8x256xf32>
    %c0_69 = arith.constant 0 : index
    %c0_70 = arith.constant 0 : index
    %c0_71 = arith.constant 0 : index
    %57 = vector.load %arg35[%c0_69, %c0_70, %c0_71] : memref<8x8x1xf32, #tpu.memory_space<vmem>>, vector<8x8x1xf32>
    %58 = vector.broadcast %57 : vector<8x8x1xf32> to vector<8x8x256xf32>
    %59 = arith.mulf %56, %58 : vector<8x8x256xf32>
    %60 = vector.shape_cast %59 : vector<8x8x256xf32> to vector<64x256xf32>
    %c0_72 = arith.constant 0 : index
    %c0_73 = arith.constant 0 : index
    %61 = vector.load %arg16[%c0_72, %c0_73] : memref<256x512xf32, #tpu.memory_space<vmem>>, vector<256x512xf32>
    %cst_74 = arith.constant dense<0.000000e+00> : vector<64x512xf32>
    %62 = tpu.matmul %60, %61, %cst_74 {dimension_numbers = #tpu.dot_dimension_numbers<[1], [0], [0], [1], [0, 0, 1, 1], [], []>} : vector<64x256xf32>, vector<256x512xf32>, vector<64x512xf32> -> vector<64x512xf32>
    %c0_75 = arith.constant 0 : index
    %c0_76 = arith.constant 0 : index
    %63 = vector.load %arg18[%c0_75, %c0_76] : memref<1x512xf32, #tpu.memory_space<vmem>>, vector<1x512xf32>
    %64 = vector.broadcast %63 : vector<1x512xf32> to vector<64x512xf32>
    %65 = arith.addf %62, %64 : vector<64x512xf32>
    %66 = vector.shape_cast %65 : vector<64x512xf32> to vector<8x8x512xf32>
    %c0_77 = arith.constant 0 : index
    %c0_78 = arith.constant 0 : index
    %c0_79 = arith.constant 0 : index
    %67 = vector.load %arg38[%c0_77, %c0_78, %c0_79] : memref<8x8x512xf32, #tpu.memory_space<vmem>>, vector<8x8x512xf32>
    tpu.vector_store %arg38[%c0_77, %c0_78, %c0_79], %66 {strides = array<i32>} : memref<8x8x512xf32, #tpu.memory_space<vmem>>, vector<8x8x512xf32>,
    %c0_80 = arith.constant 0 : index
    %c0_81 = arith.constant 0 : index
    %68 = vector.load %arg17[%c0_80, %c0_81] : memref<128x512xf32, #tpu.memory_space<vmem>>, vector<128x512xf32>
    %cst_82 = arith.constant 0.000000e+00 : f32
    %69 = vector.broadcast %cst_82 : f32 to vector<8x128xf32>
    %c0_i32_83 = arith.constant 0 : i32
    %c8_i32_84 = arith.constant 8 : i32
    %70 = arith.addi %c0_i32_83, %c8_i32_84 : i32
    %c1_i32_85 = arith.constant 1 : i32
    %71:2 = scf.for %arg41 = %c0_i32_83 to %70 step %c1_i32_85 iter_args(%arg42 = %69, %arg43 = %69) -> (vector<8x128xf32>, vector<8x128xf32>)  : i32 {
      %124 = arith.index_cast %arg41 : i32 to index
      %c0_147 = arith.constant 0 : index
      %c0_148 = arith.constant 0 : index
      %125 = vector.load %arg38[%124, %c0_147, %c0_148] : memref<8x8x512xf32, #tpu.memory_space<vmem>>, vector<1x8x512xf32>
      %126 = vector.shape_cast %125 : vector<1x8x512xf32> to vector<8x512xf32>
      %cst_149 = arith.constant dense<0.000000e+00> : vector<8x512xf32>
      %127 = tpu.matmul %arg42, %68, %cst_149 {dimension_numbers = #tpu.dot_dimension_numbers<[1], [0], [0], [1], [0, 0, 1, 1], [], []>} : vector<8x128xf32>, vector<128x512xf32>, vector<8x512xf32> -> vector<8x512xf32>
      %128 = arith.addf %126, %127 : vector<8x512xf32>
      %129 = vector.extract_strided_slice %128 {offsets = [0, 0], sizes = [8, 128], strides = [1, 1]} : vector<8x512xf32> to vector<8x128xf32>
      %130 = arith.negf %129 : vector<8x128xf32>
      %131 = math.exp %130 : vector<8x128xf32>
      %cst_150 = arith.constant 1.000000e+00 : f32
      %132 = vector.broadcast %cst_150 : f32 to vector<8x128xf32>
      %133 = arith.addf %132, %131 : vector<8x128xf32>
      %134 = arith.divf %132, %133 : vector<8x128xf32>
      %135 = vector.extract_strided_slice %128 {offsets = [0, 128], sizes = [8, 128], strides = [1, 1]} : vector<8x512xf32> to vector<8x128xf32>
      %136 = arith.negf %135 : vector<8x128xf32>
      %137 = math.exp %136 : vector<8x128xf32>
      %cst_151 = arith.constant 1.000000e+00 : f32
      %138 = vector.broadcast %cst_151 : f32 to vector<8x128xf32>
      %139 = arith.addf %138, %137 : vector<8x128xf32>
      %140 = arith.divf %138, %139 : vector<8x128xf32>
      %141 = vector.extract_strided_slice %128 {offsets = [0, 256], sizes = [8, 128], strides = [1, 1]} : vector<8x512xf32> to vector<8x128xf32>
      %142 = math.tanh %141 : vector<8x128xf32>
      %143 = vector.extract_strided_slice %128 {offsets = [0, 384], sizes = [8, 128], strides = [1, 1]} : vector<8x512xf32> to vector<8x128xf32>
      %144 = arith.negf %143 : vector<8x128xf32>
      %145 = math.exp %144 : vector<8x128xf32>
      %cst_152 = arith.constant 1.000000e+00 : f32
      %146 = vector.broadcast %cst_152 : f32 to vector<8x128xf32>
      %147 = arith.addf %146, %145 : vector<8x128xf32>
      %148 = arith.divf %146, %147 : vector<8x128xf32>
      %149 = arith.mulf %140, %arg43 : vector<8x128xf32>
      %150 = arith.mulf %134, %142 : vector<8x128xf32>
      %151 = arith.addf %149, %150 : vector<8x128xf32>
      %152 = math.tanh %151 : vector<8x128xf32>
      %153 = arith.mulf %148, %152 : vector<8x128xf32>
      %154 = arith.index_cast %arg41 : i32 to index
      %c0_153 = arith.constant 0 : index
      %c0_154 = arith.constant 0 : index
      %155 = vector.load %arg40[%154, %c0_153, %c0_154] : memref<8x8x128xf32, #tpu.memory_space<vmem>>, vector<1x8x128xf32>
      %156 = vector.shape_cast %155 : vector<1x8x128xf32> to vector<8x128xf32>
      %157 = vector.shape_cast %153 : vector<8x128xf32> to vector<1x8x128xf32>
      tpu.vector_store %arg40[%154, %c0_153, %c0_154], %157 {strides = array<i32>} : memref<8x8x128xf32, #tpu.memory_space<vmem>>, vector<1x8x128xf32>,
      scf.yield %153, %151 : vector<8x128xf32>, vector<8x128xf32>
    }
    %c8_i32_86 = arith.constant 8 : i32
    %c0_87 = arith.constant 0 : index
    %c0_88 = arith.constant 0 : index
    %c0_89 = arith.constant 0 : index
    %72 = vector.load %arg40[%c0_87, %c0_88, %c0_89] : memref<8x8x128xf32, #tpu.memory_space<vmem>>, vector<8x8x128xf32>
    %73 = vector.shape_cast %72 : vector<8x8x128xf32> to vector<64x128xf32>
    %c0_90 = arith.constant 0 : index
    %c0_91 = arith.constant 0 : index
    %74 = vector.load %arg19[%c0_90, %c0_91] : memref<128x512xf32, #tpu.memory_space<vmem>>, vector<128x512xf32>
    %cst_92 = arith.constant dense<0.000000e+00> : vector<64x512xf32>
    %75 = tpu.matmul %73, %74, %cst_92 {dimension_numbers = #tpu.dot_dimension_numbers<[1], [0], [0], [1], [0, 0, 1, 1], [], []>} : vector<64x128xf32>, vector<128x512xf32>, vector<64x512xf32> -> vector<64x512xf32>
    %c0_93 = arith.constant 0 : index
    %c0_94 = arith.constant 0 : index
    %76 = vector.load %arg21[%c0_93, %c0_94] : memref<1x512xf32, #tpu.memory_space<vmem>>, vector<1x512xf32>
    %77 = vector.broadcast %76 : vector<1x512xf32> to vector<64x512xf32>
    %78 = arith.addf %75, %77 : vector<64x512xf32>
    %79 = vector.shape_cast %78 : vector<64x512xf32> to vector<8x8x512xf32>
    %c0_95 = arith.constant 0 : index
    %c0_96 = arith.constant 0 : index
    %c0_97 = arith.constant 0 : index
    %80 = vector.load %arg38[%c0_95, %c0_96, %c0_97] : memref<8x8x512xf32, #tpu.memory_space<vmem>>, vector<8x8x512xf32>
    tpu.vector_store %arg38[%c0_95, %c0_96, %c0_97], %79 {strides = array<i32>} : memref<8x8x512xf32, #tpu.memory_space<vmem>>, vector<8x8x512xf32>,
    %c0_98 = arith.constant 0 : index
    %c0_99 = arith.constant 0 : index
    %81 = vector.load %arg20[%c0_98, %c0_99] : memref<128x512xf32, #tpu.memory_space<vmem>>, vector<128x512xf32>
    %c0_i32_100 = arith.constant 0 : i32
    %c8_i32_101 = arith.constant 8 : i32
    %82 = arith.addi %c0_i32_100, %c8_i32_101 : i32
    %c1_i32_102 = arith.constant 1 : i32
    %83:2 = scf.for %arg41 = %c0_i32_100 to %82 step %c1_i32_102 iter_args(%arg42 = %69, %arg43 = %69) -> (vector<8x128xf32>, vector<8x128xf32>)  : i32 {
      %124 = arith.index_cast %arg41 : i32 to index
      %c0_147 = arith.constant 0 : index
      %c0_148 = arith.constant 0 : index
      %125 = vector.load %arg38[%124, %c0_147, %c0_148] : memref<8x8x512xf32, #tpu.memory_space<vmem>>, vector<1x8x512xf32>
      %126 = vector.shape_cast %125 : vector<1x8x512xf32> to vector<8x512xf32>
      %cst_149 = arith.constant dense<0.000000e+00> : vector<8x512xf32>
      %127 = tpu.matmul %arg42, %81, %cst_149 {dimension_numbers = #tpu.dot_dimension_numbers<[1], [0], [0], [1], [0, 0, 1, 1], [], []>} : vector<8x128xf32>, vector<128x512xf32>, vector<8x512xf32> -> vector<8x512xf32>
      %128 = arith.addf %126, %127 : vector<8x512xf32>
      %129 = vector.extract_strided_slice %128 {offsets = [0, 0], sizes = [8, 128], strides = [1, 1]} : vector<8x512xf32> to vector<8x128xf32>
      %130 = arith.negf %129 : vector<8x128xf32>
      %131 = math.exp %130 : vector<8x128xf32>
      %cst_150 = arith.constant 1.000000e+00 : f32
      %132 = vector.broadcast %cst_150 : f32 to vector<8x128xf32>
      %133 = arith.addf %132, %131 : vector<8x128xf32>
      %134 = arith.divf %132, %133 : vector<8x128xf32>
      %135 = vector.extract_strided_slice %128 {offsets = [0, 128], sizes = [8, 128], strides = [1, 1]} : vector<8x512xf32> to vector<8x128xf32>
      %136 = arith.negf %135 : vector<8x128xf32>
      %137 = math.exp %136 : vector<8x128xf32>
      %cst_151 = arith.constant 1.000000e+00 : f32
      %138 = vector.broadcast %cst_151 : f32 to vector<8x128xf32>
      %139 = arith.addf %138, %137 : vector<8x128xf32>
      %140 = arith.divf %138, %139 : vector<8x128xf32>
      %141 = vector.extract_strided_slice %128 {offsets = [0, 256], sizes = [8, 128], strides = [1, 1]} : vector<8x512xf32> to vector<8x128xf32>
      %142 = math.tanh %141 : vector<8x128xf32>
      %143 = vector.extract_strided_slice %128 {offsets = [0, 384], sizes = [8, 128], strides = [1, 1]} : vector<8x512xf32> to vector<8x128xf32>
      %144 = arith.negf %143 : vector<8x128xf32>
      %145 = math.exp %144 : vector<8x128xf32>
      %cst_152 = arith.constant 1.000000e+00 : f32
      %146 = vector.broadcast %cst_152 : f32 to vector<8x128xf32>
      %147 = arith.addf %146, %145 : vector<8x128xf32>
      %148 = arith.divf %146, %147 : vector<8x128xf32>
      %149 = arith.mulf %140, %arg43 : vector<8x128xf32>
      %150 = arith.mulf %134, %142 : vector<8x128xf32>
      %151 = arith.addf %149, %150 : vector<8x128xf32>
      %152 = math.tanh %151 : vector<8x128xf32>
      %153 = arith.mulf %148, %152 : vector<8x128xf32>
      scf.yield %153, %151 : vector<8x128xf32>, vector<8x128xf32>
    }
    %c8_i32_103 = arith.constant 8 : i32
    %84 = tpu.concatenate %71#0, %83#0 in 0 : vector<8x128xf32>, vector<8x128xf32> -> vector<16x128xf32>
    %c0_104 = arith.constant 0 : index
    %c0_105 = arith.constant 0 : index
    %85 = vector.load %arg22[%c0_104, %c0_105] : memref<128x128xf32, #tpu.memory_space<vmem>>, vector<128x128xf32>
    %cst_106 = arith.constant dense<0.000000e+00> : vector<16x128xf32>
    %86 = tpu.matmul %84, %85, %cst_106 {dimension_numbers = #tpu.dot_dimension_numbers<[1], [0], [0], [1], [0, 0, 1, 1], [], []>} : vector<16x128xf32>, vector<128x128xf32>, vector<16x128xf32> -> vector<16x128xf32>
    %c0_107 = arith.constant 0 : index
    %c0_108 = arith.constant 0 : index
    %87 = vector.load %arg23[%c0_107, %c0_108] : memref<1x128xf32, #tpu.memory_space<vmem>>, vector<1x128xf32>
    %88 = vector.broadcast %87 : vector<1x128xf32> to vector<16x128xf32>
    %89 = arith.addf %86, %88 : vector<16x128xf32>
    %90 = vector.shape_cast %89 : vector<16x128xf32> to vector<2x8x128xf32>
    %c0_109 = arith.constant 0 : index
    %c0_110 = arith.constant 0 : index
    %91 = vector.load %arg24[%c0_109, %c0_110] : memref<128x128xf32, #tpu.memory_space<vmem>>, vector<128x128xf32>
    %cst_111 = arith.constant dense<0.000000e+00> : vector<16x128xf32>
    %92 = tpu.matmul %84, %91, %cst_111 {dimension_numbers = #tpu.dot_dimension_numbers<[1], [0], [0], [1], [0, 0, 1, 1], [], []>} : vector<16x128xf32>, vector<128x128xf32>, vector<16x128xf32> -> vector<16x128xf32>
    %c0_112 = arith.constant 0 : index
    %c0_113 = arith.constant 0 : index
    %93 = vector.load %arg25[%c0_112, %c0_113] : memref<1x128xf32, #tpu.memory_space<vmem>>, vector<1x128xf32>
    %94 = vector.broadcast %93 : vector<1x128xf32> to vector<16x128xf32>
    %95 = arith.addf %92, %94 : vector<16x128xf32>
    %96 = vector.shape_cast %95 : vector<16x128xf32> to vector<2x8x128xf32>
    %c0_114 = arith.constant 0 : index
    %c0_115 = arith.constant 0 : index
    %c0_116 = arith.constant 0 : index
    %97 = vector.load %arg33[%c0_114, %c0_115, %c0_116] : memref<2x8x128xf32, #tpu.memory_space<vmem>>, vector<2x8x128xf32>
    tpu.vector_store %arg33[%c0_114, %c0_115, %c0_116], %90 {strides = array<i32>} : memref<2x8x128xf32, #tpu.memory_space<vmem>>, vector<2x8x128xf32>,
    %c0_117 = arith.constant 0 : index
    %c0_118 = arith.constant 0 : index
    %c0_119 = arith.constant 0 : index
    %98 = vector.load %arg34[%c0_117, %c0_118, %c0_119] : memref<2x8x128xf32, #tpu.memory_space<vmem>>, vector<2x8x128xf32>
    tpu.vector_store %arg34[%c0_117, %c0_118, %c0_119], %96 {strides = array<i32>} : memref<2x8x128xf32, #tpu.memory_space<vmem>>, vector<2x8x128xf32>,
    %c0_120 = arith.constant 0 : index
    %c0_121 = arith.constant 0 : index
    %c0_122 = arith.constant 0 : index
    %99 = vector.load %arg1[%c0_120, %c0_121, %c0_122] : memref<2x8x128xf32, #tpu.memory_space<vmem>>, vector<2x8x128xf32>
    %cst_123 = arith.constant 5.000000e-01 : f32
    %100 = vector.broadcast %cst_123 : f32 to vector<2x8x128xf32>
    %101 = arith.mulf %100, %96 : vector<2x8x128xf32>
    %102 = math.exp %101 : vector<2x8x128xf32>
    %103 = arith.mulf %99, %102 : vector<2x8x128xf32>
    %104 = arith.addf %90, %103 : vector<2x8x128xf32>
    %c0_124 = arith.constant 0 : index
    %c0_125 = arith.constant 0 : index
    %105 = vector.load %arg26[%c0_124, %c0_125] : memref<256x512xf32, #tpu.memory_space<vmem>>, vector<256x512xf32>
    %c0_126 = arith.constant 0 : index
    %c0_127 = arith.constant 0 : index
    %106 = vector.load %arg27[%c0_126, %c0_127] : memref<1x512xf32, #tpu.memory_space<vmem>>, vector<1x512xf32>
    %c0_128 = arith.constant 0 : index
    %c0_129 = arith.constant 0 : index
    %107 = vector.load %arg28[%c0_128, %c0_129] : memref<256x512xf32, #tpu.memory_space<vmem>>, vector<256x512xf32>
    %c0_130 = arith.constant 0 : index
    %c0_131 = arith.constant 0 : index
    %108 = vector.load %arg29[%c0_130, %c0_131] : memref<1x512xf32, #tpu.memory_space<vmem>>, vector<1x512xf32>
    %109 = vector.extract_strided_slice %104 {offsets = [0, 0, 0], sizes = [1, 8, 128], strides = [1, 1, 1]} : vector<2x8x128xf32> to vector<1x8x128xf32>
    %110 = vector.shape_cast %109 : vector<1x8x128xf32> to vector<8x128xf32>
    %111 = vector.extract_strided_slice %104 {offsets = [1, 0, 0], sizes = [1, 8, 128], strides = [1, 1, 1]} : vector<2x8x128xf32> to vector<1x8x128xf32>
    %112 = vector.shape_cast %111 : vector<1x8x128xf32> to vector<8x128xf32>
    %c0_i32_132 = arith.constant 0 : i32
    %c8_i32_133 = arith.constant 8 : i32
    %113 = arith.addi %c0_i32_132, %c8_i32_133 : i32
    %c1_i32_134 = arith.constant 1 : i32
    %114:5 = scf.for %arg41 = %c0_i32_132 to %113 step %c1_i32_134 iter_args(%arg42 = %69, %arg43 = %110, %arg44 = %71#1, %arg45 = %112, %arg46 = %83#1) -> (vector<8x128xf32>, vector<8x128xf32>, vector<8x128xf32>, vector<8x128xf32>, vector<8x128xf32>)  : i32 {
      %124 = tpu.concatenate %arg42, %arg43 in 1 : vector<8x128xf32>, vector<8x128xf32> -> vector<8x256xf32>
      %cst_147 = arith.constant dense<0.000000e+00> : vector<8x512xf32>
      %125 = tpu.matmul %124, %105, %cst_147 {dimension_numbers = #tpu.dot_dimension_numbers<[1], [0], [0], [1], [0, 0, 1, 1], [], []>} : vector<8x256xf32>, vector<256x512xf32>, vector<8x512xf32> -> vector<8x512xf32>
      %126 = vector.broadcast %106 : vector<1x512xf32> to vector<8x512xf32>
      %127 = arith.addf %125, %126 : vector<8x512xf32>
      %128 = vector.extract_strided_slice %127 {offsets = [0, 0], sizes = [8, 128], strides = [1, 1]} : vector<8x512xf32> to vector<8x128xf32>
      %129 = arith.negf %128 : vector<8x128xf32>
      %130 = math.exp %129 : vector<8x128xf32>
      %cst_148 = arith.constant 1.000000e+00 : f32
      %131 = vector.broadcast %cst_148 : f32 to vector<8x128xf32>
      %132 = arith.addf %131, %130 : vector<8x128xf32>
      %133 = arith.divf %131, %132 : vector<8x128xf32>
      %134 = vector.extract_strided_slice %127 {offsets = [0, 128], sizes = [8, 128], strides = [1, 1]} : vector<8x512xf32> to vector<8x128xf32>
      %135 = arith.negf %134 : vector<8x128xf32>
      %136 = math.exp %135 : vector<8x128xf32>
      %cst_149 = arith.constant 1.000000e+00 : f32
      %137 = vector.broadcast %cst_149 : f32 to vector<8x128xf32>
      %138 = arith.addf %137, %136 : vector<8x128xf32>
      %139 = arith.divf %137, %138 : vector<8x128xf32>
      %140 = vector.extract_strided_slice %127 {offsets = [0, 256], sizes = [8, 128], strides = [1, 1]} : vector<8x512xf32> to vector<8x128xf32>
      %141 = math.tanh %140 : vector<8x128xf32>
      %142 = vector.extract_strided_slice %127 {offsets = [0, 384], sizes = [8, 128], strides = [1, 1]} : vector<8x512xf32> to vector<8x128xf32>
      %143 = arith.negf %142 : vector<8x128xf32>
      %144 = math.exp %143 : vector<8x128xf32>
      %cst_150 = arith.constant 1.000000e+00 : f32
      %145 = vector.broadcast %cst_150 : f32 to vector<8x128xf32>
      %146 = arith.addf %145, %144 : vector<8x128xf32>
      %147 = arith.divf %145, %146 : vector<8x128xf32>
      %148 = arith.mulf %139, %arg44 : vector<8x128xf32>
      %149 = arith.mulf %133, %141 : vector<8x128xf32>
      %150 = arith.addf %148, %149 : vector<8x128xf32>
      %151 = math.tanh %150 : vector<8x128xf32>
      %152 = arith.mulf %147, %151 : vector<8x128xf32>
      %153 = tpu.concatenate %152, %arg45 in 1 : vector<8x128xf32>, vector<8x128xf32> -> vector<8x256xf32>
      %cst_151 = arith.constant dense<0.000000e+00> : vector<8x512xf32>
      %154 = tpu.matmul %153, %107, %cst_151 {dimension_numbers = #tpu.dot_dimension_numbers<[1], [0], [0], [1], [0, 0, 1, 1], [], []>} : vector<8x256xf32>, vector<256x512xf32>, vector<8x512xf32> -> vector<8x512xf32>
      %155 = vector.broadcast %108 : vector<1x512xf32> to vector<8x512xf32>
      %156 = arith.addf %154, %155 : vector<8x512xf32>
      %157 = vector.extract_strided_slice %156 {offsets = [0, 0], sizes = [8, 128], strides = [1, 1]} : vector<8x512xf32> to vector<8x128xf32>
      %158 = arith.negf %157 : vector<8x128xf32>
      %159 = math.exp %158 : vector<8x128xf32>
      %cst_152 = arith.constant 1.000000e+00 : f32
      %160 = vector.broadcast %cst_152 : f32 to vector<8x128xf32>
      %161 = arith.addf %160, %159 : vector<8x128xf32>
      %162 = arith.divf %160, %161 : vector<8x128xf32>
      %163 = vector.extract_strided_slice %156 {offsets = [0, 128], sizes = [8, 128], strides = [1, 1]} : vector<8x512xf32> to vector<8x128xf32>
      %164 = arith.negf %163 : vector<8x128xf32>
      %165 = math.exp %164 : vector<8x128xf32>
      %cst_153 = arith.constant 1.000000e+00 : f32
      %166 = vector.broadcast %cst_153 : f32 to vector<8x128xf32>
      %167 = arith.addf %166, %165 : vector<8x128xf32>
      %168 = arith.divf %166, %167 : vector<8x128xf32>
      %169 = vector.extract_strided_slice %156 {offsets = [0, 256], sizes = [8, 128], strides = [1, 1]} : vector<8x512xf32> to vector<8x128xf32>
      %170 = math.tanh %169 : vector<8x128xf32>
      %171 = vector.extract_strided_slice %156 {offsets = [0, 384], sizes = [8, 128], strides = [1, 1]} : vector<8x512xf32> to vector<8x128xf32>
      %172 = arith.negf %171 : vector<8x128xf32>
      %173 = math.exp %172 : vector<8x128xf32>
      %cst_154 = arith.constant 1.000000e+00 : f32
      %174 = vector.broadcast %cst_154 : f32 to vector<8x128xf32>
      %175 = arith.addf %174, %173 : vector<8x128xf32>
      %176 = arith.divf %174, %175 : vector<8x128xf32>
      %177 = arith.mulf %168, %arg46 : vector<8x128xf32>
      %178 = arith.mulf %162, %170 : vector<8x128xf32>
      %179 = arith.addf %177, %178 : vector<8x128xf32>
      %180 = math.tanh %179 : vector<8x128xf32>
      %181 = arith.mulf %176, %180 : vector<8x128xf32>
      %c7_i32 = arith.constant 7 : i32
      %182 = arith.subi %c7_i32, %arg41 : i32
      %183 = arith.index_cast %182 : i32 to index
      %c0_155 = arith.constant 0 : index
      %c0_156 = arith.constant 0 : index
      %184 = vector.load %arg40[%183, %c0_155, %c0_156] : memref<8x8x128xf32, #tpu.memory_space<vmem>>, vector<1x8x128xf32>
      %185 = vector.shape_cast %184 : vector<1x8x128xf32> to vector<8x128xf32>
      %186 = vector.shape_cast %181 : vector<8x128xf32> to vector<1x8x128xf32>
      tpu.vector_store %arg40[%183, %c0_155, %c0_156], %186 {strides = array<i32>} : memref<8x8x128xf32, #tpu.memory_space<vmem>>, vector<1x8x128xf32>,
      scf.yield %181, %152, %150, %181, %179 : vector<8x128xf32>, vector<8x128xf32>, vector<8x128xf32>, vector<8x128xf32>, vector<8x128xf32>
    }
    %c8_i32_135 = arith.constant 8 : i32
    %c0_136 = arith.constant 0 : index
    %c0_137 = arith.constant 0 : index
    %c0_138 = arith.constant 0 : index
    %115 = vector.load %arg40[%c0_136, %c0_137, %c0_138] : memref<8x8x128xf32, #tpu.memory_space<vmem>>, vector<8x8x128xf32>
    %116 = vector.shape_cast %115 : vector<8x8x128xf32> to vector<64x128xf32>
    %c0_139 = arith.constant 0 : index
    %c0_140 = arith.constant 0 : index
    %117 = vector.load %arg30[%c0_139, %c0_140] : memref<128x256xf32, #tpu.memory_space<vmem>>, vector<128x256xf32>
    %cst_141 = arith.constant dense<0.000000e+00> : vector<64x256xf32>
    %118 = tpu.matmul %116, %117, %cst_141 {dimension_numbers = #tpu.dot_dimension_numbers<[1], [0], [0], [1], [0, 0, 1, 1], [], []>} : vector<64x128xf32>, vector<128x256xf32>, vector<64x256xf32> -> vector<64x256xf32>
    %c0_142 = arith.constant 0 : index
    %c0_143 = arith.constant 0 : index
    %119 = vector.load %arg31[%c0_142, %c0_143] : memref<1x256xf32, #tpu.memory_space<vmem>>, vector<1x256xf32>
    %120 = vector.broadcast %119 : vector<1x256xf32> to vector<64x256xf32>
    %121 = arith.addf %118, %120 : vector<64x256xf32>
    %122 = vector.shape_cast %121 : vector<64x256xf32> to vector<8x8x256xf32>
    %c0_144 = arith.constant 0 : index
    %c0_145 = arith.constant 0 : index
    %c0_146 = arith.constant 0 : index
    %123 = vector.load %arg32[%c0_144, %c0_145, %c0_146] : memref<8x8x256xf32, #tpu.memory_space<vmem>>, vector<8x8x256xf32>
    tpu.vector_store %arg32[%c0_144, %c0_145, %c0_146], %122 {strides = array<i32>} : memref<8x8x256xf32, #tpu.memory_space<vmem>>, vector<8x8x256xf32>,
    return
  }
}

</mosaic_0001>

<llo_original>
// kernel: summarizer_forward.1
$region0: #{summarizer_forward.1}
  #allocation0 [shape = 'u32[]', space=smem, size = 0x4, offset = 0x4, fixed_abs, tag = 'smem constant byte address 0x4 - core index']
  #allocation1 [shape = 'u32[144,128]{1,0:T(1,128)}', space=vmem, size = 0x12000, scoped, tag = 'internal scratch']
  #allocation2 [shape = 'f32[8,8,512]{2,1,0:T(8,128)}', space=vmem, size = 0x20000, scoped, tag = 'scratch operand']
  #allocation3 [shape = 'f32[8,8,512]{2,1,0:T(8,128)}', space=vmem, size = 0x20000, scoped, tag = 'scratch operand']
  #allocation4 [shape = 'f32[8,8,512]{2,1,0:T(8,128)}', space=vmem, size = 0x20000, scoped, tag = 'scratch operand']
  #allocation5 [shape = 'f32[8,8,256]{2,1,0:T(8,128)}', space=vmem, size = 0x10000, scoped, tag = 'scratch operand']
  #allocation6 [shape = 'f32[8,8,128]{2,1,0:T(8,128)}', space=vmem, size = 0x8000, scoped, tag = 'scratch operand']
  #allocation7 [shape = 'f32[1,1]{1,0:T(1,128)S(1)}', space=vmem, size = 0x200, scoped, tag = 'scoped memory for summarizer_forward.1']
  %s0 = inlined_call_operand.smem [shape: u32[36], index: -1, kind: input, shape index: {}]
  %s1 = sld [smem:[%s0]]
  %s2 = scalar_lea.smem %s0, 1
  %s3 = sld [smem:[%s2]]
  %s4 = scalar_lea.smem %s0, 2
  %s5 = sld [smem:[%s4]]
  %s6 = scalar_lea.smem %s0, 3
  %s7 = sld [smem:[%s6]]
  %s8 = scalar_lea.smem %s0, 4
  %s9 = sld [smem:[%s8]]
  %s10 = scalar_lea.smem %s0, 5
  %s11 = sld [smem:[%s10]]
  %s12 = scalar_lea.smem %s0, 6
  %s13 = sld [smem:[%s12]]
  %s14 = scalar_lea.smem %s0, 7
  %s15 = sld [smem:[%s14]]
  %s16 = scalar_lea.smem %s0, 8
  %s17 = sld [smem:[%s16]]
  %s18 = scalar_lea.smem %s0, 9
  %s19 = sld [smem:[%s18]]
  %s20 = scalar_lea.smem %s0, 10
  %s21 = sld [smem:[%s20]]
  %s22 = scalar_lea.smem %s0, 11
  %s23 = sld [smem:[%s22]]
  %s24 = scalar_lea.smem %s0, 12
  %s25 = sld [smem:[%s24]]
  %s26 = scalar_lea.smem %s0, 13
  %s27 = sld [smem:[%s26]]
  %s28 = scalar_lea.smem %s0, 14
  %s29 = sld [smem:[%s28]]
  %s30 = scalar_lea.smem %s0, 15
  %s31 = sld [smem:[%s30]]
  %s32 = scalar_lea.smem %s0, 16
  %s33 = sld [smem:[%s32]]
  %s34 = scalar_lea.smem %s0, 17
  %s35 = sld [smem:[%s34]]
  %s36 = scalar_lea.smem %s0, 18
  %s37 = sld [smem:[%s36]]
  %s38 = scalar_lea.smem %s0, 19
  %s39 = sld [smem:[%s38]]
  %s40 = scalar_lea.smem %s0, 20
  %s41 = sld [smem:[%s40]]
  %s42 = scalar_lea.smem %s0, 21
  %s43 = sld [smem:[%s42]]
  %s44 = scalar_lea.smem %s0, 22
  %s45 = sld [smem:[%s44]]
  %s46 = scalar_lea.smem %s0, 23
  %s47 = sld [smem:[%s46]]
  %s48 = scalar_lea.smem %s0, 24
  %s49 = sld [smem:[%s48]]
  %s50 = scalar_lea.smem %s0, 25
  %s51 = sld [smem:[%s50]]
  %s52 = scalar_lea.smem %s0, 26
  %s53 = sld [smem:[%s52]]
  %s54 = scalar_lea.smem %s0, 27
  %s55 = sld [smem:[%s54]]
  %s56 = scalar_lea.smem %s0, 28
  %s57 = sld [smem:[%s56]]
  %s58 = scalar_lea.smem %s0, 29
  %s59 = sld [smem:[%s58]]
  %s60 = scalar_lea.smem %s0, 30
  %s61 = sld [smem:[%s60]]
  %s62 = scalar_lea.smem %s0, 31
  %s63 = sld [smem:[%s62]]
  %s64 = scalar_lea.smem %s0, 32
  %s65 = sld [smem:[%s64]]
  %s66 = scalar_lea.smem %s0, 33
  %s67 = sld [smem:[%s66]]
  %s68 = scalar_lea.smem %s0, 34
  %s69 = sld [smem:[%s68]]
  %s70 = scalar_lea.smem %s0, 35
  %s71 = sld [smem:[%s70]]
  %72 = xla_tuple %s65, %s67, %s69, %s71
  %s73 = sld [smem:[#allocation0]]
  $region289: #{summarizer_forward.1} parent=0
    _
  %s75 = ssub.s32 1, %s73
  %s76 = scalar_select 0, %s75, %s73
  %v77 = vstv %s31
  %78 = vst [vmem:[#allocation7] sm:$0x1] %v77
  $region1: #{summarizer_forward.1} parent=0
    #allocation8 [shape = 'u8[65536]{0}', space=vmem, size = 0x10000, scoped, tag = 'input window, operand 0, single buffered']
    #allocation9 [shape = 's32[1]{0}', space=sflag, size = 0x4, scoped, tag = 'scoped memory for summarizer_forward.1']
    #allocation10 [shape = 's32[1]{0}', space=sflag, size = 0x4, scoped, tag = 'scoped memory for summarizer_forward.1']
    #allocation11 [shape = 'u8[524288]{0}', space=vmem, size = 0x80000, scoped, tag = 'input window, operand 2, single buffered']
    #allocation12 [shape = 's32[1]{0}', space=sflag, size = 0x4, scoped, tag = 'scoped memory for summarizer_forward.1']
    #allocation13 [shape = 'u8[262144]{0}', space=vmem, size = 0x40000, scoped, tag = 'input window, operand 3, single buffered']
    #allocation14 [shape = 'u8[524288]{0}', space=vmem, size = 0x80000, scoped, tag = 'input window, operand 5, single buffered']
    #allocation15 [shape = 's32[1]{0}', space=sflag, size = 0x4, scoped, tag = 'scoped memory for summarizer_forward.1']
    #allocation16 [shape = 'u8[262144]{0}', space=vmem, size = 0x40000, scoped, tag = 'input window, operand 6, single buffered']
    #allocation17 [shape = 'u8[524288]{0}', space=vmem, size = 0x80000, scoped, tag = 'input window, operand 8, single buffered']
    #allocation18 [shape = 's32[1]{0}', space=sflag, size = 0x4, scoped, tag = 'scoped memory for summarizer_forward.1']
    #allocation19 [shape = 'u8[262144]{0}', space=vmem, size = 0x40000, scoped, tag = 'input window, operand 9, single buffered']
    #allocation20 [shape = 'u8[524288]{0}', space=vmem, size = 0x80000, scoped, tag = 'input window, operand 11, single buffered']
    #allocation21 [shape = 's32[1]{0}', space=sflag, size = 0x4, scoped, tag = 'scoped memory for summarizer_forward.1']
    #allocation22 [shape = 'u8[262144]{0}', space=vmem, size = 0x40000, scoped, tag = 'input window, operand 12, single buffered']
    #allocation23 [shape = 'u8[524288]{0}', space=vmem, size = 0x80000, scoped, tag = 'input window, operand 16, single buffered']
    #allocation24 [shape = 's32[1]{0}', space=sflag, size = 0x4, scoped, tag = 'scoped memory for summarizer_forward.1']
    #allocation25 [shape = 'u8[262144]{0}', space=vmem, size = 0x40000, scoped, tag = 'input window, operand 17, single buffered']
    #allocation26 [shape = 'u8[2048]{0}', space=vmem, size = 0x800, scoped, tag = 'input window, operand 18, single buffered']
    #allocation27 [shape = 's32[1]{0}', space=sflag, size = 0x4, scoped, tag = 'scoped memory for summarizer_forward.1']
    #allocation28 [shape = 'u8[262144]{0}', space=vmem, size = 0x40000, scoped, tag = 'input window, operand 19, single buffered']
    #allocation29 [shape = 'u8[262144]{0}', space=vmem, size = 0x40000, scoped, tag = 'input window, operand 20, single buffered']
    #allocation30 [shape = 's32[1]{0}', space=sflag, size = 0x4, scoped, tag = 'scoped memory for summarizer_forward.1']
    #allocation31 [shape = 'u8[2048]{0}', space=vmem, size = 0x800, scoped, tag = 'input window, operand 21, single buffered']
    #allocation32 [shape = 'u8[65536]{0}', space=vmem, size = 0x10000, scoped, tag = 'input window, operand 22, single buffered']
    #allocation33 [shape = 's32[1]{0}', space=sflag, size = 0x4, scoped, tag = 'scoped memory for summarizer_forward.1']
    #allocation34 [shape = 'u8[65536]{0}', space=vmem, size = 0x10000, scoped, tag = 'input window, operand 24, single buffered']
    #allocation35 [shape = 'u8[524288]{0}', space=vmem, size = 0x80000, scoped, tag = 'input window, operand 26, single buffered']
    #allocation36 [shape = 's32[1]{0}', space=sflag, size = 0x4, scoped, tag = 'scoped memory for summarizer_forward.1']
    #allocation37 [shape = 'u8[2048]{0}', space=vmem, size = 0x800, scoped, tag = 'input window, operand 27, single buffered']
    #allocation38 [shape = 'u8[524288]{0}', space=vmem, size = 0x80000, scoped, tag = 'input window, operand 28, single buffered']
    #allocation39 [shape = 's32[1]{0}', space=sflag, size = 0x4, scoped, tag = 'scoped memory for summarizer_forward.1']
    #allocation40 [shape = 'u8[2048]{0}', space=vmem, size = 0x800, scoped, tag = 'input window, operand 29, single buffered']
    #allocation41 [shape = 'u8[131072]{0}', space=vmem, size = 0x20000, scoped, tag = 'input window, operand 30, single buffered']
    #allocation42 [shape = 's32[1]{0}', space=sflag, size = 0x4, scoped, tag = 'scoped memory for summarizer_forward.1']
    #allocation43 [shape = 'u8[1024]{0}', space=vmem, size = 0x400, scoped, tag = 'input window, operand 31, single buffered']
    #allocation44 [shape = 'u8[65536]{0}', space=vmem, size = 0x10000, scoped, tag = 'output window, operand 0, single buffered']
    #allocation45 [shape = 'u8[8192]{0}', space=vmem, size = 0x2000, scoped, tag = 'output window, operand 1, single buffered']
    #allocation46 [shape = 's32[1]{0}', space=sflag, size = 0x4, scoped, tag = 'scoped memory for summarizer_forward.1']
    #allocation47 [shape = 'u8[8192]{0}', space=vmem, size = 0x2000, scoped, tag = 'output window, operand 2, single buffered']
    %79 = vsyncpa [#allocation9], 0
    %80 = vsyncpa [#allocation12], 0
    %81 = vsyncpa [#allocation15], 0
    %82 = vsyncpa [#allocation18], 0
    %83 = vsyncpa [#allocation21], 0
    %84 = vsyncpa [#allocation24], 0
    %85 = vsyncpa [#allocation27], 0
    %86 = vsyncpa [#allocation30], 0
    %87 = vsyncpa [#allocation33], 0
    %88 = vsyncpa [#allocation36], 0
    %89 = vsyncpa [#allocation39], 0
    %90 = vsyncpa [#allocation42], 0
    %91 = vsyncpa [#allocation10], 0
    %92 = vsyncpa [#allocation46], 0
    // Predicated region
    $region2: #{summarizer_forward.1} parent=1 // pred_check
      _
    $region3: #{summarizer_forward.1} parent=1 // pred_check_branch
      %94 = sbr.rel (0) target = $region5
    $region4: #{summarizer_forward.1} parent=1 // pred_region
      %s96 = ssub.s32 2048, 2048
      %97 = vsyncadd [#allocation9], %s96
      %s98 = sshll.u32 [#allocation8], 4
      %s99 = int_to_ptr.vmem [resolvable:$true] %s98
      %104 = dma.hbm_to_vmem [thread:$0]  %s1, 2048, %s99, [#allocation9], 256, 256, 16
    $region5: #{summarizer_forward.1} parent=1 // pred_fallthru
      _
    // Predicated region
    $region6: #{summarizer_forward.1} parent=1 // pred_check
      _
    $region7: #{summarizer_forward.1} parent=1 // pred_check_branch
      %106 = sbr.rel (0) target = $region9
    $region8: #{summarizer_forward.1} parent=1 // pred_region
      _
    $region9: #{summarizer_forward.1} parent=1 // pred_fallthru
      _
    // Predicated region
    $region10: #{summarizer_forward.1} parent=1 // pred_check
      _
    $region11: #{summarizer_forward.1} parent=1 // pred_check_branch
      %108 = sbr.rel (0) target = $region13
    $region12: #{summarizer_forward.1} parent=1 // pred_region
      %s110 = ssub.s32 16384, 16384
      %111 = vsyncadd [#allocation12], %s110
      %s112 = sshll.u32 [#allocation11], 4
      %s113 = int_to_ptr.vmem [resolvable:$true] %s112
      %118 = dma.hbm_to_vmem [thread:$0]  %s5, 16384, %s113, [#allocation12], 512, 512, 32
    $region13: #{summarizer_forward.1} parent=1 // pred_fallthru
      _
    // Predicated region
    $region14: #{summarizer_forward.1} parent=1 // pred_check
      _
    $region15: #{summarizer_forward.1} parent=1 // pred_check_branch
      %120 = sbr.rel (0) target = $region17
    $region16: #{summarizer_forward.1} parent=1 // pred_region
      %s122 = ssub.s32 8192, 8192
      %123 = vsyncadd [#allocation12], %s122
      %s124 = sshll.u32 [#allocation13], 4
      %s125 = int_to_ptr.vmem [resolvable:$true] %s124
      %130 = dma.hbm_to_vmem [thread:$0]  %s7, 8192, %s125, [#allocation12], 512, 512, 32
    $region17: #{summarizer_forward.1} parent=1 // pred_fallthru
      _
    // Predicated region
    $region18: #{summarizer_forward.1} parent=1 // pred_check
      _
    $region19: #{summarizer_forward.1} parent=1 // pred_check_branch
      %132 = sbr.rel (0) target = $region21
    $region20: #{summarizer_forward.1} parent=1 // pred_region
      _
    $region21: #{summarizer_forward.1} parent=1 // pred_fallthru
      _
    // Predicated region
    $region22: #{summarizer_forward.1} parent=1 // pred_check
      _
    $region23: #{summarizer_forward.1} parent=1 // pred_check_branch
      %134 = sbr.rel (0) target = $region25
    $region24: #{summarizer_forward.1} parent=1 // pred_region
      %s136 = ssub.s32 16384, 16384
      %137 = vsyncadd [#allocation15], %s136
      %s138 = sshll.u32 [#allocation14], 4
      %s139 = int_to_ptr.vmem [resolvable:$true] %s138
      %144 = dma.hbm_to_vmem [thread:$0]  %s11, 16384, %s139, [#allocation15], 512, 512, 32
    $region25: #{summarizer_forward.1} parent=1 // pred_fallthru
      _
    // Predicated region
    $region26: #{summarizer_forward.1} parent=1 // pred_check
      _
    $region27: #{summarizer_forward.1} parent=1 // pred_check_branch
      %146 = sbr.rel (0) target = $region29
    $region28: #{summarizer_forward.1} parent=1 // pred_region
      %s148 = ssub.s32 8192, 8192
      %149 = vsyncadd [#allocation15], %s148
      %s150 = sshll.u32 [#allocation16], 4
      %s151 = int_to_ptr.vmem [resolvable:$true] %s150
      %156 = dma.hbm_to_vmem [thread:$0]  %s13, 8192, %s151, [#allocation15], 512, 512, 32
    $region29: #{summarizer_forward.1} parent=1 // pred_fallthru
      _
    // Predicated region
    $region30: #{summarizer_forward.1} parent=1 // pred_check
      _
    $region31: #{summarizer_forward.1} parent=1 // pred_check_branch
      %158 = sbr.rel (0) target = $region33
    $region32: #{summarizer_forward.1} parent=1 // pred_region
      _
    $region33: #{summarizer_forward.1} parent=1 // pred_fallthru
      _
    // Predicated region
    $region34: #{summarizer_forward.1} parent=1 // pred_check
      _
    $region35: #{summarizer_forward.1} parent=1 // pred_check_branch
      %160 = sbr.rel (0) target = $region37
    $region36: #{summarizer_forward.1} parent=1 // pred_region
      %s162 = ssub.s32 16384, 16384
      %163 = vsyncadd [#allocation18], %s162
      %s164 = sshll.u32 [#allocation17], 4
      %s165 = int_to_ptr.vmem [resolvable:$true] %s164
      %170 = dma.hbm_to_vmem [thread:$0]  %s17, 16384, %s165, [#allocation18], 512, 512, 32
    $region37: #{summarizer_forward.1} parent=1 // pred_fallthru
      _
    // Predicated region
    $region38: #{summarizer_forward.1} parent=1 // pred_check
      _
    $region39: #{summarizer_forward.1} parent=1 // pred_check_branch
      %172 = sbr.rel (0) target = $region41
    $region40: #{summarizer_forward.1} parent=1 // pred_region
      %s174 = ssub.s32 8192, 8192
      %175 = vsyncadd [#allocation18], %s174
      %s176 = sshll.u32 [#allocation19], 4
      %s177 = int_to_ptr.vmem [resolvable:$true] %s176
      %182 = dma.hbm_to_vmem [thread:$0]  %s19, 8192, %s177, [#allocation18], 512, 512, 32
    $region41: #{summarizer_forward.1} parent=1 // pred_fallthru
      _
    // Predicated region
    $region42: #{summarizer_forward.1} parent=1 // pred_check
      _
    $region43: #{summarizer_forward.1} parent=1 // pred_check_branch
      %184 = sbr.rel (0) target = $region45
    $region44: #{summarizer_forward.1} parent=1 // pred_region
      _
    $region45: #{summarizer_forward.1} parent=1 // pred_fallthru
      _
    // Predicated region
    $region46: #{summarizer_forward.1} parent=1 // pred_check
      _
    $region47: #{summarizer_forward.1} parent=1 // pred_check_branch
      %186 = sbr.rel (0) target = $region49
    $region48: #{summarizer_forward.1} parent=1 // pred_region
      %s188 = ssub.s32 16384, 16384
      %189 = vsyncadd [#allocation21], %s188
      %s190 = sshll.u32 [#allocation20], 4
      %s191 = int_to_ptr.vmem [resolvable:$true] %s190
      %196 = dma.hbm_to_vmem [thread:$0]  %s23, 16384, %s191, [#allocation21], 512, 512, 32
    $region49: #{summarizer_forward.1} parent=1 // pred_fallthru
      _
    // Predicated region
    $region50: #{summarizer_forward.1} parent=1 // pred_check
      _
    $region51: #{summarizer_forward.1} parent=1 // pred_check_branch
      %198 = sbr.rel (0) target = $region53
    $region52: #{summarizer_forward.1} parent=1 // pred_region
      %s200 = ssub.s32 8192, 8192
      %201 = vsyncadd [#allocation21], %s200
      %s202 = sshll.u32 [#allocation22], 4
      %s203 = int_to_ptr.vmem [resolvable:$true] %s202
      %208 = dma.hbm_to_vmem [thread:$0]  %s25, 8192, %s203, [#allocation21], 512, 512, 32
    $region53: #{summarizer_forward.1} parent=1 // pred_fallthru
      _
    // Predicated region
    $region54: #{summarizer_forward.1} parent=1 // pred_check
      _
    $region55: #{summarizer_forward.1} parent=1 // pred_check_branch
      %210 = sbr.rel (0) target = $region57
    $region56: #{summarizer_forward.1} parent=1 // pred_region
      _
    $region57: #{summarizer_forward.1} parent=1 // pred_fallthru
      _
    // Predicated region
    $region58: #{summarizer_forward.1} parent=1 // pred_check
      _
    $region59: #{summarizer_forward.1} parent=1 // pred_check_branch
      %212 = sbr.rel (0) target = $region61
    $region60: #{summarizer_forward.1} parent=1 // pred_region
      _
    $region61: #{summarizer_forward.1} parent=1 // pred_fallthru
      _
    // Predicated region
    $region62: #{summarizer_forward.1} parent=1 // pred_check
      _
    $region63: #{summarizer_forward.1} parent=1 // pred_check_branch
      %214 = sbr.rel (0) target = $region65
    $region64: #{summarizer_forward.1} parent=1 // pred_region
      _
    $region65: #{summarizer_forward.1} parent=1 // pred_fallthru
      _
    // Predicated region
    $region66: #{summarizer_forward.1} parent=1 // pred_check
      _
    $region67: #{summarizer_forward.1} parent=1 // pred_check_branch
      %216 = sbr.rel (0) target = $region69
    $region68: #{summarizer_forward.1} parent=1 // pred_region
      %s218 = ssub.s32 16384, 16384
      %219 = vsyncadd [#allocation24], %s218
      %s220 = sshll.u32 [#allocation23], 4
      %s221 = int_to_ptr.vmem [resolvable:$true] %s220
      %226 = dma.hbm_to_vmem [thread:$0]  %s33, 16384, %s221, [#allocation24], 512, 512, 32
    $region69: #{summarizer_forward.1} parent=1 // pred_fallthru
      _
    // Predicated region
    $region70: #{summarizer_forward.1} parent=1 // pred_check
      _
    $region71: #{summarizer_forward.1} parent=1 // pred_check_branch
      %228 = sbr.rel (0) target = $region73
    $region72: #{summarizer_forward.1} parent=1 // pred_region
      %s230 = ssub.s32 8192, 8192
      %231 = vsyncadd [#allocation24], %s230
      %s232 = sshll.u32 [#allocation25], 4
      %s233 = int_to_ptr.vmem [resolvable:$true] %s232
      %238 = dma.hbm_to_vmem [thread:$0]  %s35, 8192, %s233, [#allocation24], 512, 512, 32
    $region73: #{summarizer_forward.1} parent=1 // pred_fallthru
      _
    // Predicated region
    $region74: #{summarizer_forward.1} parent=1 // pred_check
      _
    $region75: #{summarizer_forward.1} parent=1 // pred_check_branch
      %240 = sbr.rel (0) target = $region77
    $region76: #{summarizer_forward.1} parent=1 // pred_region
      %s242 = ssub.s32 64, 64
      %243 = vsyncadd [#allocation27], %s242
      %s245 = sshll.u32 [#allocation26], 4
      %s246 = int_to_ptr.vmem [resolvable:$true] %s245
      %248 = dma.hbm_to_vmem [thread:$0]  %s37, 64, %s246, [#allocation27]
    $region77: #{summarizer_forward.1} parent=1 // pred_fallthru
      _
    // Predicated region
    $region78: #{summarizer_forward.1} parent=1 // pred_check
      _
    $region79: #{summarizer_forward.1} parent=1 // pred_check_branch
      %250 = sbr.rel (0) target = $region81
    $region80: #{summarizer_forward.1} parent=1 // pred_region
      %s252 = ssub.s32 8192, 8192
      %253 = vsyncadd [#allocation27], %s252
      %s254 = sshll.u32 [#allocation28], 4
      %s255 = int_to_ptr.vmem [resolvable:$true] %s254
      %260 = dma.hbm_to_vmem [thread:$0]  %s39, 8192, %s255, [#allocation27], 512, 512, 32
    $region81: #{summarizer_forward.1} parent=1 // pred_fallthru
      _
    // Predicated region
    $region82: #{summarizer_forward.1} parent=1 // pred_check
      _
    $region83: #{summarizer_forward.1} parent=1 // pred_check_branch
      %262 = sbr.rel (0) target = $region85
    $region84: #{summarizer_forward.1} parent=1 // pred_region
      %s264 = ssub.s32 8192, 8192
      %265 = vsyncadd [#allocation30], %s264
      %s266 = sshll.u32 [#allocation29], 4
      %s267 = int_to_ptr.vmem [resolvable:$true] %s266
      %272 = dma.hbm_to_vmem [thread:$0]  %s41, 8192, %s267, [#allocation30], 512, 512, 32
    $region85: #{summarizer_forward.1} parent=1 // pred_fallthru
      _
    // Predicated region
    $region86: #{summarizer_forward.1} parent=1 // pred_check
      _
    $region87: #{summarizer_forward.1} parent=1 // pred_check_branch
      %274 = sbr.rel (0) target = $region89
    $region88: #{summarizer_forward.1} parent=1 // pred_region
      %s276 = ssub.s32 64, 64
      %277 = vsyncadd [#allocation30], %s276
      %s279 = sshll.u32 [#allocation31], 4
      %s280 = int_to_ptr.vmem [resolvable:$true] %s279
      %282 = dma.hbm_to_vmem [thread:$0]  %s43, 64, %s280, [#allocation30]
    $region89: #{summarizer_forward.1} parent=1 // pred_fallthru
      _
    // Predicated region
    $region90: #{summarizer_forward.1} parent=1 // pred_check
      _
    $region91: #{summarizer_forward.1} parent=1 // pred_check_branch
      %284 = sbr.rel (0) target = $region93
    $region92: #{summarizer_forward.1} parent=1 // pred_region
      %s286 = ssub.s32 2048, 2048
      %287 = vsyncadd [#allocation33], %s286
      %s288 = sshll.u32 [#allocation32], 4
      %s289 = int_to_ptr.vmem [resolvable:$true] %s288
      %294 = dma.hbm_to_vmem [thread:$0]  %s45, 2048, %s289, [#allocation33], 128, 128, 8
    $region93: #{summarizer_forward.1} parent=1 // pred_fallthru
      _
    // Predicated region
    $region94: #{summarizer_forward.1} parent=1 // pred_check
      _
    $region95: #{summarizer_forward.1} parent=1 // pred_check_branch
      %296 = sbr.rel (0) target = $region97
    $region96: #{summarizer_forward.1} parent=1 // pred_region
      _
    $region97: #{summarizer_forward.1} parent=1 // pred_fallthru
      _
    // Predicated region
    $region98: #{summarizer_forward.1} parent=1 // pred_check
      _
    $region99: #{summarizer_forward.1} parent=1 // pred_check_branch
      %298 = sbr.rel (0) target = $region101
    $region100: #{summarizer_forward.1} parent=1 // pred_region
      %s300 = ssub.s32 2048, 2048
      %301 = vsyncadd [#allocation33], %s300
      %s302 = sshll.u32 [#allocation34], 4
      %s303 = int_to_ptr.vmem [resolvable:$true] %s302
      %308 = dma.hbm_to_vmem [thread:$0]  %s49, 2048, %s303, [#allocation33], 128, 128, 8
    $region101: #{summarizer_forward.1} parent=1 // pred_fallthru
      _
    // Predicated region
    $region102: #{summarizer_forward.1} parent=1 // pred_check
      _
    $region103: #{summarizer_forward.1} parent=1 // pred_check_branch
      %310 = sbr.rel (0) target = $region105
    $region104: #{summarizer_forward.1} parent=1 // pred_region
      _
    $region105: #{summarizer_forward.1} parent=1 // pred_fallthru
      _
    // Predicated region
    $region106: #{summarizer_forward.1} parent=1 // pred_check
      _
    $region107: #{summarizer_forward.1} parent=1 // pred_check_branch
      %312 = sbr.rel (0) target = $region109
    $region108: #{summarizer_forward.1} parent=1 // pred_region
      %s314 = ssub.s32 16384, 16384
      %315 = vsyncadd [#allocation36], %s314
      %s316 = sshll.u32 [#allocation35], 4
      %s317 = int_to_ptr.vmem [resolvable:$true] %s316
      %322 = dma.hbm_to_vmem [thread:$0]  %s53, 16384, %s317, [#allocation36], 512, 512, 32
    $region109: #{summarizer_forward.1} parent=1 // pred_fallthru
      _
    // Predicated region
    $region110: #{summarizer_forward.1} parent=1 // pred_check
      _
    $region111: #{summarizer_forward.1} parent=1 // pred_check_branch
      %324 = sbr.rel (0) target = $region113
    $region112: #{summarizer_forward.1} parent=1 // pred_region
      %s326 = ssub.s32 64, 64
      %327 = vsyncadd [#allocation36], %s326
      %s329 = sshll.u32 [#allocation37], 4
      %s330 = int_to_ptr.vmem [resolvable:$true] %s329
      %332 = dma.hbm_to_vmem [thread:$0]  %s55, 64, %s330, [#allocation36]
    $region113: #{summarizer_forward.1} parent=1 // pred_fallthru
      _
    // Predicated region
    $region114: #{summarizer_forward.1} parent=1 // pred_check
      _
    $region115: #{summarizer_forward.1} parent=1 // pred_check_branch
      %334 = sbr.rel (0) target = $region117
    $region116: #{summarizer_forward.1} parent=1 // pred_region
      %s336 = ssub.s32 16384, 16384
      %337 = vsyncadd [#allocation39], %s336
      %s338 = sshll.u32 [#allocation38], 4
      %s339 = int_to_ptr.vmem [resolvable:$true] %s338
      %344 = dma.hbm_to_vmem [thread:$0]  %s57, 16384, %s339, [#allocation39], 512, 512, 32
    $region117: #{summarizer_forward.1} parent=1 // pred_fallthru
      _
    // Predicated region
    $region118: #{summarizer_forward.1} parent=1 // pred_check
      _
    $region119: #{summarizer_forward.1} parent=1 // pred_check_branch
      %346 = sbr.rel (0) target = $region121
    $region120: #{summarizer_forward.1} parent=1 // pred_region
      %s348 = ssub.s32 64, 64
      %349 = vsyncadd [#allocation39], %s348
      %s351 = sshll.u32 [#allocation40], 4
      %s352 = int_to_ptr.vmem [resolvable:$true] %s351
      %354 = dma.hbm_to_vmem [thread:$0]  %s59, 64, %s352, [#allocation39]
    $region121: #{summarizer_forward.1} parent=1 // pred_fallthru
      _
    // Predicated region
    $region122: #{summarizer_forward.1} parent=1 // pred_check
      _
    $region123: #{summarizer_forward.1} parent=1 // pred_check_branch
      %356 = sbr.rel (0) target = $region125
    $region124: #{summarizer_forward.1} parent=1 // pred_region
      %s358 = ssub.s32 4096, 4096
      %359 = vsyncadd [#allocation42], %s358
      %s360 = sshll.u32 [#allocation41], 4
      %s361 = int_to_ptr.vmem [resolvable:$true] %s360
      %366 = dma.hbm_to_vmem [thread:$0]  %s61, 4096, %s361, [#allocation42], 256, 256, 16
    $region125: #{summarizer_forward.1} parent=1 // pred_fallthru
      _
    // Predicated region
    $region126: #{summarizer_forward.1} parent=1 // pred_check
      _
    $region127: #{summarizer_forward.1} parent=1 // pred_check_branch
      %368 = sbr.rel (0) target = $region129
    $region128: #{summarizer_forward.1} parent=1 // pred_region
      %s370 = ssub.s32 32, 32
      %371 = vsyncadd [#allocation42], %s370
      %s373 = sshll.u32 [#allocation43], 4
      %s374 = int_to_ptr.vmem [resolvable:$true] %s373
      %376 = dma.hbm_to_vmem [thread:$0]  %s63, 32, %s374, [#allocation42]
    $region129: #{summarizer_forward.1} parent=1 // pred_fallthru
      _
    // Predicated region
    $region130: #{summarizer_forward.1} parent=1 // pred_check
      _
    $region131: #{summarizer_forward.1} parent=1 // pred_check_branch
      %378 = sbr.rel (0) target = $region133
    $region132: #{summarizer_forward.1} parent=1 // pred_region
      %379 = dma.done [#allocation9], 2048
    $region133: #{summarizer_forward.1} parent=1 // pred_fallthru
      _
    // Predicated region
    $region134: #{summarizer_forward.1} parent=1 // pred_check
      _
    $region135: #{summarizer_forward.1} parent=1 // pred_check_branch
      %381 = sbr.rel (0) target = $region137
    $region136: #{summarizer_forward.1} parent=1 // pred_region
      %382 = dma.done [#allocation12], 16384
    $region137: #{summarizer_forward.1} parent=1 // pred_fallthru
      _
    // Predicated region
    $region138: #{summarizer_forward.1} parent=1 // pred_check
      _
    $region139: #{summarizer_forward.1} parent=1 // pred_check_branch
      %384 = sbr.rel (0) target = $region141
    $region140: #{summarizer_forward.1} parent=1 // pred_region
      %385 = dma.done [#allocation12], 8192
    $region141: #{summarizer_forward.1} parent=1 // pred_fallthru
      _
    // Predicated region
    $region142: #{summarizer_forward.1} parent=1 // pred_check
      _
    $region143: #{summarizer_forward.1} parent=1 // pred_check_branch
      %387 = sbr.rel (0) target = $region145
    $region144: #{summarizer_forward.1} parent=1 // pred_region
      %388 = dma.done [#allocation15], 16384
    $region145: #{summarizer_forward.1} parent=1 // pred_fallthru
      _
    // Predicated region
    $region146: #{summarizer_forward.1} parent=1 // pred_check
      _
    $region147: #{summarizer_forward.1} parent=1 // pred_check_branch
      %390 = sbr.rel (0) target = $region149
    $region148: #{summarizer_forward.1} parent=1 // pred_region
      %391 = dma.done [#allocation15], 8192
    $region149: #{summarizer_forward.1} parent=1 // pred_fallthru
      _
    // Predicated region
    $region150: #{summarizer_forward.1} parent=1 // pred_check
      _
    $region151: #{summarizer_forward.1} parent=1 // pred_check_branch
      %393 = sbr.rel (0) target = $region153
    $region152: #{summarizer_forward.1} parent=1 // pred_region
      %394 = dma.done [#allocation18], 16384
    $region153: #{summarizer_forward.1} parent=1 // pred_fallthru
      _
    // Predicated region
    $region154: #{summarizer_forward.1} parent=1 // pred_check
      _
    $region155: #{summarizer_forward.1} parent=1 // pred_check_branch
      %396 = sbr.rel (0) target = $region157
    $region156: #{summarizer_forward.1} parent=1 // pred_region
      %397 = dma.done [#allocation18], 8192
    $region157: #{summarizer_forward.1} parent=1 // pred_fallthru
      _
    // Predicated region
    $region158: #{summarizer_forward.1} parent=1 // pred_check
      _
    $region159: #{summarizer_forward.1} parent=1 // pred_check_branch
      %399 = sbr.rel (0) target = $region161
    $region160: #{summarizer_forward.1} parent=1 // pred_region
      %400 = dma.done [#allocation21], 16384
    $region161: #{summarizer_forward.1} parent=1 // pred_fallthru
      _
    // Predicated region
    $region162: #{summarizer_forward.1} parent=1 // pred_check
      _
    $region163: #{summarizer_forward.1} parent=1 // pred_check_branch
      %402 = sbr.rel (0) target = $region165
    $region164: #{summarizer_forward.1} parent=1 // pred_region
      %403 = dma.done [#allocation21], 8192
    $region165: #{summarizer_forward.1} parent=1 // pred_fallthru
      _
    // Predicated region
    $region166: #{summarizer_forward.1} parent=1 // pred_check
      _
    $region167: #{summarizer_forward.1} parent=1 // pred_check_branch
      %405 = sbr.rel (0) target = $region169
    $region168: #{summarizer_forward.1} parent=1 // pred_region
      %406 = dma.done [#allocation24], 16384
    $region169: #{summarizer_forward.1} parent=1 // pred_fallthru
      _
    // Predicated region
    $region170: #{summarizer_forward.1} parent=1 // pred_check
      _
    $region171: #{summarizer_forward.1} parent=1 // pred_check_branch
      %408 = sbr.rel (0) target = $region173
    $region172: #{summarizer_forward.1} parent=1 // pred_region
      %409 = dma.done [#allocation24], 8192
    $region173: #{summarizer_forward.1} parent=1 // pred_fallthru
      _
    // Predicated region
    $region174: #{summarizer_forward.1} parent=1 // pred_check
      _
    $region175: #{summarizer_forward.1} parent=1 // pred_check_branch
      %411 = sbr.rel (0) target = $region177
    $region176: #{summarizer_forward.1} parent=1 // pred_region
      %412 = dma.done [#allocation27], 64
    $region177: #{summarizer_forward.1} parent=1 // pred_fallthru
      _
    // Predicated region
    $region178: #{summarizer_forward.1} parent=1 // pred_check
      _
    $region179: #{summarizer_forward.1} parent=1 // pred_check_branch
      %414 = sbr.rel (0) target = $region181
    $region180: #{summarizer_forward.1} parent=1 // pred_region
      %415 = dma.done [#allocation27], 8192
    $region181: #{summarizer_forward.1} parent=1 // pred_fallthru
      _
    // Predicated region
    $region182: #{summarizer_forward.1} parent=1 // pred_check
      _
    $region183: #{summarizer_forward.1} parent=1 // pred_check_branch
      %417 = sbr.rel (0) target = $region185
    $region184: #{summarizer_forward.1} parent=1 // pred_region
      %418 = dma.done [#allocation30], 8192
    $region185: #{summarizer_forward.1} parent=1 // pred_fallthru
      _
    // Predicated region
    $region186: #{summarizer_forward.1} parent=1 // pred_check
      _
    $region187: #{summarizer_forward.1} parent=1 // pred_check_branch
      %420 = sbr.rel (0) target = $region189
    $region188: #{summarizer_forward.1} parent=1 // pred_region
      %421 = dma.done [#allocation30], 64
    $region189: #{summarizer_forward.1} parent=1 // pred_fallthru
      _
    // Predicated region
    $region190: #{summarizer_forward.1} parent=1 // pred_check
      _
    $region191: #{summarizer_forward.1} parent=1 // pred_check_branch
      %423 = sbr.rel (0) target = $region193
    $region192: #{summarizer_forward.1} parent=1 // pred_region
      %424 = dma.done [#allocation33], 2048
    $region193: #{summarizer_forward.1} parent=1 // pred_fallthru
      _
    // Predicated region
    $region194: #{summarizer_forward.1} parent=1 // pred_check
      _
    $region195: #{summarizer_forward.1} parent=1 // pred_check_branch
      %426 = sbr.rel (0) target = $region197
    $region196: #{summarizer_forward.1} parent=1 // pred_region
      %427 = dma.done [#allocation33], 2048
    $region197: #{summarizer_forward.1} parent=1 // pred_fallthru
      _
    // Predicated region
    $region198: #{summarizer_forward.1} parent=1 // pred_check
      _
    $region199: #{summarizer_forward.1} parent=1 // pred_check_branch
      %429 = sbr.rel (0) target = $region201
    $region200: #{summarizer_forward.1} parent=1 // pred_region
      %430 = dma.done [#allocation36], 16384
    $region201: #{summarizer_forward.1} parent=1 // pred_fallthru
      _
    // Predicated region
    $region202: #{summarizer_forward.1} parent=1 // pred_check
      _
    $region203: #{summarizer_forward.1} parent=1 // pred_check_branch
      %432 = sbr.rel (0) target = $region205
    $region204: #{summarizer_forward.1} parent=1 // pred_region
      %433 = dma.done [#allocation36], 64
    $region205: #{summarizer_forward.1} parent=1 // pred_fallthru
      _
    // Predicated region
    $region206: #{summarizer_forward.1} parent=1 // pred_check
      _
    $region207: #{summarizer_forward.1} parent=1 // pred_check_branch
      %435 = sbr.rel (0) target = $region209
    $region208: #{summarizer_forward.1} parent=1 // pred_region
      %436 = dma.done [#allocation39], 16384
    $region209: #{summarizer_forward.1} parent=1 // pred_fallthru
      _
    // Predicated region
    $region210: #{summarizer_forward.1} parent=1 // pred_check
      _
    $region211: #{summarizer_forward.1} parent=1 // pred_check_branch
      %438 = sbr.rel (0) target = $region213
    $region212: #{summarizer_forward.1} parent=1 // pred_region
      %439 = dma.done [#allocation39], 64
    $region213: #{summarizer_forward.1} parent=1 // pred_fallthru
      _
    // Predicated region
    $region214: #{summarizer_forward.1} parent=1 // pred_check
      _
    $region215: #{summarizer_forward.1} parent=1 // pred_check_branch
      %441 = sbr.rel (0) target = $region217
    $region216: #{summarizer_forward.1} parent=1 // pred_region
      %442 = dma.done [#allocation42], 4096
    $region217: #{summarizer_forward.1} parent=1 // pred_fallthru
      _
    // Predicated region
    $region218: #{summarizer_forward.1} parent=1 // pred_check
      _
    $region219: #{summarizer_forward.1} parent=1 // pred_check_branch
      %444 = sbr.rel (0) target = $region221
    $region220: #{summarizer_forward.1} parent=1 // pred_region
      %445 = dma.done [#allocation42], 32
    $region221: #{summarizer_forward.1} parent=1 // pred_fallthru
      _
    %v446 = vld [vmem:[#allocation8] sm:$0xff]
    %v447 = vld [vmem:[#allocation8 + $0x8] sm:$0xff]
    %v448 = vld [vmem:[#allocation8 + $0x10] sm:$0xff]
    %v449 = vld [vmem:[#allocation8 + $0x18] sm:$0xff]
    %v450 = vld [vmem:[#allocation8 + $0x20] sm:$0xff]
    %v451 = vld [vmem:[#allocation8 + $0x28] sm:$0xff]
    %v452 = vld [vmem:[#allocation8 + $0x30] sm:$0xff]
    %v453 = vld [vmem:[#allocation8 + $0x38] sm:$0xff]
    %v454 = vld [vmem:[#allocation8 + $0x40] sm:$0xff]
    %v455 = vld [vmem:[#allocation8 + $0x48] sm:$0xff]
    %v456 = vld [vmem:[#allocation8 + $0x50] sm:$0xff]
    %v457 = vld [vmem:[#allocation8 + $0x58] sm:$0xff]
    %v458 = vld [vmem:[#allocation8 + $0x60] sm:$0xff]
    %v459 = vld [vmem:[#allocation8 + $0x68] sm:$0xff]
    %v460 = vld [vmem:[#allocation8 + $0x70] sm:$0xff]
    %v461 = vld [vmem:[#allocation8 + $0x78] sm:$0xff]
    %v462 = vld [vmem:[#allocation11] sm:$0xff]
    %v463 = vld [vmem:[#allocation11 + $0x8] sm:$0xff]
    %v464 = vld [vmem:[#allocation11 + $0x10] sm:$0xff]
    %v465 = vld [vmem:[#allocation11 + $0x18] sm:$0xff]
    %v466 = vld [vmem:[#allocation11 + $0x20] sm:$0xff]
    %v467 = vld [vmem:[#allocation11 + $0x28] sm:$0xff]
    %v468 = vld [vmem:[#allocation11 + $0x30] sm:$0xff]
    %v469 = vld [vmem:[#allocation11 + $0x38] sm:$0xff]
    %v470 = vld [vmem:[#allocation11 + $0x40] sm:$0xff]
    %v471 = vld [vmem:[#allocation11 + $0x48] sm:$0xff]
    %v472 = vld [vmem:[#allocation11 + $0x50] sm:$0xff]
    %v473 = vld [vmem:[#allocation11 + $0x58] sm:$0xff]
    %v474 = vld [vmem:[#allocation11 + $0x60] sm:$0xff]
    %v475 = vld [vmem:[#allocation11 + $0x68] sm:$0xff]
    %v476 = vld [vmem:[#allocation11 + $0x70] sm:$0xff]
    %v477 = vld [vmem:[#allocation11 + $0x78] sm:$0xff]
    %v478 = vld [vmem:[#allocation11 + $0x80] sm:$0xff]
    %v479 = vld [vmem:[#allocation11 + $0x88] sm:$0xff]
    %v480 = vld [vmem:[#allocation11 + $0x90] sm:$0xff]
    %v481 = vld [vmem:[#allocation11 + $0x98] sm:$0xff]
    %v482 = vld [vmem:[#allocation11 + $0xa0] sm:$0xff]
    %v483 = vld [vmem:[#allocation11 + $0xa8] sm:$0xff]
    %v484 = vld [vmem:[#allocation11 + $0xb0] sm:$0xff]
    %v485 = vld [vmem:[#allocation11 + $0xb8] sm:$0xff]
    %v486 = vld [vmem:[#allocation11 + $0xc0] sm:$0xff]
    %v487 = vld [vmem:[#allocation11 + $0xc8] sm:$0xff]
    %v488 = vld [vmem:[#allocation11 + $0xd0] sm:$0xff]
    %v489 = vld [vmem:[#allocation11 + $0xd8] sm:$0xff]
    %v490 = vld [vmem:[#allocation11 + $0xe0] sm:$0xff]
    %v491 = vld [vmem:[#allocation11 + $0xe8] sm:$0xff]
    %v492 = vld [vmem:[#allocation11 + $0xf0] sm:$0xff]
    %v493 = vld [vmem:[#allocation11 + $0xf8] sm:$0xff]
    %v494 = vld [vmem:[#allocation11 + $0x100] sm:$0xff]
    %v495 = vld [vmem:[#allocation11 + $0x108] sm:$0xff]
    %v496 = vld [vmem:[#allocation11 + $0x110] sm:$0xff]
    %v497 = vld [vmem:[#allocation11 + $0x118] sm:$0xff]
    %v498 = vld [vmem:[#allocation11 + $0x120] sm:$0xff]
    %v499 = vld [vmem:[#allocation11 + $0x128] sm:$0xff]
    %v500 = vld [vmem:[#allocation11 + $0x130] sm:$0xff]
    %v501 = vld [vmem:[#allocation11 + $0x138] sm:$0xff]
    %v502 = vld [vmem:[#allocation11 + $0x140] sm:$0xff]
    %v503 = vld [vmem:[#allocation11 + $0x148] sm:$0xff]
    %v504 = vld [vmem:[#allocation11 + $0x150] sm:$0xff]
    %v505 = vld [vmem:[#allocation11 + $0x158] sm:$0xff]
    %v506 = vld [vmem:[#allocation11 + $0x160] sm:$0xff]
    %v507 = vld [vmem:[#allocation11 + $0x168] sm:$0xff]
    %v508 = vld [vmem:[#allocation11 + $0x170] sm:$0xff]
    %v509 = vld [vmem:[#allocation11 + $0x178] sm:$0xff]
    %v510 = vld [vmem:[#allocation11 + $0x180] sm:$0xff]
    %v511 = vld [vmem:[#allocation11 + $0x188] sm:$0xff]
    %v512 = vld [vmem:[#allocation11 + $0x190] sm:$0xff]
    %v513 = vld [vmem:[#allocation11 + $0x198] sm:$0xff]
    %v514 = vld [vmem:[#allocation11 + $0x1a0] sm:$0xff]
    %v515 = vld [vmem:[#allocation11 + $0x1a8] sm:$0xff]
    %v516 = vld [vmem:[#allocation11 + $0x1b0] sm:$0xff]
    %v517 = vld [vmem:[#allocation11 + $0x1b8] sm:$0xff]
    %v518 = vld [vmem:[#allocation11 + $0x1c0] sm:$0xff]
    %v519 = vld [vmem:[#allocation11 + $0x1c8] sm:$0xff]
    %v520 = vld [vmem:[#allocation11 + $0x1d0] sm:$0xff]
    %v521 = vld [vmem:[#allocation11 + $0x1d8] sm:$0xff]
    %v522 = vld [vmem:[#allocation11 + $0x1e0] sm:$0xff]
    %v523 = vld [vmem:[#allocation11 + $0x1e8] sm:$0xff]
    %v524 = vld [vmem:[#allocation11 + $0x1f0] sm:$0xff]
    %v525 = vld [vmem:[#allocation11 + $0x1f8] sm:$0xff]
    %v526 = vld [vmem:[#allocation11 + $0x200] sm:$0xff]
    %v527 = vld [vmem:[#allocation11 + $0x208] sm:$0xff]
    %v528 = vld [vmem:[#allocation11 + $0x210] sm:$0xff]
    %v529 = vld [vmem:[#allocation11 + $0x218] sm:$0xff]
    %v530 = vld [vmem:[#allocation11 + $0x220] sm:$0xff]
    %v531 = vld [vmem:[#allocation11 + $0x228] sm:$0xff]
    %v532 = vld [vmem:[#allocation11 + $0x230] sm:$0xff]
    %v533 = vld [vmem:[#allocation11 + $0x238] sm:$0xff]
    %v534 = vld [vmem:[#allocation11 + $0x240] sm:$0xff]
    %v535 = vld [vmem:[#allocation11 + $0x248] sm:$0xff]
    %v536 = vld [vmem:[#allocation11 + $0x250] sm:$0xff]
    %v537 = vld [vmem:[#allocation11 + $0x258] sm:$0xff]
    %v538 = vld [vmem:[#allocation11 + $0x260] sm:$0xff]
    %v539 = vld [vmem:[#allocation11 + $0x268] sm:$0xff]
    %v540 = vld [vmem:[#allocation11 + $0x270] sm:$0xff]
    %v541 = vld [vmem:[#allocation11 + $0x278] sm:$0xff]
    %v542 = vld [vmem:[#allocation11 + $0x280] sm:$0xff]
    %v543 = vld [vmem:[#allocation11 + $0x288] sm:$0xff]
    %v544 = vld [vmem:[#allocation11 + $0x290] sm:$0xff]
    %v545 = vld [vmem:[#allocation11 + $0x298] sm:$0xff]
    %v546 = vld [vmem:[#allocation11 + $0x2a0] sm:$0xff]
    %v547 = vld [vmem:[#allocation11 + $0x2a8] sm:$0xff]
    %v548 = vld [vmem:[#allocation11 + $0x2b0] sm:$0xff]
    %v549 = vld [vmem:[#allocation11 + $0x2b8] sm:$0xff]
    %v550 = vld [vmem:[#allocation11 + $0x2c0] sm:$0xff]
    %v551 = vld [vmem:[#allocation11 + $0x2c8] sm:$0xff]
    %v552 = vld [vmem:[#allocation11 + $0x2d0] sm:$0xff]
    %v553 = vld [vmem:[#allocation11 + $0x2d8] sm:$0xff]
    %v554 = vld [vmem:[#allocation11 + $0x2e0] sm:$0xff]
    %v555 = vld [vmem:[#allocation11 + $0x2e8] sm:$0xff]
    %v556 = vld [vmem:[#allocation11 + $0x2f0] sm:$0xff]
    %v557 = vld [vmem:[#allocation11 + $0x2f8] sm:$0xff]
    %v558 = vld [vmem:[#allocation11 + $0x300] sm:$0xff]
    %v559 = vld [vmem:[#allocation11 + $0x308] sm:$0xff]
    %v560 = vld [vmem:[#allocation11 + $0x310] sm:$0xff]
    %v561 = vld [vmem:[#allocation11 + $0x318] sm:$0xff]
    %v562 = vld [vmem:[#allocation11 + $0x320] sm:$0xff]
    %v563 = vld [vmem:[#allocation11 + $0x328] sm:$0xff]
    %v564 = vld [vmem:[#allocation11 + $0x330] sm:$0xff]
    %v565 = vld [vmem:[#allocation11 + $0x338] sm:$0xff]
    %v566 = vld [vmem:[#allocation11 + $0x340] sm:$0xff]
    %v567 = vld [vmem:[#allocation11 + $0x348] sm:$0xff]
    %v568 = vld [vmem:[#allocation11 + $0x350] sm:$0xff]
    %v569 = vld [vmem:[#allocation11 + $0x358] sm:$0xff]
    %v570 = vld [vmem:[#allocation11 + $0x360] sm:$0xff]
    %v571 = vld [vmem:[#allocation11 + $0x368] sm:$0xff]
    %v572 = vld [vmem:[#allocation11 + $0x370] sm:$0xff]
    %v573 = vld [vmem:[#allocation11 + $0x378] sm:$0xff]
    %v574 = vld [vmem:[#allocation11 + $0x380] sm:$0xff]
    %v575 = vld [vmem:[#allocation11 + $0x388] sm:$0xff]
    %v576 = vld [vmem:[#allocation11 + $0x390] sm:$0xff]
    %v577 = vld [vmem:[#allocation11 + $0x398] sm:$0xff]
    %v578 = vld [vmem:[#allocation11 + $0x3a0] sm:$0xff]
    %v579 = vld [vmem:[#allocation11 + $0x3a8] sm:$0xff]
    %v580 = vld [vmem:[#allocation11 + $0x3b0] sm:$0xff]
    %v581 = vld [vmem:[#allocation11 + $0x3b8] sm:$0xff]
    %v582 = vld [vmem:[#allocation11 + $0x3c0] sm:$0xff]
    %v583 = vld [vmem:[#allocation11 + $0x3c8] sm:$0xff]
    %v584 = vld [vmem:[#allocation11 + $0x3d0] sm:$0xff]
    %v585 = vld [vmem:[#allocation11 + $0x3d8] sm:$0xff]
    %v586 = vld [vmem:[#allocation11 + $0x3e0] sm:$0xff]
    %v587 = vld [vmem:[#allocation11 + $0x3e8] sm:$0xff]
    %v588 = vld [vmem:[#allocation11 + $0x3f0] sm:$0xff]
    %v589 = vld [vmem:[#allocation11 + $0x3f8] sm:$0xff]
    %v590 = vld [vmem:[%s9] sm:$0xf]
    %v592 = vlaneseq
    %v593 = vshrl.u32 %v592, 7
    %v594 = vsub.s32 0, %v593
    %v595 = vrot.slane %v590, %v594
    %v596 = vlaneseq
    %v597 = vshrl.u32 %v596, 7
    %v598 = vsub.s32 1, %v597
    %v599 = vrot.slane %v590, %v598
    %v600 = vlaneseq
    %v601 = vshrl.u32 %v600, 7
    %v602 = vsub.s32 2, %v601
    %v603 = vrot.slane %v590, %v602
    %v604 = vlaneseq
    %v605 = vshrl.u32 %v604, 7
    %v606 = vsub.s32 3, %v605
    %v607 = vrot.slane %v590, %v606
    %612 = vmatprep.subr.mxu0 %v463
    %613 = vmatpush1.msra.mxu0 %v462
    %614 = vmatprep.subr.mxu0 %v467
    %615 = vmatpush1.msra.mxu0 %v466
    %616 = vmatprep.subr.mxu0 %v471
    %617 = vmatpush1.msra.mxu0 %v470
    %618 = vmatprep.subr.mxu0 %v475
    %619 = vmatpush1.msra.mxu0 %v474
    %620 = vmatprep.subr.mxu0 %v479
    %621 = vmatpush1.msra.mxu0 %v478
    %622 = vmatprep.subr.mxu0 %v483
    %623 = vmatpush1.msra.mxu0 %v482
    %624 = vmatprep.subr.mxu0 %v487
    %625 = vmatpush1.msra.mxu0 %v486
    %626 = vmatprep.subr.mxu0 %v491
    %627 = vmatpush1.msra.mxu0 %v490
    %628 = vmatprep.subr.mxu0 %v495
    %629 = vmatpush1.msra.mxu0 %v494
    %630 = vmatprep.subr.mxu0 %v499
    %631 = vmatpush1.msra.mxu0 %v498
    %632 = vmatprep.subr.mxu0 %v503
    %633 = vmatpush1.msra.mxu0 %v502
    %634 = vmatprep.subr.mxu0 %v507
    %635 = vmatpush1.msra.mxu0 %v506
    %636 = vmatprep.subr.mxu0 %v511
    %637 = vmatpush1.msra.mxu0 %v510
    %638 = vmatprep.subr.mxu0 %v515
    %639 = vmatpush1.msra.mxu0 %v514
    %640 = vmatprep.subr.mxu0 %v519
    %641 = vmatpush1.msra.mxu0 %v518
    %642 = vmatprep.subr.mxu0 %v523
    %643 = vmatpush1.msra.mxu0 %v522
    %644 = vmatprep.subr.mxu0 %v527
    %645 = vmatpush1.msra.mxu0 %v526
    %646 = vmatprep.subr.mxu0 %v531
    %647 = vmatpush1.msra.mxu0 %v530
    %648 = vmatprep.subr.mxu0 %v535
    %649 = vmatpush1.msra.mxu0 %v534
    %650 = vmatprep.subr.mxu0 %v539
    %651 = vmatpush1.msra.mxu0 %v538
    %652 = vmatprep.subr.mxu0 %v543
    %653 = vmatpush1.msra.mxu0 %v542
    %654 = vmatprep.subr.mxu0 %v547
    %655 = vmatpush1.msra.mxu0 %v546
    %656 = vmatprep.subr.mxu0 %v551
    %657 = vmatpush1.msra.mxu0 %v550
    %658 = vmatprep.subr.mxu0 %v555
    %659 = vmatpush1.msra.mxu0 %v554
    %660 = vmatprep.subr.mxu0 %v559
    %661 = vmatpush1.msra.mxu0 %v558
    %662 = vmatprep.subr.mxu0 %v563
    %663 = vmatpush1.msra.mxu0 %v562
    %664 = vmatprep.subr.mxu0 %v567
    %665 = vmatpush1.msra.mxu0 %v566
    %666 = vmatprep.subr.mxu0 %v571
    %667 = vmatpush1.msra.mxu0 %v570
    %668 = vmatprep.subr.mxu0 %v575
    %669 = vmatpush1.msra.mxu0 %v574
    %670 = vmatprep.subr.mxu0 %v579
    %671 = vmatpush1.msra.mxu0 %v578
    %672 = vmatprep.subr.mxu0 %v583
    %673 = vmatpush1.msra.mxu0 %v582
    %674 = vmatprep.subr.mxu0 %v587
    %675 = vmatpush1.msra.mxu0 %v586
    %676 = vmatprep.mubr.f32.mxu0 %v447
    %677 = vmatmul.mubr.f32.gmra.mrb[0].mxu0 %v446
    %v678 = vpop.f32.mrb[0].mxu0
    %v679 = vadd.f32 %v595, %v678
    %v680 = vpop.f32.mrb[0].mxu0
    %v681 = vadd.f32 %v599, %v680
    %682 = vmatprep.mubr.f32.mxu0 %v449
    %683 = vmatmul.mubr.f32.gmra.mrb[0].mxu0 %v448
    %v684 = vpop.f32.mrb[0].mxu0
    %v685 = vadd.f32 %v595, %v684
    %v686 = vpop.f32.mrb[0].mxu0
    %v687 = vadd.f32 %v599, %v686
    %688 = vmatprep.mubr.f32.mxu0 %v451
    %689 = vmatmul.mubr.f32.gmra.mrb[0].mxu0 %v450
    %v690 = vpop.f32.mrb[0].mxu0
    %v691 = vadd.f32 %v595, %v690
    %v692 = vpop.f32.mrb[0].mxu0
    %v693 = vadd.f32 %v599, %v692
    %694 = vmatprep.mubr.f32.mxu0 %v453
    %695 = vmatmul.mubr.f32.gmra.mrb[0].mxu0 %v452
    %v696 = vpop.f32.mrb[0].mxu0
    %v697 = vadd.f32 %v595, %v696
    %v698 = vpop.f32.mrb[0].mxu0
    %v699 = vadd.f32 %v599, %v698
    %700 = vmatprep.mubr.f32.mxu0 %v455
    %701 = vmatmul.mubr.f32.gmra.mrb[0].mxu0 %v454
    %v702 = vpop.f32.mrb[0].mxu0
    %v703 = vadd.f32 %v595, %v702
    %v704 = vpop.f32.mrb[0].mxu0
    %v705 = vadd.f32 %v599, %v704
    %706 = vmatprep.mubr.f32.mxu0 %v457
    %707 = vmatmul.mubr.f32.gmra.mrb[0].mxu0 %v456
    %v708 = vpop.f32.mrb[0].mxu0
    %v709 = vadd.f32 %v595, %v708
    %v710 = vpop.f32.mrb[0].mxu0
    %v711 = vadd.f32 %v599, %v710
    %712 = vmatprep.mubr.f32.mxu0 %v459
    %713 = vmatmul.mubr.f32.gmra.mrb[0].mxu0 %v458
    %v714 = vpop.f32.mrb[0].mxu0
    %v715 = vadd.f32 %v595, %v714
    %v716 = vpop.f32.mrb[0].mxu0
    %v717 = vadd.f32 %v599, %v716
    %718 = vmatprep.mubr.f32.mxu0 %v461
    %719 = vmatmul.mubr.f32.gmra.mrb[0].mxu0 %v460
    %v720 = vpop.f32.mrb[0].mxu0
    %v721 = vadd.f32 %v595, %v720
    %v722 = vpop.f32.mrb[0].mxu0
    %v723 = vadd.f32 %v599, %v722
    %724 = vdwg.mxu0
    %725 = vmatprep.subr.mxu0 %v465
    %726 = vmatpush1.msra.mxu0 %v464
    %727 = vmatprep.subr.mxu0 %v469
    %728 = vmatpush1.msra.mxu0 %v468
    %729 = vmatprep.subr.mxu0 %v473
    %730 = vmatpush1.msra.mxu0 %v472
    %731 = vmatprep.subr.mxu0 %v477
    %732 = vmatpush1.msra.mxu0 %v476
    %733 = vmatprep.subr.mxu0 %v481
    %734 = vmatpush1.msra.mxu0 %v480
    %735 = vmatprep.subr.mxu0 %v485
    %736 = vmatpush1.msra.mxu0 %v484
    %737 = vmatprep.subr.mxu0 %v489
    %738 = vmatpush1.msra.mxu0 %v488
    %739 = vmatprep.subr.mxu0 %v493
    %740 = vmatpush1.msra.mxu0 %v492
    %741 = vmatprep.subr.mxu0 %v497
    %742 = vmatpush1.msra.mxu0 %v496
    %743 = vmatprep.subr.mxu0 %v501
    %744 = vmatpush1.msra.mxu0 %v500
    %745 = vmatprep.subr.mxu0 %v505
    %746 = vmatpush1.msra.mxu0 %v504
    %747 = vmatprep.subr.mxu0 %v509
    %748 = vmatpush1.msra.mxu0 %v508
    %749 = vmatprep.subr.mxu0 %v513
    %750 = vmatpush1.msra.mxu0 %v512
    %751 = vmatprep.subr.mxu0 %v517
    %752 = vmatpush1.msra.mxu0 %v516
    %753 = vmatprep.subr.mxu0 %v521
    %754 = vmatpush1.msra.mxu0 %v520
    %755 = vmatprep.subr.mxu0 %v525
    %756 = vmatpush1.msra.mxu0 %v524
    %757 = vmatprep.subr.mxu0 %v529
    %758 = vmatpush1.msra.mxu0 %v528
    %759 = vmatprep.subr.mxu0 %v533
    %760 = vmatpush1.msra.mxu0 %v532
    %761 = vmatprep.subr.mxu0 %v537
    %762 = vmatpush1.msra.mxu0 %v536
    %763 = vmatprep.subr.mxu0 %v541
    %764 = vmatpush1.msra.mxu0 %v540
    %765 = vmatprep.subr.mxu0 %v545
    %766 = vmatpush1.msra.mxu0 %v544
    %767 = vmatprep.subr.mxu0 %v549
    %768 = vmatpush1.msra.mxu0 %v548
    %769 = vmatprep.subr.mxu0 %v553
    %770 = vmatpush1.msra.mxu0 %v552
    %771 = vmatprep.subr.mxu0 %v557
    %772 = vmatpush1.msra.mxu0 %v556
    %773 = vmatprep.subr.mxu0 %v561
    %774 = vmatpush1.msra.mxu0 %v560
    %775 = vmatprep.subr.mxu0 %v565
    %776 = vmatpush1.msra.mxu0 %v564
    %777 = vmatprep.subr.mxu0 %v569
    %778 = vmatpush1.msra.mxu0 %v568
    %779 = vmatprep.subr.mxu0 %v573
    %780 = vmatpush1.msra.mxu0 %v572
    %781 = vmatprep.subr.mxu0 %v577
    %782 = vmatpush1.msra.mxu0 %v576
    %783 = vmatprep.subr.mxu0 %v581
    %784 = vmatpush1.msra.mxu0 %v580
    %785 = vmatprep.subr.mxu0 %v585
    %786 = vmatpush1.msra.mxu0 %v584
    %787 = vmatprep.subr.mxu0 %v589
    %788 = vmatpush1.msra.mxu0 %v588
    %789 = vmatprep.mubr.f32.mxu0 %v447
    %790 = vmatmul.mubr.f32.gmra.mrb[0].mxu0 %v446
    %v791 = vpop.f32.mrb[0].mxu0
    %v792 = vadd.f32 %v603, %v791
    %v793 = vpop.f32.mrb[0].mxu0
    %v794 = vadd.f32 %v607, %v793
    %795 = vmatprep.mubr.f32.mxu0 %v449
    %796 = vmatmul.mubr.f32.gmra.mrb[0].mxu0 %v448
    %v797 = vpop.f32.mrb[0].mxu0
    %v798 = vadd.f32 %v603, %v797
    %v799 = vpop.f32.mrb[0].mxu0
    %v800 = vadd.f32 %v607, %v799
    %801 = vmatprep.mubr.f32.mxu0 %v451
    %802 = vmatmul.mubr.f32.gmra.mrb[0].mxu0 %v450
    %v803 = vpop.f32.mrb[0].mxu0
    %v804 = vadd.f32 %v603, %v803
    %v805 = vpop.f32.mrb[0].mxu0
    %v806 = vadd.f32 %v607, %v805
    %807 = vmatprep.mubr.f32.mxu0 %v453
    %808 = vmatmul.mubr.f32.gmra.mrb[0].mxu0 %v452
    %v809 = vpop.f32.mrb[0].mxu0
    %v810 = vadd.f32 %v603, %v809
    %v811 = vpop.f32.mrb[0].mxu0
    %v812 = vadd.f32 %v607, %v811
    %813 = vmatprep.mubr.f32.mxu0 %v455
    %814 = vmatmul.mubr.f32.gmra.mrb[0].mxu0 %v454
    %v815 = vpop.f32.mrb[0].mxu0
    %v816 = vadd.f32 %v603, %v815
    %v817 = vpop.f32.mrb[0].mxu0
    %v818 = vadd.f32 %v607, %v817
    %819 = vmatprep.mubr.f32.mxu0 %v457
    %820 = vmatmul.mubr.f32.gmra.mrb[0].mxu0 %v456
    %v821 = vpop.f32.mrb[0].mxu0
    %v822 = vadd.f32 %v603, %v821
    %v823 = vpop.f32.mrb[0].mxu0
    %v824 = vadd.f32 %v607, %v823
    %825 = vmatprep.mubr.f32.mxu0 %v459
    %826 = vmatmul.mubr.f32.gmra.mrb[0].mxu0 %v458
    %v827 = vpop.f32.mrb[0].mxu0
    %v828 = vadd.f32 %v603, %v827
    %v829 = vpop.f32.mrb[0].mxu0
    %v830 = vadd.f32 %v607, %v829
    %831 = vmatprep.mubr.f32.mxu0 %v461
    %832 = vmatmul.mubr.f32.gmra.mrb[0].mxu0 %v460
    %v833 = vpop.f32.mrb[0].mxu0
    %v834 = vadd.f32 %v603, %v833
    %v835 = vpop.f32.mrb[0].mxu0
    %v836 = vadd.f32 %v607, %v835
    %837 = vdwg.mxu0
    %838 = vst [vmem:[#allocation2] sm:$0xff] %v679
    %839 = vst [vmem:[#allocation2 + $0x8] sm:$0xff] %v681
    %840 = vst [vmem:[#allocation2 + $0x10] sm:$0xff] %v792
    %841 = vst [vmem:[#allocation2 + $0x18] sm:$0xff] %v794
    %842 = vst [vmem:[#allocation2 + $0x20] sm:$0xff] %v685
    %843 = vst [vmem:[#allocation2 + $0x28] sm:$0xff] %v687
    %844 = vst [vmem:[#allocation2 + $0x30] sm:$0xff] %v798
    %845 = vst [vmem:[#allocation2 + $0x38] sm:$0xff] %v800
    %846 = vst [vmem:[#allocation2 + $0x40] sm:$0xff] %v691
    %847 = vst [vmem:[#allocation2 + $0x48] sm:$0xff] %v693
    %848 = vst [vmem:[#allocation2 + $0x50] sm:$0xff] %v804
    %849 = vst [vmem:[#allocation2 + $0x58] sm:$0xff] %v806
    %850 = vst [vmem:[#allocation2 + $0x60] sm:$0xff] %v697
    %851 = vst [vmem:[#allocation2 + $0x68] sm:$0xff] %v699
    %852 = vst [vmem:[#allocation2 + $0x70] sm:$0xff] %v810
    %853 = vst [vmem:[#allocation2 + $0x78] sm:$0xff] %v812
    %854 = vst [vmem:[#allocation2 + $0x80] sm:$0xff] %v703
    %855 = vst [vmem:[#allocation2 + $0x88] sm:$0xff] %v705
    %856 = vst [vmem:[#allocation2 + $0x90] sm:$0xff] %v816
    %857 = vst [vmem:[#allocation2 + $0x98] sm:$0xff] %v818
    %858 = vst [vmem:[#allocation2 + $0xa0] sm:$0xff] %v709
    %859 = vst [vmem:[#allocation2 + $0xa8] sm:$0xff] %v711
    %860 = vst [vmem:[#allocation2 + $0xb0] sm:$0xff] %v822
    %861 = vst [vmem:[#allocation2 + $0xb8] sm:$0xff] %v824
    %862 = vst [vmem:[#allocation2 + $0xc0] sm:$0xff] %v715
    %863 = vst [vmem:[#allocation2 + $0xc8] sm:$0xff] %v717
    %864 = vst [vmem:[#allocation2 + $0xd0] sm:$0xff] %v828
    %865 = vst [vmem:[#allocation2 + $0xd8] sm:$0xff] %v830
    %866 = vst [vmem:[#allocation2 + $0xe0] sm:$0xff] %v721
    %867 = vst [vmem:[#allocation2 + $0xe8] sm:$0xff] %v723
    %868 = vst [vmem:[#allocation2 + $0xf0] sm:$0xff] %v834
    %869 = vst [vmem:[#allocation2 + $0xf8] sm:$0xff] %v836
    %v870 = vld [vmem:[#allocation14] sm:$0xff]
    %v871 = vld [vmem:[#allocation14 + $0x8] sm:$0xff]
    %v872 = vld [vmem:[#allocation14 + $0x10] sm:$0xff]
    %v873 = vld [vmem:[#allocation14 + $0x18] sm:$0xff]
    %v874 = vld [vmem:[#allocation14 + $0x20] sm:$0xff]
    %v875 = vld [vmem:[#allocation14 + $0x28] sm:$0xff]
    %v876 = vld [vmem:[#allocation14 + $0x30] sm:$0xff]
    %v877 = vld [vmem:[#allocation14 + $0x38] sm:$0xff]
    %v878 = vld [vmem:[#allocation14 + $0x40] sm:$0xff]
    %v879 = vld [vmem:[#allocation14 + $0x48] sm:$0xff]
    %v880 = vld [vmem:[#allocation14 + $0x50] sm:$0xff]
    %v881 = vld [vmem:[#allocation14 + $0x58] sm:$0xff]
    %v882 = vld [vmem:[#allocation14 + $0x60] sm:$0xff]
    %v883 = vld [vmem:[#allocation14 + $0x68] sm:$0xff]
    %v884 = vld [vmem:[#allocation14 + $0x70] sm:$0xff]
    %v885 = vld [vmem:[#allocation14 + $0x78] sm:$0xff]
    %v886 = vld [vmem:[#allocation14 + $0x80] sm:$0xff]
    %v887 = vld [vmem:[#allocation14 + $0x88] sm:$0xff]
    %v888 = vld [vmem:[#allocation14 + $0x90] sm:$0xff]
    %v889 = vld [vmem:[#allocation14 + $0x98] sm:$0xff]
    %v890 = vld [vmem:[#allocation14 + $0xa0] sm:$0xff]
    %v891 = vld [vmem:[#allocation14 + $0xa8] sm:$0xff]
    %v892 = vld [vmem:[#allocation14 + $0xb0] sm:$0xff]
    %v893 = vld [vmem:[#allocation14 + $0xb8] sm:$0xff]
    %v894 = vld [vmem:[#allocation14 + $0xc0] sm:$0xff]
    %v895 = vld [vmem:[#allocation14 + $0xc8] sm:$0xff]
    %v896 = vld [vmem:[#allocation14 + $0xd0] sm:$0xff]
    %v897 = vld [vmem:[#allocation14 + $0xd8] sm:$0xff]
    %v898 = vld [vmem:[#allocation14 + $0xe0] sm:$0xff]
    %v899 = vld [vmem:[#allocation14 + $0xe8] sm:$0xff]
    %v900 = vld [vmem:[#allocation14 + $0xf0] sm:$0xff]
    %v901 = vld [vmem:[#allocation14 + $0xf8] sm:$0xff]
    %v902 = vld [vmem:[#allocation14 + $0x100] sm:$0xff]
    %v903 = vld [vmem:[#allocation14 + $0x108] sm:$0xff]
    %v904 = vld [vmem:[#allocation14 + $0x110] sm:$0xff]
    %v905 = vld [vmem:[#allocation14 + $0x118] sm:$0xff]
    %v906 = vld [vmem:[#allocation14 + $0x120] sm:$0xff]
    %v907 = vld [vmem:[#allocation14 + $0x128] sm:$0xff]
    %v908 = vld [vmem:[#allocation14 + $0x130] sm:$0xff]
    %v909 = vld [vmem:[#allocation14 + $0x138] sm:$0xff]
    %v910 = vld [vmem:[#allocation14 + $0x140] sm:$0xff]
    %v911 = vld [vmem:[#allocation14 + $0x148] sm:$0xff]
    %v912 = vld [vmem:[#allocation14 + $0x150] sm:$0xff]
    %v913 = vld [vmem:[#allocation14 + $0x158] sm:$0xff]
    %v914 = vld [vmem:[#allocation14 + $0x160] sm:$0xff]
    %v915 = vld [vmem:[#allocation14 + $0x168] sm:$0xff]
    %v916 = vld [vmem:[#allocation14 + $0x170] sm:$0xff]
    %v917 = vld [vmem:[#allocation14 + $0x178] sm:$0xff]
    %v918 = vld [vmem:[#allocation14 + $0x180] sm:$0xff]
    %v919 = vld [vmem:[#allocation14 + $0x188] sm:$0xff]
    %v920 = vld [vmem:[#allocation14 + $0x190] sm:$0xff]
    %v921 = vld [vmem:[#allocation14 + $0x198] sm:$0xff]
    %v922 = vld [vmem:[#allocation14 + $0x1a0] sm:$0xff]
    %v923 = vld [vmem:[#allocation14 + $0x1a8] sm:$0xff]
    %v924 = vld [vmem:[#allocation14 + $0x1b0] sm:$0xff]
    %v925 = vld [vmem:[#allocation14 + $0x1b8] sm:$0xff]
    %v926 = vld [vmem:[#allocation14 + $0x1c0] sm:$0xff]
    %v927 = vld [vmem:[#allocation14 + $0x1c8] sm:$0xff]
    %v928 = vld [vmem:[#allocation14 + $0x1d0] sm:$0xff]
    %v929 = vld [vmem:[#allocation14 + $0x1d8] sm:$0xff]
    %v930 = vld [vmem:[#allocation14 + $0x1e0] sm:$0xff]
    %v931 = vld [vmem:[#allocation14 + $0x1e8] sm:$0xff]
    %v932 = vld [vmem:[#allocation14 + $0x1f0] sm:$0xff]
    %v933 = vld [vmem:[#allocation14 + $0x1f8] sm:$0xff]
    %v934 = vld [vmem:[#allocation14 + $0x200] sm:$0xff]
    %v935 = vld [vmem:[#allocation14 + $0x208] sm:$0xff]
    %v936 = vld [vmem:[#allocation14 + $0x210] sm:$0xff]
    %v937 = vld [vmem:[#allocation14 + $0x218] sm:$0xff]
    %v938 = vld [vmem:[#allocation14 + $0x220] sm:$0xff]
    %v939 = vld [vmem:[#allocation14 + $0x228] sm:$0xff]
    %v940 = vld [vmem:[#allocation14 + $0x230] sm:$0xff]
    %v941 = vld [vmem:[#allocation14 + $0x238] sm:$0xff]
    %v942 = vld [vmem:[#allocation14 + $0x240] sm:$0xff]
    %v943 = vld [vmem:[#allocation14 + $0x248] sm:$0xff]
    %v944 = vld [vmem:[#allocation14 + $0x250] sm:$0xff]
    %v945 = vld [vmem:[#allocation14 + $0x258] sm:$0xff]
    %v946 = vld [vmem:[#allocation14 + $0x260] sm:$0xff]
    %v947 = vld [vmem:[#allocation14 + $0x268] sm:$0xff]
    %v948 = vld [vmem:[#allocation14 + $0x270] sm:$0xff]
    %v949 = vld [vmem:[#allocation14 + $0x278] sm:$0xff]
    %v950 = vld [vmem:[#allocation14 + $0x280] sm:$0xff]
    %v951 = vld [vmem:[#allocation14 + $0x288] sm:$0xff]
    %v952 = vld [vmem:[#allocation14 + $0x290] sm:$0xff]
    %v953 = vld [vmem:[#allocation14 + $0x298] sm:$0xff]
    %v954 = vld [vmem:[#allocation14 + $0x2a0] sm:$0xff]
    %v955 = vld [vmem:[#allocation14 + $0x2a8] sm:$0xff]
    %v956 = vld [vmem:[#allocation14 + $0x2b0] sm:$0xff]
    %v957 = vld [vmem:[#allocation14 + $0x2b8] sm:$0xff]
    %v958 = vld [vmem:[#allocation14 + $0x2c0] sm:$0xff]
    %v959 = vld [vmem:[#allocation14 + $0x2c8] sm:$0xff]
    %v960 = vld [vmem:[#allocation14 + $0x2d0] sm:$0xff]
    %v961 = vld [vmem:[#allocation14 + $0x2d8] sm:$0xff]
    %v962 = vld [vmem:[#allocation14 + $0x2e0] sm:$0xff]
    %v963 = vld [vmem:[#allocation14 + $0x2e8] sm:$0xff]
    %v964 = vld [vmem:[#allocation14 + $0x2f0] sm:$0xff]
    %v965 = vld [vmem:[#allocation14 + $0x2f8] sm:$0xff]
    %v966 = vld [vmem:[#allocation14 + $0x300] sm:$0xff]
    %v967 = vld [vmem:[#allocation14 + $0x308] sm:$0xff]
    %v968 = vld [vmem:[#allocation14 + $0x310] sm:$0xff]
    %v969 = vld [vmem:[#allocation14 + $0x318] sm:$0xff]
    %v970 = vld [vmem:[#allocation14 + $0x320] sm:$0xff]
    %v971 = vld [vmem:[#allocation14 + $0x328] sm:$0xff]
    %v972 = vld [vmem:[#allocation14 + $0x330] sm:$0xff]
    %v973 = vld [vmem:[#allocation14 + $0x338] sm:$0xff]
    %v974 = vld [vmem:[#allocation14 + $0x340] sm:$0xff]
    %v975 = vld [vmem:[#allocation14 + $0x348] sm:$0xff]
    %v976 = vld [vmem:[#allocation14 + $0x350] sm:$0xff]
    %v977 = vld [vmem:[#allocation14 + $0x358] sm:$0xff]
    %v978 = vld [vmem:[#allocation14 + $0x360] sm:$0xff]
    %v979 = vld [vmem:[#allocation14 + $0x368] sm:$0xff]
    %v980 = vld [vmem:[#allocation14 + $0x370] sm:$0xff]
    %v981 = vld [vmem:[#allocation14 + $0x378] sm:$0xff]
    %v982 = vld [vmem:[#allocation14 + $0x380] sm:$0xff]
    %v983 = vld [vmem:[#allocation14 + $0x388] sm:$0xff]
    %v984 = vld [vmem:[#allocation14 + $0x390] sm:$0xff]
    %v985 = vld [vmem:[#allocation14 + $0x398] sm:$0xff]
    %v986 = vld [vmem:[#allocation14 + $0x3a0] sm:$0xff]
    %v987 = vld [vmem:[#allocation14 + $0x3a8] sm:$0xff]
    %v988 = vld [vmem:[#allocation14 + $0x3b0] sm:$0xff]
    %v989 = vld [vmem:[#allocation14 + $0x3b8] sm:$0xff]
    %v990 = vld [vmem:[#allocation14 + $0x3c0] sm:$0xff]
    %v991 = vld [vmem:[#allocation14 + $0x3c8] sm:$0xff]
    %v992 = vld [vmem:[#allocation14 + $0x3d0] sm:$0xff]
    %v993 = vld [vmem:[#allocation14 + $0x3d8] sm:$0xff]
    %v994 = vld [vmem:[#allocation14 + $0x3e0] sm:$0xff]
    %v995 = vld [vmem:[#allocation14 + $0x3e8] sm:$0xff]
    %v996 = vld [vmem:[#allocation14 + $0x3f0] sm:$0xff]
    %v997 = vld [vmem:[#allocation14 + $0x3f8] sm:$0xff]
    %v998 = vld [vmem:[%s15] sm:$0xf]
    %v1000 = vlaneseq
    %v1001 = vshrl.u32 %v1000, 7
    %v1002 = vsub.s32 0, %v1001
    %v1003 = vrot.slane %v998, %v1002
    %v1004 = vlaneseq
    %v1005 = vshrl.u32 %v1004, 7
    %v1006 = vsub.s32 1, %v1005
    %v1007 = vrot.slane %v998, %v1006
    %v1008 = vlaneseq
    %v1009 = vshrl.u32 %v1008, 7
    %v1010 = vsub.s32 2, %v1009
    %v1011 = vrot.slane %v998, %v1010
    %v1012 = vlaneseq
    %v1013 = vshrl.u32 %v1012, 7
    %v1014 = vsub.s32 3, %v1013
    %v1015 = vrot.slane %v998, %v1014
    %1020 = vmatprep.subr.mxu0 %v871
    %1021 = vmatpush1.msra.mxu0 %v870
    %1022 = vmatprep.subr.mxu0 %v875
    %1023 = vmatpush1.msra.mxu0 %v874
    %1024 = vmatprep.subr.mxu0 %v879
    %1025 = vmatpush1.msra.mxu0 %v878
    %1026 = vmatprep.subr.mxu0 %v883
    %1027 = vmatpush1.msra.mxu0 %v882
    %1028 = vmatprep.subr.mxu0 %v887
    %1029 = vmatpush1.msra.mxu0 %v886
    %1030 = vmatprep.subr.mxu0 %v891
    %1031 = vmatpush1.msra.mxu0 %v890
    %1032 = vmatprep.subr.mxu0 %v895
    %1033 = vmatpush1.msra.mxu0 %v894
    %1034 = vmatprep.subr.mxu0 %v899
    %1035 = vmatpush1.msra.mxu0 %v898
    %1036 = vmatprep.subr.mxu0 %v903
    %1037 = vmatpush1.msra.mxu0 %v902
    %1038 = vmatprep.subr.mxu0 %v907
    %1039 = vmatpush1.msra.mxu0 %v906
    %1040 = vmatprep.subr.mxu0 %v911
    %1041 = vmatpush1.msra.mxu0 %v910
    %1042 = vmatprep.subr.mxu0 %v915
    %1043 = vmatpush1.msra.mxu0 %v914
    %1044 = vmatprep.subr.mxu0 %v919
    %1045 = vmatpush1.msra.mxu0 %v918
    %1046 = vmatprep.subr.mxu0 %v923
    %1047 = vmatpush1.msra.mxu0 %v922
    %1048 = vmatprep.subr.mxu0 %v927
    %1049 = vmatpush1.msra.mxu0 %v926
    %1050 = vmatprep.subr.mxu0 %v931
    %1051 = vmatpush1.msra.mxu0 %v930
    %1052 = vmatprep.subr.mxu0 %v935
    %1053 = vmatpush1.msra.mxu0 %v934
    %1054 = vmatprep.subr.mxu0 %v939
    %1055 = vmatpush1.msra.mxu0 %v938
    %1056 = vmatprep.subr.mxu0 %v943
    %1057 = vmatpush1.msra.mxu0 %v942
    %1058 = vmatprep.subr.mxu0 %v947
    %1059 = vmatpush1.msra.mxu0 %v946
    %1060 = vmatprep.subr.mxu0 %v951
    %1061 = vmatpush1.msra.mxu0 %v950
    %1062 = vmatprep.subr.mxu0 %v955
    %1063 = vmatpush1.msra.mxu0 %v954
    %1064 = vmatprep.subr.mxu0 %v959
    %1065 = vmatpush1.msra.mxu0 %v958
    %1066 = vmatprep.subr.mxu0 %v963
    %1067 = vmatpush1.msra.mxu0 %v962
    %1068 = vmatprep.subr.mxu0 %v967
    %1069 = vmatpush1.msra.mxu0 %v966
    %1070 = vmatprep.subr.mxu0 %v971
    %1071 = vmatpush1.msra.mxu0 %v970
    %1072 = vmatprep.subr.mxu0 %v975
    %1073 = vmatpush1.msra.mxu0 %v974
    %1074 = vmatprep.subr.mxu0 %v979
    %1075 = vmatpush1.msra.mxu0 %v978
    %1076 = vmatprep.subr.mxu0 %v983
    %1077 = vmatpush1.msra.mxu0 %v982
    %1078 = vmatprep.subr.mxu0 %v987
    %1079 = vmatpush1.msra.mxu0 %v986
    %1080 = vmatprep.subr.mxu0 %v991
    %1081 = vmatpush1.msra.mxu0 %v990
    %1082 = vmatprep.subr.mxu0 %v995
    %1083 = vmatpush1.msra.mxu0 %v994
    %1084 = vmatprep.mubr.f32.mxu0 %v447
    %1085 = vmatmul.mubr.f32.gmra.mrb[0].mxu0 %v446
    %v1086 = vpop.f32.mrb[0].mxu0
    %v1087 = vadd.f32 %v1003, %v1086
    %v1088 = vpop.f32.mrb[0].mxu0
    %v1089 = vadd.f32 %v1007, %v1088
    %1090 = vmatprep.mubr.f32.mxu0 %v449
    %1091 = vmatmul.mubr.f32.gmra.mrb[0].mxu0 %v448
    %v1092 = vpop.f32.mrb[0].mxu0
    %v1093 = vadd.f32 %v1003, %v1092
    %v1094 = vpop.f32.mrb[0].mxu0
    %v1095 = vadd.f32 %v1007, %v1094
    %1096 = vmatprep.mubr.f32.mxu0 %v451
    %1097 = vmatmul.mubr.f32.gmra.mrb[0].mxu0 %v450
    %v1098 = vpop.f32.mrb[0].mxu0
    %v1099 = vadd.f32 %v1003, %v1098
    %v1100 = vpop.f32.mrb[0].mxu0
    %v1101 = vadd.f32 %v1007, %v1100
    %1102 = vmatprep.mubr.f32.mxu0 %v453
    %1103 = vmatmul.mubr.f32.gmra.mrb[0].mxu0 %v452
    %v1104 = vpop.f32.mrb[0].mxu0
    %v1105 = vadd.f32 %v1003, %v1104
    %v1106 = vpop.f32.mrb[0].mxu0
    %v1107 = vadd.f32 %v1007, %v1106
    %1108 = vmatprep.mubr.f32.mxu0 %v455
    %1109 = vmatmul.mubr.f32.gmra.mrb[0].mxu0 %v454
    %v1110 = vpop.f32.mrb[0].mxu0
    %v1111 = vadd.f32 %v1003, %v1110
    %v1112 = vpop.f32.mrb[0].mxu0
    %v1113 = vadd.f32 %v1007, %v1112
    %1114 = vmatprep.mubr.f32.mxu0 %v457
    %1115 = vmatmul.mubr.f32.gmra.mrb[0].mxu0 %v456
    %v1116 = vpop.f32.mrb[0].mxu0
    %v1117 = vadd.f32 %v1003, %v1116
    %v1118 = vpop.f32.mrb[0].mxu0
    %v1119 = vadd.f32 %v1007, %v1118
    %1120 = vmatprep.mubr.f32.mxu0 %v459
    %1121 = vmatmul.mubr.f32.gmra.mrb[0].mxu0 %v458
    %v1122 = vpop.f32.mrb[0].mxu0
    %v1123 = vadd.f32 %v1003, %v1122
    %v1124 = vpop.f32.mrb[0].mxu0
    %v1125 = vadd.f32 %v1007, %v1124
    %1126 = vmatprep.mubr.f32.mxu0 %v461
    %1127 = vmatmul.mubr.f32.gmra.mrb[0].mxu0 %v460
    %v1128 = vpop.f32.mrb[0].mxu0
    %v1129 = vadd.f32 %v1003, %v1128
    %v1130 = vpop.f32.mrb[0].mxu0
    %v1131 = vadd.f32 %v1007, %v1130
    %1132 = vdwg.mxu0
    %1133 = vmatprep.subr.mxu0 %v873
    %1134 = vmatpush1.msra.mxu0 %v872
    %1135 = vmatprep.subr.mxu0 %v877
    %1136 = vmatpush1.msra.mxu0 %v876
    %1137 = vmatprep.subr.mxu0 %v881
    %1138 = vmatpush1.msra.mxu0 %v880
    %1139 = vmatprep.subr.mxu0 %v885
    %1140 = vmatpush1.msra.mxu0 %v884
    %1141 = vmatprep.subr.mxu0 %v889
    %1142 = vmatpush1.msra.mxu0 %v888
    %1143 = vmatprep.subr.mxu0 %v893
    %1144 = vmatpush1.msra.mxu0 %v892
    %1145 = vmatprep.subr.mxu0 %v897
    %1146 = vmatpush1.msra.mxu0 %v896
    %1147 = vmatprep.subr.mxu0 %v901
    %1148 = vmatpush1.msra.mxu0 %v900
    %1149 = vmatprep.subr.mxu0 %v905
    %1150 = vmatpush1.msra.mxu0 %v904
    %1151 = vmatprep.subr.mxu0 %v909
    %1152 = vmatpush1.msra.mxu0 %v908
    %1153 = vmatprep.subr.mxu0 %v913
    %1154 = vmatpush1.msra.mxu0 %v912
    %1155 = vmatprep.subr.mxu0 %v917
    %1156 = vmatpush1.msra.mxu0 %v916
    %1157 = vmatprep.subr.mxu0 %v921
    %1158 = vmatpush1.msra.mxu0 %v920
    %1159 = vmatprep.subr.mxu0 %v925
    %1160 = vmatpush1.msra.mxu0 %v924
    %1161 = vmatprep.subr.mxu0 %v929
    %1162 = vmatpush1.msra.mxu0 %v928
    %1163 = vmatprep.subr.mxu0 %v933
    %1164 = vmatpush1.msra.mxu0 %v932
    %1165 = vmatprep.subr.mxu0 %v937
    %1166 = vmatpush1.msra.mxu0 %v936
    %1167 = vmatprep.subr.mxu0 %v941
    %1168 = vmatpush1.msra.mxu0 %v940
    %1169 = vmatprep.subr.mxu0 %v945
    %1170 = vmatpush1.msra.mxu0 %v944
    %1171 = vmatprep.subr.mxu0 %v949
    %1172 = vmatpush1.msra.mxu0 %v948
    %1173 = vmatprep.subr.mxu0 %v953
    %1174 = vmatpush1.msra.mxu0 %v952
    %1175 = vmatprep.subr.mxu0 %v957
    %1176 = vmatpush1.msra.mxu0 %v956
    %1177 = vmatprep.subr.mxu0 %v961
    %1178 = vmatpush1.msra.mxu0 %v960
    %1179 = vmatprep.subr.mxu0 %v965
    %1180 = vmatpush1.msra.mxu0 %v964
    %1181 = vmatprep.subr.mxu0 %v969
    %1182 = vmatpush1.msra.mxu0 %v968
    %1183 = vmatprep.subr.mxu0 %v973
    %1184 = vmatpush1.msra.mxu0 %v972
    %1185 = vmatprep.subr.mxu0 %v977
    %1186 = vmatpush1.msra.mxu0 %v976
    %1187 = vmatprep.subr.mxu0 %v981
    %1188 = vmatpush1.msra.mxu0 %v980
    %1189 = vmatprep.subr.mxu0 %v985
    %1190 = vmatpush1.msra.mxu0 %v984
    %1191 = vmatprep.subr.mxu0 %v989
    %1192 = vmatpush1.msra.mxu0 %v988
    %1193 = vmatprep.subr.mxu0 %v993
    %1194 = vmatpush1.msra.mxu0 %v992
    %1195 = vmatprep.subr.mxu0 %v997
    %1196 = vmatpush1.msra.mxu0 %v996
    %1197 = vmatprep.mubr.f32.mxu0 %v447
    %1198 = vmatmul.mubr.f32.gmra.mrb[0].mxu0 %v446
    %v1199 = vpop.f32.mrb[0].mxu0
    %v1200 = vadd.f32 %v1011, %v1199
    %v1201 = vpop.f32.mrb[0].mxu0
    %v1202 = vadd.f32 %v1015, %v1201
    %1203 = vmatprep.mubr.f32.mxu0 %v449
    %1204 = vmatmul.mubr.f32.gmra.mrb[0].mxu0 %v448
    %v1205 = vpop.f32.mrb[0].mxu0
    %v1206 = vadd.f32 %v1011, %v1205
    %v1207 = vpop.f32.mrb[0].mxu0
    %v1208 = vadd.f32 %v1015, %v1207
    %1209 = vmatprep.mubr.f32.mxu0 %v451
    %1210 = vmatmul.mubr.f32.gmra.mrb[0].mxu0 %v450
    %v1211 = vpop.f32.mrb[0].mxu0
    %v1212 = vadd.f32 %v1011, %v1211
    %v1213 = vpop.f32.mrb[0].mxu0
    %v1214 = vadd.f32 %v1015, %v1213
    %1215 = vmatprep.mubr.f32.mxu0 %v453
    %1216 = vmatmul.mubr.f32.gmra.mrb[0].mxu0 %v452
    %v1217 = vpop.f32.mrb[0].mxu0
    %v1218 = vadd.f32 %v1011, %v1217
    %v1219 = vpop.f32.mrb[0].mxu0
    %v1220 = vadd.f32 %v1015, %v1219
    %1221 = vmatprep.mubr.f32.mxu0 %v455
    %1222 = vmatmul.mubr.f32.gmra.mrb[0].mxu0 %v454
    %v1223 = vpop.f32.mrb[0].mxu0
    %v1224 = vadd.f32 %v1011, %v1223
    %v1225 = vpop.f32.mrb[0].mxu0
    %v1226 = vadd.f32 %v1015, %v1225
    %1227 = vmatprep.mubr.f32.mxu0 %v457
    %1228 = vmatmul.mubr.f32.gmra.mrb[0].mxu0 %v456
    %v1229 = vpop.f32.mrb[0].mxu0
    %v1230 = vadd.f32 %v1011, %v1229
    %v1231 = vpop.f32.mrb[0].mxu0
    %v1232 = vadd.f32 %v1015, %v1231
    %1233 = vmatprep.mubr.f32.mxu0 %v459
    %1234 = vmatmul.mubr.f32.gmra.mrb[0].mxu0 %v458
    %v1235 = vpop.f32.mrb[0].mxu0
    %v1236 = vadd.f32 %v1011, %v1235
    %v1237 = vpop.f32.mrb[0].mxu0
    %v1238 = vadd.f32 %v1015, %v1237
    %1239 = vmatprep.mubr.f32.mxu0 %v461
    %1240 = vmatmul.mubr.f32.gmra.mrb[0].mxu0 %v460
    %v1241 = vpop.f32.mrb[0].mxu0
    %v1242 = vadd.f32 %v1011, %v1241
    %v1243 = vpop.f32.mrb[0].mxu0
    %v1244 = vadd.f32 %v1015, %v1243
    %1245 = vdwg.mxu0
    %1246 = vst [vmem:[#allocation3] sm:$0xff] %v1087
    %1247 = vst [vmem:[#allocation3 + $0x8] sm:$0xff] %v1089
    %1248 = vst [vmem:[#allocation3 + $0x10] sm:$0xff] %v1200
    %1249 = vst [vmem:[#allocation3 + $0x18] sm:$0xff] %v1202
    %1250 = vst [vmem:[#allocation3 + $0x20] sm:$0xff] %v1093
    %1251 = vst [vmem:[#allocation3 + $0x28] sm:$0xff] %v1095
    %1252 = vst [vmem:[#allocation3 + $0x30] sm:$0xff] %v1206
    %1253 = vst [vmem:[#allocation3 + $0x38] sm:$0xff] %v1208
    %1254 = vst [vmem:[#allocation3 + $0x40] sm:$0xff] %v1099
    %1255 = vst [vmem:[#allocation3 + $0x48] sm:$0xff] %v1101
    %1256 = vst [vmem:[#allocation3 + $0x50] sm:$0xff] %v1212
    %1257 = vst [vmem:[#allocation3 + $0x58] sm:$0xff] %v1214
    %1258 = vst [vmem:[#allocation3 + $0x60] sm:$0xff] %v1105
    %1259 = vst [vmem:[#allocation3 + $0x68] sm:$0xff] %v1107
    %1260 = vst [vmem:[#allocation3 + $0x70] sm:$0xff] %v1218
    %1261 = vst [vmem:[#allocation3 + $0x78] sm:$0xff] %v1220
    %1262 = vst [vmem:[#allocation3 + $0x80] sm:$0xff] %v1111
    %1263 = vst [vmem:[#allocation3 + $0x88] sm:$0xff] %v1113
    %1264 = vst [vmem:[#allocation3 + $0x90] sm:$0xff] %v1224
    %1265 = vst [vmem:[#allocation3 + $0x98] sm:$0xff] %v1226
    %1266 = vst [vmem:[#allocation3 + $0xa0] sm:$0xff] %v1117
    %1267 = vst [vmem:[#allocation3 + $0xa8] sm:$0xff] %v1119
    %1268 = vst [vmem:[#allocation3 + $0xb0] sm:$0xff] %v1230
    %1269 = vst [vmem:[#allocation3 + $0xb8] sm:$0xff] %v1232
    %1270 = vst [vmem:[#allocation3 + $0xc0] sm:$0xff] %v1123
    %1271 = vst [vmem:[#allocation3 + $0xc8] sm:$0xff] %v1125
    %1272 = vst [vmem:[#allocation3 + $0xd0] sm:$0xff] %v1236
    %1273 = vst [vmem:[#allocation3 + $0xd8] sm:$0xff] %v1238
    %1274 = vst [vmem:[#allocation3 + $0xe0] sm:$0xff] %v1129
    %1275 = vst [vmem:[#allocation3 + $0xe8] sm:$0xff] %v1131
    %1276 = vst [vmem:[#allocation3 + $0xf0] sm:$0xff] %v1242
    %1277 = vst [vmem:[#allocation3 + $0xf8] sm:$0xff] %v1244
    %v1278 = vld [vmem:[#allocation13] sm:$0xff]
    %v1279 = vld [vmem:[#allocation13 + $0x8] sm:$0xff]
    %v1280 = vld [vmem:[#allocation13 + $0x10] sm:$0xff]
    %v1281 = vld [vmem:[#allocation13 + $0x18] sm:$0xff]
    %v1282 = vld [vmem:[#allocation13 + $0x20] sm:$0xff]
    %v1283 = vld [vmem:[#allocation13 + $0x28] sm:$0xff]
    %v1284 = vld [vmem:[#allocation13 + $0x30] sm:$0xff]
    %v1285 = vld [vmem:[#allocation13 + $0x38] sm:$0xff]
    %v1286 = vld [vmem:[#allocation13 + $0x40] sm:$0xff]
    %v1287 = vld [vmem:[#allocation13 + $0x48] sm:$0xff]
    %v1288 = vld [vmem:[#allocation13 + $0x50] sm:$0xff]
    %v1289 = vld [vmem:[#allocation13 + $0x58] sm:$0xff]
    %v1290 = vld [vmem:[#allocation13 + $0x60] sm:$0xff]
    %v1291 = vld [vmem:[#allocation13 + $0x68] sm:$0xff]
    %v1292 = vld [vmem:[#allocation13 + $0x70] sm:$0xff]
    %v1293 = vld [vmem:[#allocation13 + $0x78] sm:$0xff]
    %v1294 = vld [vmem:[#allocation13 + $0x80] sm:$0xff]
    %v1295 = vld [vmem:[#allocation13 + $0x88] sm:$0xff]
    %v1296 = vld [vmem:[#allocation13 + $0x90] sm:$0xff]
    %v1297 = vld [vmem:[#allocation13 + $0x98] sm:$0xff]
    %v1298 = vld [vmem:[#allocation13 + $0xa0] sm:$0xff]
    %v1299 = vld [vmem:[#allocation13 + $0xa8] sm:$0xff]
    %v1300 = vld [vmem:[#allocation13 + $0xb0] sm:$0xff]
    %v1301 = vld [vmem:[#allocation13 + $0xb8] sm:$0xff]
    %v1302 = vld [vmem:[#allocation13 + $0xc0] sm:$0xff]
    %v1303 = vld [vmem:[#allocation13 + $0xc8] sm:$0xff]
    %v1304 = vld [vmem:[#allocation13 + $0xd0] sm:$0xff]
    %v1305 = vld [vmem:[#allocation13 + $0xd8] sm:$0xff]
    %v1306 = vld [vmem:[#allocation13 + $0xe0] sm:$0xff]
    %v1307 = vld [vmem:[#allocation13 + $0xe8] sm:$0xff]
    %v1308 = vld [vmem:[#allocation13 + $0xf0] sm:$0xff]
    %v1309 = vld [vmem:[#allocation13 + $0xf8] sm:$0xff]
    %v1310 = vld [vmem:[#allocation13 + $0x100] sm:$0xff]
    %v1311 = vld [vmem:[#allocation13 + $0x108] sm:$0xff]
    %v1312 = vld [vmem:[#allocation13 + $0x110] sm:$0xff]
    %v1313 = vld [vmem:[#allocation13 + $0x118] sm:$0xff]
    %v1314 = vld [vmem:[#allocation13 + $0x120] sm:$0xff]
    %v1315 = vld [vmem:[#allocation13 + $0x128] sm:$0xff]
    %v1316 = vld [vmem:[#allocation13 + $0x130] sm:$0xff]
    %v1317 = vld [vmem:[#allocation13 + $0x138] sm:$0xff]
    %v1318 = vld [vmem:[#allocation13 + $0x140] sm:$0xff]
    %v1319 = vld [vmem:[#allocation13 + $0x148] sm:$0xff]
    %v1320 = vld [vmem:[#allocation13 + $0x150] sm:$0xff]
    %v1321 = vld [vmem:[#allocation13 + $0x158] sm:$0xff]
    %v1322 = vld [vmem:[#allocation13 + $0x160] sm:$0xff]
    %v1323 = vld [vmem:[#allocation13 + $0x168] sm:$0xff]
    %v1324 = vld [vmem:[#allocation13 + $0x170] sm:$0xff]
    %v1325 = vld [vmem:[#allocation13 + $0x178] sm:$0xff]
    %v1326 = vld [vmem:[#allocation13 + $0x180] sm:$0xff]
    %v1327 = vld [vmem:[#allocation13 + $0x188] sm:$0xff]
    %v1328 = vld [vmem:[#allocation13 + $0x190] sm:$0xff]
    %v1329 = vld [vmem:[#allocation13 + $0x198] sm:$0xff]
    %v1330 = vld [vmem:[#allocation13 + $0x1a0] sm:$0xff]
    %v1331 = vld [vmem:[#allocation13 + $0x1a8] sm:$0xff]
    %v1332 = vld [vmem:[#allocation13 + $0x1b0] sm:$0xff]
    %v1333 = vld [vmem:[#allocation13 + $0x1b8] sm:$0xff]
    %v1334 = vld [vmem:[#allocation13 + $0x1c0] sm:$0xff]
    %v1335 = vld [vmem:[#allocation13 + $0x1c8] sm:$0xff]
    %v1336 = vld [vmem:[#allocation13 + $0x1d0] sm:$0xff]
    %v1337 = vld [vmem:[#allocation13 + $0x1d8] sm:$0xff]
    %v1338 = vld [vmem:[#allocation13 + $0x1e0] sm:$0xff]
    %v1339 = vld [vmem:[#allocation13 + $0x1e8] sm:$0xff]
    %v1340 = vld [vmem:[#allocation13 + $0x1f0] sm:$0xff]
    %v1341 = vld [vmem:[#allocation13 + $0x1f8] sm:$0xff]
    %v1342 = vld [vmem:[#allocation16] sm:$0xff]
    %v1343 = vld [vmem:[#allocation16 + $0x8] sm:$0xff]
    %v1344 = vld [vmem:[#allocation16 + $0x10] sm:$0xff]
    %v1345 = vld [vmem:[#allocation16 + $0x18] sm:$0xff]
    %v1346 = vld [vmem:[#allocation16 + $0x20] sm:$0xff]
    %v1347 = vld [vmem:[#allocation16 + $0x28] sm:$0xff]
    %v1348 = vld [vmem:[#allocation16 + $0x30] sm:$0xff]
    %v1349 = vld [vmem:[#allocation16 + $0x38] sm:$0xff]
    %v1350 = vld [vmem:[#allocation16 + $0x40] sm:$0xff]
    %v1351 = vld [vmem:[#allocation16 + $0x48] sm:$0xff]
    %v1352 = vld [vmem:[#allocation16 + $0x50] sm:$0xff]
    %v1353 = vld [vmem:[#allocation16 + $0x58] sm:$0xff]
    %v1354 = vld [vmem:[#allocation16 + $0x60] sm:$0xff]
    %v1355 = vld [vmem:[#allocation16 + $0x68] sm:$0xff]
    %v1356 = vld [vmem:[#allocation16 + $0x70] sm:$0xff]
    %v1357 = vld [vmem:[#allocation16 + $0x78] sm:$0xff]
    %v1358 = vld [vmem:[#allocation16 + $0x80] sm:$0xff]
    %v1359 = vld [vmem:[#allocation16 + $0x88] sm:$0xff]
    %v1360 = vld [vmem:[#allocation16 + $0x90] sm:$0xff]
    %v1361 = vld [vmem:[#allocation16 + $0x98] sm:$0xff]
    %v1362 = vld [vmem:[#allocation16 + $0xa0] sm:$0xff]
    %v1363 = vld [vmem:[#allocation16 + $0xa8] sm:$0xff]
    %v1364 = vld [vmem:[#allocation16 + $0xb0] sm:$0xff]
    %v1365 = vld [vmem:[#allocation16 + $0xb8] sm:$0xff]
    %v1366 = vld [vmem:[#allocation16 + $0xc0] sm:$0xff]
    %v1367 = vld [vmem:[#allocation16 + $0xc8] sm:$0xff]
    %v1368 = vld [vmem:[#allocation16 + $0xd0] sm:$0xff]
    %v1369 = vld [vmem:[#allocation16 + $0xd8] sm:$0xff]
    %v1370 = vld [vmem:[#allocation16 + $0xe0] sm:$0xff]
    %v1371 = vld [vmem:[#allocation16 + $0xe8] sm:$0xff]
    %v1372 = vld [vmem:[#allocation16 + $0xf0] sm:$0xff]
    %v1373 = vld [vmem:[#allocation16 + $0xf8] sm:$0xff]
    %v1374 = vld [vmem:[#allocation16 + $0x100] sm:$0xff]
    %v1375 = vld [vmem:[#allocation16 + $0x108] sm:$0xff]
    %v1376 = vld [vmem:[#allocation16 + $0x110] sm:$0xff]
    %v1377 = vld [vmem:[#allocation16 + $0x118] sm:$0xff]
    %v1378 = vld [vmem:[#allocation16 + $0x120] sm:$0xff]
    %v1379 = vld [vmem:[#allocation16 + $0x128] sm:$0xff]
    %v1380 = vld [vmem:[#allocation16 + $0x130] sm:$0xff]
    %v1381 = vld [vmem:[#allocation16 + $0x138] sm:$0xff]
    %v1382 = vld [vmem:[#allocation16 + $0x140] sm:$0xff]
    %v1383 = vld [vmem:[#allocation16 + $0x148] sm:$0xff]
    %v1384 = vld [vmem:[#allocation16 + $0x150] sm:$0xff]
    %v1385 = vld [vmem:[#allocation16 + $0x158] sm:$0xff]
    %v1386 = vld [vmem:[#allocation16 + $0x160] sm:$0xff]
    %v1387 = vld [vmem:[#allocation16 + $0x168] sm:$0xff]
    %v1388 = vld [vmem:[#allocation16 + $0x170] sm:$0xff]
    %v1389 = vld [vmem:[#allocation16 + $0x178] sm:$0xff]
    %v1390 = vld [vmem:[#allocation16 + $0x180] sm:$0xff]
    %v1391 = vld [vmem:[#allocation16 + $0x188] sm:$0xff]
    %v1392 = vld [vmem:[#allocation16 + $0x190] sm:$0xff]
    %v1393 = vld [vmem:[#allocation16 + $0x198] sm:$0xff]
    %v1394 = vld [vmem:[#allocation16 + $0x1a0] sm:$0xff]
    %v1395 = vld [vmem:[#allocation16 + $0x1a8] sm:$0xff]
    %v1396 = vld [vmem:[#allocation16 + $0x1b0] sm:$0xff]
    %v1397 = vld [vmem:[#allocation16 + $0x1b8] sm:$0xff]
    %v1398 = vld [vmem:[#allocation16 + $0x1c0] sm:$0xff]
    %v1399 = vld [vmem:[#allocation16 + $0x1c8] sm:$0xff]
    %v1400 = vld [vmem:[#allocation16 + $0x1d0] sm:$0xff]
    %v1401 = vld [vmem:[#allocation16 + $0x1d8] sm:$0xff]
    %v1402 = vld [vmem:[#allocation16 + $0x1e0] sm:$0xff]
    %v1403 = vld [vmem:[#allocation16 + $0x1e8] sm:$0xff]
    %v1404 = vld [vmem:[#allocation16 + $0x1f0] sm:$0xff]
    %v1405 = vld [vmem:[#allocation16 + $0x1f8] sm:$0xff]
    loop: start=0, step=1, limit=8
    $region222: #{summarizer_forward.1} parent=1 // loop_pre_header
      _
    $region223: #{summarizer_forward.1} parent=1 // loop_header
      %s1407 = sphi 0, %s1411
      %p1408 = scmp.ge.s32.totalorder %s1407, 8
      %v1412 = vphi 0.0, %v1746
      %v1413 = vphi 0.0, %v1744
      %v1414 = vphi 0.0, %v1770
      %v1415 = vphi 0.0, %v1768
    $region224: #{summarizer_forward.1} parent=1 // loop_header_branch
      %1410 = sbr.rel (%p1408) target = $region228
    $region225: #{summarizer_forward.1} parent=1 // loop_body
      %s1416 = ssub.s32 7, %s1407
      %s1417 = smul.u32 %s1407, 4
      %s1418 = smul.addr %s1417, 8
      %s1419 = scalar_lea.vmem [#allocation2], %s1418
      %v1420 = vld [vmem:[%s1419] sm:$0xff]
      %v1421 = vld [vmem:[%s1419 + $0x8] sm:$0xff]
      %v1422 = vld [vmem:[%s1419 + $0x10] sm:$0xff]
      %v1423 = vld [vmem:[%s1419 + $0x18] sm:$0xff]
      %1424 = vmatprep.subr.mxu0 %v1279
      %1425 = vmatpush1.msra.mxu0 %v1278
      %1426 = vmatprep.subr.mxu0 %v1283
      %1427 = vmatpush1.msra.mxu0 %v1282
      %1428 = vmatprep.subr.mxu0 %v1287
      %1429 = vmatpush1.msra.mxu0 %v1286
      %1430 = vmatprep.subr.mxu0 %v1291
      %1431 = vmatpush1.msra.mxu0 %v1290
      %1432 = vmatprep.subr.mxu0 %v1295
      %1433 = vmatpush1.msra.mxu0 %v1294
      %1434 = vmatprep.subr.mxu0 %v1299
      %1435 = vmatpush1.msra.mxu0 %v1298
      %1436 = vmatprep.subr.mxu0 %v1303
      %1437 = vmatpush1.msra.mxu0 %v1302
      %1438 = vmatprep.subr.mxu0 %v1307
      %1439 = vmatpush1.msra.mxu0 %v1306
      %1440 = vmatprep.subr.mxu0 %v1311
      %1441 = vmatpush1.msra.mxu0 %v1310
      %1442 = vmatprep.subr.mxu0 %v1315
      %1443 = vmatpush1.msra.mxu0 %v1314
      %1444 = vmatprep.subr.mxu0 %v1319
      %1445 = vmatpush1.msra.mxu0 %v1318
      %1446 = vmatprep.subr.mxu0 %v1323
      %1447 = vmatpush1.msra.mxu0 %v1322
      %1448 = vmatprep.subr.mxu0 %v1327
      %1449 = vmatpush1.msra.mxu0 %v1326
      %1450 = vmatprep.subr.mxu0 %v1331
      %1451 = vmatpush1.msra.mxu0 %v1330
      %1452 = vmatprep.subr.mxu0 %v1335
      %1453 = vmatpush1.msra.mxu0 %v1334
      %1454 = vmatprep.subr.mxu0 %v1339
      %1455 = vmatpush1.msra.mxu0 %v1338
      %1456 = vmatprep.subr.mxu0 0.0
      %1457 = vmatpush1.msra.mxu0 0.0
      %1458 = vmatprep.subr.mxu0 0.0
      %1459 = vmatpush1.msra.mxu0 0.0
      %1460 = vmatprep.subr.mxu0 0.0
      %1461 = vmatpush1.msra.mxu0 0.0
      %1462 = vmatprep.subr.mxu0 0.0
      %1463 = vmatpush1.msra.mxu0 0.0
      %1464 = vmatprep.subr.mxu0 0.0
      %1465 = vmatpush1.msra.mxu0 0.0
      %1466 = vmatprep.subr.mxu0 0.0
      %1467 = vmatpush1.msra.mxu0 0.0
      %1468 = vmatprep.subr.mxu0 0.0
      %1469 = vmatpush1.msra.mxu0 0.0
      %1470 = vmatprep.subr.mxu0 0.0
      %1471 = vmatpush1.msra.mxu0 0.0
      %1472 = vmatprep.subr.mxu0 0.0
      %1473 = vmatpush1.msra.mxu0 0.0
      %1474 = vmatprep.subr.mxu0 0.0
      %1475 = vmatpush1.msra.mxu0 0.0
      %1476 = vmatprep.subr.mxu0 0.0
      %1477 = vmatpush1.msra.mxu0 0.0
      %1478 = vmatprep.subr.mxu0 0.0
      %1479 = vmatpush1.msra.mxu0 0.0
      %1480 = vmatprep.subr.mxu0 0.0
      %1481 = vmatpush1.msra.mxu0 0.0
      %1482 = vmatprep.subr.mxu0 0.0
      %1483 = vmatpush1.msra.mxu0 0.0
      %1484 = vmatprep.subr.mxu0 0.0
      %1485 = vmatpush1.msra.mxu0 0.0
      %1486 = vmatprep.subr.mxu0 0.0
      %1487 = vmatpush1.msra.mxu0 0.0
      %1488 = vmatprep.mubr.f32.mxu0 0.0
      %1489 = vmatmul.mubr.f32.gmra.mrb[0].mxu0 %v1412
      %v1490 = vpop.f32.mrb[0].mxu0
      %v1491 = vadd.f32 0.0, %v1490
      %v1492 = vpop.f32.mrb[0].mxu0
      %v1493 = vadd.f32 0.0, %v1492
      %1494 = vdwg.mxu0
      %1495 = vmatprep.subr.mxu0 %v1281
      %1496 = vmatpush1.msra.mxu0 %v1280
      %1497 = vmatprep.subr.mxu0 %v1285
      %1498 = vmatpush1.msra.mxu0 %v1284
      %1499 = vmatprep.subr.mxu0 %v1289
      %1500 = vmatpush1.msra.mxu0 %v1288
      %1501 = vmatprep.subr.mxu0 %v1293
      %1502 = vmatpush1.msra.mxu0 %v1292
      %1503 = vmatprep.subr.mxu0 %v1297
      %1504 = vmatpush1.msra.mxu0 %v1296
      %1505 = vmatprep.subr.mxu0 %v1301
      %1506 = vmatpush1.msra.mxu0 %v1300
      %1507 = vmatprep.subr.mxu0 %v1305
      %1508 = vmatpush1.msra.mxu0 %v1304
      %1509 = vmatprep.subr.mxu0 %v1309
      %1510 = vmatpush1.msra.mxu0 %v1308
      %1511 = vmatprep.subr.mxu0 %v1313
      %1512 = vmatpush1.msra.mxu0 %v1312
      %1513 = vmatprep.subr.mxu0 %v1317
      %1514 = vmatpush1.msra.mxu0 %v1316
      %1515 = vmatprep.subr.mxu0 %v1321
      %1516 = vmatpush1.msra.mxu0 %v1320
      %1517 = vmatprep.subr.mxu0 %v1325
      %1518 = vmatpush1.msra.mxu0 %v1324
      %1519 = vmatprep.subr.mxu0 %v1329
      %1520 = vmatpush1.msra.mxu0 %v1328
      %1521 = vmatprep.subr.mxu0 %v1333
      %1522 = vmatpush1.msra.mxu0 %v1332
      %1523 = vmatprep.subr.mxu0 %v1337
      %1524 = vmatpush1.msra.mxu0 %v1336
      %1525 = vmatprep.subr.mxu0 %v1341
      %1526 = vmatpush1.msra.mxu0 %v1340
      %1527 = vmatprep.subr.mxu0 0.0
      %1528 = vmatpush1.msra.mxu0 0.0
      %1529 = vmatprep.subr.mxu0 0.0
      %1530 = vmatpush1.msra.mxu0 0.0
      %1531 = vmatprep.subr.mxu0 0.0
      %1532 = vmatpush1.msra.mxu0 0.0
      %1533 = vmatprep.subr.mxu0 0.0
      %1534 = vmatpush1.msra.mxu0 0.0
      %1535 = vmatprep.subr.mxu0 0.0
      %1536 = vmatpush1.msra.mxu0 0.0
      %1537 = vmatprep.subr.mxu0 0.0
      %1538 = vmatpush1.msra.mxu0 0.0
      %1539 = vmatprep.subr.mxu0 0.0
      %1540 = vmatpush1.msra.mxu0 0.0
      %1541 = vmatprep.subr.mxu0 0.0
      %1542 = vmatpush1.msra.mxu0 0.0
      %1543 = vmatprep.subr.mxu0 0.0
      %1544 = vmatpush1.msra.mxu0 0.0
      %1545 = vmatprep.subr.mxu0 0.0
      %1546 = vmatpush1.msra.mxu0 0.0
      %1547 = vmatprep.subr.mxu0 0.0
      %1548 = vmatpush1.msra.mxu0 0.0
      %1549 = vmatprep.subr.mxu0 0.0
      %1550 = vmatpush1.msra.mxu0 0.0
      %1551 = vmatprep.subr.mxu0 0.0
      %1552 = vmatpush1.msra.mxu0 0.0
      %1553 = vmatprep.subr.mxu0 0.0
      %1554 = vmatpush1.msra.mxu0 0.0
      %1555 = vmatprep.subr.mxu0 0.0
      %1556 = vmatpush1.msra.mxu0 0.0
      %1557 = vmatprep.subr.mxu0 0.0
      %1558 = vmatpush1.msra.mxu0 0.0
      %1559 = vmatprep.mubr.f32.mxu0 0.0
      %1560 = vmatmul.mubr.f32.gmra.mrb[0].mxu0 %v1412
      %v1561 = vpop.f32.mrb[0].mxu0
      %v1562 = vadd.f32 0.0, %v1561
      %v1563 = vpop.f32.mrb[0].mxu0
      %v1564 = vadd.f32 0.0, %v1563
      %1565 = vdwg.mxu0
      %v1566 = vadd.f32 %v1420, %v1491
      %v1567 = vadd.f32 %v1421, %v1493
      %v1568 = vadd.f32 %v1422, %v1562
      %v1569 = vadd.f32 %v1423, %v1564
      %s1570 = smul.u32 %s1416, 4
      %s1571 = smul.addr %s1570, 8
      %s1572 = scalar_lea.vmem [#allocation3], %s1571
      %v1573 = vld [vmem:[%s1572] sm:$0xff]
      %v1574 = vld [vmem:[%s1572 + $0x8] sm:$0xff]
      %v1575 = vld [vmem:[%s1572 + $0x10] sm:$0xff]
      %v1576 = vld [vmem:[%s1572 + $0x18] sm:$0xff]
      %1577 = vmatprep.subr.mxu0 %v1343
      %1578 = vmatpush1.msra.mxu0 %v1342
      %1579 = vmatprep.subr.mxu0 %v1347
      %1580 = vmatpush1.msra.mxu0 %v1346
      %1581 = vmatprep.subr.mxu0 %v1351
      %1582 = vmatpush1.msra.mxu0 %v1350
      %1583 = vmatprep.subr.mxu0 %v1355
      %1584 = vmatpush1.msra.mxu0 %v1354
      %1585 = vmatprep.subr.mxu0 %v1359
      %1586 = vmatpush1.msra.mxu0 %v1358
      %1587 = vmatprep.subr.mxu0 %v1363
      %1588 = vmatpush1.msra.mxu0 %v1362
      %1589 = vmatprep.subr.mxu0 %v1367
      %1590 = vmatpush1.msra.mxu0 %v1366
      %1591 = vmatprep.subr.mxu0 %v1371
      %1592 = vmatpush1.msra.mxu0 %v1370
      %1593 = vmatprep.subr.mxu0 %v1375
      %1594 = vmatpush1.msra.mxu0 %v1374
      %1595 = vmatprep.subr.mxu0 %v1379
      %1596 = vmatpush1.msra.mxu0 %v1378
      %1597 = vmatprep.subr.mxu0 %v1383
      %1598 = vmatpush1.msra.mxu0 %v1382
      %1599 = vmatprep.subr.mxu0 %v1387
      %1600 = vmatpush1.msra.mxu0 %v1386
      %1601 = vmatprep.subr.mxu0 %v1391
      %1602 = vmatpush1.msra.mxu0 %v1390
      %1603 = vmatprep.subr.mxu0 %v1395
      %1604 = vmatpush1.msra.mxu0 %v1394
      %1605 = vmatprep.subr.mxu0 %v1399
      %1606 = vmatpush1.msra.mxu0 %v1398
      %1607 = vmatprep.subr.mxu0 %v1403
      %1608 = vmatpush1.msra.mxu0 %v1402
      %1609 = vmatprep.subr.mxu0 0.0
      %1610 = vmatpush1.msra.mxu0 0.0
      %1611 = vmatprep.subr.mxu0 0.0
      %1612 = vmatpush1.msra.mxu0 0.0
      %1613 = vmatprep.subr.mxu0 0.0
      %1614 = vmatpush1.msra.mxu0 0.0
      %1615 = vmatprep.subr.mxu0 0.0
      %1616 = vmatpush1.msra.mxu0 0.0
      %1617 = vmatprep.subr.mxu0 0.0
      %1618 = vmatpush1.msra.mxu0 0.0
      %1619 = vmatprep.subr.mxu0 0.0
      %1620 = vmatpush1.msra.mxu0 0.0
      %1621 = vmatprep.subr.mxu0 0.0
      %1622 = vmatpush1.msra.mxu0 0.0
      %1623 = vmatprep.subr.mxu0 0.0
      %1624 = vmatpush1.msra.mxu0 0.0
      %1625 = vmatprep.subr.mxu0 0.0
      %1626 = vmatpush1.msra.mxu0 0.0
      %1627 = vmatprep.subr.mxu0 0.0
      %1628 = vmatpush1.msra.mxu0 0.0
      %1629 = vmatprep.subr.mxu0 0.0
      %1630 = vmatpush1.msra.mxu0 0.0
      %1631 = vmatprep.subr.mxu0 0.0
      %1632 = vmatpush1.msra.mxu0 0.0
      %1633 = vmatprep.subr.mxu0 0.0
      %1634 = vmatpush1.msra.mxu0 0.0
      %1635 = vmatprep.subr.mxu0 0.0
      %1636 = vmatpush1.msra.mxu0 0.0
      %1637 = vmatprep.subr.mxu0 0.0
      %1638 = vmatpush1.msra.mxu0 0.0
      %1639 = vmatprep.subr.mxu0 0.0
      %1640 = vmatpush1.msra.mxu0 0.0
      %1641 = vmatprep.mubr.f32.mxu0 0.0
      %1642 = vmatmul.mubr.f32.gmra.mrb[0].mxu0 %v1414
      %v1643 = vpop.f32.mrb[0].mxu0
      %v1644 = vadd.f32 0.0, %v1643
      %v1645 = vpop.f32.mrb[0].mxu0
      %v1646 = vadd.f32 0.0, %v1645
      %1647 = vdwg.mxu0
      %1648 = vmatprep.subr.mxu0 %v1345
      %1649 = vmatpush1.msra.mxu0 %v1344
      %1650 = vmatprep.subr.mxu0 %v1349
      %1651 = vmatpush1.msra.mxu0 %v1348
      %1652 = vmatprep.subr.mxu0 %v1353
      %1653 = vmatpush1.msra.mxu0 %v1352
      %1654 = vmatprep.subr.mxu0 %v1357
      %1655 = vmatpush1.msra.mxu0 %v1356
      %1656 = vmatprep.subr.mxu0 %v1361
      %1657 = vmatpush1.msra.mxu0 %v1360
      %1658 = vmatprep.subr.mxu0 %v1365
      %1659 = vmatpush1.msra.mxu0 %v1364
      %1660 = vmatprep.subr.mxu0 %v1369
      %1661 = vmatpush1.msra.mxu0 %v1368
      %1662 = vmatprep.subr.mxu0 %v1373
      %1663 = vmatpush1.msra.mxu0 %v1372
      %1664 = vmatprep.subr.mxu0 %v1377
      %1665 = vmatpush1.msra.mxu0 %v1376
      %1666 = vmatprep.subr.mxu0 %v1381
      %1667 = vmatpush1.msra.mxu0 %v1380
      %1668 = vmatprep.subr.mxu0 %v1385
      %1669 = vmatpush1.msra.mxu0 %v1384
      %1670 = vmatprep.subr.mxu0 %v1389
      %1671 = vmatpush1.msra.mxu0 %v1388
      %1672 = vmatprep.subr.mxu0 %v1393
      %1673 = vmatpush1.msra.mxu0 %v1392
      %1674 = vmatprep.subr.mxu0 %v1397
      %1675 = vmatpush1.msra.mxu0 %v1396
      %1676 = vmatprep.subr.mxu0 %v1401
      %1677 = vmatpush1.msra.mxu0 %v1400
      %1678 = vmatprep.subr.mxu0 %v1405
      %1679 = vmatpush1.msra.mxu0 %v1404
      %1680 = vmatprep.subr.mxu0 0.0
      %1681 = vmatpush1.msra.mxu0 0.0
      %1682 = vmatprep.subr.mxu0 0.0
      %1683 = vmatpush1.msra.mxu0 0.0
      %1684 = vmatprep.subr.mxu0 0.0
      %1685 = vmatpush1.msra.mxu0 0.0
      %1686 = vmatprep.subr.mxu0 0.0
      %1687 = vmatpush1.msra.mxu0 0.0
      %1688 = vmatprep.subr.mxu0 0.0
      %1689 = vmatpush1.msra.mxu0 0.0
      %1690 = vmatprep.subr.mxu0 0.0
      %1691 = vmatpush1.msra.mxu0 0.0
      %1692 = vmatprep.subr.mxu0 0.0
      %1693 = vmatpush1.msra.mxu0 0.0
      %1694 = vmatprep.subr.mxu0 0.0
      %1695 = vmatpush1.msra.mxu0 0.0
      %1696 = vmatprep.subr.mxu0 0.0
      %1697 = vmatpush1.msra.mxu0 0.0
      %1698 = vmatprep.subr.mxu0 0.0
      %1699 = vmatpush1.msra.mxu0 0.0
      %1700 = vmatprep.subr.mxu0 0.0
      %1701 = vmatpush1.msra.mxu0 0.0
      %1702 = vmatprep.subr.mxu0 0.0
      %1703 = vmatpush1.msra.mxu0 0.0
      %1704 = vmatprep.subr.mxu0 0.0
      %1705 = vmatpush1.msra.mxu0 0.0
      %1706 = vmatprep.subr.mxu0 0.0
      %1707 = vmatpush1.msra.mxu0 0.0
      %1708 = vmatprep.subr.mxu0 0.0
      %1709 = vmatpush1.msra.mxu0 0.0
      %1710 = vmatprep.subr.mxu0 0.0
      %1711 = vmatpush1.msra.mxu0 0.0
      %1712 = vmatprep.mubr.f32.mxu0 0.0
      %1713 = vmatmul.mubr.f32.gmra.mrb[0].mxu0 %v1414
      %v1714 = vpop.f32.mrb[0].mxu0
      %v1715 = vadd.f32 0.0, %v1714
      %v1716 = vpop.f32.mrb[0].mxu0
      %v1717 = vadd.f32 0.0, %v1716
      %1718 = vdwg.mxu0
      %v1719 = vadd.f32 %v1573, %v1644
      %v1720 = vadd.f32 %v1574, %v1646
      %v1721 = vadd.f32 %v1575, %v1715
      %v1722 = vadd.f32 %v1576, %v1717
      %v1723 = vxor.u32 %v1566, 2147483648
      %v1724 = vmul.f32 %v1723, 1.442695
      %v1725 = vpow.pop %v1724
      %v1726 = vadd.f32 %v1725, 1.0
      %v1727 = vrcp.pop %v1726
      %v1728 = vmul.f32 1.0, %v1727
      %v1729 = vxor.u32 %v1567, 2147483648
      %v1730 = vmul.f32 %v1729, 1.442695
      %v1731 = vpow.pop %v1730
      %v1732 = vadd.f32 %v1731, 1.0
      %v1733 = vrcp.pop %v1732
      %v1734 = vmul.f32 1.0, %v1733
      %v1735 = vtanh.pop %v1568
      %v1736 = vxor.u32 %v1569, 2147483648
      %v1737 = vmul.f32 %v1736, 1.442695
      %v1738 = vpow.pop %v1737
      %v1739 = vadd.f32 %v1738, 1.0
      %v1740 = vrcp.pop %v1739
      %v1741 = vmul.f32 1.0, %v1740
      %v1742 = vmul.f32 %v1734, %v1413
      %v1743 = vmul.f32 %v1728, %v1735
      %v1744 = vadd.f32 %v1742, %v1743
      %v1745 = vtanh.pop %v1744
      %v1746 = vmul.f32 %v1741, %v1745
      %v1747 = vxor.u32 %v1719, 2147483648
      %v1748 = vmul.f32 %v1747, 1.442695
      %v1749 = vpow.pop %v1748
      %v1750 = vadd.f32 %v1749, 1.0
      %v1751 = vrcp.pop %v1750
      %v1752 = vmul.f32 1.0, %v1751
      %v1753 = vxor.u32 %v1720, 2147483648
      %v1754 = vmul.f32 %v1753, 1.442695
      %v1755 = vpow.pop %v1754
      %v1756 = vadd.f32 %v1755, 1.0
      %v1757 = vrcp.pop %v1756
      %v1758 = vmul.f32 1.0, %v1757
      %v1759 = vtanh.pop %v1721
      %v1760 = vxor.u32 %v1722, 2147483648
      %v1761 = vmul.f32 %v1760, 1.442695
      %v1762 = vpow.pop %v1761
      %v1763 = vadd.f32 %v1762, 1.0
      %v1764 = vrcp.pop %v1763
      %v1765 = vmul.f32 1.0, %v1764
      %v1766 = vmul.f32 %v1758, %v1415
      %v1767 = vmul.f32 %v1752, %v1759
      %v1768 = vadd.f32 %v1766, %v1767
      %v1769 = vtanh.pop %v1768
      %v1770 = vmul.f32 %v1765, %v1769
      %s1771 = smul.u32 %s1407, 2
      %s1772 = smul.addr %s1771, 8
      %s1773 = scalar_lea.vmem [#allocation5], %s1772
      %1774 = vst [vmem:[%s1773] sm:$0xff] %v1746
      %s1775 = smul.u32 %s1416, 2
      %s1776 = smul.addr %s1775, 8
      %s1777 = scalar_lea.vmem [#allocation5], %s1776
      %1778 = vst [vmem:[%s1777 + $0x8] sm:$0xff] %v1770
    $region226: #{summarizer_forward.1} parent=1 // loop_footer
      %s1411 = sadd.s32 1, %s1407
    $region227: #{summarizer_forward.1} parent=1 // loop_footer_branch
      %1406 = sbr.rel target = $region223
    $region228: #{summarizer_forward.1} parent=1 // loop_exit
      _
    %v1779 = vld [vmem:[#allocation5] sm:$0xff]
    %v1780 = vld [vmem:[#allocation5 + $0x8] sm:$0xff]
    %v1781 = vld [vmem:[#allocation5 + $0x10] sm:$0xff]
    %v1782 = vld [vmem:[#allocation5 + $0x18] sm:$0xff]
    %v1783 = vld [vmem:[#allocation5 + $0x20] sm:$0xff]
    %v1784 = vld [vmem:[#allocation5 + $0x28] sm:$0xff]
    %v1785 = vld [vmem:[#allocation5 + $0x30] sm:$0xff]
    %v1786 = vld [vmem:[#allocation5 + $0x38] sm:$0xff]
    %v1787 = vld [vmem:[#allocation5 + $0x40] sm:$0xff]
    %v1788 = vld [vmem:[#allocation5 + $0x48] sm:$0xff]
    %v1789 = vld [vmem:[#allocation5 + $0x50] sm:$0xff]
    %v1790 = vld [vmem:[#allocation5 + $0x58] sm:$0xff]
    %v1791 = vld [vmem:[#allocation5 + $0x60] sm:$0xff]
    %v1792 = vld [vmem:[#allocation5 + $0x68] sm:$0xff]
    %v1793 = vld [vmem:[#allocation5 + $0x70] sm:$0xff]
    %v1794 = vld [vmem:[#allocation5 + $0x78] sm:$0xff]
    %v1795 = vld [vmem:[#allocation17] sm:$0xff]
    %v1796 = vld [vmem:[#allocation17 + $0x8] sm:$0xff]
    %v1797 = vld [vmem:[#allocation17 + $0x10] sm:$0xff]
    %v1798 = vld [vmem:[#allocation17 + $0x18] sm:$0xff]
    %v1799 = vld [vmem:[#allocation17 + $0x20] sm:$0xff]
    %v1800 = vld [vmem:[#allocation17 + $0x28] sm:$0xff]
    %v1801 = vld [vmem:[#allocation17 + $0x30] sm:$0xff]
    %v1802 = vld [vmem:[#allocation17 + $0x38] sm:$0xff]
    %v1803 = vld [vmem:[#allocation17 + $0x40] sm:$0xff]
    %v1804 = vld [vmem:[#allocation17 + $0x48] sm:$0xff]
    %v1805 = vld [vmem:[#allocation17 + $0x50] sm:$0xff]
    %v1806 = vld [vmem:[#allocation17 + $0x58] sm:$0xff]
    %v1807 = vld [vmem:[#allocation17 + $0x60] sm:$0xff]
    %v1808 = vld [vmem:[#allocation17 + $0x68] sm:$0xff]
    %v1809 = vld [vmem:[#allocation17 + $0x70] sm:$0xff]
    %v1810 = vld [vmem:[#allocation17 + $0x78] sm:$0xff]
    %v1811 = vld [vmem:[#allocation17 + $0x80] sm:$0xff]
    %v1812 = vld [vmem:[#allocation17 + $0x88] sm:$0xff]
    %v1813 = vld [vmem:[#allocation17 + $0x90] sm:$0xff]
    %v1814 = vld [vmem:[#allocation17 + $0x98] sm:$0xff]
    %v1815 = vld [vmem:[#allocation17 + $0xa0] sm:$0xff]
    %v1816 = vld [vmem:[#allocation17 + $0xa8] sm:$0xff]
    %v1817 = vld [vmem:[#allocation17 + $0xb0] sm:$0xff]
    %v1818 = vld [vmem:[#allocation17 + $0xb8] sm:$0xff]
    %v1819 = vld [vmem:[#allocation17 + $0xc0] sm:$0xff]
    %v1820 = vld [vmem:[#allocation17 + $0xc8] sm:$0xff]
    %v1821 = vld [vmem:[#allocation17 + $0xd0] sm:$0xff]
    %v1822 = vld [vmem:[#allocation17 + $0xd8] sm:$0xff]
    %v1823 = vld [vmem:[#allocation17 + $0xe0] sm:$0xff]
    %v1824 = vld [vmem:[#allocation17 + $0xe8] sm:$0xff]
    %v1825 = vld [vmem:[#allocation17 + $0xf0] sm:$0xff]
    %v1826 = vld [vmem:[#allocation17 + $0xf8] sm:$0xff]
    %v1827 = vld [vmem:[#allocation17 + $0x100] sm:$0xff]
    %v1828 = vld [vmem:[#allocation17 + $0x108] sm:$0xff]
    %v1829 = vld [vmem:[#allocation17 + $0x110] sm:$0xff]
    %v1830 = vld [vmem:[#allocation17 + $0x118] sm:$0xff]
    %v1831 = vld [vmem:[#allocation17 + $0x120] sm:$0xff]
    %v1832 = vld [vmem:[#allocation17 + $0x128] sm:$0xff]
    %v1833 = vld [vmem:[#allocation17 + $0x130] sm:$0xff]
    %v1834 = vld [vmem:[#allocation17 + $0x138] sm:$0xff]
    %v1835 = vld [vmem:[#allocation17 + $0x140] sm:$0xff]
    %v1836 = vld [vmem:[#allocation17 + $0x148] sm:$0xff]
    %v1837 = vld [vmem:[#allocation17 + $0x150] sm:$0xff]
    %v1838 = vld [vmem:[#allocation17 + $0x158] sm:$0xff]
    %v1839 = vld [vmem:[#allocation17 + $0x160] sm:$0xff]
    %v1840 = vld [vmem:[#allocation17 + $0x168] sm:$0xff]
    %v1841 = vld [vmem:[#allocation17 + $0x170] sm:$0xff]
    %v1842 = vld [vmem:[#allocation17 + $0x178] sm:$0xff]
    %v1843 = vld [vmem:[#allocation17 + $0x180] sm:$0xff]
    %v1844 = vld [vmem:[#allocation17 + $0x188] sm:$0xff]
    %v1845 = vld [vmem:[#allocation17 + $0x190] sm:$0xff]
    %v1846 = vld [vmem:[#allocation17 + $0x198] sm:$0xff]
    %v1847 = vld [vmem:[#allocation17 + $0x1a0] sm:$0xff]
    %v1848 = vld [vmem:[#allocation17 + $0x1a8] sm:$0xff]
    %v1849 = vld [vmem:[#allocation17 + $0x1b0] sm:$0xff]
    %v1850 = vld [vmem:[#allocation17 + $0x1b8] sm:$0xff]
    %v1851 = vld [vmem:[#allocation17 + $0x1c0] sm:$0xff]
    %v1852 = vld [vmem:[#allocation17 + $0x1c8] sm:$0xff]
    %v1853 = vld [vmem:[#allocation17 + $0x1d0] sm:$0xff]
    %v1854 = vld [vmem:[#allocation17 + $0x1d8] sm:$0xff]
    %v1855 = vld [vmem:[#allocation17 + $0x1e0] sm:$0xff]
    %v1856 = vld [vmem:[#allocation17 + $0x1e8] sm:$0xff]
    %v1857 = vld [vmem:[#allocation17 + $0x1f0] sm:$0xff]
    %v1858 = vld [vmem:[#allocation17 + $0x1f8] sm:$0xff]
    %v1859 = vld [vmem:[#allocation17 + $0x200] sm:$0xff]
    %v1860 = vld [vmem:[#allocation17 + $0x208] sm:$0xff]
    %v1861 = vld [vmem:[#allocation17 + $0x210] sm:$0xff]
    %v1862 = vld [vmem:[#allocation17 + $0x218] sm:$0xff]
    %v1863 = vld [vmem:[#allocation17 + $0x220] sm:$0xff]
    %v1864 = vld [vmem:[#allocation17 + $0x228] sm:$0xff]
    %v1865 = vld [vmem:[#allocation17 + $0x230] sm:$0xff]
    %v1866 = vld [vmem:[#allocation17 + $0x238] sm:$0xff]
    %v1867 = vld [vmem:[#allocation17 + $0x240] sm:$0xff]
    %v1868 = vld [vmem:[#allocation17 + $0x248] sm:$0xff]
    %v1869 = vld [vmem:[#allocation17 + $0x250] sm:$0xff]
    %v1870 = vld [vmem:[#allocation17 + $0x258] sm:$0xff]
    %v1871 = vld [vmem:[#allocation17 + $0x260] sm:$0xff]
    %v1872 = vld [vmem:[#allocation17 + $0x268] sm:$0xff]
    %v1873 = vld [vmem:[#allocation17 + $0x270] sm:$0xff]
    %v1874 = vld [vmem:[#allocation17 + $0x278] sm:$0xff]
    %v1875 = vld [vmem:[#allocation17 + $0x280] sm:$0xff]
    %v1876 = vld [vmem:[#allocation17 + $0x288] sm:$0xff]
    %v1877 = vld [vmem:[#allocation17 + $0x290] sm:$0xff]
    %v1878 = vld [vmem:[#allocation17 + $0x298] sm:$0xff]
    %v1879 = vld [vmem:[#allocation17 + $0x2a0] sm:$0xff]
    %v1880 = vld [vmem:[#allocation17 + $0x2a8] sm:$0xff]
    %v1881 = vld [vmem:[#allocation17 + $0x2b0] sm:$0xff]
    %v1882 = vld [vmem:[#allocation17 + $0x2b8] sm:$0xff]
    %v1883 = vld [vmem:[#allocation17 + $0x2c0] sm:$0xff]
    %v1884 = vld [vmem:[#allocation17 + $0x2c8] sm:$0xff]
    %v1885 = vld [vmem:[#allocation17 + $0x2d0] sm:$0xff]
    %v1886 = vld [vmem:[#allocation17 + $0x2d8] sm:$0xff]
    %v1887 = vld [vmem:[#allocation17 + $0x2e0] sm:$0xff]
    %v1888 = vld [vmem:[#allocation17 + $0x2e8] sm:$0xff]
    %v1889 = vld [vmem:[#allocation17 + $0x2f0] sm:$0xff]
    %v1890 = vld [vmem:[#allocation17 + $0x2f8] sm:$0xff]
    %v1891 = vld [vmem:[#allocation17 + $0x300] sm:$0xff]
    %v1892 = vld [vmem:[#allocation17 + $0x308] sm:$0xff]
    %v1893 = vld [vmem:[#allocation17 + $0x310] sm:$0xff]
    %v1894 = vld [vmem:[#allocation17 + $0x318] sm:$0xff]
    %v1895 = vld [vmem:[#allocation17 + $0x320] sm:$0xff]
    %v1896 = vld [vmem:[#allocation17 + $0x328] sm:$0xff]
    %v1897 = vld [vmem:[#allocation17 + $0x330] sm:$0xff]
    %v1898 = vld [vmem:[#allocation17 + $0x338] sm:$0xff]
    %v1899 = vld [vmem:[#allocation17 + $0x340] sm:$0xff]
    %v1900 = vld [vmem:[#allocation17 + $0x348] sm:$0xff]
    %v1901 = vld [vmem:[#allocation17 + $0x350] sm:$0xff]
    %v1902 = vld [vmem:[#allocation17 + $0x358] sm:$0xff]
    %v1903 = vld [vmem:[#allocation17 + $0x360] sm:$0xff]
    %v1904 = vld [vmem:[#allocation17 + $0x368] sm:$0xff]
    %v1905 = vld [vmem:[#allocation17 + $0x370] sm:$0xff]
    %v1906 = vld [vmem:[#allocation17 + $0x378] sm:$0xff]
    %v1907 = vld [vmem:[#allocation17 + $0x380] sm:$0xff]
    %v1908 = vld [vmem:[#allocation17 + $0x388] sm:$0xff]
    %v1909 = vld [vmem:[#allocation17 + $0x390] sm:$0xff]
    %v1910 = vld [vmem:[#allocation17 + $0x398] sm:$0xff]
    %v1911 = vld [vmem:[#allocation17 + $0x3a0] sm:$0xff]
    %v1912 = vld [vmem:[#allocation17 + $0x3a8] sm:$0xff]
    %v1913 = vld [vmem:[#allocation17 + $0x3b0] sm:$0xff]
    %v1914 = vld [vmem:[#allocation17 + $0x3b8] sm:$0xff]
    %v1915 = vld [vmem:[#allocation17 + $0x3c0] sm:$0xff]
    %v1916 = vld [vmem:[#allocation17 + $0x3c8] sm:$0xff]
    %v1917 = vld [vmem:[#allocation17 + $0x3d0] sm:$0xff]
    %v1918 = vld [vmem:[#allocation17 + $0x3d8] sm:$0xff]
    %v1919 = vld [vmem:[#allocation17 + $0x3e0] sm:$0xff]
    %v1920 = vld [vmem:[#allocation17 + $0x3e8] sm:$0xff]
    %v1921 = vld [vmem:[#allocation17 + $0x3f0] sm:$0xff]
    %v1922 = vld [vmem:[#allocation17 + $0x3f8] sm:$0xff]
    %v1923 = vld [vmem:[%s21] sm:$0xf]
    %v1925 = vlaneseq
    %v1926 = vshrl.u32 %v1925, 7
    %v1927 = vsub.s32 0, %v1926
    %v1928 = vrot.slane %v1923, %v1927
    %v1929 = vlaneseq
    %v1930 = vshrl.u32 %v1929, 7
    %v1931 = vsub.s32 1, %v1930
    %v1932 = vrot.slane %v1923, %v1931
    %v1933 = vlaneseq
    %v1934 = vshrl.u32 %v1933, 7
    %v1935 = vsub.s32 2, %v1934
    %v1936 = vrot.slane %v1923, %v1935
    %v1937 = vlaneseq
    %v1938 = vshrl.u32 %v1937, 7
    %v1939 = vsub.s32 3, %v1938
    %v1940 = vrot.slane %v1923, %v1939
    %1945 = vmatprep.subr.mxu0 %v1796
    %1946 = vmatpush1.msra.mxu0 %v1795
    %1947 = vmatprep.subr.mxu0 %v1800
    %1948 = vmatpush1.msra.mxu0 %v1799
    %1949 = vmatprep.subr.mxu0 %v1804
    %1950 = vmatpush1.msra.mxu0 %v1803
    %1951 = vmatprep.subr.mxu0 %v1808
    %1952 = vmatpush1.msra.mxu0 %v1807
    %1953 = vmatprep.subr.mxu0 %v1812
    %1954 = vmatpush1.msra.mxu0 %v1811
    %1955 = vmatprep.subr.mxu0 %v1816
    %1956 = vmatpush1.msra.mxu0 %v1815
    %1957 = vmatprep.subr.mxu0 %v1820
    %1958 = vmatpush1.msra.mxu0 %v1819
    %1959 = vmatprep.subr.mxu0 %v1824
    %1960 = vmatpush1.msra.mxu0 %v1823
    %1961 = vmatprep.subr.mxu0 %v1828
    %1962 = vmatpush1.msra.mxu0 %v1827
    %1963 = vmatprep.subr.mxu0 %v1832
    %1964 = vmatpush1.msra.mxu0 %v1831
    %1965 = vmatprep.subr.mxu0 %v1836
    %1966 = vmatpush1.msra.mxu0 %v1835
    %1967 = vmatprep.subr.mxu0 %v1840
    %1968 = vmatpush1.msra.mxu0 %v1839
    %1969 = vmatprep.subr.mxu0 %v1844
    %1970 = vmatpush1.msra.mxu0 %v1843
    %1971 = vmatprep.subr.mxu0 %v1848
    %1972 = vmatpush1.msra.mxu0 %v1847
    %1973 = vmatprep.subr.mxu0 %v1852
    %1974 = vmatpush1.msra.mxu0 %v1851
    %1975 = vmatprep.subr.mxu0 %v1856
    %1976 = vmatpush1.msra.mxu0 %v1855
    %1977 = vmatprep.subr.mxu0 %v1860
    %1978 = vmatpush1.msra.mxu0 %v1859
    %1979 = vmatprep.subr.mxu0 %v1864
    %1980 = vmatpush1.msra.mxu0 %v1863
    %1981 = vmatprep.subr.mxu0 %v1868
    %1982 = vmatpush1.msra.mxu0 %v1867
    %1983 = vmatprep.subr.mxu0 %v1872
    %1984 = vmatpush1.msra.mxu0 %v1871
    %1985 = vmatprep.subr.mxu0 %v1876
    %1986 = vmatpush1.msra.mxu0 %v1875
    %1987 = vmatprep.subr.mxu0 %v1880
    %1988 = vmatpush1.msra.mxu0 %v1879
    %1989 = vmatprep.subr.mxu0 %v1884
    %1990 = vmatpush1.msra.mxu0 %v1883
    %1991 = vmatprep.subr.mxu0 %v1888
    %1992 = vmatpush1.msra.mxu0 %v1887
    %1993 = vmatprep.subr.mxu0 %v1892
    %1994 = vmatpush1.msra.mxu0 %v1891
    %1995 = vmatprep.subr.mxu0 %v1896
    %1996 = vmatpush1.msra.mxu0 %v1895
    %1997 = vmatprep.subr.mxu0 %v1900
    %1998 = vmatpush1.msra.mxu0 %v1899
    %1999 = vmatprep.subr.mxu0 %v1904
    %2000 = vmatpush1.msra.mxu0 %v1903
    %2001 = vmatprep.subr.mxu0 %v1908
    %2002 = vmatpush1.msra.mxu0 %v1907
    %2003 = vmatprep.subr.mxu0 %v1912
    %2004 = vmatpush1.msra.mxu0 %v1911
    %2005 = vmatprep.subr.mxu0 %v1916
    %2006 = vmatpush1.msra.mxu0 %v1915
    %2007 = vmatprep.subr.mxu0 %v1920
    %2008 = vmatpush1.msra.mxu0 %v1919
    %2009 = vmatprep.mubr.f32.mxu0 %v1780
    %2010 = vmatmul.mubr.f32.gmra.mrb[0].mxu0 %v1779
    %v2011 = vpop.f32.mrb[0].mxu0
    %v2012 = vadd.f32 %v1928, %v2011
    %v2013 = vpop.f32.mrb[0].mxu0
    %v2014 = vadd.f32 %v1932, %v2013
    %2015 = vmatprep.mubr.f32.mxu0 %v1782
    %2016 = vmatmul.mubr.f32.gmra.mrb[0].mxu0 %v1781
    %v2017 = vpop.f32.mrb[0].mxu0
    %v2018 = vadd.f32 %v1928, %v2017
    %v2019 = vpop.f32.mrb[0].mxu0
    %v2020 = vadd.f32 %v1932, %v2019
    %2021 = vmatprep.mubr.f32.mxu0 %v1784
    %2022 = vmatmul.mubr.f32.gmra.mrb[0].mxu0 %v1783
    %v2023 = vpop.f32.mrb[0].mxu0
    %v2024 = vadd.f32 %v1928, %v2023
    %v2025 = vpop.f32.mrb[0].mxu0
    %v2026 = vadd.f32 %v1932, %v2025
    %2027 = vmatprep.mubr.f32.mxu0 %v1786
    %2028 = vmatmul.mubr.f32.gmra.mrb[0].mxu0 %v1785
    %v2029 = vpop.f32.mrb[0].mxu0
    %v2030 = vadd.f32 %v1928, %v2029
    %v2031 = vpop.f32.mrb[0].mxu0
    %v2032 = vadd.f32 %v1932, %v2031
    %2033 = vmatprep.mubr.f32.mxu0 %v1788
    %2034 = vmatmul.mubr.f32.gmra.mrb[0].mxu0 %v1787
    %v2035 = vpop.f32.mrb[0].mxu0
    %v2036 = vadd.f32 %v1928, %v2035
    %v2037 = vpop.f32.mrb[0].mxu0
    %v2038 = vadd.f32 %v1932, %v2037
    %2039 = vmatprep.mubr.f32.mxu0 %v1790
    %2040 = vmatmul.mubr.f32.gmra.mrb[0].mxu0 %v1789
    %v2041 = vpop.f32.mrb[0].mxu0
    %v2042 = vadd.f32 %v1928, %v2041
    %v2043 = vpop.f32.mrb[0].mxu0
    %v2044 = vadd.f32 %v1932, %v2043
    %2045 = vmatprep.mubr.f32.mxu0 %v1792
    %2046 = vmatmul.mubr.f32.gmra.mrb[0].mxu0 %v1791
    %v2047 = vpop.f32.mrb[0].mxu0
    %v2048 = vadd.f32 %v1928, %v2047
    %v2049 = vpop.f32.mrb[0].mxu0
    %v2050 = vadd.f32 %v1932, %v2049
    %2051 = vmatprep.mubr.f32.mxu0 %v1794
    %2052 = vmatmul.mubr.f32.gmra.mrb[0].mxu0 %v1793
    %v2053 = vpop.f32.mrb[0].mxu0
    %v2054 = vadd.f32 %v1928, %v2053
    %v2055 = vpop.f32.mrb[0].mxu0
    %v2056 = vadd.f32 %v1932, %v2055
    %2057 = vdwg.mxu0
    %2058 = vmatprep.subr.mxu0 %v1798
    %2059 = vmatpush1.msra.mxu0 %v1797
    %2060 = vmatprep.subr.mxu0 %v1802
    %2061 = vmatpush1.msra.mxu0 %v1801
    %2062 = vmatprep.subr.mxu0 %v1806
    %2063 = vmatpush1.msra.mxu0 %v1805
    %2064 = vmatprep.subr.mxu0 %v1810
    %2065 = vmatpush1.msra.mxu0 %v1809
    %2066 = vmatprep.subr.mxu0 %v1814
    %2067 = vmatpush1.msra.mxu0 %v1813
    %2068 = vmatprep.subr.mxu0 %v1818
    %2069 = vmatpush1.msra.mxu0 %v1817
    %2070 = vmatprep.subr.mxu0 %v1822
    %2071 = vmatpush1.msra.mxu0 %v1821
    %2072 = vmatprep.subr.mxu0 %v1826
    %2073 = vmatpush1.msra.mxu0 %v1825
    %2074 = vmatprep.subr.mxu0 %v1830
    %2075 = vmatpush1.msra.mxu0 %v1829
    %2076 = vmatprep.subr.mxu0 %v1834
    %2077 = vmatpush1.msra.mxu0 %v1833
    %2078 = vmatprep.subr.mxu0 %v1838
    %2079 = vmatpush1.msra.mxu0 %v1837
    %2080 = vmatprep.subr.mxu0 %v1842
    %2081 = vmatpush1.msra.mxu0 %v1841
    %2082 = vmatprep.subr.mxu0 %v1846
    %2083 = vmatpush1.msra.mxu0 %v1845
    %2084 = vmatprep.subr.mxu0 %v1850
    %2085 = vmatpush1.msra.mxu0 %v1849
    %2086 = vmatprep.subr.mxu0 %v1854
    %2087 = vmatpush1.msra.mxu0 %v1853
    %2088 = vmatprep.subr.mxu0 %v1858
    %2089 = vmatpush1.msra.mxu0 %v1857
    %2090 = vmatprep.subr.mxu0 %v1862
    %2091 = vmatpush1.msra.mxu0 %v1861
    %2092 = vmatprep.subr.mxu0 %v1866
    %2093 = vmatpush1.msra.mxu0 %v1865
    %2094 = vmatprep.subr.mxu0 %v1870
    %2095 = vmatpush1.msra.mxu0 %v1869
    %2096 = vmatprep.subr.mxu0 %v1874
    %2097 = vmatpush1.msra.mxu0 %v1873
    %2098 = vmatprep.subr.mxu0 %v1878
    %2099 = vmatpush1.msra.mxu0 %v1877
    %2100 = vmatprep.subr.mxu0 %v1882
    %2101 = vmatpush1.msra.mxu0 %v1881
    %2102 = vmatprep.subr.mxu0 %v1886
    %2103 = vmatpush1.msra.mxu0 %v1885
    %2104 = vmatprep.subr.mxu0 %v1890
    %2105 = vmatpush1.msra.mxu0 %v1889
    %2106 = vmatprep.subr.mxu0 %v1894
    %2107 = vmatpush1.msra.mxu0 %v1893
    %2108 = vmatprep.subr.mxu0 %v1898
    %2109 = vmatpush1.msra.mxu0 %v1897
    %2110 = vmatprep.subr.mxu0 %v1902
    %2111 = vmatpush1.msra.mxu0 %v1901
    %2112 = vmatprep.subr.mxu0 %v1906
    %2113 = vmatpush1.msra.mxu0 %v1905
    %2114 = vmatprep.subr.mxu0 %v1910
    %2115 = vmatpush1.msra.mxu0 %v1909
    %2116 = vmatprep.subr.mxu0 %v1914
    %2117 = vmatpush1.msra.mxu0 %v1913
    %2118 = vmatprep.subr.mxu0 %v1918
    %2119 = vmatpush1.msra.mxu0 %v1917
    %2120 = vmatprep.subr.mxu0 %v1922
    %2121 = vmatpush1.msra.mxu0 %v1921
    %2122 = vmatprep.mubr.f32.mxu0 %v1780
    %2123 = vmatmul.mubr.f32.gmra.mrb[0].mxu0 %v1779
    %v2124 = vpop.f32.mrb[0].mxu0
    %v2125 = vadd.f32 %v1936, %v2124
    %v2126 = vpop.f32.mrb[0].mxu0
    %v2127 = vadd.f32 %v1940, %v2126
    %2128 = vmatprep.mubr.f32.mxu0 %v1782
    %2129 = vmatmul.mubr.f32.gmra.mrb[0].mxu0 %v1781
    %v2130 = vpop.f32.mrb[0].mxu0
    %v2131 = vadd.f32 %v1936, %v2130
    %v2132 = vpop.f32.mrb[0].mxu0
    %v2133 = vadd.f32 %v1940, %v2132
    %2134 = vmatprep.mubr.f32.mxu0 %v1784
    %2135 = vmatmul.mubr.f32.gmra.mrb[0].mxu0 %v1783
    %v2136 = vpop.f32.mrb[0].mxu0
    %v2137 = vadd.f32 %v1936, %v2136
    %v2138 = vpop.f32.mrb[0].mxu0
    %v2139 = vadd.f32 %v1940, %v2138
    %2140 = vmatprep.mubr.f32.mxu0 %v1786
    %2141 = vmatmul.mubr.f32.gmra.mrb[0].mxu0 %v1785
    %v2142 = vpop.f32.mrb[0].mxu0
    %v2143 = vadd.f32 %v1936, %v2142
    %v2144 = vpop.f32.mrb[0].mxu0
    %v2145 = vadd.f32 %v1940, %v2144
    %2146 = vmatprep.mubr.f32.mxu0 %v1788
    %2147 = vmatmul.mubr.f32.gmra.mrb[0].mxu0 %v1787
    %v2148 = vpop.f32.mrb[0].mxu0
    %v2149 = vadd.f32 %v1936, %v2148
    %v2150 = vpop.f32.mrb[0].mxu0
    %v2151 = vadd.f32 %v1940, %v2150
    %2152 = vmatprep.mubr.f32.mxu0 %v1790
    %2153 = vmatmul.mubr.f32.gmra.mrb[0].mxu0 %v1789
    %v2154 = vpop.f32.mrb[0].mxu0
    %v2155 = vadd.f32 %v1936, %v2154
    %v2156 = vpop.f32.mrb[0].mxu0
    %v2157 = vadd.f32 %v1940, %v2156
    %2158 = vmatprep.mubr.f32.mxu0 %v1792
    %2159 = vmatmul.mubr.f32.gmra.mrb[0].mxu0 %v1791
    %v2160 = vpop.f32.mrb[0].mxu0
    %v2161 = vadd.f32 %v1936, %v2160
    %v2162 = vpop.f32.mrb[0].mxu0
    %v2163 = vadd.f32 %v1940, %v2162
    %2164 = vmatprep.mubr.f32.mxu0 %v1794
    %2165 = vmatmul.mubr.f32.gmra.mrb[0].mxu0 %v1793
    %v2166 = vpop.f32.mrb[0].mxu0
    %v2167 = vadd.f32 %v1936, %v2166
    %v2168 = vpop.f32.mrb[0].mxu0
    %v2169 = vadd.f32 %v1940, %v2168
    %2170 = vdwg.mxu0
    %2171 = vst [vmem:[#allocation2] sm:$0xff] %v2012
    %2172 = vst [vmem:[#allocation2 + $0x8] sm:$0xff] %v2014
    %2173 = vst [vmem:[#allocation2 + $0x10] sm:$0xff] %v2125
    %2174 = vst [vmem:[#allocation2 + $0x18] sm:$0xff] %v2127
    %2175 = vst [vmem:[#allocation2 + $0x20] sm:$0xff] %v2018
    %2176 = vst [vmem:[#allocation2 + $0x28] sm:$0xff] %v2020
    %2177 = vst [vmem:[#allocation2 + $0x30] sm:$0xff] %v2131
    %2178 = vst [vmem:[#allocation2 + $0x38] sm:$0xff] %v2133
    %2179 = vst [vmem:[#allocation2 + $0x40] sm:$0xff] %v2024
    %2180 = vst [vmem:[#allocation2 + $0x48] sm:$0xff] %v2026
    %2181 = vst [vmem:[#allocation2 + $0x50] sm:$0xff] %v2137
    %2182 = vst [vmem:[#allocation2 + $0x58] sm:$0xff] %v2139
    %2183 = vst [vmem:[#allocation2 + $0x60] sm:$0xff] %v2030
    %2184 = vst [vmem:[#allocation2 + $0x68] sm:$0xff] %v2032
    %2185 = vst [vmem:[#allocation2 + $0x70] sm:$0xff] %v2143
    %2186 = vst [vmem:[#allocation2 + $0x78] sm:$0xff] %v2145
    %2187 = vst [vmem:[#allocation2 + $0x80] sm:$0xff] %v2036
    %2188 = vst [vmem:[#allocation2 + $0x88] sm:$0xff] %v2038
    %2189 = vst [vmem:[#allocation2 + $0x90] sm:$0xff] %v2149
    %2190 = vst [vmem:[#allocation2 + $0x98] sm:$0xff] %v2151
    %2191 = vst [vmem:[#allocation2 + $0xa0] sm:$0xff] %v2042
    %2192 = vst [vmem:[#allocation2 + $0xa8] sm:$0xff] %v2044
    %2193 = vst [vmem:[#allocation2 + $0xb0] sm:$0xff] %v2155
    %2194 = vst [vmem:[#allocation2 + $0xb8] sm:$0xff] %v2157
    %2195 = vst [vmem:[#allocation2 + $0xc0] sm:$0xff] %v2048
    %2196 = vst [vmem:[#allocation2 + $0xc8] sm:$0xff] %v2050
    %2197 = vst [vmem:[#allocation2 + $0xd0] sm:$0xff] %v2161
    %2198 = vst [vmem:[#allocation2 + $0xd8] sm:$0xff] %v2163
    %2199 = vst [vmem:[#allocation2 + $0xe0] sm:$0xff] %v2054
    %2200 = vst [vmem:[#allocation2 + $0xe8] sm:$0xff] %v2056
    %2201 = vst [vmem:[#allocation2 + $0xf0] sm:$0xff] %v2167
    %2202 = vst [vmem:[#allocation2 + $0xf8] sm:$0xff] %v2169
    %v2203 = vld [vmem:[#allocation20] sm:$0xff]
    %v2204 = vld [vmem:[#allocation20 + $0x8] sm:$0xff]
    %v2205 = vld [vmem:[#allocation20 + $0x10] sm:$0xff]
    %v2206 = vld [vmem:[#allocation20 + $0x18] sm:$0xff]
    %v2207 = vld [vmem:[#allocation20 + $0x20] sm:$0xff]
    %v2208 = vld [vmem:[#allocation20 + $0x28] sm:$0xff]
    %v2209 = vld [vmem:[#allocation20 + $0x30] sm:$0xff]
    %v2210 = vld [vmem:[#allocation20 + $0x38] sm:$0xff]
    %v2211 = vld [vmem:[#allocation20 + $0x40] sm:$0xff]
    %v2212 = vld [vmem:[#allocation20 + $0x48] sm:$0xff]
    %v2213 = vld [vmem:[#allocation20 + $0x50] sm:$0xff]
    %v2214 = vld [vmem:[#allocation20 + $0x58] sm:$0xff]
    %v2215 = vld [vmem:[#allocation20 + $0x60] sm:$0xff]
    %v2216 = vld [vmem:[#allocation20 + $0x68] sm:$0xff]
    %v2217 = vld [vmem:[#allocation20 + $0x70] sm:$0xff]
    %v2218 = vld [vmem:[#allocation20 + $0x78] sm:$0xff]
    %v2219 = vld [vmem:[#allocation20 + $0x80] sm:$0xff]
    %v2220 = vld [vmem:[#allocation20 + $0x88] sm:$0xff]
    %v2221 = vld [vmem:[#allocation20 + $0x90] sm:$0xff]
    %v2222 = vld [vmem:[#allocation20 + $0x98] sm:$0xff]
    %v2223 = vld [vmem:[#allocation20 + $0xa0] sm:$0xff]
    %v2224 = vld [vmem:[#allocation20 + $0xa8] sm:$0xff]
    %v2225 = vld [vmem:[#allocation20 + $0xb0] sm:$0xff]
    %v2226 = vld [vmem:[#allocation20 + $0xb8] sm:$0xff]
    %v2227 = vld [vmem:[#allocation20 + $0xc0] sm:$0xff]
    %v2228 = vld [vmem:[#allocation20 + $0xc8] sm:$0xff]
    %v2229 = vld [vmem:[#allocation20 + $0xd0] sm:$0xff]
    %v2230 = vld [vmem:[#allocation20 + $0xd8] sm:$0xff]
    %v2231 = vld [vmem:[#allocation20 + $0xe0] sm:$0xff]
    %v2232 = vld [vmem:[#allocation20 + $0xe8] sm:$0xff]
    %v2233 = vld [vmem:[#allocation20 + $0xf0] sm:$0xff]
    %v2234 = vld [vmem:[#allocation20 + $0xf8] sm:$0xff]
    %v2235 = vld [vmem:[#allocation20 + $0x100] sm:$0xff]
    %v2236 = vld [vmem:[#allocation20 + $0x108] sm:$0xff]
    %v2237 = vld [vmem:[#allocation20 + $0x110] sm:$0xff]
    %v2238 = vld [vmem:[#allocation20 + $0x118] sm:$0xff]
    %v2239 = vld [vmem:[#allocation20 + $0x120] sm:$0xff]
    %v2240 = vld [vmem:[#allocation20 + $0x128] sm:$0xff]
    %v2241 = vld [vmem:[#allocation20 + $0x130] sm:$0xff]
    %v2242 = vld [vmem:[#allocation20 + $0x138] sm:$0xff]
    %v2243 = vld [vmem:[#allocation20 + $0x140] sm:$0xff]
    %v2244 = vld [vmem:[#allocation20 + $0x148] sm:$0xff]
    %v2245 = vld [vmem:[#allocation20 + $0x150] sm:$0xff]
    %v2246 = vld [vmem:[#allocation20 + $0x158] sm:$0xff]
    %v2247 = vld [vmem:[#allocation20 + $0x160] sm:$0xff]
    %v2248 = vld [vmem:[#allocation20 + $0x168] sm:$0xff]
    %v2249 = vld [vmem:[#allocation20 + $0x170] sm:$0xff]
    %v2250 = vld [vmem:[#allocation20 + $0x178] sm:$0xff]
    %v2251 = vld [vmem:[#allocation20 + $0x180] sm:$0xff]
    %v2252 = vld [vmem:[#allocation20 + $0x188] sm:$0xff]
    %v2253 = vld [vmem:[#allocation20 + $0x190] sm:$0xff]
    %v2254 = vld [vmem:[#allocation20 + $0x198] sm:$0xff]
    %v2255 = vld [vmem:[#allocation20 + $0x1a0] sm:$0xff]
    %v2256 = vld [vmem:[#allocation20 + $0x1a8] sm:$0xff]
    %v2257 = vld [vmem:[#allocation20 + $0x1b0] sm:$0xff]
    %v2258 = vld [vmem:[#allocation20 + $0x1b8] sm:$0xff]
    %v2259 = vld [vmem:[#allocation20 + $0x1c0] sm:$0xff]
    %v2260 = vld [vmem:[#allocation20 + $0x1c8] sm:$0xff]
    %v2261 = vld [vmem:[#allocation20 + $0x1d0] sm:$0xff]
    %v2262 = vld [vmem:[#allocation20 + $0x1d8] sm:$0xff]
    %v2263 = vld [vmem:[#allocation20 + $0x1e0] sm:$0xff]
    %v2264 = vld [vmem:[#allocation20 + $0x1e8] sm:$0xff]
    %v2265 = vld [vmem:[#allocation20 + $0x1f0] sm:$0xff]
    %v2266 = vld [vmem:[#allocation20 + $0x1f8] sm:$0xff]
    %v2267 = vld [vmem:[#allocation20 + $0x200] sm:$0xff]
    %v2268 = vld [vmem:[#allocation20 + $0x208] sm:$0xff]
    %v2269 = vld [vmem:[#allocation20 + $0x210] sm:$0xff]
    %v2270 = vld [vmem:[#allocation20 + $0x218] sm:$0xff]
    %v2271 = vld [vmem:[#allocation20 + $0x220] sm:$0xff]
    %v2272 = vld [vmem:[#allocation20 + $0x228] sm:$0xff]
    %v2273 = vld [vmem:[#allocation20 + $0x230] sm:$0xff]
    %v2274 = vld [vmem:[#allocation20 + $0x238] sm:$0xff]
    %v2275 = vld [vmem:[#allocation20 + $0x240] sm:$0xff]
    %v2276 = vld [vmem:[#allocation20 + $0x248] sm:$0xff]
    %v2277 = vld [vmem:[#allocation20 + $0x250] sm:$0xff]
    %v2278 = vld [vmem:[#allocation20 + $0x258] sm:$0xff]
    %v2279 = vld [vmem:[#allocation20 + $0x260] sm:$0xff]
    %v2280 = vld [vmem:[#allocation20 + $0x268] sm:$0xff]
    %v2281 = vld [vmem:[#allocation20 + $0x270] sm:$0xff]
    %v2282 = vld [vmem:[#allocation20 + $0x278] sm:$0xff]
    %v2283 = vld [vmem:[#allocation20 + $0x280] sm:$0xff]
    %v2284 = vld [vmem:[#allocation20 + $0x288] sm:$0xff]
    %v2285 = vld [vmem:[#allocation20 + $0x290] sm:$0xff]
    %v2286 = vld [vmem:[#allocation20 + $0x298] sm:$0xff]
    %v2287 = vld [vmem:[#allocation20 + $0x2a0] sm:$0xff]
    %v2288 = vld [vmem:[#allocation20 + $0x2a8] sm:$0xff]
    %v2289 = vld [vmem:[#allocation20 + $0x2b0] sm:$0xff]
    %v2290 = vld [vmem:[#allocation20 + $0x2b8] sm:$0xff]
    %v2291 = vld [vmem:[#allocation20 + $0x2c0] sm:$0xff]
    %v2292 = vld [vmem:[#allocation20 + $0x2c8] sm:$0xff]
    %v2293 = vld [vmem:[#allocation20 + $0x2d0] sm:$0xff]
    %v2294 = vld [vmem:[#allocation20 + $0x2d8] sm:$0xff]
    %v2295 = vld [vmem:[#allocation20 + $0x2e0] sm:$0xff]
    %v2296 = vld [vmem:[#allocation20 + $0x2e8] sm:$0xff]
    %v2297 = vld [vmem:[#allocation20 + $0x2f0] sm:$0xff]
    %v2298 = vld [vmem:[#allocation20 + $0x2f8] sm:$0xff]
    %v2299 = vld [vmem:[#allocation20 + $0x300] sm:$0xff]
    %v2300 = vld [vmem:[#allocation20 + $0x308] sm:$0xff]
    %v2301 = vld [vmem:[#allocation20 + $0x310] sm:$0xff]
    %v2302 = vld [vmem:[#allocation20 + $0x318] sm:$0xff]
    %v2303 = vld [vmem:[#allocation20 + $0x320] sm:$0xff]
    %v2304 = vld [vmem:[#allocation20 + $0x328] sm:$0xff]
    %v2305 = vld [vmem:[#allocation20 + $0x330] sm:$0xff]
    %v2306 = vld [vmem:[#allocation20 + $0x338] sm:$0xff]
    %v2307 = vld [vmem:[#allocation20 + $0x340] sm:$0xff]
    %v2308 = vld [vmem:[#allocation20 + $0x348] sm:$0xff]
    %v2309 = vld [vmem:[#allocation20 + $0x350] sm:$0xff]
    %v2310 = vld [vmem:[#allocation20 + $0x358] sm:$0xff]
    %v2311 = vld [vmem:[#allocation20 + $0x360] sm:$0xff]
    %v2312 = vld [vmem:[#allocation20 + $0x368] sm:$0xff]
    %v2313 = vld [vmem:[#allocation20 + $0x370] sm:$0xff]
    %v2314 = vld [vmem:[#allocation20 + $0x378] sm:$0xff]
    %v2315 = vld [vmem:[#allocation20 + $0x380] sm:$0xff]
    %v2316 = vld [vmem:[#allocation20 + $0x388] sm:$0xff]
    %v2317 = vld [vmem:[#allocation20 + $0x390] sm:$0xff]
    %v2318 = vld [vmem:[#allocation20 + $0x398] sm:$0xff]
    %v2319 = vld [vmem:[#allocation20 + $0x3a0] sm:$0xff]
    %v2320 = vld [vmem:[#allocation20 + $0x3a8] sm:$0xff]
    %v2321 = vld [vmem:[#allocation20 + $0x3b0] sm:$0xff]
    %v2322 = vld [vmem:[#allocation20 + $0x3b8] sm:$0xff]
    %v2323 = vld [vmem:[#allocation20 + $0x3c0] sm:$0xff]
    %v2324 = vld [vmem:[#allocation20 + $0x3c8] sm:$0xff]
    %v2325 = vld [vmem:[#allocation20 + $0x3d0] sm:$0xff]
    %v2326 = vld [vmem:[#allocation20 + $0x3d8] sm:$0xff]
    %v2327 = vld [vmem:[#allocation20 + $0x3e0] sm:$0xff]
    %v2328 = vld [vmem:[#allocation20 + $0x3e8] sm:$0xff]
    %v2329 = vld [vmem:[#allocation20 + $0x3f0] sm:$0xff]
    %v2330 = vld [vmem:[#allocation20 + $0x3f8] sm:$0xff]
    %v2331 = vld [vmem:[%s27] sm:$0xf]
    %v2333 = vlaneseq
    %v2334 = vshrl.u32 %v2333, 7
    %v2335 = vsub.s32 0, %v2334
    %v2336 = vrot.slane %v2331, %v2335
    %v2337 = vlaneseq
    %v2338 = vshrl.u32 %v2337, 7
    %v2339 = vsub.s32 1, %v2338
    %v2340 = vrot.slane %v2331, %v2339
    %v2341 = vlaneseq
    %v2342 = vshrl.u32 %v2341, 7
    %v2343 = vsub.s32 2, %v2342
    %v2344 = vrot.slane %v2331, %v2343
    %v2345 = vlaneseq
    %v2346 = vshrl.u32 %v2345, 7
    %v2347 = vsub.s32 3, %v2346
    %v2348 = vrot.slane %v2331, %v2347
    %2353 = vmatprep.subr.mxu0 %v2204
    %2354 = vmatpush1.msra.mxu0 %v2203
    %2355 = vmatprep.subr.mxu0 %v2208
    %2356 = vmatpush1.msra.mxu0 %v2207
    %2357 = vmatprep.subr.mxu0 %v2212
    %2358 = vmatpush1.msra.mxu0 %v2211
    %2359 = vmatprep.subr.mxu0 %v2216
    %2360 = vmatpush1.msra.mxu0 %v2215
    %2361 = vmatprep.subr.mxu0 %v2220
    %2362 = vmatpush1.msra.mxu0 %v2219
    %2363 = vmatprep.subr.mxu0 %v2224
    %2364 = vmatpush1.msra.mxu0 %v2223
    %2365 = vmatprep.subr.mxu0 %v2228
    %2366 = vmatpush1.msra.mxu0 %v2227
    %2367 = vmatprep.subr.mxu0 %v2232
    %2368 = vmatpush1.msra.mxu0 %v2231
    %2369 = vmatprep.subr.mxu0 %v2236
    %2370 = vmatpush1.msra.mxu0 %v2235
    %2371 = vmatprep.subr.mxu0 %v2240
    %2372 = vmatpush1.msra.mxu0 %v2239
    %2373 = vmatprep.subr.mxu0 %v2244
    %2374 = vmatpush1.msra.mxu0 %v2243
    %2375 = vmatprep.subr.mxu0 %v2248
    %2376 = vmatpush1.msra.mxu0 %v2247
    %2377 = vmatprep.subr.mxu0 %v2252
    %2378 = vmatpush1.msra.mxu0 %v2251
    %2379 = vmatprep.subr.mxu0 %v2256
    %2380 = vmatpush1.msra.mxu0 %v2255
    %2381 = vmatprep.subr.mxu0 %v2260
    %2382 = vmatpush1.msra.mxu0 %v2259
    %2383 = vmatprep.subr.mxu0 %v2264
    %2384 = vmatpush1.msra.mxu0 %v2263
    %2385 = vmatprep.subr.mxu0 %v2268
    %2386 = vmatpush1.msra.mxu0 %v2267
    %2387 = vmatprep.subr.mxu0 %v2272
    %2388 = vmatpush1.msra.mxu0 %v2271
    %2389 = vmatprep.subr.mxu0 %v2276
    %2390 = vmatpush1.msra.mxu0 %v2275
    %2391 = vmatprep.subr.mxu0 %v2280
    %2392 = vmatpush1.msra.mxu0 %v2279
    %2393 = vmatprep.subr.mxu0 %v2284
    %2394 = vmatpush1.msra.mxu0 %v2283
    %2395 = vmatprep.subr.mxu0 %v2288
    %2396 = vmatpush1.msra.mxu0 %v2287
    %2397 = vmatprep.subr.mxu0 %v2292
    %2398 = vmatpush1.msra.mxu0 %v2291
    %2399 = vmatprep.subr.mxu0 %v2296
    %2400 = vmatpush1.msra.mxu0 %v2295
    %2401 = vmatprep.subr.mxu0 %v2300
    %2402 = vmatpush1.msra.mxu0 %v2299
    %2403 = vmatprep.subr.mxu0 %v2304
    %2404 = vmatpush1.msra.mxu0 %v2303
    %2405 = vmatprep.subr.mxu0 %v2308
    %2406 = vmatpush1.msra.mxu0 %v2307
    %2407 = vmatprep.subr.mxu0 %v2312
    %2408 = vmatpush1.msra.mxu0 %v2311
    %2409 = vmatprep.subr.mxu0 %v2316
    %2410 = vmatpush1.msra.mxu0 %v2315
    %2411 = vmatprep.subr.mxu0 %v2320
    %2412 = vmatpush1.msra.mxu0 %v2319
    %2413 = vmatprep.subr.mxu0 %v2324
    %2414 = vmatpush1.msra.mxu0 %v2323
    %2415 = vmatprep.subr.mxu0 %v2328
    %2416 = vmatpush1.msra.mxu0 %v2327
    %2417 = vmatprep.mubr.f32.mxu0 %v1780
    %2418 = vmatmul.mubr.f32.gmra.mrb[0].mxu0 %v1779
    %v2419 = vpop.f32.mrb[0].mxu0
    %v2420 = vadd.f32 %v2336, %v2419
    %v2421 = vpop.f32.mrb[0].mxu0
    %v2422 = vadd.f32 %v2340, %v2421
    %2423 = vmatprep.mubr.f32.mxu0 %v1782
    %2424 = vmatmul.mubr.f32.gmra.mrb[0].mxu0 %v1781
    %v2425 = vpop.f32.mrb[0].mxu0
    %v2426 = vadd.f32 %v2336, %v2425
    %v2427 = vpop.f32.mrb[0].mxu0
    %v2428 = vadd.f32 %v2340, %v2427
    %2429 = vmatprep.mubr.f32.mxu0 %v1784
    %2430 = vmatmul.mubr.f32.gmra.mrb[0].mxu0 %v1783
    %v2431 = vpop.f32.mrb[0].mxu0
    %v2432 = vadd.f32 %v2336, %v2431
    %v2433 = vpop.f32.mrb[0].mxu0
    %v2434 = vadd.f32 %v2340, %v2433
    %2435 = vmatprep.mubr.f32.mxu0 %v1786
    %2436 = vmatmul.mubr.f32.gmra.mrb[0].mxu0 %v1785
    %v2437 = vpop.f32.mrb[0].mxu0
    %v2438 = vadd.f32 %v2336, %v2437
    %v2439 = vpop.f32.mrb[0].mxu0
    %v2440 = vadd.f32 %v2340, %v2439
    %2441 = vmatprep.mubr.f32.mxu0 %v1788
    %2442 = vmatmul.mubr.f32.gmra.mrb[0].mxu0 %v1787
    %v2443 = vpop.f32.mrb[0].mxu0
    %v2444 = vadd.f32 %v2336, %v2443
    %v2445 = vpop.f32.mrb[0].mxu0
    %v2446 = vadd.f32 %v2340, %v2445
    %2447 = vmatprep.mubr.f32.mxu0 %v1790
    %2448 = vmatmul.mubr.f32.gmra.mrb[0].mxu0 %v1789
    %v2449 = vpop.f32.mrb[0].mxu0
    %v2450 = vadd.f32 %v2336, %v2449
    %v2451 = vpop.f32.mrb[0].mxu0
    %v2452 = vadd.f32 %v2340, %v2451
    %2453 = vmatprep.mubr.f32.mxu0 %v1792
    %2454 = vmatmul.mubr.f32.gmra.mrb[0].mxu0 %v1791
    %v2455 = vpop.f32.mrb[0].mxu0
    %v2456 = vadd.f32 %v2336, %v2455
    %v2457 = vpop.f32.mrb[0].mxu0
    %v2458 = vadd.f32 %v2340, %v2457
    %2459 = vmatprep.mubr.f32.mxu0 %v1794
    %2460 = vmatmul.mubr.f32.gmra.mrb[0].mxu0 %v1793
    %v2461 = vpop.f32.mrb[0].mxu0
    %v2462 = vadd.f32 %v2336, %v2461
    %v2463 = vpop.f32.mrb[0].mxu0
    %v2464 = vadd.f32 %v2340, %v2463
    %2465 = vdwg.mxu0
    %2466 = vmatprep.subr.mxu0 %v2206
    %2467 = vmatpush1.msra.mxu0 %v2205
    %2468 = vmatprep.subr.mxu0 %v2210
    %2469 = vmatpush1.msra.mxu0 %v2209
    %2470 = vmatprep.subr.mxu0 %v2214
    %2471 = vmatpush1.msra.mxu0 %v2213
    %2472 = vmatprep.subr.mxu0 %v2218
    %2473 = vmatpush1.msra.mxu0 %v2217
    %2474 = vmatprep.subr.mxu0 %v2222
    %2475 = vmatpush1.msra.mxu0 %v2221
    %2476 = vmatprep.subr.mxu0 %v2226
    %2477 = vmatpush1.msra.mxu0 %v2225
    %2478 = vmatprep.subr.mxu0 %v2230
    %2479 = vmatpush1.msra.mxu0 %v2229
    %2480 = vmatprep.subr.mxu0 %v2234
    %2481 = vmatpush1.msra.mxu0 %v2233
    %2482 = vmatprep.subr.mxu0 %v2238
    %2483 = vmatpush1.msra.mxu0 %v2237
    %2484 = vmatprep.subr.mxu0 %v2242
    %2485 = vmatpush1.msra.mxu0 %v2241
    %2486 = vmatprep.subr.mxu0 %v2246
    %2487 = vmatpush1.msra.mxu0 %v2245
    %2488 = vmatprep.subr.mxu0 %v2250
    %2489 = vmatpush1.msra.mxu0 %v2249
    %2490 = vmatprep.subr.mxu0 %v2254
    %2491 = vmatpush1.msra.mxu0 %v2253
    %2492 = vmatprep.subr.mxu0 %v2258
    %2493 = vmatpush1.msra.mxu0 %v2257
    %2494 = vmatprep.subr.mxu0 %v2262
    %2495 = vmatpush1.msra.mxu0 %v2261
    %2496 = vmatprep.subr.mxu0 %v2266
    %2497 = vmatpush1.msra.mxu0 %v2265
    %2498 = vmatprep.subr.mxu0 %v2270
    %2499 = vmatpush1.msra.mxu0 %v2269
    %2500 = vmatprep.subr.mxu0 %v2274
    %2501 = vmatpush1.msra.mxu0 %v2273
    %2502 = vmatprep.subr.mxu0 %v2278
    %2503 = vmatpush1.msra.mxu0 %v2277
    %2504 = vmatprep.subr.mxu0 %v2282
    %2505 = vmatpush1.msra.mxu0 %v2281
    %2506 = vmatprep.subr.mxu0 %v2286
    %2507 = vmatpush1.msra.mxu0 %v2285
    %2508 = vmatprep.subr.mxu0 %v2290
    %2509 = vmatpush1.msra.mxu0 %v2289
    %2510 = vmatprep.subr.mxu0 %v2294
    %2511 = vmatpush1.msra.mxu0 %v2293
    %2512 = vmatprep.subr.mxu0 %v2298
    %2513 = vmatpush1.msra.mxu0 %v2297
    %2514 = vmatprep.subr.mxu0 %v2302
    %2515 = vmatpush1.msra.mxu0 %v2301
    %2516 = vmatprep.subr.mxu0 %v2306
    %2517 = vmatpush1.msra.mxu0 %v2305
    %2518 = vmatprep.subr.mxu0 %v2310
    %2519 = vmatpush1.msra.mxu0 %v2309
    %2520 = vmatprep.subr.mxu0 %v2314
    %2521 = vmatpush1.msra.mxu0 %v2313
    %2522 = vmatprep.subr.mxu0 %v2318
    %2523 = vmatpush1.msra.mxu0 %v2317
    %2524 = vmatprep.subr.mxu0 %v2322
    %2525 = vmatpush1.msra.mxu0 %v2321
    %2526 = vmatprep.subr.mxu0 %v2326
    %2527 = vmatpush1.msra.mxu0 %v2325
    %2528 = vmatprep.subr.mxu0 %v2330
    %2529 = vmatpush1.msra.mxu0 %v2329
    %2530 = vmatprep.mubr.f32.mxu0 %v1780
    %2531 = vmatmul.mubr.f32.gmra.mrb[0].mxu0 %v1779
    %v2532 = vpop.f32.mrb[0].mxu0
    %v2533 = vadd.f32 %v2344, %v2532
    %v2534 = vpop.f32.mrb[0].mxu0
    %v2535 = vadd.f32 %v2348, %v2534
    %2536 = vmatprep.mubr.f32.mxu0 %v1782
    %2537 = vmatmul.mubr.f32.gmra.mrb[0].mxu0 %v1781
    %v2538 = vpop.f32.mrb[0].mxu0
    %v2539 = vadd.f32 %v2344, %v2538
    %v2540 = vpop.f32.mrb[0].mxu0
    %v2541 = vadd.f32 %v2348, %v2540
    %2542 = vmatprep.mubr.f32.mxu0 %v1784
    %2543 = vmatmul.mubr.f32.gmra.mrb[0].mxu0 %v1783
    %v2544 = vpop.f32.mrb[0].mxu0
    %v2545 = vadd.f32 %v2344, %v2544
    %v2546 = vpop.f32.mrb[0].mxu0
    %v2547 = vadd.f32 %v2348, %v2546
    %2548 = vmatprep.mubr.f32.mxu0 %v1786
    %2549 = vmatmul.mubr.f32.gmra.mrb[0].mxu0 %v1785
    %v2550 = vpop.f32.mrb[0].mxu0
    %v2551 = vadd.f32 %v2344, %v2550
    %v2552 = vpop.f32.mrb[0].mxu0
    %v2553 = vadd.f32 %v2348, %v2552
    %2554 = vmatprep.mubr.f32.mxu0 %v1788
    %2555 = vmatmul.mubr.f32.gmra.mrb[0].mxu0 %v1787
    %v2556 = vpop.f32.mrb[0].mxu0
    %v2557 = vadd.f32 %v2344, %v2556
    %v2558 = vpop.f32.mrb[0].mxu0
    %v2559 = vadd.f32 %v2348, %v2558
    %2560 = vmatprep.mubr.f32.mxu0 %v1790
    %2561 = vmatmul.mubr.f32.gmra.mrb[0].mxu0 %v1789
    %v2562 = vpop.f32.mrb[0].mxu0
    %v2563 = vadd.f32 %v2344, %v2562
    %v2564 = vpop.f32.mrb[0].mxu0
    %v2565 = vadd.f32 %v2348, %v2564
    %2566 = vmatprep.mubr.f32.mxu0 %v1792
    %2567 = vmatmul.mubr.f32.gmra.mrb[0].mxu0 %v1791
    %v2568 = vpop.f32.mrb[0].mxu0
    %v2569 = vadd.f32 %v2344, %v2568
    %v2570 = vpop.f32.mrb[0].mxu0
    %v2571 = vadd.f32 %v2348, %v2570
    %2572 = vmatprep.mubr.f32.mxu0 %v1794
    %2573 = vmatmul.mubr.f32.gmra.mrb[0].mxu0 %v1793
    %v2574 = vpop.f32.mrb[0].mxu0
    %v2575 = vadd.f32 %v2344, %v2574
    %v2576 = vpop.f32.mrb[0].mxu0
    %v2577 = vadd.f32 %v2348, %v2576
    %2578 = vdwg.mxu0
    %2579 = vst [vmem:[#allocation3] sm:$0xff] %v2420
    %2580 = vst [vmem:[#allocation3 + $0x8] sm:$0xff] %v2422
    %2581 = vst [vmem:[#allocation3 + $0x10] sm:$0xff] %v2533
    %2582 = vst [vmem:[#allocation3 + $0x18] sm:$0xff] %v2535
    %2583 = vst [vmem:[#allocation3 + $0x20] sm:$0xff] %v2426
    %2584 = vst [vmem:[#allocation3 + $0x28] sm:$0xff] %v2428
    %2585 = vst [vmem:[#allocation3 + $0x30] sm:$0xff] %v2539
    %2586 = vst [vmem:[#allocation3 + $0x38] sm:$0xff] %v2541
    %2587 = vst [vmem:[#allocation3 + $0x40] sm:$0xff] %v2432
    %2588 = vst [vmem:[#allocation3 + $0x48] sm:$0xff] %v2434
    %2589 = vst [vmem:[#allocation3 + $0x50] sm:$0xff] %v2545
    %2590 = vst [vmem:[#allocation3 + $0x58] sm:$0xff] %v2547
    %2591 = vst [vmem:[#allocation3 + $0x60] sm:$0xff] %v2438
    %2592 = vst [vmem:[#allocation3 + $0x68] sm:$0xff] %v2440
    %2593 = vst [vmem:[#allocation3 + $0x70] sm:$0xff] %v2551
    %2594 = vst [vmem:[#allocation3 + $0x78] sm:$0xff] %v2553
    %2595 = vst [vmem:[#allocation3 + $0x80] sm:$0xff] %v2444
    %2596 = vst [vmem:[#allocation3 + $0x88] sm:$0xff] %v2446
    %2597 = vst [vmem:[#allocation3 + $0x90] sm:$0xff] %v2557
    %2598 = vst [vmem:[#allocation3 + $0x98] sm:$0xff] %v2559
    %2599 = vst [vmem:[#allocation3 + $0xa0] sm:$0xff] %v2450
    %2600 = vst [vmem:[#allocation3 + $0xa8] sm:$0xff] %v2452
    %2601 = vst [vmem:[#allocation3 + $0xb0] sm:$0xff] %v2563
    %2602 = vst [vmem:[#allocation3 + $0xb8] sm:$0xff] %v2565
    %2603 = vst [vmem:[#allocation3 + $0xc0] sm:$0xff] %v2456
    %2604 = vst [vmem:[#allocation3 + $0xc8] sm:$0xff] %v2458
    %2605 = vst [vmem:[#allocation3 + $0xd0] sm:$0xff] %v2569
    %2606 = vst [vmem:[#allocation3 + $0xd8] sm:$0xff] %v2571
    %2607 = vst [vmem:[#allocation3 + $0xe0] sm:$0xff] %v2462
    %2608 = vst [vmem:[#allocation3 + $0xe8] sm:$0xff] %v2464
    %2609 = vst [vmem:[#allocation3 + $0xf0] sm:$0xff] %v2575
    %2610 = vst [vmem:[#allocation3 + $0xf8] sm:$0xff] %v2577
    %v2611 = vld [vmem:[#allocation19] sm:$0xff]
    %v2612 = vld [vmem:[#allocation19 + $0x8] sm:$0xff]
    %v2613 = vld [vmem:[#allocation19 + $0x10] sm:$0xff]
    %v2614 = vld [vmem:[#allocation19 + $0x18] sm:$0xff]
    %v2615 = vld [vmem:[#allocation19 + $0x20] sm:$0xff]
    %v2616 = vld [vmem:[#allocation19 + $0x28] sm:$0xff]
    %v2617 = vld [vmem:[#allocation19 + $0x30] sm:$0xff]
    %v2618 = vld [vmem:[#allocation19 + $0x38] sm:$0xff]
    %v2619 = vld [vmem:[#allocation19 + $0x40] sm:$0xff]
    %v2620 = vld [vmem:[#allocation19 + $0x48] sm:$0xff]
    %v2621 = vld [vmem:[#allocation19 + $0x50] sm:$0xff]
    %v2622 = vld [vmem:[#allocation19 + $0x58] sm:$0xff]
    %v2623 = vld [vmem:[#allocation19 + $0x60] sm:$0xff]
    %v2624 = vld [vmem:[#allocation19 + $0x68] sm:$0xff]
    %v2625 = vld [vmem:[#allocation19 + $0x70] sm:$0xff]
    %v2626 = vld [vmem:[#allocation19 + $0x78] sm:$0xff]
    %v2627 = vld [vmem:[#allocation19 + $0x80] sm:$0xff]
    %v2628 = vld [vmem:[#allocation19 + $0x88] sm:$0xff]
    %v2629 = vld [vmem:[#allocation19 + $0x90] sm:$0xff]
    %v2630 = vld [vmem:[#allocation19 + $0x98] sm:$0xff]
    %v2631 = vld [vmem:[#allocation19 + $0xa0] sm:$0xff]
    %v2632 = vld [vmem:[#allocation19 + $0xa8] sm:$0xff]
    %v2633 = vld [vmem:[#allocation19 + $0xb0] sm:$0xff]
    %v2634 = vld [vmem:[#allocation19 + $0xb8] sm:$0xff]
    %v2635 = vld [vmem:[#allocation19 + $0xc0] sm:$0xff]
    %v2636 = vld [vmem:[#allocation19 + $0xc8] sm:$0xff]
    %v2637 = vld [vmem:[#allocation19 + $0xd0] sm:$0xff]
    %v2638 = vld [vmem:[#allocation19 + $0xd8] sm:$0xff]
    %v2639 = vld [vmem:[#allocation19 + $0xe0] sm:$0xff]
    %v2640 = vld [vmem:[#allocation19 + $0xe8] sm:$0xff]
    %v2641 = vld [vmem:[#allocation19 + $0xf0] sm:$0xff]
    %v2642 = vld [vmem:[#allocation19 + $0xf8] sm:$0xff]
    %v2643 = vld [vmem:[#allocation19 + $0x100] sm:$0xff]
    %v2644 = vld [vmem:[#allocation19 + $0x108] sm:$0xff]
    %v2645 = vld [vmem:[#allocation19 + $0x110] sm:$0xff]
    %v2646 = vld [vmem:[#allocation19 + $0x118] sm:$0xff]
    %v2647 = vld [vmem:[#allocation19 + $0x120] sm:$0xff]
    %v2648 = vld [vmem:[#allocation19 + $0x128] sm:$0xff]
    %v2649 = vld [vmem:[#allocation19 + $0x130] sm:$0xff]
    %v2650 = vld [vmem:[#allocation19 + $0x138] sm:$0xff]
    %v2651 = vld [vmem:[#allocation19 + $0x140] sm:$0xff]
    %v2652 = vld [vmem:[#allocation19 + $0x148] sm:$0xff]
    %v2653 = vld [vmem:[#allocation19 + $0x150] sm:$0xff]
    %v2654 = vld [vmem:[#allocation19 + $0x158] sm:$0xff]
    %v2655 = vld [vmem:[#allocation19 + $0x160] sm:$0xff]
    %v2656 = vld [vmem:[#allocation19 + $0x168] sm:$0xff]
    %v2657 = vld [vmem:[#allocation19 + $0x170] sm:$0xff]
    %v2658 = vld [vmem:[#allocation19 + $0x178] sm:$0xff]
    %v2659 = vld [vmem:[#allocation19 + $0x180] sm:$0xff]
    %v2660 = vld [vmem:[#allocation19 + $0x188] sm:$0xff]
    %v2661 = vld [vmem:[#allocation19 + $0x190] sm:$0xff]
    %v2662 = vld [vmem:[#allocation19 + $0x198] sm:$0xff]
    %v2663 = vld [vmem:[#allocation19 + $0x1a0] sm:$0xff]
    %v2664 = vld [vmem:[#allocation19 + $0x1a8] sm:$0xff]
    %v2665 = vld [vmem:[#allocation19 + $0x1b0] sm:$0xff]
    %v2666 = vld [vmem:[#allocation19 + $0x1b8] sm:$0xff]
    %v2667 = vld [vmem:[#allocation19 + $0x1c0] sm:$0xff]
    %v2668 = vld [vmem:[#allocation19 + $0x1c8] sm:$0xff]
    %v2669 = vld [vmem:[#allocation19 + $0x1d0] sm:$0xff]
    %v2670 = vld [vmem:[#allocation19 + $0x1d8] sm:$0xff]
    %v2671 = vld [vmem:[#allocation19 + $0x1e0] sm:$0xff]
    %v2672 = vld [vmem:[#allocation19 + $0x1e8] sm:$0xff]
    %v2673 = vld [vmem:[#allocation19 + $0x1f0] sm:$0xff]
    %v2674 = vld [vmem:[#allocation19 + $0x1f8] sm:$0xff]
    %v2675 = vld [vmem:[#allocation22] sm:$0xff]
    %v2676 = vld [vmem:[#allocation22 + $0x8] sm:$0xff]
    %v2677 = vld [vmem:[#allocation22 + $0x10] sm:$0xff]
    %v2678 = vld [vmem:[#allocation22 + $0x18] sm:$0xff]
    %v2679 = vld [vmem:[#allocation22 + $0x20] sm:$0xff]
    %v2680 = vld [vmem:[#allocation22 + $0x28] sm:$0xff]
    %v2681 = vld [vmem:[#allocation22 + $0x30] sm:$0xff]
    %v2682 = vld [vmem:[#allocation22 + $0x38] sm:$0xff]
    %v2683 = vld [vmem:[#allocation22 + $0x40] sm:$0xff]
    %v2684 = vld [vmem:[#allocation22 + $0x48] sm:$0xff]
    %v2685 = vld [vmem:[#allocation22 + $0x50] sm:$0xff]
    %v2686 = vld [vmem:[#allocation22 + $0x58] sm:$0xff]
    %v2687 = vld [vmem:[#allocation22 + $0x60] sm:$0xff]
    %v2688 = vld [vmem:[#allocation22 + $0x68] sm:$0xff]
    %v2689 = vld [vmem:[#allocation22 + $0x70] sm:$0xff]
    %v2690 = vld [vmem:[#allocation22 + $0x78] sm:$0xff]
    %v2691 = vld [vmem:[#allocation22 + $0x80] sm:$0xff]
    %v2692 = vld [vmem:[#allocation22 + $0x88] sm:$0xff]
    %v2693 = vld [vmem:[#allocation22 + $0x90] sm:$0xff]
    %v2694 = vld [vmem:[#allocation22 + $0x98] sm:$0xff]
    %v2695 = vld [vmem:[#allocation22 + $0xa0] sm:$0xff]
    %v2696 = vld [vmem:[#allocation22 + $0xa8] sm:$0xff]
    %v2697 = vld [vmem:[#allocation22 + $0xb0] sm:$0xff]
    %v2698 = vld [vmem:[#allocation22 + $0xb8] sm:$0xff]
    %v2699 = vld [vmem:[#allocation22 + $0xc0] sm:$0xff]
    %v2700 = vld [vmem:[#allocation22 + $0xc8] sm:$0xff]
    %v2701 = vld [vmem:[#allocation22 + $0xd0] sm:$0xff]
    %v2702 = vld [vmem:[#allocation22 + $0xd8] sm:$0xff]
    %v2703 = vld [vmem:[#allocation22 + $0xe0] sm:$0xff]
    %v2704 = vld [vmem:[#allocation22 + $0xe8] sm:$0xff]
    %v2705 = vld [vmem:[#allocation22 + $0xf0] sm:$0xff]
    %v2706 = vld [vmem:[#allocation22 + $0xf8] sm:$0xff]
    %v2707 = vld [vmem:[#allocation22 + $0x100] sm:$0xff]
    %v2708 = vld [vmem:[#allocation22 + $0x108] sm:$0xff]
    %v2709 = vld [vmem:[#allocation22 + $0x110] sm:$0xff]
    %v2710 = vld [vmem:[#allocation22 + $0x118] sm:$0xff]
    %v2711 = vld [vmem:[#allocation22 + $0x120] sm:$0xff]
    %v2712 = vld [vmem:[#allocation22 + $0x128] sm:$0xff]
    %v2713 = vld [vmem:[#allocation22 + $0x130] sm:$0xff]
    %v2714 = vld [vmem:[#allocation22 + $0x138] sm:$0xff]
    %v2715 = vld [vmem:[#allocation22 + $0x140] sm:$0xff]
    %v2716 = vld [vmem:[#allocation22 + $0x148] sm:$0xff]
    %v2717 = vld [vmem:[#allocation22 + $0x150] sm:$0xff]
    %v2718 = vld [vmem:[#allocation22 + $0x158] sm:$0xff]
    %v2719 = vld [vmem:[#allocation22 + $0x160] sm:$0xff]
    %v2720 = vld [vmem:[#allocation22 + $0x168] sm:$0xff]
    %v2721 = vld [vmem:[#allocation22 + $0x170] sm:$0xff]
    %v2722 = vld [vmem:[#allocation22 + $0x178] sm:$0xff]
    %v2723 = vld [vmem:[#allocation22 + $0x180] sm:$0xff]
    %v2724 = vld [vmem:[#allocation22 + $0x188] sm:$0xff]
    %v2725 = vld [vmem:[#allocation22 + $0x190] sm:$0xff]
    %v2726 = vld [vmem:[#allocation22 + $0x198] sm:$0xff]
    %v2727 = vld [vmem:[#allocation22 + $0x1a0] sm:$0xff]
    %v2728 = vld [vmem:[#allocation22 + $0x1a8] sm:$0xff]
    %v2729 = vld [vmem:[#allocation22 + $0x1b0] sm:$0xff]
    %v2730 = vld [vmem:[#allocation22 + $0x1b8] sm:$0xff]
    %v2731 = vld [vmem:[#allocation22 + $0x1c0] sm:$0xff]
    %v2732 = vld [vmem:[#allocation22 + $0x1c8] sm:$0xff]
    %v2733 = vld [vmem:[#allocation22 + $0x1d0] sm:$0xff]
    %v2734 = vld [vmem:[#allocation22 + $0x1d8] sm:$0xff]
    %v2735 = vld [vmem:[#allocation22 + $0x1e0] sm:$0xff]
    %v2736 = vld [vmem:[#allocation22 + $0x1e8] sm:$0xff]
    %v2737 = vld [vmem:[#allocation22 + $0x1f0] sm:$0xff]
    %v2738 = vld [vmem:[#allocation22 + $0x1f8] sm:$0xff]
    %v2739 = vld [vmem:[%s29] sm:$0x1]
    %v2740 = vld [vmem:[%s29 + $0x1] sm:$0x1]
    %vm2741 = vcmask 7168
    %2742 = vst.msk [vmem:[%s71] sm:$0xff] %vm2741, 0.0
    %2743 = vst.msk [vmem:[%s71 + $0x8] sm:$0xff] %vm2741, 0.0
    %2744 = vst.msk [vmem:[%s71 + $0x10] sm:$0xff] %vm2741, 0.0
    %2745 = vst.msk [vmem:[%s71 + $0x18] sm:$0xff] %vm2741, 0.0
    %2746 = vst.msk [vmem:[%s71 + $0x20] sm:$0xff] %vm2741, 0.0
    %2747 = vst.msk [vmem:[%s71 + $0x28] sm:$0xff] %vm2741, 0.0
    %2748 = vst.msk [vmem:[%s71 + $0x30] sm:$0xff] %vm2741, 0.0
    %2749 = vst.msk [vmem:[%s71 + $0x38] sm:$0xff] %vm2741, 0.0
    loop: start=0, step=1, limit=8
    $region229: #{summarizer_forward.1} parent=1 // loop_pre_header
      _
    $region230: #{summarizer_forward.1} parent=1 // loop_header
      %s2751 = sphi 0, %s2755
      %p2752 = scmp.ge.s32.totalorder %s2751, 8
      %v2756 = vphi 0.0, %v3090
      %v2757 = vphi 0.0, %v3088
      %v2758 = vphi 0.0, %v3114
      %v2759 = vphi 0.0, %v3112
    $region231: #{summarizer_forward.1} parent=1 // loop_header_branch
      %2754 = sbr.rel (%p2752) target = $region235
    $region232: #{summarizer_forward.1} parent=1 // loop_body
      %s2760 = ssub.s32 7, %s2751
      %s2761 = smul.u32 %s2751, 4
      %s2762 = smul.addr %s2761, 8
      %s2763 = scalar_lea.vmem [#allocation2], %s2762
      %v2764 = vld [vmem:[%s2763] sm:$0xff]
      %v2765 = vld [vmem:[%s2763 + $0x8] sm:$0xff]
      %v2766 = vld [vmem:[%s2763 + $0x10] sm:$0xff]
      %v2767 = vld [vmem:[%s2763 + $0x18] sm:$0xff]
      %2768 = vmatprep.subr.mxu0 %v2612
      %2769 = vmatpush1.msra.mxu0 %v2611
      %2770 = vmatprep.subr.mxu0 %v2616
      %2771 = vmatpush1.msra.mxu0 %v2615
      %2772 = vmatprep.subr.mxu0 %v2620
      %2773 = vmatpush1.msra.mxu0 %v2619
      %2774 = vmatprep.subr.mxu0 %v2624
      %2775 = vmatpush1.msra.mxu0 %v2623
      %2776 = vmatprep.subr.mxu0 %v2628
      %2777 = vmatpush1.msra.mxu0 %v2627
      %2778 = vmatprep.subr.mxu0 %v2632
      %2779 = vmatpush1.msra.mxu0 %v2631
      %2780 = vmatprep.subr.mxu0 %v2636
      %2781 = vmatpush1.msra.mxu0 %v2635
      %2782 = vmatprep.subr.mxu0 %v2640
      %2783 = vmatpush1.msra.mxu0 %v2639
      %2784 = vmatprep.subr.mxu0 %v2644
      %2785 = vmatpush1.msra.mxu0 %v2643
      %2786 = vmatprep.subr.mxu0 %v2648
      %2787 = vmatpush1.msra.mxu0 %v2647
      %2788 = vmatprep.subr.mxu0 %v2652
      %2789 = vmatpush1.msra.mxu0 %v2651
      %2790 = vmatprep.subr.mxu0 %v2656
      %2791 = vmatpush1.msra.mxu0 %v2655
      %2792 = vmatprep.subr.mxu0 %v2660
      %2793 = vmatpush1.msra.mxu0 %v2659
      %2794 = vmatprep.subr.mxu0 %v2664
      %2795 = vmatpush1.msra.mxu0 %v2663
      %2796 = vmatprep.subr.mxu0 %v2668
      %2797 = vmatpush1.msra.mxu0 %v2667
      %2798 = vmatprep.subr.mxu0 %v2672
      %2799 = vmatpush1.msra.mxu0 %v2671
      %2800 = vmatprep.subr.mxu0 0.0
      %2801 = vmatpush1.msra.mxu0 0.0
      %2802 = vmatprep.subr.mxu0 0.0
      %2803 = vmatpush1.msra.mxu0 0.0
      %2804 = vmatprep.subr.mxu0 0.0
      %2805 = vmatpush1.msra.mxu0 0.0
      %2806 = vmatprep.subr.mxu0 0.0
      %2807 = vmatpush1.msra.mxu0 0.0
      %2808 = vmatprep.subr.mxu0 0.0
      %2809 = vmatpush1.msra.mxu0 0.0
      %2810 = vmatprep.subr.mxu0 0.0
      %2811 = vmatpush1.msra.mxu0 0.0
      %2812 = vmatprep.subr.mxu0 0.0
      %2813 = vmatpush1.msra.mxu0 0.0
      %2814 = vmatprep.subr.mxu0 0.0
      %2815 = vmatpush1.msra.mxu0 0.0
      %2816 = vmatprep.subr.mxu0 0.0
      %2817 = vmatpush1.msra.mxu0 0.0
      %2818 = vmatprep.subr.mxu0 0.0
      %2819 = vmatpush1.msra.mxu0 0.0
      %2820 = vmatprep.subr.mxu0 0.0
      %2821 = vmatpush1.msra.mxu0 0.0
      %2822 = vmatprep.subr.mxu0 0.0
      %2823 = vmatpush1.msra.mxu0 0.0
      %2824 = vmatprep.subr.mxu0 0.0
      %2825 = vmatpush1.msra.mxu0 0.0
      %2826 = vmatprep.subr.mxu0 0.0
      %2827 = vmatpush1.msra.mxu0 0.0
      %2828 = vmatprep.subr.mxu0 0.0
      %2829 = vmatpush1.msra.mxu0 0.0
      %2830 = vmatprep.subr.mxu0 0.0
      %2831 = vmatpush1.msra.mxu0 0.0
      %2832 = vmatprep.mubr.f32.mxu0 0.0
      %2833 = vmatmul.mubr.f32.gmra.mrb[0].mxu0 %v2756
      %v2834 = vpop.f32.mrb[0].mxu0
      %v2835 = vadd.f32 0.0, %v2834
      %v2836 = vpop.f32.mrb[0].mxu0
      %v2837 = vadd.f32 0.0, %v2836
      %2838 = vdwg.mxu0
      %2839 = vmatprep.subr.mxu0 %v2614
      %2840 = vmatpush1.msra.mxu0 %v2613
      %2841 = vmatprep.subr.mxu0 %v2618
      %2842 = vmatpush1.msra.mxu0 %v2617
      %2843 = vmatprep.subr.mxu0 %v2622
      %2844 = vmatpush1.msra.mxu0 %v2621
      %2845 = vmatprep.subr.mxu0 %v2626
      %2846 = vmatpush1.msra.mxu0 %v2625
      %2847 = vmatprep.subr.mxu0 %v2630
      %2848 = vmatpush1.msra.mxu0 %v2629
      %2849 = vmatprep.subr.mxu0 %v2634
      %2850 = vmatpush1.msra.mxu0 %v2633
      %2851 = vmatprep.subr.mxu0 %v2638
      %2852 = vmatpush1.msra.mxu0 %v2637
      %2853 = vmatprep.subr.mxu0 %v2642
      %2854 = vmatpush1.msra.mxu0 %v2641
      %2855 = vmatprep.subr.mxu0 %v2646
      %2856 = vmatpush1.msra.mxu0 %v2645
      %2857 = vmatprep.subr.mxu0 %v2650
      %2858 = vmatpush1.msra.mxu0 %v2649
      %2859 = vmatprep.subr.mxu0 %v2654
      %2860 = vmatpush1.msra.mxu0 %v2653
      %2861 = vmatprep.subr.mxu0 %v2658
      %2862 = vmatpush1.msra.mxu0 %v2657
      %2863 = vmatprep.subr.mxu0 %v2662
      %2864 = vmatpush1.msra.mxu0 %v2661
      %2865 = vmatprep.subr.mxu0 %v2666
      %2866 = vmatpush1.msra.mxu0 %v2665
      %2867 = vmatprep.subr.mxu0 %v2670
      %2868 = vmatpush1.msra.mxu0 %v2669
      %2869 = vmatprep.subr.mxu0 %v2674
      %2870 = vmatpush1.msra.mxu0 %v2673
      %2871 = vmatprep.subr.mxu0 0.0
      %2872 = vmatpush1.msra.mxu0 0.0
      %2873 = vmatprep.subr.mxu0 0.0
      %2874 = vmatpush1.msra.mxu0 0.0
      %2875 = vmatprep.subr.mxu0 0.0
      %2876 = vmatpush1.msra.mxu0 0.0
      %2877 = vmatprep.subr.mxu0 0.0
      %2878 = vmatpush1.msra.mxu0 0.0
      %2879 = vmatprep.subr.mxu0 0.0
      %2880 = vmatpush1.msra.mxu0 0.0
      %2881 = vmatprep.subr.mxu0 0.0
      %2882 = vmatpush1.msra.mxu0 0.0
      %2883 = vmatprep.subr.mxu0 0.0
      %2884 = vmatpush1.msra.mxu0 0.0
      %2885 = vmatprep.subr.mxu0 0.0
      %2886 = vmatpush1.msra.mxu0 0.0
      %2887 = vmatprep.subr.mxu0 0.0
      %2888 = vmatpush1.msra.mxu0 0.0
      %2889 = vmatprep.subr.mxu0 0.0
      %2890 = vmatpush1.msra.mxu0 0.0
      %2891 = vmatprep.subr.mxu0 0.0
      %2892 = vmatpush1.msra.mxu0 0.0
      %2893 = vmatprep.subr.mxu0 0.0
      %2894 = vmatpush1.msra.mxu0 0.0
      %2895 = vmatprep.subr.mxu0 0.0
      %2896 = vmatpush1.msra.mxu0 0.0
      %2897 = vmatprep.subr.mxu0 0.0
      %2898 = vmatpush1.msra.mxu0 0.0
      %2899 = vmatprep.subr.mxu0 0.0
      %2900 = vmatpush1.msra.mxu0 0.0
      %2901 = vmatprep.subr.mxu0 0.0
      %2902 = vmatpush1.msra.mxu0 0.0
      %2903 = vmatprep.mubr.f32.mxu0 0.0
      %2904 = vmatmul.mubr.f32.gmra.mrb[0].mxu0 %v2756
      %v2905 = vpop.f32.mrb[0].mxu0
      %v2906 = vadd.f32 0.0, %v2905
      %v2907 = vpop.f32.mrb[0].mxu0
      %v2908 = vadd.f32 0.0, %v2907
      %2909 = vdwg.mxu0
      %v2910 = vadd.f32 %v2764, %v2835
      %v2911 = vadd.f32 %v2765, %v2837
      %v2912 = vadd.f32 %v2766, %v2906
      %v2913 = vadd.f32 %v2767, %v2908
      %s2914 = smul.u32 %s2760, 4
      %s2915 = smul.addr %s2914, 8
      %s2916 = scalar_lea.vmem [#allocation3], %s2915
      %v2917 = vld [vmem:[%s2916] sm:$0xff]
      %v2918 = vld [vmem:[%s2916 + $0x8] sm:$0xff]
      %v2919 = vld [vmem:[%s2916 + $0x10] sm:$0xff]
      %v2920 = vld [vmem:[%s2916 + $0x18] sm:$0xff]
      %2921 = vmatprep.subr.mxu0 %v2676
      %2922 = vmatpush1.msra.mxu0 %v2675
      %2923 = vmatprep.subr.mxu0 %v2680
      %2924 = vmatpush1.msra.mxu0 %v2679
      %2925 = vmatprep.subr.mxu0 %v2684
      %2926 = vmatpush1.msra.mxu0 %v2683
      %2927 = vmatprep.subr.mxu0 %v2688
      %2928 = vmatpush1.msra.mxu0 %v2687
      %2929 = vmatprep.subr.mxu0 %v2692
      %2930 = vmatpush1.msra.mxu0 %v2691
      %2931 = vmatprep.subr.mxu0 %v2696
      %2932 = vmatpush1.msra.mxu0 %v2695
      %2933 = vmatprep.subr.mxu0 %v2700
      %2934 = vmatpush1.msra.mxu0 %v2699
      %2935 = vmatprep.subr.mxu0 %v2704
      %2936 = vmatpush1.msra.mxu0 %v2703
      %2937 = vmatprep.subr.mxu0 %v2708
      %2938 = vmatpush1.msra.mxu0 %v2707
      %2939 = vmatprep.subr.mxu0 %v2712
      %2940 = vmatpush1.msra.mxu0 %v2711
      %2941 = vmatprep.subr.mxu0 %v2716
      %2942 = vmatpush1.msra.mxu0 %v2715
      %2943 = vmatprep.subr.mxu0 %v2720
      %2944 = vmatpush1.msra.mxu0 %v2719
      %2945 = vmatprep.subr.mxu0 %v2724
      %2946 = vmatpush1.msra.mxu0 %v2723
      %2947 = vmatprep.subr.mxu0 %v2728
      %2948 = vmatpush1.msra.mxu0 %v2727
      %2949 = vmatprep.subr.mxu0 %v2732
      %2950 = vmatpush1.msra.mxu0 %v2731
      %2951 = vmatprep.subr.mxu0 %v2736
      %2952 = vmatpush1.msra.mxu0 %v2735
      %2953 = vmatprep.subr.mxu0 0.0
      %2954 = vmatpush1.msra.mxu0 0.0
      %2955 = vmatprep.subr.mxu0 0.0
      %2956 = vmatpush1.msra.mxu0 0.0
      %2957 = vmatprep.subr.mxu0 0.0
      %2958 = vmatpush1.msra.mxu0 0.0
      %2959 = vmatprep.subr.mxu0 0.0
      %2960 = vmatpush1.msra.mxu0 0.0
      %2961 = vmatprep.subr.mxu0 0.0
      %2962 = vmatpush1.msra.mxu0 0.0
      %2963 = vmatprep.subr.mxu0 0.0
      %2964 = vmatpush1.msra.mxu0 0.0
      %2965 = vmatprep.subr.mxu0 0.0
      %2966 = vmatpush1.msra.mxu0 0.0
      %2967 = vmatprep.subr.mxu0 0.0
      %2968 = vmatpush1.msra.mxu0 0.0
      %2969 = vmatprep.subr.mxu0 0.0
      %2970 = vmatpush1.msra.mxu0 0.0
      %2971 = vmatprep.subr.mxu0 0.0
      %2972 = vmatpush1.msra.mxu0 0.0
      %2973 = vmatprep.subr.mxu0 0.0
      %2974 = vmatpush1.msra.mxu0 0.0
      %2975 = vmatprep.subr.mxu0 0.0
      %2976 = vmatpush1.msra.mxu0 0.0
      %2977 = vmatprep.subr.mxu0 0.0
      %2978 = vmatpush1.msra.mxu0 0.0
      %2979 = vmatprep.subr.mxu0 0.0
      %2980 = vmatpush1.msra.mxu0 0.0
      %2981 = vmatprep.subr.mxu0 0.0
      %2982 = vmatpush1.msra.mxu0 0.0
      %2983 = vmatprep.subr.mxu0 0.0
      %2984 = vmatpush1.msra.mxu0 0.0
      %2985 = vmatprep.mubr.f32.mxu0 0.0
      %2986 = vmatmul.mubr.f32.gmra.mrb[0].mxu0 %v2758
      %v2987 = vpop.f32.mrb[0].mxu0
      %v2988 = vadd.f32 0.0, %v2987
      %v2989 = vpop.f32.mrb[0].mxu0
      %v2990 = vadd.f32 0.0, %v2989
      %2991 = vdwg.mxu0
      %2992 = vmatprep.subr.mxu0 %v2678
      %2993 = vmatpush1.msra.mxu0 %v2677
      %2994 = vmatprep.subr.mxu0 %v2682
      %2995 = vmatpush1.msra.mxu0 %v2681
      %2996 = vmatprep.subr.mxu0 %v2686
      %2997 = vmatpush1.msra.mxu0 %v2685
      %2998 = vmatprep.subr.mxu0 %v2690
      %2999 = vmatpush1.msra.mxu0 %v2689
      %3000 = vmatprep.subr.mxu0 %v2694
      %3001 = vmatpush1.msra.mxu0 %v2693
      %3002 = vmatprep.subr.mxu0 %v2698
      %3003 = vmatpush1.msra.mxu0 %v2697
      %3004 = vmatprep.subr.mxu0 %v2702
      %3005 = vmatpush1.msra.mxu0 %v2701
      %3006 = vmatprep.subr.mxu0 %v2706
      %3007 = vmatpush1.msra.mxu0 %v2705
      %3008 = vmatprep.subr.mxu0 %v2710
      %3009 = vmatpush1.msra.mxu0 %v2709
      %3010 = vmatprep.subr.mxu0 %v2714
      %3011 = vmatpush1.msra.mxu0 %v2713
      %3012 = vmatprep.subr.mxu0 %v2718
      %3013 = vmatpush1.msra.mxu0 %v2717
      %3014 = vmatprep.subr.mxu0 %v2722
      %3015 = vmatpush1.msra.mxu0 %v2721
      %3016 = vmatprep.subr.mxu0 %v2726
      %3017 = vmatpush1.msra.mxu0 %v2725
      %3018 = vmatprep.subr.mxu0 %v2730
      %3019 = vmatpush1.msra.mxu0 %v2729
      %3020 = vmatprep.subr.mxu0 %v2734
      %3021 = vmatpush1.msra.mxu0 %v2733
      %3022 = vmatprep.subr.mxu0 %v2738
      %3023 = vmatpush1.msra.mxu0 %v2737
      %3024 = vmatprep.subr.mxu0 0.0
      %3025 = vmatpush1.msra.mxu0 0.0
      %3026 = vmatprep.subr.mxu0 0.0
      %3027 = vmatpush1.msra.mxu0 0.0
      %3028 = vmatprep.subr.mxu0 0.0
      %3029 = vmatpush1.msra.mxu0 0.0
      %3030 = vmatprep.subr.mxu0 0.0
      %3031 = vmatpush1.msra.mxu0 0.0
      %3032 = vmatprep.subr.mxu0 0.0
      %3033 = vmatpush1.msra.mxu0 0.0
      %3034 = vmatprep.subr.mxu0 0.0
      %3035 = vmatpush1.msra.mxu0 0.0
      %3036 = vmatprep.subr.mxu0 0.0
      %3037 = vmatpush1.msra.mxu0 0.0
      %3038 = vmatprep.subr.mxu0 0.0
      %3039 = vmatpush1.msra.mxu0 0.0
      %3040 = vmatprep.subr.mxu0 0.0
      %3041 = vmatpush1.msra.mxu0 0.0
      %3042 = vmatprep.subr.mxu0 0.0
      %3043 = vmatpush1.msra.mxu0 0.0
      %3044 = vmatprep.subr.mxu0 0.0
      %3045 = vmatpush1.msra.mxu0 0.0
      %3046 = vmatprep.subr.mxu0 0.0
      %3047 = vmatpush1.msra.mxu0 0.0
      %3048 = vmatprep.subr.mxu0 0.0
      %3049 = vmatpush1.msra.mxu0 0.0
      %3050 = vmatprep.subr.mxu0 0.0
      %3051 = vmatpush1.msra.mxu0 0.0
      %3052 = vmatprep.subr.mxu0 0.0
      %3053 = vmatpush1.msra.mxu0 0.0
      %3054 = vmatprep.subr.mxu0 0.0
      %3055 = vmatpush1.msra.mxu0 0.0
      %3056 = vmatprep.mubr.f32.mxu0 0.0
      %3057 = vmatmul.mubr.f32.gmra.mrb[0].mxu0 %v2758
      %v3058 = vpop.f32.mrb[0].mxu0
      %v3059 = vadd.f32 0.0, %v3058
      %v3060 = vpop.f32.mrb[0].mxu0
      %v3061 = vadd.f32 0.0, %v3060
      %3062 = vdwg.mxu0
      %v3063 = vadd.f32 %v2917, %v2988
      %v3064 = vadd.f32 %v2918, %v2990
      %v3065 = vadd.f32 %v2919, %v3059
      %v3066 = vadd.f32 %v2920, %v3061
      %v3067 = vxor.u32 %v2910, 2147483648
      %v3068 = vmul.f32 %v3067, 1.442695
      %v3069 = vpow.pop %v3068
      %v3070 = vadd.f32 %v3069, 1.0
      %v3071 = vrcp.pop %v3070
      %v3072 = vmul.f32 1.0, %v3071
      %v3073 = vxor.u32 %v2911, 2147483648
      %v3074 = vmul.f32 %v3073, 1.442695
      %v3075 = vpow.pop %v3074
      %v3076 = vadd.f32 %v3075, 1.0
      %v3077 = vrcp.pop %v3076
      %v3078 = vmul.f32 1.0, %v3077
      %v3079 = vtanh.pop %v2912
      %v3080 = vxor.u32 %v2913, 2147483648
      %v3081 = vmul.f32 %v3080, 1.442695
      %v3082 = vpow.pop %v3081
      %v3083 = vadd.f32 %v3082, 1.0
      %v3084 = vrcp.pop %v3083
      %v3085 = vmul.f32 1.0, %v3084
      %v3086 = vmul.f32 %v3078, %v2757
      %v3087 = vmul.f32 %v3072, %v3079
      %v3088 = vadd.f32 %v3086, %v3087
      %v3089 = vtanh.pop %v3088
      %v3090 = vmul.f32 %v3085, %v3089
      %v3091 = vxor.u32 %v3063, 2147483648
      %v3092 = vmul.f32 %v3091, 1.442695
      %v3093 = vpow.pop %v3092
      %v3094 = vadd.f32 %v3093, 1.0
      %v3095 = vrcp.pop %v3094
      %v3096 = vmul.f32 1.0, %v3095
      %v3097 = vxor.u32 %v3064, 2147483648
      %v3098 = vmul.f32 %v3097, 1.442695
      %v3099 = vpow.pop %v3098
      %v3100 = vadd.f32 %v3099, 1.0
      %v3101 = vrcp.pop %v3100
      %v3102 = vmul.f32 1.0, %v3101
      %v3103 = vtanh.pop %v3065
      %v3104 = vxor.u32 %v3066, 2147483648
      %v3105 = vmul.f32 %v3104, 1.442695
      %v3106 = vpow.pop %v3105
      %v3107 = vadd.f32 %v3106, 1.0
      %v3108 = vrcp.pop %v3107
      %v3109 = vmul.f32 1.0, %v3108
      %v3110 = vmul.f32 %v3102, %v2759
      %v3111 = vmul.f32 %v3096, %v3103
      %v3112 = vadd.f32 %v3110, %v3111
      %v3113 = vtanh.pop %v3112
      %v3114 = vmul.f32 %v3109, %v3113
      %s3115 = smul.u32 %s2751, 8
      %s3116 = scalar_lea.vmem %s71, %s3115
      %v3117 = vld [vmem:[%s3116] sm:$0xff]
      %v3119 = vlaneseq
      %v3120 = vshrl.u32 %v3119, 7
      %v3121 = vsub.s32 0, %v3120
      %v3122 = vrot.slane %v2739, %v3121
      %v3124 = vmul.f32 %v3090, %v3122
      %3125 = vadd.xlane.f32.xlu0 %v3124
      %v3126 = vpop.xlane.xlu0 %3125
      %v3127 = vadd.f32 %v3117, %v3126
      %3128 = vst.msk [vmem:[%s3116] sm:$0xff] %vm2741, %v3127
      %s3129 = smul.u32 %s2760, 8
      %s3130 = scalar_lea.vmem %s71, %s3129
      %v3131 = vld [vmem:[%s3130] sm:$0xff]
      %v3133 = vlaneseq
      %v3134 = vshrl.u32 %v3133, 7
      %v3135 = vsub.s32 0, %v3134
      %v3136 = vrot.slane %v2740, %v3135
      %v3138 = vmul.f32 %v3114, %v3136
      %3139 = vadd.xlane.f32.xlu0 %v3138
      %v3140 = vpop.xlane.xlu0 %3139
      %v3141 = vadd.f32 %v3131, %v3140
      %3142 = vst.msk [vmem:[%s3130] sm:$0xff] %vm2741, %v3141
    $region233: #{summarizer_forward.1} parent=1 // loop_footer
      %s2755 = sadd.s32 1, %s2751
    $region234: #{summarizer_forward.1} parent=1 // loop_footer_branch
      %2750 = sbr.rel target = $region230
    $region235: #{summarizer_forward.1} parent=1 // loop_exit
      _
    %v3143 = vld [vmem:[%s71] sm:$0xff]
    %v3144 = vld [vmem:[%s71 + $0x8] sm:$0xff]
    %v3145 = vld [vmem:[%s71 + $0x10] sm:$0xff]
    %v3146 = vld [vmem:[%s71 + $0x18] sm:$0xff]
    %v3147 = vld [vmem:[%s71 + $0x20] sm:$0xff]
    %v3148 = vld [vmem:[%s71 + $0x28] sm:$0xff]
    %v3149 = vld [vmem:[%s71 + $0x30] sm:$0xff]
    %v3150 = vld [vmem:[%s71 + $0x38] sm:$0xff]
    %v3151 = vld [vmem:[#allocation7] sm:$0x1]
    %v3153 = vlaneseq
    %v3154 = vshrl.u32 %v3153, 7
    %v3155 = vsub.s32 0, %v3154
    %v3156 = vrot.slane %v3151, %v3155
    %v3158 = vadd.f32 %v3143, %v3156
    %v3159 = vadd.f32 %v3144, %v3156
    %v3160 = vadd.f32 %v3145, %v3156
    %v3161 = vadd.f32 %v3146, %v3156
    %v3162 = vadd.f32 %v3147, %v3156
    %v3163 = vadd.f32 %v3148, %v3156
    %v3164 = vadd.f32 %v3149, %v3156
    %v3165 = vadd.f32 %v3150, %v3156
    %v3166 = vxor.u32 %v3158, 2147483648
    %v3167 = vxor.u32 %v3159, 2147483648
    %v3168 = vxor.u32 %v3160, 2147483648
    %v3169 = vxor.u32 %v3161, 2147483648
    %v3170 = vxor.u32 %v3162, 2147483648
    %v3171 = vxor.u32 %v3163, 2147483648
    %v3172 = vxor.u32 %v3164, 2147483648
    %v3173 = vxor.u32 %v3165, 2147483648
    %v3174 = vmul.f32 %v3166, 1.442695
    %v3175 = vpow.pop %v3174
    %v3176 = vmul.f32 %v3167, 1.442695
    %v3177 = vpow.pop %v3176
    %v3178 = vmul.f32 %v3168, 1.442695
    %v3179 = vpow.pop %v3178
    %v3180 = vmul.f32 %v3169, 1.442695
    %v3181 = vpow.pop %v3180
    %v3182 = vmul.f32 %v3170, 1.442695
    %v3183 = vpow.pop %v3182
    %v3184 = vmul.f32 %v3171, 1.442695
    %v3185 = vpow.pop %v3184
    %v3186 = vmul.f32 %v3172, 1.442695
    %v3187 = vpow.pop %v3186
    %v3188 = vmul.f32 %v3173, 1.442695
    %v3189 = vpow.pop %v3188
    %v3190 = vadd.f32 %v3175, 1.0
    %v3191 = vadd.f32 %v3177, 1.0
    %v3192 = vadd.f32 %v3179, 1.0
    %v3193 = vadd.f32 %v3181, 1.0
    %v3194 = vadd.f32 %v3183, 1.0
    %v3195 = vadd.f32 %v3185, 1.0
    %v3196 = vadd.f32 %v3187, 1.0
    %v3197 = vadd.f32 %v3189, 1.0
    %v3198 = vrcp.pop %v3190
    %v3199 = vmul.f32 1.0, %v3198
    %v3200 = vrcp.pop %v3191
    %v3201 = vmul.f32 1.0, %v3200
    %v3202 = vrcp.pop %v3192
    %v3203 = vmul.f32 1.0, %v3202
    %v3204 = vrcp.pop %v3193
    %v3205 = vmul.f32 1.0, %v3204
    %v3206 = vrcp.pop %v3194
    %v3207 = vmul.f32 1.0, %v3206
    %v3208 = vrcp.pop %v3195
    %v3209 = vmul.f32 1.0, %v3208
    %v3210 = vrcp.pop %v3196
    %v3211 = vmul.f32 1.0, %v3210
    %v3212 = vrcp.pop %v3197
    %v3213 = vmul.f32 1.0, %v3212
    %3214 = vst.msk [vmem:[%s71] sm:$0xff] %vm2741, %v3199
    %3215 = vst.msk [vmem:[%s71 + $0x8] sm:$0xff] %vm2741, %v3201
    %3216 = vst.msk [vmem:[%s71 + $0x10] sm:$0xff] %vm2741, %v3203
    %3217 = vst.msk [vmem:[%s71 + $0x18] sm:$0xff] %vm2741, %v3205
    %3218 = vst.msk [vmem:[%s71 + $0x20] sm:$0xff] %vm2741, %v3207
    %3219 = vst.msk [vmem:[%s71 + $0x28] sm:$0xff] %vm2741, %v3209
    %3220 = vst.msk [vmem:[%s71 + $0x30] sm:$0xff] %vm2741, %v3211
    %3221 = vst.msk [vmem:[%s71 + $0x38] sm:$0xff] %vm2741, %v3213
    %v3222 = vld [vmem:[#allocation8] sm:$0xff]
    %v3223 = vld [vmem:[#allocation8 + $0x8] sm:$0xff]
    %v3224 = vld [vmem:[#allocation8 + $0x10] sm:$0xff]
    %v3225 = vld [vmem:[#allocation8 + $0x18] sm:$0xff]
    %v3226 = vld [vmem:[#allocation8 + $0x20] sm:$0xff]
    %v3227 = vld [vmem:[#allocation8 + $0x28] sm:$0xff]
    %v3228 = vld [vmem:[#allocation8 + $0x30] sm:$0xff]
    %v3229 = vld [vmem:[#allocation8 + $0x38] sm:$0xff]
    %v3230 = vld [vmem:[#allocation8 + $0x40] sm:$0xff]
    %v3231 = vld [vmem:[#allocation8 + $0x48] sm:$0xff]
    %v3232 = vld [vmem:[#allocation8 + $0x50] sm:$0xff]
    %v3233 = vld [vmem:[#allocation8 + $0x58] sm:$0xff]
    %v3234 = vld [vmem:[#allocation8 + $0x60] sm:$0xff]
    %v3235 = vld [vmem:[#allocation8 + $0x68] sm:$0xff]
    %v3236 = vld [vmem:[#allocation8 + $0x70] sm:$0xff]
    %v3237 = vld [vmem:[#allocation8 + $0x78] sm:$0xff]
    %v3238 = vld [vmem:[%s71] sm:$0xff]
    %v3239 = vld [vmem:[%s71 + $0x8] sm:$0xff]
    %v3240 = vld [vmem:[%s71 + $0x10] sm:$0xff]
    %v3241 = vld [vmem:[%s71 + $0x18] sm:$0xff]
    %v3242 = vld [vmem:[%s71 + $0x20] sm:$0xff]
    %v3243 = vld [vmem:[%s71 + $0x28] sm:$0xff]
    %v3244 = vld [vmem:[%s71 + $0x30] sm:$0xff]
    %v3245 = vld [vmem:[%s71 + $0x38] sm:$0xff]
    %3247 = vset.pattern.permute.xlu0 0
    %3248 = vperm.xlu0 %3247, %v3238
    %v3249 = vpop.permute.xlu0 %3248
    %3252 = vset.pattern.permute.xlu0 0
    %3253 = vperm.xlu0 %3252, %v3239
    %v3254 = vpop.permute.xlu0 %3253
    %3257 = vset.pattern.permute.xlu0 0
    %3258 = vperm.xlu0 %3257, %v3240
    %v3259 = vpop.permute.xlu0 %3258
    %3262 = vset.pattern.permute.xlu0 0
    %3263 = vperm.xlu0 %3262, %v3241
    %v3264 = vpop.permute.xlu0 %3263
    %3267 = vset.pattern.permute.xlu0 0
    %3268 = vperm.xlu0 %3267, %v3242
    %v3269 = vpop.permute.xlu0 %3268
    %3272 = vset.pattern.permute.xlu0 0
    %3273 = vperm.xlu0 %3272, %v3243
    %v3274 = vpop.permute.xlu0 %3273
    %3277 = vset.pattern.permute.xlu0 0
    %3278 = vperm.xlu0 %3277, %v3244
    %v3279 = vpop.permute.xlu0 %3278
    %3282 = vset.pattern.permute.xlu0 0
    %3283 = vperm.xlu0 %3282, %v3245
    %v3284 = vpop.permute.xlu0 %3283
    %v3286 = vmul.f32 %v3222, %v3249
    %v3287 = vmul.f32 %v3223, %v3249
    %v3288 = vmul.f32 %v3224, %v3254
    %v3289 = vmul.f32 %v3225, %v3254
    %v3290 = vmul.f32 %v3226, %v3259
    %v3291 = vmul.f32 %v3227, %v3259
    %v3292 = vmul.f32 %v3228, %v3264
    %v3293 = vmul.f32 %v3229, %v3264
    %v3294 = vmul.f32 %v3230, %v3269
    %v3295 = vmul.f32 %v3231, %v3269
    %v3296 = vmul.f32 %v3232, %v3274
    %v3297 = vmul.f32 %v3233, %v3274
    %v3298 = vmul.f32 %v3234, %v3279
    %v3299 = vmul.f32 %v3235, %v3279
    %v3300 = vmul.f32 %v3236, %v3284
    %v3301 = vmul.f32 %v3237, %v3284
    %v3302 = vld [vmem:[#allocation23] sm:$0xff]
    %v3303 = vld [vmem:[#allocation23 + $0x8] sm:$0xff]
    %v3304 = vld [vmem:[#allocation23 + $0x10] sm:$0xff]
    %v3305 = vld [vmem:[#allocation23 + $0x18] sm:$0xff]
    %v3306 = vld [vmem:[#allocation23 + $0x20] sm:$0xff]
    %v3307 = vld [vmem:[#allocation23 + $0x28] sm:$0xff]
    %v3308 = vld [vmem:[#allocation23 + $0x30] sm:$0xff]
    %v3309 = vld [vmem:[#allocation23 + $0x38] sm:$0xff]
    %v3310 = vld [vmem:[#allocation23 + $0x40] sm:$0xff]
    %v3311 = vld [vmem:[#allocation23 + $0x48] sm:$0xff]
    %v3312 = vld [vmem:[#allocation23 + $0x50] sm:$0xff]
    %v3313 = vld [vmem:[#allocation23 + $0x58] sm:$0xff]
    %v3314 = vld [vmem:[#allocation23 + $0x60] sm:$0xff]
    %v3315 = vld [vmem:[#allocation23 + $0x68] sm:$0xff]
    %v3316 = vld [vmem:[#allocation23 + $0x70] sm:$0xff]
    %v3317 = vld [vmem:[#allocation23 + $0x78] sm:$0xff]
    %v3318 = vld [vmem:[#allocation23 + $0x80] sm:$0xff]
    %v3319 = vld [vmem:[#allocation23 + $0x88] sm:$0xff]
    %v3320 = vld [vmem:[#allocation23 + $0x90] sm:$0xff]
    %v3321 = vld [vmem:[#allocation23 + $0x98] sm:$0xff]
    %v3322 = vld [vmem:[#allocation23 + $0xa0] sm:$0xff]
    %v3323 = vld [vmem:[#allocation23 + $0xa8] sm:$0xff]
    %v3324 = vld [vmem:[#allocation23 + $0xb0] sm:$0xff]
    %v3325 = vld [vmem:[#allocation23 + $0xb8] sm:$0xff]
    %v3326 = vld [vmem:[#allocation23 + $0xc0] sm:$0xff]
    %v3327 = vld [vmem:[#allocation23 + $0xc8] sm:$0xff]
    %v3328 = vld [vmem:[#allocation23 + $0xd0] sm:$0xff]
    %v3329 = vld [vmem:[#allocation23 + $0xd8] sm:$0xff]
    %v3330 = vld [vmem:[#allocation23 + $0xe0] sm:$0xff]
    %v3331 = vld [vmem:[#allocation23 + $0xe8] sm:$0xff]
    %v3332 = vld [vmem:[#allocation23 + $0xf0] sm:$0xff]
    %v3333 = vld [vmem:[#allocation23 + $0xf8] sm:$0xff]
    %v3334 = vld [vmem:[#allocation23 + $0x100] sm:$0xff]
    %v3335 = vld [vmem:[#allocation23 + $0x108] sm:$0xff]
    %v3336 = vld [vmem:[#allocation23 + $0x110] sm:$0xff]
    %v3337 = vld [vmem:[#allocation23 + $0x118] sm:$0xff]
    %v3338 = vld [vmem:[#allocation23 + $0x120] sm:$0xff]
    %v3339 = vld [vmem:[#allocation23 + $0x128] sm:$0xff]
    %v3340 = vld [vmem:[#allocation23 + $0x130] sm:$0xff]
    %v3341 = vld [vmem:[#allocation23 + $0x138] sm:$0xff]
    %v3342 = vld [vmem:[#allocation23 + $0x140] sm:$0xff]
    %v3343 = vld [vmem:[#allocation23 + $0x148] sm:$0xff]
    %v3344 = vld [vmem:[#allocation23 + $0x150] sm:$0xff]
    %v3345 = vld [vmem:[#allocation23 + $0x158] sm:$0xff]
    %v3346 = vld [vmem:[#allocation23 + $0x160] sm:$0xff]
    %v3347 = vld [vmem:[#allocation23 + $0x168] sm:$0xff]
    %v3348 = vld [vmem:[#allocation23 + $0x170] sm:$0xff]
    %v3349 = vld [vmem:[#allocation23 + $0x178] sm:$0xff]
    %v3350 = vld [vmem:[#allocation23 + $0x180] sm:$0xff]
    %v3351 = vld [vmem:[#allocation23 + $0x188] sm:$0xff]
    %v3352 = vld [vmem:[#allocation23 + $0x190] sm:$0xff]
    %v3353 = vld [vmem:[#allocation23 + $0x198] sm:$0xff]
    %v3354 = vld [vmem:[#allocation23 + $0x1a0] sm:$0xff]
    %v3355 = vld [vmem:[#allocation23 + $0x1a8] sm:$0xff]
    %v3356 = vld [vmem:[#allocation23 + $0x1b0] sm:$0xff]
    %v3357 = vld [vmem:[#allocation23 + $0x1b8] sm:$0xff]
    %v3358 = vld [vmem:[#allocation23 + $0x1c0] sm:$0xff]
    %v3359 = vld [vmem:[#allocation23 + $0x1c8] sm:$0xff]
    %v3360 = vld [vmem:[#allocation23 + $0x1d0] sm:$0xff]
    %v3361 = vld [vmem:[#allocation23 + $0x1d8] sm:$0xff]
    %v3362 = vld [vmem:[#allocation23 + $0x1e0] sm:$0xff]
    %v3363 = vld [vmem:[#allocation23 + $0x1e8] sm:$0xff]
    %v3364 = vld [vmem:[#allocation23 + $0x1f0] sm:$0xff]
    %v3365 = vld [vmem:[#allocation23 + $0x1f8] sm:$0xff]
    %v3366 = vld [vmem:[#allocation23 + $0x200] sm:$0xff]
    %v3367 = vld [vmem:[#allocation23 + $0x208] sm:$0xff]
    %v3368 = vld [vmem:[#allocation23 + $0x210] sm:$0xff]
    %v3369 = vld [vmem:[#allocation23 + $0x218] sm:$0xff]
    %v3370 = vld [vmem:[#allocation23 + $0x220] sm:$0xff]
    %v3371 = vld [vmem:[#allocation23 + $0x228] sm:$0xff]
    %v3372 = vld [vmem:[#allocation23 + $0x230] sm:$0xff]
    %v3373 = vld [vmem:[#allocation23 + $0x238] sm:$0xff]
    %v3374 = vld [vmem:[#allocation23 + $0x240] sm:$0xff]
    %v3375 = vld [vmem:[#allocation23 + $0x248] sm:$0xff]
    %v3376 = vld [vmem:[#allocation23 + $0x250] sm:$0xff]
    %v3377 = vld [vmem:[#allocation23 + $0x258] sm:$0xff]
    %v3378 = vld [vmem:[#allocation23 + $0x260] sm:$0xff]
    %v3379 = vld [vmem:[#allocation23 + $0x268] sm:$0xff]
    %v3380 = vld [vmem:[#allocation23 + $0x270] sm:$0xff]
    %v3381 = vld [vmem:[#allocation23 + $0x278] sm:$0xff]
    %v3382 = vld [vmem:[#allocation23 + $0x280] sm:$0xff]
    %v3383 = vld [vmem:[#allocation23 + $0x288] sm:$0xff]
    %v3384 = vld [vmem:[#allocation23 + $0x290] sm:$0xff]
    %v3385 = vld [vmem:[#allocation23 + $0x298] sm:$0xff]
    %v3386 = vld [vmem:[#allocation23 + $0x2a0] sm:$0xff]
    %v3387 = vld [vmem:[#allocation23 + $0x2a8] sm:$0xff]
    %v3388 = vld [vmem:[#allocation23 + $0x2b0] sm:$0xff]
    %v3389 = vld [vmem:[#allocation23 + $0x2b8] sm:$0xff]
    %v3390 = vld [vmem:[#allocation23 + $0x2c0] sm:$0xff]
    %v3391 = vld [vmem:[#allocation23 + $0x2c8] sm:$0xff]
    %v3392 = vld [vmem:[#allocation23 + $0x2d0] sm:$0xff]
    %v3393 = vld [vmem:[#allocation23 + $0x2d8] sm:$0xff]
    %v3394 = vld [vmem:[#allocation23 + $0x2e0] sm:$0xff]
    %v3395 = vld [vmem:[#allocation23 + $0x2e8] sm:$0xff]
    %v3396 = vld [vmem:[#allocation23 + $0x2f0] sm:$0xff]
    %v3397 = vld [vmem:[#allocation23 + $0x2f8] sm:$0xff]
    %v3398 = vld [vmem:[#allocation23 + $0x300] sm:$0xff]
    %v3399 = vld [vmem:[#allocation23 + $0x308] sm:$0xff]
    %v3400 = vld [vmem:[#allocation23 + $0x310] sm:$0xff]
    %v3401 = vld [vmem:[#allocation23 + $0x318] sm:$0xff]
    %v3402 = vld [vmem:[#allocation23 + $0x320] sm:$0xff]
    %v3403 = vld [vmem:[#allocation23 + $0x328] sm:$0xff]
    %v3404 = vld [vmem:[#allocation23 + $0x330] sm:$0xff]
    %v3405 = vld [vmem:[#allocation23 + $0x338] sm:$0xff]
    %v3406 = vld [vmem:[#allocation23 + $0x340] sm:$0xff]
    %v3407 = vld [vmem:[#allocation23 + $0x348] sm:$0xff]
    %v3408 = vld [vmem:[#allocation23 + $0x350] sm:$0xff]
    %v3409 = vld [vmem:[#allocation23 + $0x358] sm:$0xff]
    %v3410 = vld [vmem:[#allocation23 + $0x360] sm:$0xff]
    %v3411 = vld [vmem:[#allocation23 + $0x368] sm:$0xff]
    %v3412 = vld [vmem:[#allocation23 + $0x370] sm:$0xff]
    %v3413 = vld [vmem:[#allocation23 + $0x378] sm:$0xff]
    %v3414 = vld [vmem:[#allocation23 + $0x380] sm:$0xff]
    %v3415 = vld [vmem:[#allocation23 + $0x388] sm:$0xff]
    %v3416 = vld [vmem:[#allocation23 + $0x390] sm:$0xff]
    %v3417 = vld [vmem:[#allocation23 + $0x398] sm:$0xff]
    %v3418 = vld [vmem:[#allocation23 + $0x3a0] sm:$0xff]
    %v3419 = vld [vmem:[#allocation23 + $0x3a8] sm:$0xff]
    %v3420 = vld [vmem:[#allocation23 + $0x3b0] sm:$0xff]
    %v3421 = vld [vmem:[#allocation23 + $0x3b8] sm:$0xff]
    %v3422 = vld [vmem:[#allocation23 + $0x3c0] sm:$0xff]
    %v3423 = vld [vmem:[#allocation23 + $0x3c8] sm:$0xff]
    %v3424 = vld [vmem:[#allocation23 + $0x3d0] sm:$0xff]
    %v3425 = vld [vmem:[#allocation23 + $0x3d8] sm:$0xff]
    %v3426 = vld [vmem:[#allocation23 + $0x3e0] sm:$0xff]
    %v3427 = vld [vmem:[#allocation23 + $0x3e8] sm:$0xff]
    %v3428 = vld [vmem:[#allocation23 + $0x3f0] sm:$0xff]
    %v3429 = vld [vmem:[#allocation23 + $0x3f8] sm:$0xff]
    %v3430 = vld [vmem:[#allocation26] sm:$0xf]
    %v3432 = vlaneseq
    %v3433 = vshrl.u32 %v3432, 7
    %v3434 = vsub.s32 0, %v3433
    %v3435 = vrot.slane %v3430, %v3434
    %v3436 = vlaneseq
    %v3437 = vshrl.u32 %v3436, 7
    %v3438 = vsub.s32 1, %v3437
    %v3439 = vrot.slane %v3430, %v3438
    %v3440 = vlaneseq
    %v3441 = vshrl.u32 %v3440, 7
    %v3442 = vsub.s32 2, %v3441
    %v3443 = vrot.slane %v3430, %v3442
    %v3444 = vlaneseq
    %v3445 = vshrl.u32 %v3444, 7
    %v3446 = vsub.s32 3, %v3445
    %v3447 = vrot.slane %v3430, %v3446
    %3452 = vmatprep.subr.mxu0 %v3303
    %3453 = vmatpush1.msra.mxu0 %v3302
    %3454 = vmatprep.subr.mxu0 %v3307
    %3455 = vmatpush1.msra.mxu0 %v3306
    %3456 = vmatprep.subr.mxu0 %v3311
    %3457 = vmatpush1.msra.mxu0 %v3310
    %3458 = vmatprep.subr.mxu0 %v3315
    %3459 = vmatpush1.msra.mxu0 %v3314
    %3460 = vmatprep.subr.mxu0 %v3319
    %3461 = vmatpush1.msra.mxu0 %v3318
    %3462 = vmatprep.subr.mxu0 %v3323
    %3463 = vmatpush1.msra.mxu0 %v3322
    %3464 = vmatprep.subr.mxu0 %v3327
    %3465 = vmatpush1.msra.mxu0 %v3326
    %3466 = vmatprep.subr.mxu0 %v3331
    %3467 = vmatpush1.msra.mxu0 %v3330
    %3468 = vmatprep.subr.mxu0 %v3335
    %3469 = vmatpush1.msra.mxu0 %v3334
    %3470 = vmatprep.subr.mxu0 %v3339
    %3471 = vmatpush1.msra.mxu0 %v3338
    %3472 = vmatprep.subr.mxu0 %v3343
    %3473 = vmatpush1.msra.mxu0 %v3342
    %3474 = vmatprep.subr.mxu0 %v3347
    %3475 = vmatpush1.msra.mxu0 %v3346
    %3476 = vmatprep.subr.mxu0 %v3351
    %3477 = vmatpush1.msra.mxu0 %v3350
    %3478 = vmatprep.subr.mxu0 %v3355
    %3479 = vmatpush1.msra.mxu0 %v3354
    %3480 = vmatprep.subr.mxu0 %v3359
    %3481 = vmatpush1.msra.mxu0 %v3358
    %3482 = vmatprep.subr.mxu0 %v3363
    %3483 = vmatpush1.msra.mxu0 %v3362
    %3484 = vmatprep.subr.mxu0 %v3367
    %3485 = vmatpush1.msra.mxu0 %v3366
    %3486 = vmatprep.subr.mxu0 %v3371
    %3487 = vmatpush1.msra.mxu0 %v3370
    %3488 = vmatprep.subr.mxu0 %v3375
    %3489 = vmatpush1.msra.mxu0 %v3374
    %3490 = vmatprep.subr.mxu0 %v3379
    %3491 = vmatpush1.msra.mxu0 %v3378
    %3492 = vmatprep.subr.mxu0 %v3383
    %3493 = vmatpush1.msra.mxu0 %v3382
    %3494 = vmatprep.subr.mxu0 %v3387
    %3495 = vmatpush1.msra.mxu0 %v3386
    %3496 = vmatprep.subr.mxu0 %v3391
    %3497 = vmatpush1.msra.mxu0 %v3390
    %3498 = vmatprep.subr.mxu0 %v3395
    %3499 = vmatpush1.msra.mxu0 %v3394
    %3500 = vmatprep.subr.mxu0 %v3399
    %3501 = vmatpush1.msra.mxu0 %v3398
    %3502 = vmatprep.subr.mxu0 %v3403
    %3503 = vmatpush1.msra.mxu0 %v3402
    %3504 = vmatprep.subr.mxu0 %v3407
    %3505 = vmatpush1.msra.mxu0 %v3406
    %3506 = vmatprep.subr.mxu0 %v3411
    %3507 = vmatpush1.msra.mxu0 %v3410
    %3508 = vmatprep.subr.mxu0 %v3415
    %3509 = vmatpush1.msra.mxu0 %v3414
    %3510 = vmatprep.subr.mxu0 %v3419
    %3511 = vmatpush1.msra.mxu0 %v3418
    %3512 = vmatprep.subr.mxu0 %v3423
    %3513 = vmatpush1.msra.mxu0 %v3422
    %3514 = vmatprep.subr.mxu0 %v3427
    %3515 = vmatpush1.msra.mxu0 %v3426
    %3516 = vmatprep.mubr.f32.mxu0 %v3287
    %3517 = vmatmul.mubr.f32.gmra.mrb[0].mxu0 %v3286
    %v3518 = vpop.f32.mrb[0].mxu0
    %v3519 = vadd.f32 %v3435, %v3518
    %v3520 = vpop.f32.mrb[0].mxu0
    %v3521 = vadd.f32 %v3439, %v3520
    %3522 = vmatprep.mubr.f32.mxu0 %v3289
    %3523 = vmatmul.mubr.f32.gmra.mrb[0].mxu0 %v3288
    %v3524 = vpop.f32.mrb[0].mxu0
    %v3525 = vadd.f32 %v3435, %v3524
    %v3526 = vpop.f32.mrb[0].mxu0
    %v3527 = vadd.f32 %v3439, %v3526
    %3528 = vmatprep.mubr.f32.mxu0 %v3291
    %3529 = vmatmul.mubr.f32.gmra.mrb[0].mxu0 %v3290
    %v3530 = vpop.f32.mrb[0].mxu0
    %v3531 = vadd.f32 %v3435, %v3530
    %v3532 = vpop.f32.mrb[0].mxu0
    %v3533 = vadd.f32 %v3439, %v3532
    %3534 = vmatprep.mubr.f32.mxu0 %v3293
    %3535 = vmatmul.mubr.f32.gmra.mrb[0].mxu0 %v3292
    %v3536 = vpop.f32.mrb[0].mxu0
    %v3537 = vadd.f32 %v3435, %v3536
    %v3538 = vpop.f32.mrb[0].mxu0
    %v3539 = vadd.f32 %v3439, %v3538
    %3540 = vmatprep.mubr.f32.mxu0 %v3295
    %3541 = vmatmul.mubr.f32.gmra.mrb[0].mxu0 %v3294
    %v3542 = vpop.f32.mrb[0].mxu0
    %v3543 = vadd.f32 %v3435, %v3542
    %v3544 = vpop.f32.mrb[0].mxu0
    %v3545 = vadd.f32 %v3439, %v3544
    %3546 = vmatprep.mubr.f32.mxu0 %v3297
    %3547 = vmatmul.mubr.f32.gmra.mrb[0].mxu0 %v3296
    %v3548 = vpop.f32.mrb[0].mxu0
    %v3549 = vadd.f32 %v3435, %v3548
    %v3550 = vpop.f32.mrb[0].mxu0
    %v3551 = vadd.f32 %v3439, %v3550
    %3552 = vmatprep.mubr.f32.mxu0 %v3299
    %3553 = vmatmul.mubr.f32.gmra.mrb[0].mxu0 %v3298
    %v3554 = vpop.f32.mrb[0].mxu0
    %v3555 = vadd.f32 %v3435, %v3554
    %v3556 = vpop.f32.mrb[0].mxu0
    %v3557 = vadd.f32 %v3439, %v3556
    %3558 = vmatprep.mubr.f32.mxu0 %v3301
    %3559 = vmatmul.mubr.f32.gmra.mrb[0].mxu0 %v3300
    %v3560 = vpop.f32.mrb[0].mxu0
    %v3561 = vadd.f32 %v3435, %v3560
    %v3562 = vpop.f32.mrb[0].mxu0
    %v3563 = vadd.f32 %v3439, %v3562
    %3564 = vdwg.mxu0
    %3565 = vmatprep.subr.mxu0 %v3305
    %3566 = vmatpush1.msra.mxu0 %v3304
    %3567 = vmatprep.subr.mxu0 %v3309
    %3568 = vmatpush1.msra.mxu0 %v3308
    %3569 = vmatprep.subr.mxu0 %v3313
    %3570 = vmatpush1.msra.mxu0 %v3312
    %3571 = vmatprep.subr.mxu0 %v3317
    %3572 = vmatpush1.msra.mxu0 %v3316
    %3573 = vmatprep.subr.mxu0 %v3321
    %3574 = vmatpush1.msra.mxu0 %v3320
    %3575 = vmatprep.subr.mxu0 %v3325
    %3576 = vmatpush1.msra.mxu0 %v3324
    %3577 = vmatprep.subr.mxu0 %v3329
    %3578 = vmatpush1.msra.mxu0 %v3328
    %3579 = vmatprep.subr.mxu0 %v3333
    %3580 = vmatpush1.msra.mxu0 %v3332
    %3581 = vmatprep.subr.mxu0 %v3337
    %3582 = vmatpush1.msra.mxu0 %v3336
    %3583 = vmatprep.subr.mxu0 %v3341
    %3584 = vmatpush1.msra.mxu0 %v3340
    %3585 = vmatprep.subr.mxu0 %v3345
    %3586 = vmatpush1.msra.mxu0 %v3344
    %3587 = vmatprep.subr.mxu0 %v3349
    %3588 = vmatpush1.msra.mxu0 %v3348
    %3589 = vmatprep.subr.mxu0 %v3353
    %3590 = vmatpush1.msra.mxu0 %v3352
    %3591 = vmatprep.subr.mxu0 %v3357
    %3592 = vmatpush1.msra.mxu0 %v3356
    %3593 = vmatprep.subr.mxu0 %v3361
    %3594 = vmatpush1.msra.mxu0 %v3360
    %3595 = vmatprep.subr.mxu0 %v3365
    %3596 = vmatpush1.msra.mxu0 %v3364
    %3597 = vmatprep.subr.mxu0 %v3369
    %3598 = vmatpush1.msra.mxu0 %v3368
    %3599 = vmatprep.subr.mxu0 %v3373
    %3600 = vmatpush1.msra.mxu0 %v3372
    %3601 = vmatprep.subr.mxu0 %v3377
    %3602 = vmatpush1.msra.mxu0 %v3376
    %3603 = vmatprep.subr.mxu0 %v3381
    %3604 = vmatpush1.msra.mxu0 %v3380
    %3605 = vmatprep.subr.mxu0 %v3385
    %3606 = vmatpush1.msra.mxu0 %v3384
    %3607 = vmatprep.subr.mxu0 %v3389
    %3608 = vmatpush1.msra.mxu0 %v3388
    %3609 = vmatprep.subr.mxu0 %v3393
    %3610 = vmatpush1.msra.mxu0 %v3392
    %3611 = vmatprep.subr.mxu0 %v3397
    %3612 = vmatpush1.msra.mxu0 %v3396
    %3613 = vmatprep.subr.mxu0 %v3401
    %3614 = vmatpush1.msra.mxu0 %v3400
    %3615 = vmatprep.subr.mxu0 %v3405
    %3616 = vmatpush1.msra.mxu0 %v3404
    %3617 = vmatprep.subr.mxu0 %v3409
    %3618 = vmatpush1.msra.mxu0 %v3408
    %3619 = vmatprep.subr.mxu0 %v3413
    %3620 = vmatpush1.msra.mxu0 %v3412
    %3621 = vmatprep.subr.mxu0 %v3417
    %3622 = vmatpush1.msra.mxu0 %v3416
    %3623 = vmatprep.subr.mxu0 %v3421
    %3624 = vmatpush1.msra.mxu0 %v3420
    %3625 = vmatprep.subr.mxu0 %v3425
    %3626 = vmatpush1.msra.mxu0 %v3424
    %3627 = vmatprep.subr.mxu0 %v3429
    %3628 = vmatpush1.msra.mxu0 %v3428
    %3629 = vmatprep.mubr.f32.mxu0 %v3287
    %3630 = vmatmul.mubr.f32.gmra.mrb[0].mxu0 %v3286
    %v3631 = vpop.f32.mrb[0].mxu0
    %v3632 = vadd.f32 %v3443, %v3631
    %v3633 = vpop.f32.mrb[0].mxu0
    %v3634 = vadd.f32 %v3447, %v3633
    %3635 = vmatprep.mubr.f32.mxu0 %v3289
    %3636 = vmatmul.mubr.f32.gmra.mrb[0].mxu0 %v3288
    %v3637 = vpop.f32.mrb[0].mxu0
    %v3638 = vadd.f32 %v3443, %v3637
    %v3639 = vpop.f32.mrb[0].mxu0
    %v3640 = vadd.f32 %v3447, %v3639
    %3641 = vmatprep.mubr.f32.mxu0 %v3291
    %3642 = vmatmul.mubr.f32.gmra.mrb[0].mxu0 %v3290
    %v3643 = vpop.f32.mrb[0].mxu0
    %v3644 = vadd.f32 %v3443, %v3643
    %v3645 = vpop.f32.mrb[0].mxu0
    %v3646 = vadd.f32 %v3447, %v3645
    %3647 = vmatprep.mubr.f32.mxu0 %v3293
    %3648 = vmatmul.mubr.f32.gmra.mrb[0].mxu0 %v3292
    %v3649 = vpop.f32.mrb[0].mxu0
    %v3650 = vadd.f32 %v3443, %v3649
    %v3651 = vpop.f32.mrb[0].mxu0
    %v3652 = vadd.f32 %v3447, %v3651
    %3653 = vmatprep.mubr.f32.mxu0 %v3295
    %3654 = vmatmul.mubr.f32.gmra.mrb[0].mxu0 %v3294
    %v3655 = vpop.f32.mrb[0].mxu0
    %v3656 = vadd.f32 %v3443, %v3655
    %v3657 = vpop.f32.mrb[0].mxu0
    %v3658 = vadd.f32 %v3447, %v3657
    %3659 = vmatprep.mubr.f32.mxu0 %v3297
    %3660 = vmatmul.mubr.f32.gmra.mrb[0].mxu0 %v3296
    %v3661 = vpop.f32.mrb[0].mxu0
    %v3662 = vadd.f32 %v3443, %v3661
    %v3663 = vpop.f32.mrb[0].mxu0
    %v3664 = vadd.f32 %v3447, %v3663
    %3665 = vmatprep.mubr.f32.mxu0 %v3299
    %3666 = vmatmul.mubr.f32.gmra.mrb[0].mxu0 %v3298
    %v3667 = vpop.f32.mrb[0].mxu0
    %v3668 = vadd.f32 %v3443, %v3667
    %v3669 = vpop.f32.mrb[0].mxu0
    %v3670 = vadd.f32 %v3447, %v3669
    %3671 = vmatprep.mubr.f32.mxu0 %v3301
    %3672 = vmatmul.mubr.f32.gmra.mrb[0].mxu0 %v3300
    %v3673 = vpop.f32.mrb[0].mxu0
    %v3674 = vadd.f32 %v3443, %v3673
    %v3675 = vpop.f32.mrb[0].mxu0
    %v3676 = vadd.f32 %v3447, %v3675
    %3677 = vdwg.mxu0
    %3678 = vst [vmem:[#allocation4] sm:$0xff] %v3519
    %3679 = vst [vmem:[#allocation4 + $0x8] sm:$0xff] %v3521
    %3680 = vst [vmem:[#allocation4 + $0x10] sm:$0xff] %v3632
    %3681 = vst [vmem:[#allocation4 + $0x18] sm:$0xff] %v3634
    %3682 = vst [vmem:[#allocation4 + $0x20] sm:$0xff] %v3525
    %3683 = vst [vmem:[#allocation4 + $0x28] sm:$0xff] %v3527
    %3684 = vst [vmem:[#allocation4 + $0x30] sm:$0xff] %v3638
    %3685 = vst [vmem:[#allocation4 + $0x38] sm:$0xff] %v3640
    %3686 = vst [vmem:[#allocation4 + $0x40] sm:$0xff] %v3531
    %3687 = vst [vmem:[#allocation4 + $0x48] sm:$0xff] %v3533
    %3688 = vst [vmem:[#allocation4 + $0x50] sm:$0xff] %v3644
    %3689 = vst [vmem:[#allocation4 + $0x58] sm:$0xff] %v3646
    %3690 = vst [vmem:[#allocation4 + $0x60] sm:$0xff] %v3537
    %3691 = vst [vmem:[#allocation4 + $0x68] sm:$0xff] %v3539
    %3692 = vst [vmem:[#allocation4 + $0x70] sm:$0xff] %v3650
    %3693 = vst [vmem:[#allocation4 + $0x78] sm:$0xff] %v3652
    %3694 = vst [vmem:[#allocation4 + $0x80] sm:$0xff] %v3543
    %3695 = vst [vmem:[#allocation4 + $0x88] sm:$0xff] %v3545
    %3696 = vst [vmem:[#allocation4 + $0x90] sm:$0xff] %v3656
    %3697 = vst [vmem:[#allocation4 + $0x98] sm:$0xff] %v3658
    %3698 = vst [vmem:[#allocation4 + $0xa0] sm:$0xff] %v3549
    %3699 = vst [vmem:[#allocation4 + $0xa8] sm:$0xff] %v3551
    %3700 = vst [vmem:[#allocation4 + $0xb0] sm:$0xff] %v3662
    %3701 = vst [vmem:[#allocation4 + $0xb8] sm:$0xff] %v3664
    %3702 = vst [vmem:[#allocation4 + $0xc0] sm:$0xff] %v3555
    %3703 = vst [vmem:[#allocation4 + $0xc8] sm:$0xff] %v3557
    %3704 = vst [vmem:[#allocation4 + $0xd0] sm:$0xff] %v3668
    %3705 = vst [vmem:[#allocation4 + $0xd8] sm:$0xff] %v3670
    %3706 = vst [vmem:[#allocation4 + $0xe0] sm:$0xff] %v3561
    %3707 = vst [vmem:[#allocation4 + $0xe8] sm:$0xff] %v3563
    %3708 = vst [vmem:[#allocation4 + $0xf0] sm:$0xff] %v3674
    %3709 = vst [vmem:[#allocation4 + $0xf8] sm:$0xff] %v3676
    %v3710 = vld [vmem:[#allocation25] sm:$0xff]
    %v3711 = vld [vmem:[#allocation25 + $0x8] sm:$0xff]
    %v3712 = vld [vmem:[#allocation25 + $0x10] sm:$0xff]
    %v3713 = vld [vmem:[#allocation25 + $0x18] sm:$0xff]
    %v3714 = vld [vmem:[#allocation25 + $0x20] sm:$0xff]
    %v3715 = vld [vmem:[#allocation25 + $0x28] sm:$0xff]
    %v3716 = vld [vmem:[#allocation25 + $0x30] sm:$0xff]
    %v3717 = vld [vmem:[#allocation25 + $0x38] sm:$0xff]
    %v3718 = vld [vmem:[#allocation25 + $0x40] sm:$0xff]
    %v3719 = vld [vmem:[#allocation25 + $0x48] sm:$0xff]
    %v3720 = vld [vmem:[#allocation25 + $0x50] sm:$0xff]
    %v3721 = vld [vmem:[#allocation25 + $0x58] sm:$0xff]
    %v3722 = vld [vmem:[#allocation25 + $0x60] sm:$0xff]
    %v3723 = vld [vmem:[#allocation25 + $0x68] sm:$0xff]
    %v3724 = vld [vmem:[#allocation25 + $0x70] sm:$0xff]
    %v3725 = vld [vmem:[#allocation25 + $0x78] sm:$0xff]
    %v3726 = vld [vmem:[#allocation25 + $0x80] sm:$0xff]
    %v3727 = vld [vmem:[#allocation25 + $0x88] sm:$0xff]
    %v3728 = vld [vmem:[#allocation25 + $0x90] sm:$0xff]
    %v3729 = vld [vmem:[#allocation25 + $0x98] sm:$0xff]
    %v3730 = vld [vmem:[#allocation25 + $0xa0] sm:$0xff]
    %v3731 = vld [vmem:[#allocation25 + $0xa8] sm:$0xff]
    %v3732 = vld [vmem:[#allocation25 + $0xb0] sm:$0xff]
    %v3733 = vld [vmem:[#allocation25 + $0xb8] sm:$0xff]
    %v3734 = vld [vmem:[#allocation25 + $0xc0] sm:$0xff]
    %v3735 = vld [vmem:[#allocation25 + $0xc8] sm:$0xff]
    %v3736 = vld [vmem:[#allocation25 + $0xd0] sm:$0xff]
    %v3737 = vld [vmem:[#allocation25 + $0xd8] sm:$0xff]
    %v3738 = vld [vmem:[#allocation25 + $0xe0] sm:$0xff]
    %v3739 = vld [vmem:[#allocation25 + $0xe8] sm:$0xff]
    %v3740 = vld [vmem:[#allocation25 + $0xf0] sm:$0xff]
    %v3741 = vld [vmem:[#allocation25 + $0xf8] sm:$0xff]
    %v3742 = vld [vmem:[#allocation25 + $0x100] sm:$0xff]
    %v3743 = vld [vmem:[#allocation25 + $0x108] sm:$0xff]
    %v3744 = vld [vmem:[#allocation25 + $0x110] sm:$0xff]
    %v3745 = vld [vmem:[#allocation25 + $0x118] sm:$0xff]
    %v3746 = vld [vmem:[#allocation25 + $0x120] sm:$0xff]
    %v3747 = vld [vmem:[#allocation25 + $0x128] sm:$0xff]
    %v3748 = vld [vmem:[#allocation25 + $0x130] sm:$0xff]
    %v3749 = vld [vmem:[#allocation25 + $0x138] sm:$0xff]
    %v3750 = vld [vmem:[#allocation25 + $0x140] sm:$0xff]
    %v3751 = vld [vmem:[#allocation25 + $0x148] sm:$0xff]
    %v3752 = vld [vmem:[#allocation25 + $0x150] sm:$0xff]
    %v3753 = vld [vmem:[#allocation25 + $0x158] sm:$0xff]
    %v3754 = vld [vmem:[#allocation25 + $0x160] sm:$0xff]
    %v3755 = vld [vmem:[#allocation25 + $0x168] sm:$0xff]
    %v3756 = vld [vmem:[#allocation25 + $0x170] sm:$0xff]
    %v3757 = vld [vmem:[#allocation25 + $0x178] sm:$0xff]
    %v3758 = vld [vmem:[#allocation25 + $0x180] sm:$0xff]
    %v3759 = vld [vmem:[#allocation25 + $0x188] sm:$0xff]
    %v3760 = vld [vmem:[#allocation25 + $0x190] sm:$0xff]
    %v3761 = vld [vmem:[#allocation25 + $0x198] sm:$0xff]
    %v3762 = vld [vmem:[#allocation25 + $0x1a0] sm:$0xff]
    %v3763 = vld [vmem:[#allocation25 + $0x1a8] sm:$0xff]
    %v3764 = vld [vmem:[#allocation25 + $0x1b0] sm:$0xff]
    %v3765 = vld [vmem:[#allocation25 + $0x1b8] sm:$0xff]
    %v3766 = vld [vmem:[#allocation25 + $0x1c0] sm:$0xff]
    %v3767 = vld [vmem:[#allocation25 + $0x1c8] sm:$0xff]
    %v3768 = vld [vmem:[#allocation25 + $0x1d0] sm:$0xff]
    %v3769 = vld [vmem:[#allocation25 + $0x1d8] sm:$0xff]
    %v3770 = vld [vmem:[#allocation25 + $0x1e0] sm:$0xff]
    %v3771 = vld [vmem:[#allocation25 + $0x1e8] sm:$0xff]
    %v3772 = vld [vmem:[#allocation25 + $0x1f0] sm:$0xff]
    %v3773 = vld [vmem:[#allocation25 + $0x1f8] sm:$0xff]
    loop: start=0, step=1, limit=8
    $region236: #{summarizer_forward.1} parent=1 // loop_pre_header
      _
    $region237: #{summarizer_forward.1} parent=1 // loop_header
      %s3775 = sphi 0, %s3779
      %p3776 = scmp.ge.s32.totalorder %s3775, 8
      %v3780 = vphi 0.0, %v3958
      %v3781 = vphi 0.0, %v3956
    $region238: #{summarizer_forward.1} parent=1 // loop_header_branch
      %3778 = sbr.rel (%p3776) target = $region242
    $region239: #{summarizer_forward.1} parent=1 // loop_body
      %s3782 = smul.u32 %s3775, 4
      %s3783 = smul.addr %s3782, 8
      %s3784 = scalar_lea.vmem [#allocation4], %s3783
      %v3785 = vld [vmem:[%s3784] sm:$0xff]
      %v3786 = vld [vmem:[%s3784 + $0x8] sm:$0xff]
      %v3787 = vld [vmem:[%s3784 + $0x10] sm:$0xff]
      %v3788 = vld [vmem:[%s3784 + $0x18] sm:$0xff]
      %3789 = vmatprep.subr.mxu0 %v3711
      %3790 = vmatpush1.msra.mxu0 %v3710
      %3791 = vmatprep.subr.mxu0 %v3715
      %3792 = vmatpush1.msra.mxu0 %v3714
      %3793 = vmatprep.subr.mxu0 %v3719
      %3794 = vmatpush1.msra.mxu0 %v3718
      %3795 = vmatprep.subr.mxu0 %v3723
      %3796 = vmatpush1.msra.mxu0 %v3722
      %3797 = vmatprep.subr.mxu0 %v3727
      %3798 = vmatpush1.msra.mxu0 %v3726
      %3799 = vmatprep.subr.mxu0 %v3731
      %3800 = vmatpush1.msra.mxu0 %v3730
      %3801 = vmatprep.subr.mxu0 %v3735
      %3802 = vmatpush1.msra.mxu0 %v3734
      %3803 = vmatprep.subr.mxu0 %v3739
      %3804 = vmatpush1.msra.mxu0 %v3738
      %3805 = vmatprep.subr.mxu0 %v3743
      %3806 = vmatpush1.msra.mxu0 %v3742
      %3807 = vmatprep.subr.mxu0 %v3747
      %3808 = vmatpush1.msra.mxu0 %v3746
      %3809 = vmatprep.subr.mxu0 %v3751
      %3810 = vmatpush1.msra.mxu0 %v3750
      %3811 = vmatprep.subr.mxu0 %v3755
      %3812 = vmatpush1.msra.mxu0 %v3754
      %3813 = vmatprep.subr.mxu0 %v3759
      %3814 = vmatpush1.msra.mxu0 %v3758
      %3815 = vmatprep.subr.mxu0 %v3763
      %3816 = vmatpush1.msra.mxu0 %v3762
      %3817 = vmatprep.subr.mxu0 %v3767
      %3818 = vmatpush1.msra.mxu0 %v3766
      %3819 = vmatprep.subr.mxu0 %v3771
      %3820 = vmatpush1.msra.mxu0 %v3770
      %3821 = vmatprep.subr.mxu0 0.0
      %3822 = vmatpush1.msra.mxu0 0.0
      %3823 = vmatprep.subr.mxu0 0.0
      %3824 = vmatpush1.msra.mxu0 0.0
      %3825 = vmatprep.subr.mxu0 0.0
      %3826 = vmatpush1.msra.mxu0 0.0
      %3827 = vmatprep.subr.mxu0 0.0
      %3828 = vmatpush1.msra.mxu0 0.0
      %3829 = vmatprep.subr.mxu0 0.0
      %3830 = vmatpush1.msra.mxu0 0.0
      %3831 = vmatprep.subr.mxu0 0.0
      %3832 = vmatpush1.msra.mxu0 0.0
      %3833 = vmatprep.subr.mxu0 0.0
      %3834 = vmatpush1.msra.mxu0 0.0
      %3835 = vmatprep.subr.mxu0 0.0
      %3836 = vmatpush1.msra.mxu0 0.0
      %3837 = vmatprep.subr.mxu0 0.0
      %3838 = vmatpush1.msra.mxu0 0.0
      %3839 = vmatprep.subr.mxu0 0.0
      %3840 = vmatpush1.msra.mxu0 0.0
      %3841 = vmatprep.subr.mxu0 0.0
      %3842 = vmatpush1.msra.mxu0 0.0
      %3843 = vmatprep.subr.mxu0 0.0
      %3844 = vmatpush1.msra.mxu0 0.0
      %3845 = vmatprep.subr.mxu0 0.0
      %3846 = vmatpush1.msra.mxu0 0.0
      %3847 = vmatprep.subr.mxu0 0.0
      %3848 = vmatpush1.msra.mxu0 0.0
      %3849 = vmatprep.subr.mxu0 0.0
      %3850 = vmatpush1.msra.mxu0 0.0
      %3851 = vmatprep.subr.mxu0 0.0
      %3852 = vmatpush1.msra.mxu0 0.0
      %3853 = vmatprep.mubr.f32.mxu0 0.0
      %3854 = vmatmul.mubr.f32.gmra.mrb[0].mxu0 %v3780
      %v3855 = vpop.f32.mrb[0].mxu0
      %v3856 = vadd.f32 0.0, %v3855
      %v3857 = vpop.f32.mrb[0].mxu0
      %v3858 = vadd.f32 0.0, %v3857
      %3859 = vdwg.mxu0
      %3860 = vmatprep.subr.mxu0 %v3713
      %3861 = vmatpush1.msra.mxu0 %v3712
      %3862 = vmatprep.subr.mxu0 %v3717
      %3863 = vmatpush1.msra.mxu0 %v3716
      %3864 = vmatprep.subr.mxu0 %v3721
      %3865 = vmatpush1.msra.mxu0 %v3720
      %3866 = vmatprep.subr.mxu0 %v3725
      %3867 = vmatpush1.msra.mxu0 %v3724
      %3868 = vmatprep.subr.mxu0 %v3729
      %3869 = vmatpush1.msra.mxu0 %v3728
      %3870 = vmatprep.subr.mxu0 %v3733
      %3871 = vmatpush1.msra.mxu0 %v3732
      %3872 = vmatprep.subr.mxu0 %v3737
      %3873 = vmatpush1.msra.mxu0 %v3736
      %3874 = vmatprep.subr.mxu0 %v3741
      %3875 = vmatpush1.msra.mxu0 %v3740
      %3876 = vmatprep.subr.mxu0 %v3745
      %3877 = vmatpush1.msra.mxu0 %v3744
      %3878 = vmatprep.subr.mxu0 %v3749
      %3879 = vmatpush1.msra.mxu0 %v3748
      %3880 = vmatprep.subr.mxu0 %v3753
      %3881 = vmatpush1.msra.mxu0 %v3752
      %3882 = vmatprep.subr.mxu0 %v3757
      %3883 = vmatpush1.msra.mxu0 %v3756
      %3884 = vmatprep.subr.mxu0 %v3761
      %3885 = vmatpush1.msra.mxu0 %v3760
      %3886 = vmatprep.subr.mxu0 %v3765
      %3887 = vmatpush1.msra.mxu0 %v3764
      %3888 = vmatprep.subr.mxu0 %v3769
      %3889 = vmatpush1.msra.mxu0 %v3768
      %3890 = vmatprep.subr.mxu0 %v3773
      %3891 = vmatpush1.msra.mxu0 %v3772
      %3892 = vmatprep.subr.mxu0 0.0
      %3893 = vmatpush1.msra.mxu0 0.0
      %3894 = vmatprep.subr.mxu0 0.0
      %3895 = vmatpush1.msra.mxu0 0.0
      %3896 = vmatprep.subr.mxu0 0.0
      %3897 = vmatpush1.msra.mxu0 0.0
      %3898 = vmatprep.subr.mxu0 0.0
      %3899 = vmatpush1.msra.mxu0 0.0
      %3900 = vmatprep.subr.mxu0 0.0
      %3901 = vmatpush1.msra.mxu0 0.0
      %3902 = vmatprep.subr.mxu0 0.0
      %3903 = vmatpush1.msra.mxu0 0.0
      %3904 = vmatprep.subr.mxu0 0.0
      %3905 = vmatpush1.msra.mxu0 0.0
      %3906 = vmatprep.subr.mxu0 0.0
      %3907 = vmatpush1.msra.mxu0 0.0
      %3908 = vmatprep.subr.mxu0 0.0
      %3909 = vmatpush1.msra.mxu0 0.0
      %3910 = vmatprep.subr.mxu0 0.0
      %3911 = vmatpush1.msra.mxu0 0.0
      %3912 = vmatprep.subr.mxu0 0.0
      %3913 = vmatpush1.msra.mxu0 0.0
      %3914 = vmatprep.subr.mxu0 0.0
      %3915 = vmatpush1.msra.mxu0 0.0
      %3916 = vmatprep.subr.mxu0 0.0
      %3917 = vmatpush1.msra.mxu0 0.0
      %3918 = vmatprep.subr.mxu0 0.0
      %3919 = vmatpush1.msra.mxu0 0.0
      %3920 = vmatprep.subr.mxu0 0.0
      %3921 = vmatpush1.msra.mxu0 0.0
      %3922 = vmatprep.subr.mxu0 0.0
      %3923 = vmatpush1.msra.mxu0 0.0
      %3924 = vmatprep.mubr.f32.mxu0 0.0
      %3925 = vmatmul.mubr.f32.gmra.mrb[0].mxu0 %v3780
      %v3926 = vpop.f32.mrb[0].mxu0
      %v3927 = vadd.f32 0.0, %v3926
      %v3928 = vpop.f32.mrb[0].mxu0
      %v3929 = vadd.f32 0.0, %v3928
      %3930 = vdwg.mxu0
      %v3931 = vadd.f32 %v3785, %v3856
      %v3932 = vadd.f32 %v3786, %v3858
      %v3933 = vadd.f32 %v3787, %v3927
      %v3934 = vadd.f32 %v3788, %v3929
      %v3935 = vxor.u32 %v3931, 2147483648
      %v3936 = vmul.f32 %v3935, 1.442695
      %v3937 = vpow.pop %v3936
      %v3938 = vadd.f32 %v3937, 1.0
      %v3939 = vrcp.pop %v3938
      %v3940 = vmul.f32 1.0, %v3939
      %v3941 = vxor.u32 %v3932, 2147483648
      %v3942 = vmul.f32 %v3941, 1.442695
      %v3943 = vpow.pop %v3942
      %v3944 = vadd.f32 %v3943, 1.0
      %v3945 = vrcp.pop %v3944
      %v3946 = vmul.f32 1.0, %v3945
      %v3947 = vtanh.pop %v3933
      %v3948 = vxor.u32 %v3934, 2147483648
      %v3949 = vmul.f32 %v3948, 1.442695
      %v3950 = vpow.pop %v3949
      %v3951 = vadd.f32 %v3950, 1.0
      %v3952 = vrcp.pop %v3951
      %v3953 = vmul.f32 1.0, %v3952
      %v3954 = vmul.f32 %v3946, %v3781
      %v3955 = vmul.f32 %v3940, %v3947
      %v3956 = vadd.f32 %v3954, %v3955
      %v3957 = vtanh.pop %v3956
      %v3958 = vmul.f32 %v3953, %v3957
      %s3959 = smul.u32 %s3775, 8
      %s3960 = scalar_lea.vmem [#allocation6], %s3959
      %3961 = vst [vmem:[%s3960] sm:$0xff] %v3958
    $region240: #{summarizer_forward.1} parent=1 // loop_footer
      %s3779 = sadd.s32 1, %s3775
    $region241: #{summarizer_forward.1} parent=1 // loop_footer_branch
      %3774 = sbr.rel target = $region237
    $region242: #{summarizer_forward.1} parent=1 // loop_exit
      _
    %v3962 = vld [vmem:[#allocation6] sm:$0xff]
    %v3963 = vld [vmem:[#allocation6 + $0x8] sm:$0xff]
    %v3964 = vld [vmem:[#allocation6 + $0x10] sm:$0xff]
    %v3965 = vld [vmem:[#allocation6 + $0x18] sm:$0xff]
    %v3966 = vld [vmem:[#allocation6 + $0x20] sm:$0xff]
    %v3967 = vld [vmem:[#allocation6 + $0x28] sm:$0xff]
    %v3968 = vld [vmem:[#allocation6 + $0x30] sm:$0xff]
    %v3969 = vld [vmem:[#allocation6 + $0x38] sm:$0xff]
    %v3970 = vld [vmem:[#allocation28] sm:$0xff]
    %v3971 = vld [vmem:[#allocation28 + $0x8] sm:$0xff]
    %v3972 = vld [vmem:[#allocation28 + $0x10] sm:$0xff]
    %v3973 = vld [vmem:[#allocation28 + $0x18] sm:$0xff]
    %v3974 = vld [vmem:[#allocation28 + $0x20] sm:$0xff]
    %v3975 = vld [vmem:[#allocation28 + $0x28] sm:$0xff]
    %v3976 = vld [vmem:[#allocation28 + $0x30] sm:$0xff]
    %v3977 = vld [vmem:[#allocation28 + $0x38] sm:$0xff]
    %v3978 = vld [vmem:[#allocation28 + $0x40] sm:$0xff]
    %v3979 = vld [vmem:[#allocation28 + $0x48] sm:$0xff]
    %v3980 = vld [vmem:[#allocation28 + $0x50] sm:$0xff]
    %v3981 = vld [vmem:[#allocation28 + $0x58] sm:$0xff]
    %v3982 = vld [vmem:[#allocation28 + $0x60] sm:$0xff]
    %v3983 = vld [vmem:[#allocation28 + $0x68] sm:$0xff]
    %v3984 = vld [vmem:[#allocation28 + $0x70] sm:$0xff]
    %v3985 = vld [vmem:[#allocation28 + $0x78] sm:$0xff]
    %v3986 = vld [vmem:[#allocation28 + $0x80] sm:$0xff]
    %v3987 = vld [vmem:[#allocation28 + $0x88] sm:$0xff]
    %v3988 = vld [vmem:[#allocation28 + $0x90] sm:$0xff]
    %v3989 = vld [vmem:[#allocation28 + $0x98] sm:$0xff]
    %v3990 = vld [vmem:[#allocation28 + $0xa0] sm:$0xff]
    %v3991 = vld [vmem:[#allocation28 + $0xa8] sm:$0xff]
    %v3992 = vld [vmem:[#allocation28 + $0xb0] sm:$0xff]
    %v3993 = vld [vmem:[#allocation28 + $0xb8] sm:$0xff]
    %v3994 = vld [vmem:[#allocation28 + $0xc0] sm:$0xff]
    %v3995 = vld [vmem:[#allocation28 + $0xc8] sm:$0xff]
    %v3996 = vld [vmem:[#allocation28 + $0xd0] sm:$0xff]
    %v3997 = vld [vmem:[#allocation28 + $0xd8] sm:$0xff]
    %v3998 = vld [vmem:[#allocation28 + $0xe0] sm:$0xff]
    %v3999 = vld [vmem:[#allocation28 + $0xe8] sm:$0xff]
    %v4000 = vld [vmem:[#allocation28 + $0xf0] sm:$0xff]
    %v4001 = vld [vmem:[#allocation28 + $0xf8] sm:$0xff]
    %v4002 = vld [vmem:[#allocation28 + $0x100] sm:$0xff]
    %v4003 = vld [vmem:[#allocation28 + $0x108] sm:$0xff]
    %v4004 = vld [vmem:[#allocation28 + $0x110] sm:$0xff]
    %v4005 = vld [vmem:[#allocation28 + $0x118] sm:$0xff]
    %v4006 = vld [vmem:[#allocation28 + $0x120] sm:$0xff]
    %v4007 = vld [vmem:[#allocation28 + $0x128] sm:$0xff]
    %v4008 = vld [vmem:[#allocation28 + $0x130] sm:$0xff]
    %v4009 = vld [vmem:[#allocation28 + $0x138] sm:$0xff]
    %v4010 = vld [vmem:[#allocation28 + $0x140] sm:$0xff]
    %v4011 = vld [vmem:[#allocation28 + $0x148] sm:$0xff]
    %v4012 = vld [vmem:[#allocation28 + $0x150] sm:$0xff]
    %v4013 = vld [vmem:[#allocation28 + $0x158] sm:$0xff]
    %v4014 = vld [vmem:[#allocation28 + $0x160] sm:$0xff]
    %v4015 = vld [vmem:[#allocation28 + $0x168] sm:$0xff]
    %v4016 = vld [vmem:[#allocation28 + $0x170] sm:$0xff]
    %v4017 = vld [vmem:[#allocation28 + $0x178] sm:$0xff]
    %v4018 = vld [vmem:[#allocation28 + $0x180] sm:$0xff]
    %v4019 = vld [vmem:[#allocation28 + $0x188] sm:$0xff]
    %v4020 = vld [vmem:[#allocation28 + $0x190] sm:$0xff]
    %v4021 = vld [vmem:[#allocation28 + $0x198] sm:$0xff]
    %v4022 = vld [vmem:[#allocation28 + $0x1a0] sm:$0xff]
    %v4023 = vld [vmem:[#allocation28 + $0x1a8] sm:$0xff]
    %v4024 = vld [vmem:[#allocation28 + $0x1b0] sm:$0xff]
    %v4025 = vld [vmem:[#allocation28 + $0x1b8] sm:$0xff]
    %v4026 = vld [vmem:[#allocation28 + $0x1c0] sm:$0xff]
    %v4027 = vld [vmem:[#allocation28 + $0x1c8] sm:$0xff]
    %v4028 = vld [vmem:[#allocation28 + $0x1d0] sm:$0xff]
    %v4029 = vld [vmem:[#allocation28 + $0x1d8] sm:$0xff]
    %v4030 = vld [vmem:[#allocation28 + $0x1e0] sm:$0xff]
    %v4031 = vld [vmem:[#allocation28 + $0x1e8] sm:$0xff]
    %v4032 = vld [vmem:[#allocation28 + $0x1f0] sm:$0xff]
    %v4033 = vld [vmem:[#allocation28 + $0x1f8] sm:$0xff]
    %v4034 = vld [vmem:[#allocation31] sm:$0xf]
    %v4036 = vlaneseq
    %v4037 = vshrl.u32 %v4036, 7
    %v4038 = vsub.s32 0, %v4037
    %v4039 = vrot.slane %v4034, %v4038
    %v4040 = vlaneseq
    %v4041 = vshrl.u32 %v4040, 7
    %v4042 = vsub.s32 1, %v4041
    %v4043 = vrot.slane %v4034, %v4042
    %v4044 = vlaneseq
    %v4045 = vshrl.u32 %v4044, 7
    %v4046 = vsub.s32 2, %v4045
    %v4047 = vrot.slane %v4034, %v4046
    %v4048 = vlaneseq
    %v4049 = vshrl.u32 %v4048, 7
    %v4050 = vsub.s32 3, %v4049
    %v4051 = vrot.slane %v4034, %v4050
    %4056 = vmatprep.subr.mxu0 %v3971
    %4057 = vmatpush1.msra.mxu0 %v3970
    %4058 = vmatprep.subr.mxu0 %v3975
    %4059 = vmatpush1.msra.mxu0 %v3974
    %4060 = vmatprep.subr.mxu0 %v3979
    %4061 = vmatpush1.msra.mxu0 %v3978
    %4062 = vmatprep.subr.mxu0 %v3983
    %4063 = vmatpush1.msra.mxu0 %v3982
    %4064 = vmatprep.subr.mxu0 %v3987
    %4065 = vmatpush1.msra.mxu0 %v3986
    %4066 = vmatprep.subr.mxu0 %v3991
    %4067 = vmatpush1.msra.mxu0 %v3990
    %4068 = vmatprep.subr.mxu0 %v3995
    %4069 = vmatpush1.msra.mxu0 %v3994
    %4070 = vmatprep.subr.mxu0 %v3999
    %4071 = vmatpush1.msra.mxu0 %v3998
    %4072 = vmatprep.subr.mxu0 %v4003
    %4073 = vmatpush1.msra.mxu0 %v4002
    %4074 = vmatprep.subr.mxu0 %v4007
    %4075 = vmatpush1.msra.mxu0 %v4006
    %4076 = vmatprep.subr.mxu0 %v4011
    %4077 = vmatpush1.msra.mxu0 %v4010
    %4078 = vmatprep.subr.mxu0 %v4015
    %4079 = vmatpush1.msra.mxu0 %v4014
    %4080 = vmatprep.subr.mxu0 %v4019
    %4081 = vmatpush1.msra.mxu0 %v4018
    %4082 = vmatprep.subr.mxu0 %v4023
    %4083 = vmatpush1.msra.mxu0 %v4022
    %4084 = vmatprep.subr.mxu0 %v4027
    %4085 = vmatpush1.msra.mxu0 %v4026
    %4086 = vmatprep.subr.mxu0 %v4031
    %4087 = vmatpush1.msra.mxu0 %v4030
    %4088 = vmatprep.subr.mxu0 0.0
    %4089 = vmatpush1.msra.mxu0 0.0
    %4090 = vmatprep.subr.mxu0 0.0
    %4091 = vmatpush1.msra.mxu0 0.0
    %4092 = vmatprep.subr.mxu0 0.0
    %4093 = vmatpush1.msra.mxu0 0.0
    %4094 = vmatprep.subr.mxu0 0.0
    %4095 = vmatpush1.msra.mxu0 0.0
    %4096 = vmatprep.subr.mxu0 0.0
    %4097 = vmatpush1.msra.mxu0 0.0
    %4098 = vmatprep.subr.mxu0 0.0
    %4099 = vmatpush1.msra.mxu0 0.0
    %4100 = vmatprep.subr.mxu0 0.0
    %4101 = vmatpush1.msra.mxu0 0.0
    %4102 = vmatprep.subr.mxu0 0.0
    %4103 = vmatpush1.msra.mxu0 0.0
    %4104 = vmatprep.subr.mxu0 0.0
    %4105 = vmatpush1.msra.mxu0 0.0
    %4106 = vmatprep.subr.mxu0 0.0
    %4107 = vmatpush1.msra.mxu0 0.0
    %4108 = vmatprep.subr.mxu0 0.0
    %4109 = vmatpush1.msra.mxu0 0.0
    %4110 = vmatprep.subr.mxu0 0.0
    %4111 = vmatpush1.msra.mxu0 0.0
    %4112 = vmatprep.subr.mxu0 0.0
    %4113 = vmatpush1.msra.mxu0 0.0
    %4114 = vmatprep.subr.mxu0 0.0
    %4115 = vmatpush1.msra.mxu0 0.0
    %4116 = vmatprep.subr.mxu0 0.0
    %4117 = vmatpush1.msra.mxu0 0.0
    %4118 = vmatprep.subr.mxu0 0.0
    %4119 = vmatpush1.msra.mxu0 0.0
    %4120 = vmatprep.mubr.f32.mxu0 0.0
    %4121 = vmatmul.mubr.f32.gmra.mrb[0].mxu0 %v3962
    %v4122 = vpop.f32.mrb[0].mxu0
    %v4123 = vadd.f32 %v4039, %v4122
    %v4124 = vpop.f32.mrb[0].mxu0
    %v4125 = vadd.f32 %v4043, %v4124
    %4126 = vmatprep.mubr.f32.mxu0 0.0
    %4127 = vmatmul.mubr.f32.gmra.mrb[0].mxu0 %v3963
    %v4128 = vpop.f32.mrb[0].mxu0
    %v4129 = vadd.f32 %v4039, %v4128
    %v4130 = vpop.f32.mrb[0].mxu0
    %v4131 = vadd.f32 %v4043, %v4130
    %4132 = vmatprep.mubr.f32.mxu0 0.0
    %4133 = vmatmul.mubr.f32.gmra.mrb[0].mxu0 %v3964
    %v4134 = vpop.f32.mrb[0].mxu0
    %v4135 = vadd.f32 %v4039, %v4134
    %v4136 = vpop.f32.mrb[0].mxu0
    %v4137 = vadd.f32 %v4043, %v4136
    %4138 = vmatprep.mubr.f32.mxu0 0.0
    %4139 = vmatmul.mubr.f32.gmra.mrb[0].mxu0 %v3965
    %v4140 = vpop.f32.mrb[0].mxu0
    %v4141 = vadd.f32 %v4039, %v4140
    %v4142 = vpop.f32.mrb[0].mxu0
    %v4143 = vadd.f32 %v4043, %v4142
    %4144 = vmatprep.mubr.f32.mxu0 0.0
    %4145 = vmatmul.mubr.f32.gmra.mrb[0].mxu0 %v3966
    %v4146 = vpop.f32.mrb[0].mxu0
    %v4147 = vadd.f32 %v4039, %v4146
    %v4148 = vpop.f32.mrb[0].mxu0
    %v4149 = vadd.f32 %v4043, %v4148
    %4150 = vmatprep.mubr.f32.mxu0 0.0
    %4151 = vmatmul.mubr.f32.gmra.mrb[0].mxu0 %v3967
    %v4152 = vpop.f32.mrb[0].mxu0
    %v4153 = vadd.f32 %v4039, %v4152
    %v4154 = vpop.f32.mrb[0].mxu0
    %v4155 = vadd.f32 %v4043, %v4154
    %4156 = vmatprep.mubr.f32.mxu0 0.0
    %4157 = vmatmul.mubr.f32.gmra.mrb[0].mxu0 %v3968
    %v4158 = vpop.f32.mrb[0].mxu0
    %v4159 = vadd.f32 %v4039, %v4158
    %v4160 = vpop.f32.mrb[0].mxu0
    %v4161 = vadd.f32 %v4043, %v4160
    %4162 = vmatprep.mubr.f32.mxu0 0.0
    %4163 = vmatmul.mubr.f32.gmra.mrb[0].mxu0 %v3969
    %v4164 = vpop.f32.mrb[0].mxu0
    %v4165 = vadd.f32 %v4039, %v4164
    %v4166 = vpop.f32.mrb[0].mxu0
    %v4167 = vadd.f32 %v4043, %v4166
    %4168 = vdwg.mxu0
    %4169 = vmatprep.subr.mxu0 %v3973
    %4170 = vmatpush1.msra.mxu0 %v3972
    %4171 = vmatprep.subr.mxu0 %v3977
    %4172 = vmatpush1.msra.mxu0 %v3976
    %4173 = vmatprep.subr.mxu0 %v3981
    %4174 = vmatpush1.msra.mxu0 %v3980
    %4175 = vmatprep.subr.mxu0 %v3985
    %4176 = vmatpush1.msra.mxu0 %v3984
    %4177 = vmatprep.subr.mxu0 %v3989
    %4178 = vmatpush1.msra.mxu0 %v3988
    %4179 = vmatprep.subr.mxu0 %v3993
    %4180 = vmatpush1.msra.mxu0 %v3992
    %4181 = vmatprep.subr.mxu0 %v3997
    %4182 = vmatpush1.msra.mxu0 %v3996
    %4183 = vmatprep.subr.mxu0 %v4001
    %4184 = vmatpush1.msra.mxu0 %v4000
    %4185 = vmatprep.subr.mxu0 %v4005
    %4186 = vmatpush1.msra.mxu0 %v4004
    %4187 = vmatprep.subr.mxu0 %v4009
    %4188 = vmatpush1.msra.mxu0 %v4008
    %4189 = vmatprep.subr.mxu0 %v4013
    %4190 = vmatpush1.msra.mxu0 %v4012
    %4191 = vmatprep.subr.mxu0 %v4017
    %4192 = vmatpush1.msra.mxu0 %v4016
    %4193 = vmatprep.subr.mxu0 %v4021
    %4194 = vmatpush1.msra.mxu0 %v4020
    %4195 = vmatprep.subr.mxu0 %v4025
    %4196 = vmatpush1.msra.mxu0 %v4024
    %4197 = vmatprep.subr.mxu0 %v4029
    %4198 = vmatpush1.msra.mxu0 %v4028
    %4199 = vmatprep.subr.mxu0 %v4033
    %4200 = vmatpush1.msra.mxu0 %v4032
    %4201 = vmatprep.subr.mxu0 0.0
    %4202 = vmatpush1.msra.mxu0 0.0
    %4203 = vmatprep.subr.mxu0 0.0
    %4204 = vmatpush1.msra.mxu0 0.0
    %4205 = vmatprep.subr.mxu0 0.0
    %4206 = vmatpush1.msra.mxu0 0.0
    %4207 = vmatprep.subr.mxu0 0.0
    %4208 = vmatpush1.msra.mxu0 0.0
    %4209 = vmatprep.subr.mxu0 0.0
    %4210 = vmatpush1.msra.mxu0 0.0
    %4211 = vmatprep.subr.mxu0 0.0
    %4212 = vmatpush1.msra.mxu0 0.0
    %4213 = vmatprep.subr.mxu0 0.0
    %4214 = vmatpush1.msra.mxu0 0.0
    %4215 = vmatprep.subr.mxu0 0.0
    %4216 = vmatpush1.msra.mxu0 0.0
    %4217 = vmatprep.subr.mxu0 0.0
    %4218 = vmatpush1.msra.mxu0 0.0
    %4219 = vmatprep.subr.mxu0 0.0
    %4220 = vmatpush1.msra.mxu0 0.0
    %4221 = vmatprep.subr.mxu0 0.0
    %4222 = vmatpush1.msra.mxu0 0.0
    %4223 = vmatprep.subr.mxu0 0.0
    %4224 = vmatpush1.msra.mxu0 0.0
    %4225 = vmatprep.subr.mxu0 0.0
    %4226 = vmatpush1.msra.mxu0 0.0
    %4227 = vmatprep.subr.mxu0 0.0
    %4228 = vmatpush1.msra.mxu0 0.0
    %4229 = vmatprep.subr.mxu0 0.0
    %4230 = vmatpush1.msra.mxu0 0.0
    %4231 = vmatprep.subr.mxu0 0.0
    %4232 = vmatpush1.msra.mxu0 0.0
    %4233 = vmatprep.mubr.f32.mxu0 0.0
    %4234 = vmatmul.mubr.f32.gmra.mrb[0].mxu0 %v3962
    %v4235 = vpop.f32.mrb[0].mxu0
    %v4236 = vadd.f32 %v4047, %v4235
    %v4237 = vpop.f32.mrb[0].mxu0
    %v4238 = vadd.f32 %v4051, %v4237
    %4239 = vmatprep.mubr.f32.mxu0 0.0
    %4240 = vmatmul.mubr.f32.gmra.mrb[0].mxu0 %v3963
    %v4241 = vpop.f32.mrb[0].mxu0
    %v4242 = vadd.f32 %v4047, %v4241
    %v4243 = vpop.f32.mrb[0].mxu0
    %v4244 = vadd.f32 %v4051, %v4243
    %4245 = vmatprep.mubr.f32.mxu0 0.0
    %4246 = vmatmul.mubr.f32.gmra.mrb[0].mxu0 %v3964
    %v4247 = vpop.f32.mrb[0].mxu0
    %v4248 = vadd.f32 %v4047, %v4247
    %v4249 = vpop.f32.mrb[0].mxu0
    %v4250 = vadd.f32 %v4051, %v4249
    %4251 = vmatprep.mubr.f32.mxu0 0.0
    %4252 = vmatmul.mubr.f32.gmra.mrb[0].mxu0 %v3965
    %v4253 = vpop.f32.mrb[0].mxu0
    %v4254 = vadd.f32 %v4047, %v4253
    %v4255 = vpop.f32.mrb[0].mxu0
    %v4256 = vadd.f32 %v4051, %v4255
    %4257 = vmatprep.mubr.f32.mxu0 0.0
    %4258 = vmatmul.mubr.f32.gmra.mrb[0].mxu0 %v3966
    %v4259 = vpop.f32.mrb[0].mxu0
    %v4260 = vadd.f32 %v4047, %v4259
    %v4261 = vpop.f32.mrb[0].mxu0
    %v4262 = vadd.f32 %v4051, %v4261
    %4263 = vmatprep.mubr.f32.mxu0 0.0
    %4264 = vmatmul.mubr.f32.gmra.mrb[0].mxu0 %v3967
    %v4265 = vpop.f32.mrb[0].mxu0
    %v4266 = vadd.f32 %v4047, %v4265
    %v4267 = vpop.f32.mrb[0].mxu0
    %v4268 = vadd.f32 %v4051, %v4267
    %4269 = vmatprep.mubr.f32.mxu0 0.0
    %4270 = vmatmul.mubr.f32.gmra.mrb[0].mxu0 %v3968
    %v4271 = vpop.f32.mrb[0].mxu0
    %v4272 = vadd.f32 %v4047, %v4271
    %v4273 = vpop.f32.mrb[0].mxu0
    %v4274 = vadd.f32 %v4051, %v4273
    %4275 = vmatprep.mubr.f32.mxu0 0.0
    %4276 = vmatmul.mubr.f32.gmra.mrb[0].mxu0 %v3969
    %v4277 = vpop.f32.mrb[0].mxu0
    %v4278 = vadd.f32 %v4047, %v4277
    %v4279 = vpop.f32.mrb[0].mxu0
    %v4280 = vadd.f32 %v4051, %v4279
    %4281 = vdwg.mxu0
    %4282 = vst [vmem:[#allocation4] sm:$0xff] %v4123
    %4283 = vst [vmem:[#allocation4 + $0x8] sm:$0xff] %v4125
    %4284 = vst [vmem:[#allocation4 + $0x10] sm:$0xff] %v4236
    %4285 = vst [vmem:[#allocation4 + $0x18] sm:$0xff] %v4238
    %4286 = vst [vmem:[#allocation4 + $0x20] sm:$0xff] %v4129
    %4287 = vst [vmem:[#allocation4 + $0x28] sm:$0xff] %v4131
    %4288 = vst [vmem:[#allocation4 + $0x30] sm:$0xff] %v4242
    %4289 = vst [vmem:[#allocation4 + $0x38] sm:$0xff] %v4244
    %4290 = vst [vmem:[#allocation4 + $0x40] sm:$0xff] %v4135
    %4291 = vst [vmem:[#allocation4 + $0x48] sm:$0xff] %v4137
    %4292 = vst [vmem:[#allocation4 + $0x50] sm:$0xff] %v4248
    %4293 = vst [vmem:[#allocation4 + $0x58] sm:$0xff] %v4250
    %4294 = vst [vmem:[#allocation4 + $0x60] sm:$0xff] %v4141
    %4295 = vst [vmem:[#allocation4 + $0x68] sm:$0xff] %v4143
    %4296 = vst [vmem:[#allocation4 + $0x70] sm:$0xff] %v4254
    %4297 = vst [vmem:[#allocation4 + $0x78] sm:$0xff] %v4256
    %4298 = vst [vmem:[#allocation4 + $0x80] sm:$0xff] %v4147
    %4299 = vst [vmem:[#allocation4 + $0x88] sm:$0xff] %v4149
    %4300 = vst [vmem:[#allocation4 + $0x90] sm:$0xff] %v4260
    %4301 = vst [vmem:[#allocation4 + $0x98] sm:$0xff] %v4262
    %4302 = vst [vmem:[#allocation4 + $0xa0] sm:$0xff] %v4153
    %4303 = vst [vmem:[#allocation4 + $0xa8] sm:$0xff] %v4155
    %4304 = vst [vmem:[#allocation4 + $0xb0] sm:$0xff] %v4266
    %4305 = vst [vmem:[#allocation4 + $0xb8] sm:$0xff] %v4268
    %4306 = vst [vmem:[#allocation4 + $0xc0] sm:$0xff] %v4159
    %4307 = vst [vmem:[#allocation4 + $0xc8] sm:$0xff] %v4161
    %4308 = vst [vmem:[#allocation4 + $0xd0] sm:$0xff] %v4272
    %4309 = vst [vmem:[#allocation4 + $0xd8] sm:$0xff] %v4274
    %4310 = vst [vmem:[#allocation4 + $0xe0] sm:$0xff] %v4165
    %4311 = vst [vmem:[#allocation4 + $0xe8] sm:$0xff] %v4167
    %4312 = vst [vmem:[#allocation4 + $0xf0] sm:$0xff] %v4278
    %4313 = vst [vmem:[#allocation4 + $0xf8] sm:$0xff] %v4280
    %v4314 = vld [vmem:[#allocation29] sm:$0xff]
    %v4315 = vld [vmem:[#allocation29 + $0x8] sm:$0xff]
    %v4316 = vld [vmem:[#allocation29 + $0x10] sm:$0xff]
    %v4317 = vld [vmem:[#allocation29 + $0x18] sm:$0xff]
    %v4318 = vld [vmem:[#allocation29 + $0x20] sm:$0xff]
    %v4319 = vld [vmem:[#allocation29 + $0x28] sm:$0xff]
    %v4320 = vld [vmem:[#allocation29 + $0x30] sm:$0xff]
    %v4321 = vld [vmem:[#allocation29 + $0x38] sm:$0xff]
    %v4322 = vld [vmem:[#allocation29 + $0x40] sm:$0xff]
    %v4323 = vld [vmem:[#allocation29 + $0x48] sm:$0xff]
    %v4324 = vld [vmem:[#allocation29 + $0x50] sm:$0xff]
    %v4325 = vld [vmem:[#allocation29 + $0x58] sm:$0xff]
    %v4326 = vld [vmem:[#allocation29 + $0x60] sm:$0xff]
    %v4327 = vld [vmem:[#allocation29 + $0x68] sm:$0xff]
    %v4328 = vld [vmem:[#allocation29 + $0x70] sm:$0xff]
    %v4329 = vld [vmem:[#allocation29 + $0x78] sm:$0xff]
    %v4330 = vld [vmem:[#allocation29 + $0x80] sm:$0xff]
    %v4331 = vld [vmem:[#allocation29 + $0x88] sm:$0xff]
    %v4332 = vld [vmem:[#allocation29 + $0x90] sm:$0xff]
    %v4333 = vld [vmem:[#allocation29 + $0x98] sm:$0xff]
    %v4334 = vld [vmem:[#allocation29 + $0xa0] sm:$0xff]
    %v4335 = vld [vmem:[#allocation29 + $0xa8] sm:$0xff]
    %v4336 = vld [vmem:[#allocation29 + $0xb0] sm:$0xff]
    %v4337 = vld [vmem:[#allocation29 + $0xb8] sm:$0xff]
    %v4338 = vld [vmem:[#allocation29 + $0xc0] sm:$0xff]
    %v4339 = vld [vmem:[#allocation29 + $0xc8] sm:$0xff]
    %v4340 = vld [vmem:[#allocation29 + $0xd0] sm:$0xff]
    %v4341 = vld [vmem:[#allocation29 + $0xd8] sm:$0xff]
    %v4342 = vld [vmem:[#allocation29 + $0xe0] sm:$0xff]
    %v4343 = vld [vmem:[#allocation29 + $0xe8] sm:$0xff]
    %v4344 = vld [vmem:[#allocation29 + $0xf0] sm:$0xff]
    %v4345 = vld [vmem:[#allocation29 + $0xf8] sm:$0xff]
    %v4346 = vld [vmem:[#allocation29 + $0x100] sm:$0xff]
    %v4347 = vld [vmem:[#allocation29 + $0x108] sm:$0xff]
    %v4348 = vld [vmem:[#allocation29 + $0x110] sm:$0xff]
    %v4349 = vld [vmem:[#allocation29 + $0x118] sm:$0xff]
    %v4350 = vld [vmem:[#allocation29 + $0x120] sm:$0xff]
    %v4351 = vld [vmem:[#allocation29 + $0x128] sm:$0xff]
    %v4352 = vld [vmem:[#allocation29 + $0x130] sm:$0xff]
    %v4353 = vld [vmem:[#allocation29 + $0x138] sm:$0xff]
    %v4354 = vld [vmem:[#allocation29 + $0x140] sm:$0xff]
    %v4355 = vld [vmem:[#allocation29 + $0x148] sm:$0xff]
    %v4356 = vld [vmem:[#allocation29 + $0x150] sm:$0xff]
    %v4357 = vld [vmem:[#allocation29 + $0x158] sm:$0xff]
    %v4358 = vld [vmem:[#allocation29 + $0x160] sm:$0xff]
    %v4359 = vld [vmem:[#allocation29 + $0x168] sm:$0xff]
    %v4360 = vld [vmem:[#allocation29 + $0x170] sm:$0xff]
    %v4361 = vld [vmem:[#allocation29 + $0x178] sm:$0xff]
    %v4362 = vld [vmem:[#allocation29 + $0x180] sm:$0xff]
    %v4363 = vld [vmem:[#allocation29 + $0x188] sm:$0xff]
    %v4364 = vld [vmem:[#allocation29 + $0x190] sm:$0xff]
    %v4365 = vld [vmem:[#allocation29 + $0x198] sm:$0xff]
    %v4366 = vld [vmem:[#allocation29 + $0x1a0] sm:$0xff]
    %v4367 = vld [vmem:[#allocation29 + $0x1a8] sm:$0xff]
    %v4368 = vld [vmem:[#allocation29 + $0x1b0] sm:$0xff]
    %v4369 = vld [vmem:[#allocation29 + $0x1b8] sm:$0xff]
    %v4370 = vld [vmem:[#allocation29 + $0x1c0] sm:$0xff]
    %v4371 = vld [vmem:[#allocation29 + $0x1c8] sm:$0xff]
    %v4372 = vld [vmem:[#allocation29 + $0x1d0] sm:$0xff]
    %v4373 = vld [vmem:[#allocation29 + $0x1d8] sm:$0xff]
    %v4374 = vld [vmem:[#allocation29 + $0x1e0] sm:$0xff]
    %v4375 = vld [vmem:[#allocation29 + $0x1e8] sm:$0xff]
    %v4376 = vld [vmem:[#allocation29 + $0x1f0] sm:$0xff]
    %v4377 = vld [vmem:[#allocation29 + $0x1f8] sm:$0xff]
    loop: start=0, step=1, limit=8
    $region243: #{summarizer_forward.1} parent=1 // loop_pre_header
      _
    $region244: #{summarizer_forward.1} parent=1 // loop_header
      %s4379 = sphi 0, %s4383
      %p4380 = scmp.ge.s32.totalorder %s4379, 8
      %v4384 = vphi 0.0, %v4562
      %v4385 = vphi 0.0, %v4560
    $region245: #{summarizer_forward.1} parent=1 // loop_header_branch
      %4382 = sbr.rel (%p4380) target = $region249
    $region246: #{summarizer_forward.1} parent=1 // loop_body
      %s4386 = smul.u32 %s4379, 4
      %s4387 = smul.addr %s4386, 8
      %s4388 = scalar_lea.vmem [#allocation4], %s4387
      %v4389 = vld [vmem:[%s4388] sm:$0xff]
      %v4390 = vld [vmem:[%s4388 + $0x8] sm:$0xff]
      %v4391 = vld [vmem:[%s4388 + $0x10] sm:$0xff]
      %v4392 = vld [vmem:[%s4388 + $0x18] sm:$0xff]
      %4393 = vmatprep.subr.mxu0 %v4315
      %4394 = vmatpush1.msra.mxu0 %v4314
      %4395 = vmatprep.subr.mxu0 %v4319
      %4396 = vmatpush1.msra.mxu0 %v4318
      %4397 = vmatprep.subr.mxu0 %v4323
      %4398 = vmatpush1.msra.mxu0 %v4322
      %4399 = vmatprep.subr.mxu0 %v4327
      %4400 = vmatpush1.msra.mxu0 %v4326
      %4401 = vmatprep.subr.mxu0 %v4331
      %4402 = vmatpush1.msra.mxu0 %v4330
      %4403 = vmatprep.subr.mxu0 %v4335
      %4404 = vmatpush1.msra.mxu0 %v4334
      %4405 = vmatprep.subr.mxu0 %v4339
      %4406 = vmatpush1.msra.mxu0 %v4338
      %4407 = vmatprep.subr.mxu0 %v4343
      %4408 = vmatpush1.msra.mxu0 %v4342
      %4409 = vmatprep.subr.mxu0 %v4347
      %4410 = vmatpush1.msra.mxu0 %v4346
      %4411 = vmatprep.subr.mxu0 %v4351
      %4412 = vmatpush1.msra.mxu0 %v4350
      %4413 = vmatprep.subr.mxu0 %v4355
      %4414 = vmatpush1.msra.mxu0 %v4354
      %4415 = vmatprep.subr.mxu0 %v4359
      %4416 = vmatpush1.msra.mxu0 %v4358
      %4417 = vmatprep.subr.mxu0 %v4363
      %4418 = vmatpush1.msra.mxu0 %v4362
      %4419 = vmatprep.subr.mxu0 %v4367
      %4420 = vmatpush1.msra.mxu0 %v4366
      %4421 = vmatprep.subr.mxu0 %v4371
      %4422 = vmatpush1.msra.mxu0 %v4370
      %4423 = vmatprep.subr.mxu0 %v4375
      %4424 = vmatpush1.msra.mxu0 %v4374
      %4425 = vmatprep.subr.mxu0 0.0
      %4426 = vmatpush1.msra.mxu0 0.0
      %4427 = vmatprep.subr.mxu0 0.0
      %4428 = vmatpush1.msra.mxu0 0.0
      %4429 = vmatprep.subr.mxu0 0.0
      %4430 = vmatpush1.msra.mxu0 0.0
      %4431 = vmatprep.subr.mxu0 0.0
      %4432 = vmatpush1.msra.mxu0 0.0
      %4433 = vmatprep.subr.mxu0 0.0
      %4434 = vmatpush1.msra.mxu0 0.0
      %4435 = vmatprep.subr.mxu0 0.0
      %4436 = vmatpush1.msra.mxu0 0.0
      %4437 = vmatprep.subr.mxu0 0.0
      %4438 = vmatpush1.msra.mxu0 0.0
      %4439 = vmatprep.subr.mxu0 0.0
      %4440 = vmatpush1.msra.mxu0 0.0
      %4441 = vmatprep.subr.mxu0 0.0
      %4442 = vmatpush1.msra.mxu0 0.0
      %4443 = vmatprep.subr.mxu0 0.0
      %4444 = vmatpush1.msra.mxu0 0.0
      %4445 = vmatprep.subr.mxu0 0.0
      %4446 = vmatpush1.msra.mxu0 0.0
      %4447 = vmatprep.subr.mxu0 0.0
      %4448 = vmatpush1.msra.mxu0 0.0
      %4449 = vmatprep.subr.mxu0 0.0
      %4450 = vmatpush1.msra.mxu0 0.0
      %4451 = vmatprep.subr.mxu0 0.0
      %4452 = vmatpush1.msra.mxu0 0.0
      %4453 = vmatprep.subr.mxu0 0.0
      %4454 = vmatpush1.msra.mxu0 0.0
      %4455 = vmatprep.subr.mxu0 0.0
      %4456 = vmatpush1.msra.mxu0 0.0
      %4457 = vmatprep.mubr.f32.mxu0 0.0
      %4458 = vmatmul.mubr.f32.gmra.mrb[0].mxu0 %v4384
      %v4459 = vpop.f32.mrb[0].mxu0
      %v4460 = vadd.f32 0.0, %v4459
      %v4461 = vpop.f32.mrb[0].mxu0
      %v4462 = vadd.f32 0.0, %v4461
      %4463 = vdwg.mxu0
      %4464 = vmatprep.subr.mxu0 %v4317
      %4465 = vmatpush1.msra.mxu0 %v4316
      %4466 = vmatprep.subr.mxu0 %v4321
      %4467 = vmatpush1.msra.mxu0 %v4320
      %4468 = vmatprep.subr.mxu0 %v4325
      %4469 = vmatpush1.msra.mxu0 %v4324
      %4470 = vmatprep.subr.mxu0 %v4329
      %4471 = vmatpush1.msra.mxu0 %v4328
      %4472 = vmatprep.subr.mxu0 %v4333
      %4473 = vmatpush1.msra.mxu0 %v4332
      %4474 = vmatprep.subr.mxu0 %v4337
      %4475 = vmatpush1.msra.mxu0 %v4336
      %4476 = vmatprep.subr.mxu0 %v4341
      %4477 = vmatpush1.msra.mxu0 %v4340
      %4478 = vmatprep.subr.mxu0 %v4345
      %4479 = vmatpush1.msra.mxu0 %v4344
      %4480 = vmatprep.subr.mxu0 %v4349
      %4481 = vmatpush1.msra.mxu0 %v4348
      %4482 = vmatprep.subr.mxu0 %v4353
      %4483 = vmatpush1.msra.mxu0 %v4352
      %4484 = vmatprep.subr.mxu0 %v4357
      %4485 = vmatpush1.msra.mxu0 %v4356
      %4486 = vmatprep.subr.mxu0 %v4361
      %4487 = vmatpush1.msra.mxu0 %v4360
      %4488 = vmatprep.subr.mxu0 %v4365
      %4489 = vmatpush1.msra.mxu0 %v4364
      %4490 = vmatprep.subr.mxu0 %v4369
      %4491 = vmatpush1.msra.mxu0 %v4368
      %4492 = vmatprep.subr.mxu0 %v4373
      %4493 = vmatpush1.msra.mxu0 %v4372
      %4494 = vmatprep.subr.mxu0 %v4377
      %4495 = vmatpush1.msra.mxu0 %v4376
      %4496 = vmatprep.subr.mxu0 0.0
      %4497 = vmatpush1.msra.mxu0 0.0
      %4498 = vmatprep.subr.mxu0 0.0
      %4499 = vmatpush1.msra.mxu0 0.0
      %4500 = vmatprep.subr.mxu0 0.0
      %4501 = vmatpush1.msra.mxu0 0.0
      %4502 = vmatprep.subr.mxu0 0.0
      %4503 = vmatpush1.msra.mxu0 0.0
      %4504 = vmatprep.subr.mxu0 0.0
      %4505 = vmatpush1.msra.mxu0 0.0
      %4506 = vmatprep.subr.mxu0 0.0
      %4507 = vmatpush1.msra.mxu0 0.0
      %4508 = vmatprep.subr.mxu0 0.0
      %4509 = vmatpush1.msra.mxu0 0.0
      %4510 = vmatprep.subr.mxu0 0.0
      %4511 = vmatpush1.msra.mxu0 0.0
      %4512 = vmatprep.subr.mxu0 0.0
      %4513 = vmatpush1.msra.mxu0 0.0
      %4514 = vmatprep.subr.mxu0 0.0
      %4515 = vmatpush1.msra.mxu0 0.0
      %4516 = vmatprep.subr.mxu0 0.0
      %4517 = vmatpush1.msra.mxu0 0.0
      %4518 = vmatprep.subr.mxu0 0.0
      %4519 = vmatpush1.msra.mxu0 0.0
      %4520 = vmatprep.subr.mxu0 0.0
      %4521 = vmatpush1.msra.mxu0 0.0
      %4522 = vmatprep.subr.mxu0 0.0
      %4523 = vmatpush1.msra.mxu0 0.0
      %4524 = vmatprep.subr.mxu0 0.0
      %4525 = vmatpush1.msra.mxu0 0.0
      %4526 = vmatprep.subr.mxu0 0.0
      %4527 = vmatpush1.msra.mxu0 0.0
      %4528 = vmatprep.mubr.f32.mxu0 0.0
      %4529 = vmatmul.mubr.f32.gmra.mrb[0].mxu0 %v4384
      %v4530 = vpop.f32.mrb[0].mxu0
      %v4531 = vadd.f32 0.0, %v4530
      %v4532 = vpop.f32.mrb[0].mxu0
      %v4533 = vadd.f32 0.0, %v4532
      %4534 = vdwg.mxu0
      %v4535 = vadd.f32 %v4389, %v4460
      %v4536 = vadd.f32 %v4390, %v4462
      %v4537 = vadd.f32 %v4391, %v4531
      %v4538 = vadd.f32 %v4392, %v4533
      %v4539 = vxor.u32 %v4535, 2147483648
      %v4540 = vmul.f32 %v4539, 1.442695
      %v4541 = vpow.pop %v4540
      %v4542 = vadd.f32 %v4541, 1.0
      %v4543 = vrcp.pop %v4542
      %v4544 = vmul.f32 1.0, %v4543
      %v4545 = vxor.u32 %v4536, 2147483648
      %v4546 = vmul.f32 %v4545, 1.442695
      %v4547 = vpow.pop %v4546
      %v4548 = vadd.f32 %v4547, 1.0
      %v4549 = vrcp.pop %v4548
      %v4550 = vmul.f32 1.0, %v4549
      %v4551 = vtanh.pop %v4537
      %v4552 = vxor.u32 %v4538, 2147483648
      %v4553 = vmul.f32 %v4552, 1.442695
      %v4554 = vpow.pop %v4553
      %v4555 = vadd.f32 %v4554, 1.0
      %v4556 = vrcp.pop %v4555
      %v4557 = vmul.f32 1.0, %v4556
      %v4558 = vmul.f32 %v4550, %v4385
      %v4559 = vmul.f32 %v4544, %v4551
      %v4560 = vadd.f32 %v4558, %v4559
      %v4561 = vtanh.pop %v4560
      %v4562 = vmul.f32 %v4557, %v4561
    $region247: #{summarizer_forward.1} parent=1 // loop_footer
      %s4383 = sadd.s32 1, %s4379
    $region248: #{summarizer_forward.1} parent=1 // loop_footer_branch
      %4378 = sbr.rel target = $region244
    $region249: #{summarizer_forward.1} parent=1 // loop_exit
      _
    %v4563 = vld [vmem:[#allocation32] sm:$0xff]
    %v4564 = vld [vmem:[#allocation32 + $0x8] sm:$0xff]
    %v4565 = vld [vmem:[#allocation32 + $0x10] sm:$0xff]
    %v4566 = vld [vmem:[#allocation32 + $0x18] sm:$0xff]
    %v4567 = vld [vmem:[#allocation32 + $0x20] sm:$0xff]
    %v4568 = vld [vmem:[#allocation32 + $0x28] sm:$0xff]
    %v4569 = vld [vmem:[#allocation32 + $0x30] sm:$0xff]
    %v4570 = vld [vmem:[#allocation32 + $0x38] sm:$0xff]
    %v4571 = vld [vmem:[#allocation32 + $0x40] sm:$0xff]
    %v4572 = vld [vmem:[#allocation32 + $0x48] sm:$0xff]
    %v4573 = vld [vmem:[#allocation32 + $0x50] sm:$0xff]
    %v4574 = vld [vmem:[#allocation32 + $0x58] sm:$0xff]
    %v4575 = vld [vmem:[#allocation32 + $0x60] sm:$0xff]
    %v4576 = vld [vmem:[#allocation32 + $0x68] sm:$0xff]
    %v4577 = vld [vmem:[#allocation32 + $0x70] sm:$0xff]
    %v4578 = vld [vmem:[#allocation32 + $0x78] sm:$0xff]
    %v4579 = vld [vmem:[%s47] sm:$0x1]
    %v4581 = vlaneseq
    %v4582 = vshrl.u32 %v4581, 7
    %v4583 = vsub.s32 0, %v4582
    %v4584 = vrot.slane %v4579, %v4583
    %4586 = vmatprep.subr.mxu0 0.0
    %4587 = vmatpush1.msra.mxu0 %v4563
    %4588 = vmatprep.subr.mxu0 0.0
    %4589 = vmatpush1.msra.mxu0 %v4564
    %4590 = vmatprep.subr.mxu0 0.0
    %4591 = vmatpush1.msra.mxu0 %v4565
    %4592 = vmatprep.subr.mxu0 0.0
    %4593 = vmatpush1.msra.mxu0 %v4566
    %4594 = vmatprep.subr.mxu0 0.0
    %4595 = vmatpush1.msra.mxu0 %v4567
    %4596 = vmatprep.subr.mxu0 0.0
    %4597 = vmatpush1.msra.mxu0 %v4568
    %4598 = vmatprep.subr.mxu0 0.0
    %4599 = vmatpush1.msra.mxu0 %v4569
    %4600 = vmatprep.subr.mxu0 0.0
    %4601 = vmatpush1.msra.mxu0 %v4570
    %4602 = vmatprep.subr.mxu0 0.0
    %4603 = vmatpush1.msra.mxu0 %v4571
    %4604 = vmatprep.subr.mxu0 0.0
    %4605 = vmatpush1.msra.mxu0 %v4572
    %4606 = vmatprep.subr.mxu0 0.0
    %4607 = vmatpush1.msra.mxu0 %v4573
    %4608 = vmatprep.subr.mxu0 0.0
    %4609 = vmatpush1.msra.mxu0 %v4574
    %4610 = vmatprep.subr.mxu0 0.0
    %4611 = vmatpush1.msra.mxu0 %v4575
    %4612 = vmatprep.subr.mxu0 0.0
    %4613 = vmatpush1.msra.mxu0 %v4576
    %4614 = vmatprep.subr.mxu0 0.0
    %4615 = vmatpush1.msra.mxu0 %v4577
    %4616 = vmatprep.subr.mxu0 0.0
    %4617 = vmatpush1.msra.mxu0 %v4578
    %4618 = vmatprep.subr.mxu0 0.0
    %4619 = vmatpush1.msra.mxu0 0.0
    %4620 = vmatprep.subr.mxu0 0.0
    %4621 = vmatpush1.msra.mxu0 0.0
    %4622 = vmatprep.subr.mxu0 0.0
    %4623 = vmatpush1.msra.mxu0 0.0
    %4624 = vmatprep.subr.mxu0 0.0
    %4625 = vmatpush1.msra.mxu0 0.0
    %4626 = vmatprep.subr.mxu0 0.0
    %4627 = vmatpush1.msra.mxu0 0.0
    %4628 = vmatprep.subr.mxu0 0.0
    %4629 = vmatpush1.msra.mxu0 0.0
    %4630 = vmatprep.subr.mxu0 0.0
    %4631 = vmatpush1.msra.mxu0 0.0
    %4632 = vmatprep.subr.mxu0 0.0
    %4633 = vmatpush1.msra.mxu0 0.0
    %4634 = vmatprep.subr.mxu0 0.0
    %4635 = vmatpush1.msra.mxu0 0.0
    %4636 = vmatprep.subr.mxu0 0.0
    %4637 = vmatpush1.msra.mxu0 0.0
    %4638 = vmatprep.subr.mxu0 0.0
    %4639 = vmatpush1.msra.mxu0 0.0
    %4640 = vmatprep.subr.mxu0 0.0
    %4641 = vmatpush1.msra.mxu0 0.0
    %4642 = vmatprep.subr.mxu0 0.0
    %4643 = vmatpush1.msra.mxu0 0.0
    %4644 = vmatprep.subr.mxu0 0.0
    %4645 = vmatpush1.msra.mxu0 0.0
    %4646 = vmatprep.subr.mxu0 0.0
    %4647 = vmatpush1.msra.mxu0 0.0
    %4648 = vmatprep.subr.mxu0 0.0
    %4649 = vmatpush1.msra.mxu0 0.0
    %4650 = vmatprep.mubr.f32.mxu0 0.0
    %4651 = vmatmul.mubr.f32.gmra.mrb[0].mxu0 %v3780
    %v4652 = vpop.f32.mrb[0].mxu0
    %v4653 = vadd.f32 %v4584, %v4652
    %v4654 = vpop.f32.mrb[0].mxu0
    %4655 = vmatprep.mubr.f32.mxu0 0.0
    %4656 = vmatmul.mubr.f32.gmra.mrb[0].mxu0 %v4384
    %v4657 = vpop.f32.mrb[0].mxu0
    %v4658 = vadd.f32 %v4584, %v4657
    %v4659 = vpop.f32.mrb[0].mxu0
    %4660 = vdwg.mxu0
    %v4661 = vld [vmem:[#allocation34] sm:$0xff]
    %v4662 = vld [vmem:[#allocation34 + $0x8] sm:$0xff]
    %v4663 = vld [vmem:[#allocation34 + $0x10] sm:$0xff]
    %v4664 = vld [vmem:[#allocation34 + $0x18] sm:$0xff]
    %v4665 = vld [vmem:[#allocation34 + $0x20] sm:$0xff]
    %v4666 = vld [vmem:[#allocation34 + $0x28] sm:$0xff]
    %v4667 = vld [vmem:[#allocation34 + $0x30] sm:$0xff]
    %v4668 = vld [vmem:[#allocation34 + $0x38] sm:$0xff]
    %v4669 = vld [vmem:[#allocation34 + $0x40] sm:$0xff]
    %v4670 = vld [vmem:[#allocation34 + $0x48] sm:$0xff]
    %v4671 = vld [vmem:[#allocation34 + $0x50] sm:$0xff]
    %v4672 = vld [vmem:[#allocation34 + $0x58] sm:$0xff]
    %v4673 = vld [vmem:[#allocation34 + $0x60] sm:$0xff]
    %v4674 = vld [vmem:[#allocation34 + $0x68] sm:$0xff]
    %v4675 = vld [vmem:[#allocation34 + $0x70] sm:$0xff]
    %v4676 = vld [vmem:[#allocation34 + $0x78] sm:$0xff]
    %v4677 = vld [vmem:[%s51] sm:$0x1]
    %v4679 = vlaneseq
    %v4680 = vshrl.u32 %v4679, 7
    %v4681 = vsub.s32 0, %v4680
    %v4682 = vrot.slane %v4677, %v4681
    %4684 = vmatprep.subr.mxu0 0.0
    %4685 = vmatpush1.msra.mxu0 %v4661
    %4686 = vmatprep.subr.mxu0 0.0
    %4687 = vmatpush1.msra.mxu0 %v4662
    %4688 = vmatprep.subr.mxu0 0.0
    %4689 = vmatpush1.msra.mxu0 %v4663
    %4690 = vmatprep.subr.mxu0 0.0
    %4691 = vmatpush1.msra.mxu0 %v4664
    %4692 = vmatprep.subr.mxu0 0.0
    %4693 = vmatpush1.msra.mxu0 %v4665
    %4694 = vmatprep.subr.mxu0 0.0
    %4695 = vmatpush1.msra.mxu0 %v4666
    %4696 = vmatprep.subr.mxu0 0.0
    %4697 = vmatpush1.msra.mxu0 %v4667
    %4698 = vmatprep.subr.mxu0 0.0
    %4699 = vmatpush1.msra.mxu0 %v4668
    %4700 = vmatprep.subr.mxu0 0.0
    %4701 = vmatpush1.msra.mxu0 %v4669
    %4702 = vmatprep.subr.mxu0 0.0
    %4703 = vmatpush1.msra.mxu0 %v4670
    %4704 = vmatprep.subr.mxu0 0.0
    %4705 = vmatpush1.msra.mxu0 %v4671
    %4706 = vmatprep.subr.mxu0 0.0
    %4707 = vmatpush1.msra.mxu0 %v4672
    %4708 = vmatprep.subr.mxu0 0.0
    %4709 = vmatpush1.msra.mxu0 %v4673
    %4710 = vmatprep.subr.mxu0 0.0
    %4711 = vmatpush1.msra.mxu0 %v4674
    %4712 = vmatprep.subr.mxu0 0.0
    %4713 = vmatpush1.msra.mxu0 %v4675
    %4714 = vmatprep.subr.mxu0 0.0
    %4715 = vmatpush1.msra.mxu0 %v4676
    %4716 = vmatprep.subr.mxu0 0.0
    %4717 = vmatpush1.msra.mxu0 0.0
    %4718 = vmatprep.subr.mxu0 0.0
    %4719 = vmatpush1.msra.mxu0 0.0
    %4720 = vmatprep.subr.mxu0 0.0
    %4721 = vmatpush1.msra.mxu0 0.0
    %4722 = vmatprep.subr.mxu0 0.0
    %4723 = vmatpush1.msra.mxu0 0.0
    %4724 = vmatprep.subr.mxu0 0.0
    %4725 = vmatpush1.msra.mxu0 0.0
    %4726 = vmatprep.subr.mxu0 0.0
    %4727 = vmatpush1.msra.mxu0 0.0
    %4728 = vmatprep.subr.mxu0 0.0
    %4729 = vmatpush1.msra.mxu0 0.0
    %4730 = vmatprep.subr.mxu0 0.0
    %4731 = vmatpush1.msra.mxu0 0.0
    %4732 = vmatprep.subr.mxu0 0.0
    %4733 = vmatpush1.msra.mxu0 0.0
    %4734 = vmatprep.subr.mxu0 0.0
    %4735 = vmatpush1.msra.mxu0 0.0
    %4736 = vmatprep.subr.mxu0 0.0
    %4737 = vmatpush1.msra.mxu0 0.0
    %4738 = vmatprep.subr.mxu0 0.0
    %4739 = vmatpush1.msra.mxu0 0.0
    %4740 = vmatprep.subr.mxu0 0.0
    %4741 = vmatpush1.msra.mxu0 0.0
    %4742 = vmatprep.subr.mxu0 0.0
    %4743 = vmatpush1.msra.mxu0 0.0
    %4744 = vmatprep.subr.mxu0 0.0
    %4745 = vmatpush1.msra.mxu0 0.0
    %4746 = vmatprep.subr.mxu0 0.0
    %4747 = vmatpush1.msra.mxu0 0.0
    %4748 = vmatprep.mubr.f32.mxu0 0.0
    %4749 = vmatmul.mubr.f32.gmra.mrb[0].mxu0 %v3780
    %v4750 = vpop.f32.mrb[0].mxu0
    %v4751 = vadd.f32 %v4682, %v4750
    %v4752 = vpop.f32.mrb[0].mxu0
    %4753 = vmatprep.mubr.f32.mxu0 0.0
    %4754 = vmatmul.mubr.f32.gmra.mrb[0].mxu0 %v4384
    %v4755 = vpop.f32.mrb[0].mxu0
    %v4756 = vadd.f32 %v4682, %v4755
    %v4757 = vpop.f32.mrb[0].mxu0
    %4758 = vdwg.mxu0
    %4759 = vst [vmem:[#allocation45] sm:$0xff] %v4653
    %4760 = vst [vmem:[#allocation45 + $0x8] sm:$0xff] %v4658
    %4761 = vst [vmem:[#allocation47] sm:$0xff] %v4751
    %4762 = vst [vmem:[#allocation47 + $0x8] sm:$0xff] %v4756
    %v4763 = vld [vmem:[%s3] sm:$0xff]
    %v4764 = vld [vmem:[%s3 + $0x8] sm:$0xff]
    %v4765 = vmul.f32 %v4751, 0.5
    %v4766 = vmul.f32 %v4756, 0.5
    %v4767 = vmul.f32 %v4765, 1.442695
    %v4768 = vpow.pop %v4767
    %v4769 = vmul.f32 %v4766, 1.442695
    %v4770 = vpow.pop %v4769
    %v4771 = vmul.f32 %v4763, %v4768
    %v4772 = vmul.f32 %v4764, %v4770
    %v4773 = vadd.f32 %v4653, %v4771
    %v4774 = vadd.f32 %v4658, %v4772
    %v4775 = vld [vmem:[#allocation35] sm:$0xff]
    %v4776 = vld [vmem:[#allocation35 + $0x8] sm:$0xff]
    %v4777 = vld [vmem:[#allocation35 + $0x10] sm:$0xff]
    %v4778 = vld [vmem:[#allocation35 + $0x18] sm:$0xff]
    %v4779 = vld [vmem:[#allocation35 + $0x20] sm:$0xff]
    %v4780 = vld [vmem:[#allocation35 + $0x28] sm:$0xff]
    %v4781 = vld [vmem:[#allocation35 + $0x30] sm:$0xff]
    %v4782 = vld [vmem:[#allocation35 + $0x38] sm:$0xff]
    %v4783 = vld [vmem:[#allocation35 + $0x40] sm:$0xff]
    %v4784 = vld [vmem:[#allocation35 + $0x48] sm:$0xff]
    %v4785 = vld [vmem:[#allocation35 + $0x50] sm:$0xff]
    %v4786 = vld [vmem:[#allocation35 + $0x58] sm:$0xff]
    %v4787 = vld [vmem:[#allocation35 + $0x60] sm:$0xff]
    %v4788 = vld [vmem:[#allocation35 + $0x68] sm:$0xff]
    %v4789 = vld [vmem:[#allocation35 + $0x70] sm:$0xff]
    %v4790 = vld [vmem:[#allocation35 + $0x78] sm:$0xff]
    %v4791 = vld [vmem:[#allocation35 + $0x80] sm:$0xff]
    %v4792 = vld [vmem:[#allocation35 + $0x88] sm:$0xff]
    %v4793 = vld [vmem:[#allocation35 + $0x90] sm:$0xff]
    %v4794 = vld [vmem:[#allocation35 + $0x98] sm:$0xff]
    %v4795 = vld [vmem:[#allocation35 + $0xa0] sm:$0xff]
    %v4796 = vld [vmem:[#allocation35 + $0xa8] sm:$0xff]
    %v4797 = vld [vmem:[#allocation35 + $0xb0] sm:$0xff]
    %v4798 = vld [vmem:[#allocation35 + $0xb8] sm:$0xff]
    %v4799 = vld [vmem:[#allocation35 + $0xc0] sm:$0xff]
    %v4800 = vld [vmem:[#allocation35 + $0xc8] sm:$0xff]
    %v4801 = vld [vmem:[#allocation35 + $0xd0] sm:$0xff]
    %v4802 = vld [vmem:[#allocation35 + $0xd8] sm:$0xff]
    %v4803 = vld [vmem:[#allocation35 + $0xe0] sm:$0xff]
    %v4804 = vld [vmem:[#allocation35 + $0xe8] sm:$0xff]
    %v4805 = vld [vmem:[#allocation35 + $0xf0] sm:$0xff]
    %v4806 = vld [vmem:[#allocation35 + $0xf8] sm:$0xff]
    %v4807 = vld [vmem:[#allocation35 + $0x100] sm:$0xff]
    %v4808 = vld [vmem:[#allocation35 + $0x108] sm:$0xff]
    %v4809 = vld [vmem:[#allocation35 + $0x110] sm:$0xff]
    %v4810 = vld [vmem:[#allocation35 + $0x118] sm:$0xff]
    %v4811 = vld [vmem:[#allocation35 + $0x120] sm:$0xff]
    %v4812 = vld [vmem:[#allocation35 + $0x128] sm:$0xff]
    %v4813 = vld [vmem:[#allocation35 + $0x130] sm:$0xff]
    %v4814 = vld [vmem:[#allocation35 + $0x138] sm:$0xff]
    %v4815 = vld [vmem:[#allocation35 + $0x140] sm:$0xff]
    %v4816 = vld [vmem:[#allocation35 + $0x148] sm:$0xff]
    %v4817 = vld [vmem:[#allocation35 + $0x150] sm:$0xff]
    %v4818 = vld [vmem:[#allocation35 + $0x158] sm:$0xff]
    %v4819 = vld [vmem:[#allocation35 + $0x160] sm:$0xff]
    %v4820 = vld [vmem:[#allocation35 + $0x168] sm:$0xff]
    %v4821 = vld [vmem:[#allocation35 + $0x170] sm:$0xff]
    %v4822 = vld [vmem:[#allocation35 + $0x178] sm:$0xff]
    %v4823 = vld [vmem:[#allocation35 + $0x180] sm:$0xff]
    %v4824 = vld [vmem:[#allocation35 + $0x188] sm:$0xff]
    %v4825 = vld [vmem:[#allocation35 + $0x190] sm:$0xff]
    %v4826 = vld [vmem:[#allocation35 + $0x198] sm:$0xff]
    %v4827 = vld [vmem:[#allocation35 + $0x1a0] sm:$0xff]
    %v4828 = vld [vmem:[#allocation35 + $0x1a8] sm:$0xff]
    %v4829 = vld [vmem:[#allocation35 + $0x1b0] sm:$0xff]
    %v4830 = vld [vmem:[#allocation35 + $0x1b8] sm:$0xff]
    %v4831 = vld [vmem:[#allocation35 + $0x1c0] sm:$0xff]
    %v4832 = vld [vmem:[#allocation35 + $0x1c8] sm:$0xff]
    %v4833 = vld [vmem:[#allocation35 + $0x1d0] sm:$0xff]
    %v4834 = vld [vmem:[#allocation35 + $0x1d8] sm:$0xff]
    %v4835 = vld [vmem:[#allocation35 + $0x1e0] sm:$0xff]
    %v4836 = vld [vmem:[#allocation35 + $0x1e8] sm:$0xff]
    %v4837 = vld [vmem:[#allocation35 + $0x1f0] sm:$0xff]
    %v4838 = vld [vmem:[#allocation35 + $0x1f8] sm:$0xff]
    %v4839 = vld [vmem:[#allocation35 + $0x200] sm:$0xff]
    %v4840 = vld [vmem:[#allocation35 + $0x208] sm:$0xff]
    %v4841 = vld [vmem:[#allocation35 + $0x210] sm:$0xff]
    %v4842 = vld [vmem:[#allocation35 + $0x218] sm:$0xff]
    %v4843 = vld [vmem:[#allocation35 + $0x220] sm:$0xff]
    %v4844 = vld [vmem:[#allocation35 + $0x228] sm:$0xff]
    %v4845 = vld [vmem:[#allocation35 + $0x230] sm:$0xff]
    %v4846 = vld [vmem:[#allocation35 + $0x238] sm:$0xff]
    %v4847 = vld [vmem:[#allocation35 + $0x240] sm:$0xff]
    %v4848 = vld [vmem:[#allocation35 + $0x248] sm:$0xff]
    %v4849 = vld [vmem:[#allocation35 + $0x250] sm:$0xff]
    %v4850 = vld [vmem:[#allocation35 + $0x258] sm:$0xff]
    %v4851 = vld [vmem:[#allocation35 + $0x260] sm:$0xff]
    %v4852 = vld [vmem:[#allocation35 + $0x268] sm:$0xff]
    %v4853 = vld [vmem:[#allocation35 + $0x270] sm:$0xff]
    %v4854 = vld [vmem:[#allocation35 + $0x278] sm:$0xff]
    %v4855 = vld [vmem:[#allocation35 + $0x280] sm:$0xff]
    %v4856 = vld [vmem:[#allocation35 + $0x288] sm:$0xff]
    %v4857 = vld [vmem:[#allocation35 + $0x290] sm:$0xff]
    %v4858 = vld [vmem:[#allocation35 + $0x298] sm:$0xff]
    %v4859 = vld [vmem:[#allocation35 + $0x2a0] sm:$0xff]
    %v4860 = vld [vmem:[#allocation35 + $0x2a8] sm:$0xff]
    %v4861 = vld [vmem:[#allocation35 + $0x2b0] sm:$0xff]
    %v4862 = vld [vmem:[#allocation35 + $0x2b8] sm:$0xff]
    %v4863 = vld [vmem:[#allocation35 + $0x2c0] sm:$0xff]
    %v4864 = vld [vmem:[#allocation35 + $0x2c8] sm:$0xff]
    %v4865 = vld [vmem:[#allocation35 + $0x2d0] sm:$0xff]
    %v4866 = vld [vmem:[#allocation35 + $0x2d8] sm:$0xff]
    %v4867 = vld [vmem:[#allocation35 + $0x2e0] sm:$0xff]
    %v4868 = vld [vmem:[#allocation35 + $0x2e8] sm:$0xff]
    %v4869 = vld [vmem:[#allocation35 + $0x2f0] sm:$0xff]
    %v4870 = vld [vmem:[#allocation35 + $0x2f8] sm:$0xff]
    %v4871 = vld [vmem:[#allocation35 + $0x300] sm:$0xff]
    %v4872 = vld [vmem:[#allocation35 + $0x308] sm:$0xff]
    %v4873 = vld [vmem:[#allocation35 + $0x310] sm:$0xff]
    %v4874 = vld [vmem:[#allocation35 + $0x318] sm:$0xff]
    %v4875 = vld [vmem:[#allocation35 + $0x320] sm:$0xff]
    %v4876 = vld [vmem:[#allocation35 + $0x328] sm:$0xff]
    %v4877 = vld [vmem:[#allocation35 + $0x330] sm:$0xff]
    %v4878 = vld [vmem:[#allocation35 + $0x338] sm:$0xff]
    %v4879 = vld [vmem:[#allocation35 + $0x340] sm:$0xff]
    %v4880 = vld [vmem:[#allocation35 + $0x348] sm:$0xff]
    %v4881 = vld [vmem:[#allocation35 + $0x350] sm:$0xff]
    %v4882 = vld [vmem:[#allocation35 + $0x358] sm:$0xff]
    %v4883 = vld [vmem:[#allocation35 + $0x360] sm:$0xff]
    %v4884 = vld [vmem:[#allocation35 + $0x368] sm:$0xff]
    %v4885 = vld [vmem:[#allocation35 + $0x370] sm:$0xff]
    %v4886 = vld [vmem:[#allocation35 + $0x378] sm:$0xff]
    %v4887 = vld [vmem:[#allocation35 + $0x380] sm:$0xff]
    %v4888 = vld [vmem:[#allocation35 + $0x388] sm:$0xff]
    %v4889 = vld [vmem:[#allocation35 + $0x390] sm:$0xff]
    %v4890 = vld [vmem:[#allocation35 + $0x398] sm:$0xff]
    %v4891 = vld [vmem:[#allocation35 + $0x3a0] sm:$0xff]
    %v4892 = vld [vmem:[#allocation35 + $0x3a8] sm:$0xff]
    %v4893 = vld [vmem:[#allocation35 + $0x3b0] sm:$0xff]
    %v4894 = vld [vmem:[#allocation35 + $0x3b8] sm:$0xff]
    %v4895 = vld [vmem:[#allocation35 + $0x3c0] sm:$0xff]
    %v4896 = vld [vmem:[#allocation35 + $0x3c8] sm:$0xff]
    %v4897 = vld [vmem:[#allocation35 + $0x3d0] sm:$0xff]
    %v4898 = vld [vmem:[#allocation35 + $0x3d8] sm:$0xff]
    %v4899 = vld [vmem:[#allocation35 + $0x3e0] sm:$0xff]
    %v4900 = vld [vmem:[#allocation35 + $0x3e8] sm:$0xff]
    %v4901 = vld [vmem:[#allocation35 + $0x3f0] sm:$0xff]
    %v4902 = vld [vmem:[#allocation35 + $0x3f8] sm:$0xff]
    %v4903 = vld [vmem:[#allocation37] sm:$0xf]
    %v4904 = vld [vmem:[#allocation38] sm:$0xff]
    %v4905 = vld [vmem:[#allocation38 + $0x8] sm:$0xff]
    %v4906 = vld [vmem:[#allocation38 + $0x10] sm:$0xff]
    %v4907 = vld [vmem:[#allocation38 + $0x18] sm:$0xff]
    %v4908 = vld [vmem:[#allocation38 + $0x20] sm:$0xff]
    %v4909 = vld [vmem:[#allocation38 + $0x28] sm:$0xff]
    %v4910 = vld [vmem:[#allocation38 + $0x30] sm:$0xff]
    %v4911 = vld [vmem:[#allocation38 + $0x38] sm:$0xff]
    %v4912 = vld [vmem:[#allocation38 + $0x40] sm:$0xff]
    %v4913 = vld [vmem:[#allocation38 + $0x48] sm:$0xff]
    %v4914 = vld [vmem:[#allocation38 + $0x50] sm:$0xff]
    %v4915 = vld [vmem:[#allocation38 + $0x58] sm:$0xff]
    %v4916 = vld [vmem:[#allocation38 + $0x60] sm:$0xff]
    %v4917 = vld [vmem:[#allocation38 + $0x68] sm:$0xff]
    %v4918 = vld [vmem:[#allocation38 + $0x70] sm:$0xff]
    %v4919 = vld [vmem:[#allocation38 + $0x78] sm:$0xff]
    %v4920 = vld [vmem:[#allocation38 + $0x80] sm:$0xff]
    %v4921 = vld [vmem:[#allocation38 + $0x88] sm:$0xff]
    %v4922 = vld [vmem:[#allocation38 + $0x90] sm:$0xff]
    %v4923 = vld [vmem:[#allocation38 + $0x98] sm:$0xff]
    %v4924 = vld [vmem:[#allocation38 + $0xa0] sm:$0xff]
    %v4925 = vld [vmem:[#allocation38 + $0xa8] sm:$0xff]
    %v4926 = vld [vmem:[#allocation38 + $0xb0] sm:$0xff]
    %v4927 = vld [vmem:[#allocation38 + $0xb8] sm:$0xff]
    %v4928 = vld [vmem:[#allocation38 + $0xc0] sm:$0xff]
    %v4929 = vld [vmem:[#allocation38 + $0xc8] sm:$0xff]
    %v4930 = vld [vmem:[#allocation38 + $0xd0] sm:$0xff]
    %v4931 = vld [vmem:[#allocation38 + $0xd8] sm:$0xff]
    %v4932 = vld [vmem:[#allocation38 + $0xe0] sm:$0xff]
    %v4933 = vld [vmem:[#allocation38 + $0xe8] sm:$0xff]
    %v4934 = vld [vmem:[#allocation38 + $0xf0] sm:$0xff]
    %v4935 = vld [vmem:[#allocation38 + $0xf8] sm:$0xff]
    %v4936 = vld [vmem:[#allocation38 + $0x100] sm:$0xff]
    %v4937 = vld [vmem:[#allocation38 + $0x108] sm:$0xff]
    %v4938 = vld [vmem:[#allocation38 + $0x110] sm:$0xff]
    %v4939 = vld [vmem:[#allocation38 + $0x118] sm:$0xff]
    %v4940 = vld [vmem:[#allocation38 + $0x120] sm:$0xff]
    %v4941 = vld [vmem:[#allocation38 + $0x128] sm:$0xff]
    %v4942 = vld [vmem:[#allocation38 + $0x130] sm:$0xff]
    %v4943 = vld [vmem:[#allocation38 + $0x138] sm:$0xff]
    %v4944 = vld [vmem:[#allocation38 + $0x140] sm:$0xff]
    %v4945 = vld [vmem:[#allocation38 + $0x148] sm:$0xff]
    %v4946 = vld [vmem:[#allocation38 + $0x150] sm:$0xff]
    %v4947 = vld [vmem:[#allocation38 + $0x158] sm:$0xff]
    %v4948 = vld [vmem:[#allocation38 + $0x160] sm:$0xff]
    %v4949 = vld [vmem:[#allocation38 + $0x168] sm:$0xff]
    %v4950 = vld [vmem:[#allocation38 + $0x170] sm:$0xff]
    %v4951 = vld [vmem:[#allocation38 + $0x178] sm:$0xff]
    %v4952 = vld [vmem:[#allocation38 + $0x180] sm:$0xff]
    %v4953 = vld [vmem:[#allocation38 + $0x188] sm:$0xff]
    %v4954 = vld [vmem:[#allocation38 + $0x190] sm:$0xff]
    %v4955 = vld [vmem:[#allocation38 + $0x198] sm:$0xff]
    %v4956 = vld [vmem:[#allocation38 + $0x1a0] sm:$0xff]
    %v4957 = vld [vmem:[#allocation38 + $0x1a8] sm:$0xff]
    %v4958 = vld [vmem:[#allocation38 + $0x1b0] sm:$0xff]
    %v4959 = vld [vmem:[#allocation38 + $0x1b8] sm:$0xff]
    %v4960 = vld [vmem:[#allocation38 + $0x1c0] sm:$0xff]
    %v4961 = vld [vmem:[#allocation38 + $0x1c8] sm:$0xff]
    %v4962 = vld [vmem:[#allocation38 + $0x1d0] sm:$0xff]
    %v4963 = vld [vmem:[#allocation38 + $0x1d8] sm:$0xff]
    %v4964 = vld [vmem:[#allocation38 + $0x1e0] sm:$0xff]
    %v4965 = vld [vmem:[#allocation38 + $0x1e8] sm:$0xff]
    %v4966 = vld [vmem:[#allocation38 + $0x1f0] sm:$0xff]
    %v4967 = vld [vmem:[#allocation38 + $0x1f8] sm:$0xff]
    %v4968 = vld [vmem:[#allocation38 + $0x200] sm:$0xff]
    %v4969 = vld [vmem:[#allocation38 + $0x208] sm:$0xff]
    %v4970 = vld [vmem:[#allocation38 + $0x210] sm:$0xff]
    %v4971 = vld [vmem:[#allocation38 + $0x218] sm:$0xff]
    %v4972 = vld [vmem:[#allocation38 + $0x220] sm:$0xff]
    %v4973 = vld [vmem:[#allocation38 + $0x228] sm:$0xff]
    %v4974 = vld [vmem:[#allocation38 + $0x230] sm:$0xff]
    %v4975 = vld [vmem:[#allocation38 + $0x238] sm:$0xff]
    %v4976 = vld [vmem:[#allocation38 + $0x240] sm:$0xff]
    %v4977 = vld [vmem:[#allocation38 + $0x248] sm:$0xff]
    %v4978 = vld [vmem:[#allocation38 + $0x250] sm:$0xff]
    %v4979 = vld [vmem:[#allocation38 + $0x258] sm:$0xff]
    %v4980 = vld [vmem:[#allocation38 + $0x260] sm:$0xff]
    %v4981 = vld [vmem:[#allocation38 + $0x268] sm:$0xff]
    %v4982 = vld [vmem:[#allocation38 + $0x270] sm:$0xff]
    %v4983 = vld [vmem:[#allocation38 + $0x278] sm:$0xff]
    %v4984 = vld [vmem:[#allocation38 + $0x280] sm:$0xff]
    %v4985 = vld [vmem:[#allocation38 + $0x288] sm:$0xff]
    %v4986 = vld [vmem:[#allocation38 + $0x290] sm:$0xff]
    %v4987 = vld [vmem:[#allocation38 + $0x298] sm:$0xff]
    %v4988 = vld [vmem:[#allocation38 + $0x2a0] sm:$0xff]
    %v4989 = vld [vmem:[#allocation38 + $0x2a8] sm:$0xff]
    %v4990 = vld [vmem:[#allocation38 + $0x2b0] sm:$0xff]
    %v4991 = vld [vmem:[#allocation38 + $0x2b8] sm:$0xff]
    %v4992 = vld [vmem:[#allocation38 + $0x2c0] sm:$0xff]
    %v4993 = vld [vmem:[#allocation38 + $0x2c8] sm:$0xff]
    %v4994 = vld [vmem:[#allocation38 + $0x2d0] sm:$0xff]
    %v4995 = vld [vmem:[#allocation38 + $0x2d8] sm:$0xff]
    %v4996 = vld [vmem:[#allocation38 + $0x2e0] sm:$0xff]
    %v4997 = vld [vmem:[#allocation38 + $0x2e8] sm:$0xff]
    %v4998 = vld [vmem:[#allocation38 + $0x2f0] sm:$0xff]
    %v4999 = vld [vmem:[#allocation38 + $0x2f8] sm:$0xff]
    %v5000 = vld [vmem:[#allocation38 + $0x300] sm:$0xff]
    %v5001 = vld [vmem:[#allocation38 + $0x308] sm:$0xff]
    %v5002 = vld [vmem:[#allocation38 + $0x310] sm:$0xff]
    %v5003 = vld [vmem:[#allocation38 + $0x318] sm:$0xff]
    %v5004 = vld [vmem:[#allocation38 + $0x320] sm:$0xff]
    %v5005 = vld [vmem:[#allocation38 + $0x328] sm:$0xff]
    %v5006 = vld [vmem:[#allocation38 + $0x330] sm:$0xff]
    %v5007 = vld [vmem:[#allocation38 + $0x338] sm:$0xff]
    %v5008 = vld [vmem:[#allocation38 + $0x340] sm:$0xff]
    %v5009 = vld [vmem:[#allocation38 + $0x348] sm:$0xff]
    %v5010 = vld [vmem:[#allocation38 + $0x350] sm:$0xff]
    %v5011 = vld [vmem:[#allocation38 + $0x358] sm:$0xff]
    %v5012 = vld [vmem:[#allocation38 + $0x360] sm:$0xff]
    %v5013 = vld [vmem:[#allocation38 + $0x368] sm:$0xff]
    %v5014 = vld [vmem:[#allocation38 + $0x370] sm:$0xff]
    %v5015 = vld [vmem:[#allocation38 + $0x378] sm:$0xff]
    %v5016 = vld [vmem:[#allocation38 + $0x380] sm:$0xff]
    %v5017 = vld [vmem:[#allocation38 + $0x388] sm:$0xff]
    %v5018 = vld [vmem:[#allocation38 + $0x390] sm:$0xff]
    %v5019 = vld [vmem:[#allocation38 + $0x398] sm:$0xff]
    %v5020 = vld [vmem:[#allocation38 + $0x3a0] sm:$0xff]
    %v5021 = vld [vmem:[#allocation38 + $0x3a8] sm:$0xff]
    %v5022 = vld [vmem:[#allocation38 + $0x3b0] sm:$0xff]
    %v5023 = vld [vmem:[#allocation38 + $0x3b8] sm:$0xff]
    %v5024 = vld [vmem:[#allocation38 + $0x3c0] sm:$0xff]
    %v5025 = vld [vmem:[#allocation38 + $0x3c8] sm:$0xff]
    %v5026 = vld [vmem:[#allocation38 + $0x3d0] sm:$0xff]
    %v5027 = vld [vmem:[#allocation38 + $0x3d8] sm:$0xff]
    %v5028 = vld [vmem:[#allocation38 + $0x3e0] sm:$0xff]
    %v5029 = vld [vmem:[#allocation38 + $0x3e8] sm:$0xff]
    %v5030 = vld [vmem:[#allocation38 + $0x3f0] sm:$0xff]
    %v5031 = vld [vmem:[#allocation38 + $0x3f8] sm:$0xff]
    %v5032 = vld [vmem:[#allocation40] sm:$0xf]
    loop: start=0, step=1, limit=8
    $region250: #{summarizer_forward.1} parent=1 // loop_pre_header
      _
    $region251: #{summarizer_forward.1} parent=1 // loop_header
      %s5034 = sphi 0, %s5038
      %p5035 = scmp.ge.s32.totalorder %s5034, 8
      %v5039 = vphi 0.0, %v5417
      %v5040 = vphi %v4773, %v5230
      %v5041 = vphi %v3781, %v5228
      %v5042 = vphi %v4774, %v5417
      %v5043 = vphi %v4385, %v5415
    $region252: #{summarizer_forward.1} parent=1 // loop_header_branch
      %5037 = sbr.rel (%p5035) target = $region256
    $region253: #{summarizer_forward.1} parent=1 // loop_body
      %v5045 = vlaneseq
      %v5046 = vshrl.u32 %v5045, 7
      %v5047 = vsub.s32 0, %v5046
      %v5048 = vrot.slane %v4903, %v5047
      %v5049 = vlaneseq
      %v5050 = vshrl.u32 %v5049, 7
      %v5051 = vsub.s32 1, %v5050
      %v5052 = vrot.slane %v4903, %v5051
      %v5053 = vlaneseq
      %v5054 = vshrl.u32 %v5053, 7
      %v5055 = vsub.s32 2, %v5054
      %v5056 = vrot.slane %v4903, %v5055
      %v5057 = vlaneseq
      %v5058 = vshrl.u32 %v5057, 7
      %v5059 = vsub.s32 3, %v5058
      %v5060 = vrot.slane %v4903, %v5059
      %5065 = vmatprep.subr.mxu0 %v4776
      %5066 = vmatpush1.msra.mxu0 %v4775
      %5067 = vmatprep.subr.mxu0 %v4780
      %5068 = vmatpush1.msra.mxu0 %v4779
      %5069 = vmatprep.subr.mxu0 %v4784
      %5070 = vmatpush1.msra.mxu0 %v4783
      %5071 = vmatprep.subr.mxu0 %v4788
      %5072 = vmatpush1.msra.mxu0 %v4787
      %5073 = vmatprep.subr.mxu0 %v4792
      %5074 = vmatpush1.msra.mxu0 %v4791
      %5075 = vmatprep.subr.mxu0 %v4796
      %5076 = vmatpush1.msra.mxu0 %v4795
      %5077 = vmatprep.subr.mxu0 %v4800
      %5078 = vmatpush1.msra.mxu0 %v4799
      %5079 = vmatprep.subr.mxu0 %v4804
      %5080 = vmatpush1.msra.mxu0 %v4803
      %5081 = vmatprep.subr.mxu0 %v4808
      %5082 = vmatpush1.msra.mxu0 %v4807
      %5083 = vmatprep.subr.mxu0 %v4812
      %5084 = vmatpush1.msra.mxu0 %v4811
      %5085 = vmatprep.subr.mxu0 %v4816
      %5086 = vmatpush1.msra.mxu0 %v4815
      %5087 = vmatprep.subr.mxu0 %v4820
      %5088 = vmatpush1.msra.mxu0 %v4819
      %5089 = vmatprep.subr.mxu0 %v4824
      %5090 = vmatpush1.msra.mxu0 %v4823
      %5091 = vmatprep.subr.mxu0 %v4828
      %5092 = vmatpush1.msra.mxu0 %v4827
      %5093 = vmatprep.subr.mxu0 %v4832
      %5094 = vmatpush1.msra.mxu0 %v4831
      %5095 = vmatprep.subr.mxu0 %v4836
      %5096 = vmatpush1.msra.mxu0 %v4835
      %5097 = vmatprep.subr.mxu0 %v4840
      %5098 = vmatpush1.msra.mxu0 %v4839
      %5099 = vmatprep.subr.mxu0 %v4844
      %5100 = vmatpush1.msra.mxu0 %v4843
      %5101 = vmatprep.subr.mxu0 %v4848
      %5102 = vmatpush1.msra.mxu0 %v4847
      %5103 = vmatprep.subr.mxu0 %v4852
      %5104 = vmatpush1.msra.mxu0 %v4851
      %5105 = vmatprep.subr.mxu0 %v4856
      %5106 = vmatpush1.msra.mxu0 %v4855
      %5107 = vmatprep.subr.mxu0 %v4860
      %5108 = vmatpush1.msra.mxu0 %v4859
      %5109 = vmatprep.subr.mxu0 %v4864
      %5110 = vmatpush1.msra.mxu0 %v4863
      %5111 = vmatprep.subr.mxu0 %v4868
      %5112 = vmatpush1.msra.mxu0 %v4867
      %5113 = vmatprep.subr.mxu0 %v4872
      %5114 = vmatpush1.msra.mxu0 %v4871
      %5115 = vmatprep.subr.mxu0 %v4876
      %5116 = vmatpush1.msra.mxu0 %v4875
      %5117 = vmatprep.subr.mxu0 %v4880
      %5118 = vmatpush1.msra.mxu0 %v4879
      %5119 = vmatprep.subr.mxu0 %v4884
      %5120 = vmatpush1.msra.mxu0 %v4883
      %5121 = vmatprep.subr.mxu0 %v4888
      %5122 = vmatpush1.msra.mxu0 %v4887
      %5123 = vmatprep.subr.mxu0 %v4892
      %5124 = vmatpush1.msra.mxu0 %v4891
      %5125 = vmatprep.subr.mxu0 %v4896
      %5126 = vmatpush1.msra.mxu0 %v4895
      %5127 = vmatprep.subr.mxu0 %v4900
      %5128 = vmatpush1.msra.mxu0 %v4899
      %5129 = vmatprep.mubr.f32.mxu0 %v5040
      %5130 = vmatmul.mubr.f32.gmra.mrb[0].mxu0 %v5039
      %v5131 = vpop.f32.mrb[0].mxu0
      %v5132 = vadd.f32 %v5048, %v5131
      %v5133 = vpop.f32.mrb[0].mxu0
      %v5134 = vadd.f32 %v5052, %v5133
      %5135 = vdwg.mxu0
      %5136 = vmatprep.subr.mxu0 %v4778
      %5137 = vmatpush1.msra.mxu0 %v4777
      %5138 = vmatprep.subr.mxu0 %v4782
      %5139 = vmatpush1.msra.mxu0 %v4781
      %5140 = vmatprep.subr.mxu0 %v4786
      %5141 = vmatpush1.msra.mxu0 %v4785
      %5142 = vmatprep.subr.mxu0 %v4790
      %5143 = vmatpush1.msra.mxu0 %v4789
      %5144 = vmatprep.subr.mxu0 %v4794
      %5145 = vmatpush1.msra.mxu0 %v4793
      %5146 = vmatprep.subr.mxu0 %v4798
      %5147 = vmatpush1.msra.mxu0 %v4797
      %5148 = vmatprep.subr.mxu0 %v4802
      %5149 = vmatpush1.msra.mxu0 %v4801
      %5150 = vmatprep.subr.mxu0 %v4806
      %5151 = vmatpush1.msra.mxu0 %v4805
      %5152 = vmatprep.subr.mxu0 %v4810
      %5153 = vmatpush1.msra.mxu0 %v4809
      %5154 = vmatprep.subr.mxu0 %v4814
      %5155 = vmatpush1.msra.mxu0 %v4813
      %5156 = vmatprep.subr.mxu0 %v4818
      %5157 = vmatpush1.msra.mxu0 %v4817
      %5158 = vmatprep.subr.mxu0 %v4822
      %5159 = vmatpush1.msra.mxu0 %v4821
      %5160 = vmatprep.subr.mxu0 %v4826
      %5161 = vmatpush1.msra.mxu0 %v4825
      %5162 = vmatprep.subr.mxu0 %v4830
      %5163 = vmatpush1.msra.mxu0 %v4829
      %5164 = vmatprep.subr.mxu0 %v4834
      %5165 = vmatpush1.msra.mxu0 %v4833
      %5166 = vmatprep.subr.mxu0 %v4838
      %5167 = vmatpush1.msra.mxu0 %v4837
      %5168 = vmatprep.subr.mxu0 %v4842
      %5169 = vmatpush1.msra.mxu0 %v4841
      %5170 = vmatprep.subr.mxu0 %v4846
      %5171 = vmatpush1.msra.mxu0 %v4845
      %5172 = vmatprep.subr.mxu0 %v4850
      %5173 = vmatpush1.msra.mxu0 %v4849
      %5174 = vmatprep.subr.mxu0 %v4854
      %5175 = vmatpush1.msra.mxu0 %v4853
      %5176 = vmatprep.subr.mxu0 %v4858
      %5177 = vmatpush1.msra.mxu0 %v4857
      %5178 = vmatprep.subr.mxu0 %v4862
      %5179 = vmatpush1.msra.mxu0 %v4861
      %5180 = vmatprep.subr.mxu0 %v4866
      %5181 = vmatpush1.msra.mxu0 %v4865
      %5182 = vmatprep.subr.mxu0 %v4870
      %5183 = vmatpush1.msra.mxu0 %v4869
      %5184 = vmatprep.subr.mxu0 %v4874
      %5185 = vmatpush1.msra.mxu0 %v4873
      %5186 = vmatprep.subr.mxu0 %v4878
      %5187 = vmatpush1.msra.mxu0 %v4877
      %5188 = vmatprep.subr.mxu0 %v4882
      %5189 = vmatpush1.msra.mxu0 %v4881
      %5190 = vmatprep.subr.mxu0 %v4886
      %5191 = vmatpush1.msra.mxu0 %v4885
      %5192 = vmatprep.subr.mxu0 %v4890
      %5193 = vmatpush1.msra.mxu0 %v4889
      %5194 = vmatprep.subr.mxu0 %v4894
      %5195 = vmatpush1.msra.mxu0 %v4893
      %5196 = vmatprep.subr.mxu0 %v4898
      %5197 = vmatpush1.msra.mxu0 %v4897
      %5198 = vmatprep.subr.mxu0 %v4902
      %5199 = vmatpush1.msra.mxu0 %v4901
      %5200 = vmatprep.mubr.f32.mxu0 %v5040
      %5201 = vmatmul.mubr.f32.gmra.mrb[0].mxu0 %v5039
      %v5202 = vpop.f32.mrb[0].mxu0
      %v5203 = vadd.f32 %v5056, %v5202
      %v5204 = vpop.f32.mrb[0].mxu0
      %v5205 = vadd.f32 %v5060, %v5204
      %5206 = vdwg.mxu0
      %v5207 = vxor.u32 %v5132, 2147483648
      %v5208 = vmul.f32 %v5207, 1.442695
      %v5209 = vpow.pop %v5208
      %v5210 = vadd.f32 %v5209, 1.0
      %v5211 = vrcp.pop %v5210
      %v5212 = vmul.f32 1.0, %v5211
      %v5213 = vxor.u32 %v5134, 2147483648
      %v5214 = vmul.f32 %v5213, 1.442695
      %v5215 = vpow.pop %v5214
      %v5216 = vadd.f32 %v5215, 1.0
      %v5217 = vrcp.pop %v5216
      %v5218 = vmul.f32 1.0, %v5217
      %v5219 = vtanh.pop %v5203
      %v5220 = vxor.u32 %v5205, 2147483648
      %v5221 = vmul.f32 %v5220, 1.442695
      %v5222 = vpow.pop %v5221
      %v5223 = vadd.f32 %v5222, 1.0
      %v5224 = vrcp.pop %v5223
      %v5225 = vmul.f32 1.0, %v5224
      %v5226 = vmul.f32 %v5218, %v5041
      %v5227 = vmul.f32 %v5212, %v5219
      %v5228 = vadd.f32 %v5226, %v5227
      %v5229 = vtanh.pop %v5228
      %v5230 = vmul.f32 %v5225, %v5229
      %v5232 = vlaneseq
      %v5233 = vshrl.u32 %v5232, 7
      %v5234 = vsub.s32 0, %v5233
      %v5235 = vrot.slane %v5032, %v5234
      %v5236 = vlaneseq
      %v5237 = vshrl.u32 %v5236, 7
      %v5238 = vsub.s32 1, %v5237
      %v5239 = vrot.slane %v5032, %v5238
      %v5240 = vlaneseq
      %v5241 = vshrl.u32 %v5240, 7
      %v5242 = vsub.s32 2, %v5241
      %v5243 = vrot.slane %v5032, %v5242
      %v5244 = vlaneseq
      %v5245 = vshrl.u32 %v5244, 7
      %v5246 = vsub.s32 3, %v5245
      %v5247 = vrot.slane %v5032, %v5246
      %5252 = vmatprep.subr.mxu0 %v4905
      %5253 = vmatpush1.msra.mxu0 %v4904
      %5254 = vmatprep.subr.mxu0 %v4909
      %5255 = vmatpush1.msra.mxu0 %v4908
      %5256 = vmatprep.subr.mxu0 %v4913
      %5257 = vmatpush1.msra.mxu0 %v4912
      %5258 = vmatprep.subr.mxu0 %v4917
      %5259 = vmatpush1.msra.mxu0 %v4916
      %5260 = vmatprep.subr.mxu0 %v4921
      %5261 = vmatpush1.msra.mxu0 %v4920
      %5262 = vmatprep.subr.mxu0 %v4925
      %5263 = vmatpush1.msra.mxu0 %v4924
      %5264 = vmatprep.subr.mxu0 %v4929
      %5265 = vmatpush1.msra.mxu0 %v4928
      %5266 = vmatprep.subr.mxu0 %v4933
      %5267 = vmatpush1.msra.mxu0 %v4932
      %5268 = vmatprep.subr.mxu0 %v4937
      %5269 = vmatpush1.msra.mxu0 %v4936
      %5270 = vmatprep.subr.mxu0 %v4941
      %5271 = vmatpush1.msra.mxu0 %v4940
      %5272 = vmatprep.subr.mxu0 %v4945
      %5273 = vmatpush1.msra.mxu0 %v4944
      %5274 = vmatprep.subr.mxu0 %v4949
      %5275 = vmatpush1.msra.mxu0 %v4948
      %5276 = vmatprep.subr.mxu0 %v4953
      %5277 = vmatpush1.msra.mxu0 %v4952
      %5278 = vmatprep.subr.mxu0 %v4957
      %5279 = vmatpush1.msra.mxu0 %v4956
      %5280 = vmatprep.subr.mxu0 %v4961
      %5281 = vmatpush1.msra.mxu0 %v4960
      %5282 = vmatprep.subr.mxu0 %v4965
      %5283 = vmatpush1.msra.mxu0 %v4964
      %5284 = vmatprep.subr.mxu0 %v4969
      %5285 = vmatpush1.msra.mxu0 %v4968
      %5286 = vmatprep.subr.mxu0 %v4973
      %5287 = vmatpush1.msra.mxu0 %v4972
      %5288 = vmatprep.subr.mxu0 %v4977
      %5289 = vmatpush1.msra.mxu0 %v4976
      %5290 = vmatprep.subr.mxu0 %v4981
      %5291 = vmatpush1.msra.mxu0 %v4980
      %5292 = vmatprep.subr.mxu0 %v4985
      %5293 = vmatpush1.msra.mxu0 %v4984
      %5294 = vmatprep.subr.mxu0 %v4989
      %5295 = vmatpush1.msra.mxu0 %v4988
      %5296 = vmatprep.subr.mxu0 %v4993
      %5297 = vmatpush1.msra.mxu0 %v4992
      %5298 = vmatprep.subr.mxu0 %v4997
      %5299 = vmatpush1.msra.mxu0 %v4996
      %5300 = vmatprep.subr.mxu0 %v5001
      %5301 = vmatpush1.msra.mxu0 %v5000
      %5302 = vmatprep.subr.mxu0 %v5005
      %5303 = vmatpush1.msra.mxu0 %v5004
      %5304 = vmatprep.subr.mxu0 %v5009
      %5305 = vmatpush1.msra.mxu0 %v5008
      %5306 = vmatprep.subr.mxu0 %v5013
      %5307 = vmatpush1.msra.mxu0 %v5012
      %5308 = vmatprep.subr.mxu0 %v5017
      %5309 = vmatpush1.msra.mxu0 %v5016
      %5310 = vmatprep.subr.mxu0 %v5021
      %5311 = vmatpush1.msra.mxu0 %v5020
      %5312 = vmatprep.subr.mxu0 %v5025
      %5313 = vmatpush1.msra.mxu0 %v5024
      %5314 = vmatprep.subr.mxu0 %v5029
      %5315 = vmatpush1.msra.mxu0 %v5028
      %5316 = vmatprep.mubr.f32.mxu0 %v5042
      %5317 = vmatmul.mubr.f32.gmra.mrb[0].mxu0 %v5230
      %v5318 = vpop.f32.mrb[0].mxu0
      %v5319 = vadd.f32 %v5235, %v5318
      %v5320 = vpop.f32.mrb[0].mxu0
      %v5321 = vadd.f32 %v5239, %v5320
      %5322 = vdwg.mxu0
      %5323 = vmatprep.subr.mxu0 %v4907
      %5324 = vmatpush1.msra.mxu0 %v4906
      %5325 = vmatprep.subr.mxu0 %v4911
      %5326 = vmatpush1.msra.mxu0 %v4910
      %5327 = vmatprep.subr.mxu0 %v4915
      %5328 = vmatpush1.msra.mxu0 %v4914
      %5329 = vmatprep.subr.mxu0 %v4919
      %5330 = vmatpush1.msra.mxu0 %v4918
      %5331 = vmatprep.subr.mxu0 %v4923
      %5332 = vmatpush1.msra.mxu0 %v4922
      %5333 = vmatprep.subr.mxu0 %v4927
      %5334 = vmatpush1.msra.mxu0 %v4926
      %5335 = vmatprep.subr.mxu0 %v4931
      %5336 = vmatpush1.msra.mxu0 %v4930
      %5337 = vmatprep.subr.mxu0 %v4935
      %5338 = vmatpush1.msra.mxu0 %v4934
      %5339 = vmatprep.subr.mxu0 %v4939
      %5340 = vmatpush1.msra.mxu0 %v4938
      %5341 = vmatprep.subr.mxu0 %v4943
      %5342 = vmatpush1.msra.mxu0 %v4942
      %5343 = vmatprep.subr.mxu0 %v4947
      %5344 = vmatpush1.msra.mxu0 %v4946
      %5345 = vmatprep.subr.mxu0 %v4951
      %5346 = vmatpush1.msra.mxu0 %v4950
      %5347 = vmatprep.subr.mxu0 %v4955
      %5348 = vmatpush1.msra.mxu0 %v4954
      %5349 = vmatprep.subr.mxu0 %v4959
      %5350 = vmatpush1.msra.mxu0 %v4958
      %5351 = vmatprep.subr.mxu0 %v4963
      %5352 = vmatpush1.msra.mxu0 %v4962
      %5353 = vmatprep.subr.mxu0 %v4967
      %5354 = vmatpush1.msra.mxu0 %v4966
      %5355 = vmatprep.subr.mxu0 %v4971
      %5356 = vmatpush1.msra.mxu0 %v4970
      %5357 = vmatprep.subr.mxu0 %v4975
      %5358 = vmatpush1.msra.mxu0 %v4974
      %5359 = vmatprep.subr.mxu0 %v4979
      %5360 = vmatpush1.msra.mxu0 %v4978
      %5361 = vmatprep.subr.mxu0 %v4983
      %5362 = vmatpush1.msra.mxu0 %v4982
      %5363 = vmatprep.subr.mxu0 %v4987
      %5364 = vmatpush1.msra.mxu0 %v4986
      %5365 = vmatprep.subr.mxu0 %v4991
      %5366 = vmatpush1.msra.mxu0 %v4990
      %5367 = vmatprep.subr.mxu0 %v4995
      %5368 = vmatpush1.msra.mxu0 %v4994
      %5369 = vmatprep.subr.mxu0 %v4999
      %5370 = vmatpush1.msra.mxu0 %v4998
      %5371 = vmatprep.subr.mxu0 %v5003
      %5372 = vmatpush1.msra.mxu0 %v5002
      %5373 = vmatprep.subr.mxu0 %v5007
      %5374 = vmatpush1.msra.mxu0 %v5006
      %5375 = vmatprep.subr.mxu0 %v5011
      %5376 = vmatpush1.msra.mxu0 %v5010
      %5377 = vmatprep.subr.mxu0 %v5015
      %5378 = vmatpush1.msra.mxu0 %v5014
      %5379 = vmatprep.subr.mxu0 %v5019
      %5380 = vmatpush1.msra.mxu0 %v5018
      %5381 = vmatprep.subr.mxu0 %v5023
      %5382 = vmatpush1.msra.mxu0 %v5022
      %5383 = vmatprep.subr.mxu0 %v5027
      %5384 = vmatpush1.msra.mxu0 %v5026
      %5385 = vmatprep.subr.mxu0 %v5031
      %5386 = vmatpush1.msra.mxu0 %v5030
      %5387 = vmatprep.mubr.f32.mxu0 %v5042
      %5388 = vmatmul.mubr.f32.gmra.mrb[0].mxu0 %v5230
      %v5389 = vpop.f32.mrb[0].mxu0
      %v5390 = vadd.f32 %v5243, %v5389
      %v5391 = vpop.f32.mrb[0].mxu0
      %v5392 = vadd.f32 %v5247, %v5391
      %5393 = vdwg.mxu0
      %v5394 = vxor.u32 %v5319, 2147483648
      %v5395 = vmul.f32 %v5394, 1.442695
      %v5396 = vpow.pop %v5395
      %v5397 = vadd.f32 %v5396, 1.0
      %v5398 = vrcp.pop %v5397
      %v5399 = vmul.f32 1.0, %v5398
      %v5400 = vxor.u32 %v5321, 2147483648
      %v5401 = vmul.f32 %v5400, 1.442695
      %v5402 = vpow.pop %v5401
      %v5403 = vadd.f32 %v5402, 1.0
      %v5404 = vrcp.pop %v5403
      %v5405 = vmul.f32 1.0, %v5404
      %v5406 = vtanh.pop %v5390
      %v5407 = vxor.u32 %v5392, 2147483648
      %v5408 = vmul.f32 %v5407, 1.442695
      %v5409 = vpow.pop %v5408
      %v5410 = vadd.f32 %v5409, 1.0
      %v5411 = vrcp.pop %v5410
      %v5412 = vmul.f32 1.0, %v5411
      %v5413 = vmul.f32 %v5405, %v5043
      %v5414 = vmul.f32 %v5399, %v5406
      %v5415 = vadd.f32 %v5413, %v5414
      %v5416 = vtanh.pop %v5415
      %v5417 = vmul.f32 %v5412, %v5416
      %s5418 = ssub.s32 7, %s5034
      %s5419 = smul.u32 %s5418, 8
      %s5420 = scalar_lea.vmem [#allocation6], %s5419
      %5421 = vst [vmem:[%s5420] sm:$0xff] %v5417
    $region254: #{summarizer_forward.1} parent=1 // loop_footer
      %s5038 = sadd.s32 1, %s5034
    $region255: #{summarizer_forward.1} parent=1 // loop_footer_branch
      %5033 = sbr.rel target = $region251
    $region256: #{summarizer_forward.1} parent=1 // loop_exit
      _
    %v5422 = vld [vmem:[#allocation6] sm:$0xff]
    %v5423 = vld [vmem:[#allocation6 + $0x8] sm:$0xff]
    %v5424 = vld [vmem:[#allocation6 + $0x10] sm:$0xff]
    %v5425 = vld [vmem:[#allocation6 + $0x18] sm:$0xff]
    %v5426 = vld [vmem:[#allocation6 + $0x20] sm:$0xff]
    %v5427 = vld [vmem:[#allocation6 + $0x28] sm:$0xff]
    %v5428 = vld [vmem:[#allocation6 + $0x30] sm:$0xff]
    %v5429 = vld [vmem:[#allocation6 + $0x38] sm:$0xff]
    %v5430 = vld [vmem:[#allocation41] sm:$0xff]
    %v5431 = vld [vmem:[#allocation41 + $0x8] sm:$0xff]
    %v5432 = vld [vmem:[#allocation41 + $0x10] sm:$0xff]
    %v5433 = vld [vmem:[#allocation41 + $0x18] sm:$0xff]
    %v5434 = vld [vmem:[#allocation41 + $0x20] sm:$0xff]
    %v5435 = vld [vmem:[#allocation41 + $0x28] sm:$0xff]
    %v5436 = vld [vmem:[#allocation41 + $0x30] sm:$0xff]
    %v5437 = vld [vmem:[#allocation41 + $0x38] sm:$0xff]
    %v5438 = vld [vmem:[#allocation41 + $0x40] sm:$0xff]
    %v5439 = vld [vmem:[#allocation41 + $0x48] sm:$0xff]
    %v5440 = vld [vmem:[#allocation41 + $0x50] sm:$0xff]
    %v5441 = vld [vmem:[#allocation41 + $0x58] sm:$0xff]
    %v5442 = vld [vmem:[#allocation41 + $0x60] sm:$0xff]
    %v5443 = vld [vmem:[#allocation41 + $0x68] sm:$0xff]
    %v5444 = vld [vmem:[#allocation41 + $0x70] sm:$0xff]
    %v5445 = vld [vmem:[#allocation41 + $0x78] sm:$0xff]
    %v5446 = vld [vmem:[#allocation41 + $0x80] sm:$0xff]
    %v5447 = vld [vmem:[#allocation41 + $0x88] sm:$0xff]
    %v5448 = vld [vmem:[#allocation41 + $0x90] sm:$0xff]
    %v5449 = vld [vmem:[#allocation41 + $0x98] sm:$0xff]
    %v5450 = vld [vmem:[#allocation41 + $0xa0] sm:$0xff]
    %v5451 = vld [vmem:[#allocation41 + $0xa8] sm:$0xff]
    %v5452 = vld [vmem:[#allocation41 + $0xb0] sm:$0xff]
    %v5453 = vld [vmem:[#allocation41 + $0xb8] sm:$0xff]
    %v5454 = vld [vmem:[#allocation41 + $0xc0] sm:$0xff]
    %v5455 = vld [vmem:[#allocation41 + $0xc8] sm:$0xff]
    %v5456 = vld [vmem:[#allocation41 + $0xd0] sm:$0xff]
    %v5457 = vld [vmem:[#allocation41 + $0xd8] sm:$0xff]
    %v5458 = vld [vmem:[#allocation41 + $0xe0] sm:$0xff]
    %v5459 = vld [vmem:[#allocation41 + $0xe8] sm:$0xff]
    %v5460 = vld [vmem:[#allocation41 + $0xf0] sm:$0xff]
    %v5461 = vld [vmem:[#allocation41 + $0xf8] sm:$0xff]
    %v5462 = vld [vmem:[#allocation43] sm:$0x3]
    %v5464 = vlaneseq
    %v5465 = vshrl.u32 %v5464, 7
    %v5466 = vsub.s32 0, %v5465
    %v5467 = vrot.slane %v5462, %v5466
    %v5468 = vlaneseq
    %v5469 = vshrl.u32 %v5468, 7
    %v5470 = vsub.s32 1, %v5469
    %v5471 = vrot.slane %v5462, %v5470
    %5474 = vmatprep.subr.mxu0 %v5431
    %5475 = vmatpush1.msra.mxu0 %v5430
    %5476 = vmatprep.subr.mxu0 %v5433
    %5477 = vmatpush1.msra.mxu0 %v5432
    %5478 = vmatprep.subr.mxu0 %v5435
    %5479 = vmatpush1.msra.mxu0 %v5434
    %5480 = vmatprep.subr.mxu0 %v5437
    %5481 = vmatpush1.msra.mxu0 %v5436
    %5482 = vmatprep.subr.mxu0 %v5439
    %5483 = vmatpush1.msra.mxu0 %v5438
    %5484 = vmatprep.subr.mxu0 %v5441
    %5485 = vmatpush1.msra.mxu0 %v5440
    %5486 = vmatprep.subr.mxu0 %v5443
    %5487 = vmatpush1.msra.mxu0 %v5442
    %5488 = vmatprep.subr.mxu0 %v5445
    %5489 = vmatpush1.msra.mxu0 %v5444
    %5490 = vmatprep.subr.mxu0 %v5447
    %5491 = vmatpush1.msra.mxu0 %v5446
    %5492 = vmatprep.subr.mxu0 %v5449
    %5493 = vmatpush1.msra.mxu0 %v5448
    %5494 = vmatprep.subr.mxu0 %v5451
    %5495 = vmatpush1.msra.mxu0 %v5450
    %5496 = vmatprep.subr.mxu0 %v5453
    %5497 = vmatpush1.msra.mxu0 %v5452
    %5498 = vmatprep.subr.mxu0 %v5455
    %5499 = vmatpush1.msra.mxu0 %v5454
    %5500 = vmatprep.subr.mxu0 %v5457
    %5501 = vmatpush1.msra.mxu0 %v5456
    %5502 = vmatprep.subr.mxu0 %v5459
    %5503 = vmatpush1.msra.mxu0 %v5458
    %5504 = vmatprep.subr.mxu0 %v5461
    %5505 = vmatpush1.msra.mxu0 %v5460
    %5506 = vmatprep.subr.mxu0 0.0
    %5507 = vmatpush1.msra.mxu0 0.0
    %5508 = vmatprep.subr.mxu0 0.0
    %5509 = vmatpush1.msra.mxu0 0.0
    %5510 = vmatprep.subr.mxu0 0.0
    %5511 = vmatpush1.msra.mxu0 0.0
    %5512 = vmatprep.subr.mxu0 0.0
    %5513 = vmatpush1.msra.mxu0 0.0
    %5514 = vmatprep.subr.mxu0 0.0
    %5515 = vmatpush1.msra.mxu0 0.0
    %5516 = vmatprep.subr.mxu0 0.0
    %5517 = vmatpush1.msra.mxu0 0.0
    %5518 = vmatprep.subr.mxu0 0.0
    %5519 = vmatpush1.msra.mxu0 0.0
    %5520 = vmatprep.subr.mxu0 0.0
    %5521 = vmatpush1.msra.mxu0 0.0
    %5522 = vmatprep.subr.mxu0 0.0
    %5523 = vmatpush1.msra.mxu0 0.0
    %5524 = vmatprep.subr.mxu0 0.0
    %5525 = vmatpush1.msra.mxu0 0.0
    %5526 = vmatprep.subr.mxu0 0.0
    %5527 = vmatpush1.msra.mxu0 0.0
    %5528 = vmatprep.subr.mxu0 0.0
    %5529 = vmatpush1.msra.mxu0 0.0
    %5530 = vmatprep.subr.mxu0 0.0
    %5531 = vmatpush1.msra.mxu0 0.0
    %5532 = vmatprep.subr.mxu0 0.0
    %5533 = vmatpush1.msra.mxu0 0.0
    %5534 = vmatprep.subr.mxu0 0.0
    %5535 = vmatpush1.msra.mxu0 0.0
    %5536 = vmatprep.subr.mxu0 0.0
    %5537 = vmatpush1.msra.mxu0 0.0
    %5538 = vmatprep.mubr.f32.mxu0 0.0
    %5539 = vmatmul.mubr.f32.gmra.mrb[0].mxu0 %v5422
    %v5540 = vpop.f32.mrb[0].mxu0
    %v5541 = vadd.f32 %v5467, %v5540
    %v5542 = vpop.f32.mrb[0].mxu0
    %v5543 = vadd.f32 %v5471, %v5542
    %5544 = vmatprep.mubr.f32.mxu0 0.0
    %5545 = vmatmul.mubr.f32.gmra.mrb[0].mxu0 %v5423
    %v5546 = vpop.f32.mrb[0].mxu0
    %v5547 = vadd.f32 %v5467, %v5546
    %v5548 = vpop.f32.mrb[0].mxu0
    %v5549 = vadd.f32 %v5471, %v5548
    %5550 = vmatprep.mubr.f32.mxu0 0.0
    %5551 = vmatmul.mubr.f32.gmra.mrb[0].mxu0 %v5424
    %v5552 = vpop.f32.mrb[0].mxu0
    %v5553 = vadd.f32 %v5467, %v5552
    %v5554 = vpop.f32.mrb[0].mxu0
    %v5555 = vadd.f32 %v5471, %v5554
    %5556 = vmatprep.mubr.f32.mxu0 0.0
    %5557 = vmatmul.mubr.f32.gmra.mrb[0].mxu0 %v5425
    %v5558 = vpop.f32.mrb[0].mxu0
    %v5559 = vadd.f32 %v5467, %v5558
    %v5560 = vpop.f32.mrb[0].mxu0
    %v5561 = vadd.f32 %v5471, %v5560
    %5562 = vmatprep.mubr.f32.mxu0 0.0
    %5563 = vmatmul.mubr.f32.gmra.mrb[0].mxu0 %v5426
    %v5564 = vpop.f32.mrb[0].mxu0
    %v5565 = vadd.f32 %v5467, %v5564
    %v5566 = vpop.f32.mrb[0].mxu0
    %v5567 = vadd.f32 %v5471, %v5566
    %5568 = vmatprep.mubr.f32.mxu0 0.0
    %5569 = vmatmul.mubr.f32.gmra.mrb[0].mxu0 %v5427
    %v5570 = vpop.f32.mrb[0].mxu0
    %v5571 = vadd.f32 %v5467, %v5570
    %v5572 = vpop.f32.mrb[0].mxu0
    %v5573 = vadd.f32 %v5471, %v5572
    %5574 = vmatprep.mubr.f32.mxu0 0.0
    %5575 = vmatmul.mubr.f32.gmra.mrb[0].mxu0 %v5428
    %v5576 = vpop.f32.mrb[0].mxu0
    %v5577 = vadd.f32 %v5467, %v5576
    %v5578 = vpop.f32.mrb[0].mxu0
    %v5579 = vadd.f32 %v5471, %v5578
    %5580 = vmatprep.mubr.f32.mxu0 0.0
    %5581 = vmatmul.mubr.f32.gmra.mrb[0].mxu0 %v5429
    %v5582 = vpop.f32.mrb[0].mxu0
    %v5583 = vadd.f32 %v5467, %v5582
    %v5584 = vpop.f32.mrb[0].mxu0
    %v5585 = vadd.f32 %v5471, %v5584
    %5586 = vdwg.mxu0
    %5587 = vst [vmem:[#allocation44] sm:$0xff] %v5541
    %5588 = vst [vmem:[#allocation44 + $0x8] sm:$0xff] %v5543
    %5589 = vst [vmem:[#allocation44 + $0x10] sm:$0xff] %v5547
    %5590 = vst [vmem:[#allocation44 + $0x18] sm:$0xff] %v5549
    %5591 = vst [vmem:[#allocation44 + $0x20] sm:$0xff] %v5553
    %5592 = vst [vmem:[#allocation44 + $0x28] sm:$0xff] %v5555
    %5593 = vst [vmem:[#allocation44 + $0x30] sm:$0xff] %v5559
    %5594 = vst [vmem:[#allocation44 + $0x38] sm:$0xff] %v5561
    %5595 = vst [vmem:[#allocation44 + $0x40] sm:$0xff] %v5565
    %5596 = vst [vmem:[#allocation44 + $0x48] sm:$0xff] %v5567
    %5597 = vst [vmem:[#allocation44 + $0x50] sm:$0xff] %v5571
    %5598 = vst [vmem:[#allocation44 + $0x58] sm:$0xff] %v5573
    %5599 = vst [vmem:[#allocation44 + $0x60] sm:$0xff] %v5577
    %5600 = vst [vmem:[#allocation44 + $0x68] sm:$0xff] %v5579
    %5601 = vst [vmem:[#allocation44 + $0x70] sm:$0xff] %v5583
    %5602 = vst [vmem:[#allocation44 + $0x78] sm:$0xff] %v5585
    // Predicated region
    $region257: #{summarizer_forward.1} parent=1 // pred_check
      _
    $region258: #{summarizer_forward.1} parent=1 // pred_check_branch
      %5604 = sbr.rel (0) target = $region260
    $region259: #{summarizer_forward.1} parent=1 // pred_region
      %s5606 = ssub.s32 2048, 2048
      %5607 = vsyncadd [#allocation10], %s5606
      %s5608 = sshll.u32 [#allocation44], 4
      %s5609 = int_to_ptr.vmem [resolvable:$true] %s5608
      %5614 = dma.vmem_to_hbm [thread:$0]  %s5609, 2048, %s65, [#allocation10], 256, 256, 16
    $region260: #{summarizer_forward.1} parent=1 // pred_fallthru
      _
    // Predicated region
    $region261: #{summarizer_forward.1} parent=1 // pred_check
      _
    $region262: #{summarizer_forward.1} parent=1 // pred_check_branch
      %5616 = sbr.rel (0) target = $region264
    $region263: #{summarizer_forward.1} parent=1 // pred_region
      %s5618 = ssub.s32 256, 256
      %5619 = vsyncadd [#allocation46], %s5618
      %s5620 = sshll.u32 [#allocation45], 4
      %s5621 = int_to_ptr.vmem [resolvable:$true] %s5620
      %5626 = dma.vmem_to_hbm [thread:$0]  %s5621, 256, %s67, [#allocation46], 128, 128, 8
    $region264: #{summarizer_forward.1} parent=1 // pred_fallthru
      _
    // Predicated region
    $region265: #{summarizer_forward.1} parent=1 // pred_check
      _
    $region266: #{summarizer_forward.1} parent=1 // pred_check_branch
      %5628 = sbr.rel (0) target = $region268
    $region267: #{summarizer_forward.1} parent=1 // pred_region
      %s5630 = ssub.s32 256, 256
      %5631 = vsyncadd [#allocation46], %s5630
      %s5632 = sshll.u32 [#allocation47], 4
      %s5633 = int_to_ptr.vmem [resolvable:$true] %s5632
      %5638 = dma.vmem_to_hbm [thread:$0]  %s5633, 256, %s69, [#allocation46], 128, 128, 8
    $region268: #{summarizer_forward.1} parent=1 // pred_fallthru
      _
    // Predicated region
    $region269: #{summarizer_forward.1} parent=1 // pred_check
      _
    $region270: #{summarizer_forward.1} parent=1 // pred_check_branch
      %5640 = sbr.rel (0) target = $region272
    $region271: #{summarizer_forward.1} parent=1 // pred_region
      _
    $region272: #{summarizer_forward.1} parent=1 // pred_fallthru
      _
    // Predicated region
    $region273: #{summarizer_forward.1} parent=1 // pred_check
      _
    $region274: #{summarizer_forward.1} parent=1 // pred_check_branch
      %5642 = sbr.rel (0) target = $region276
    $region275: #{summarizer_forward.1} parent=1 // pred_region
      %5643 = dma.done [#allocation10], 2048
    $region276: #{summarizer_forward.1} parent=1 // pred_fallthru
      _
    // Predicated region
    $region277: #{summarizer_forward.1} parent=1 // pred_check
      _
    $region278: #{summarizer_forward.1} parent=1 // pred_check_branch
      %5645 = sbr.rel (0) target = $region280
    $region279: #{summarizer_forward.1} parent=1 // pred_region
      %5646 = dma.done [#allocation46], 256
    $region280: #{summarizer_forward.1} parent=1 // pred_fallthru
      _
    // Predicated region
    $region281: #{summarizer_forward.1} parent=1 // pred_check
      _
    $region282: #{summarizer_forward.1} parent=1 // pred_check_branch
      %5648 = sbr.rel (0) target = $region284
    $region283: #{summarizer_forward.1} parent=1 // pred_region
      %5649 = dma.done [#allocation46], 256
    $region284: #{summarizer_forward.1} parent=1 // pred_fallthru
      _
    // Predicated region
    $region285: #{summarizer_forward.1} parent=1 // pred_check
      _
    $region286: #{summarizer_forward.1} parent=1 // pred_check_branch
      %5651 = sbr.rel (0) target = $region288
    $region287: #{summarizer_forward.1} parent=1 // pred_region
      _
    $region288: #{summarizer_forward.1} parent=1 // pred_fallthru
      _
    %5652 = vsyncpa [#allocation9], 1
    %5653 = vsyncpa [#allocation12], 1
    %5654 = vsyncpa [#allocation15], 1
    %5655 = vsyncpa [#allocation18], 1
    %5656 = vsyncpa [#allocation21], 1
    %5657 = vsyncpa [#allocation24], 1
    %5658 = vsyncpa [#allocation27], 1
    %5659 = vsyncpa [#allocation30], 1
    %5660 = vsyncpa [#allocation33], 1
    %5661 = vsyncpa [#allocation36], 1
    %5662 = vsyncpa [#allocation39], 1
    %5663 = vsyncpa [#allocation42], 1
    %5664 = vsyncpa [#allocation10], 1
    %5665 = vsyncpa [#allocation46], 1

</llo_original>
